<compile_context>
chip_gen: v5e
topology: v5e:2x2
jax: 0.10.0
libtpu: 0.0.40
codegen_flags: <defaults>
</compile_context>

<pallas_src>
import numpy as np
import jax
import jax.numpy as jnp
from jax import lax
from jax.experimental import pallas as pl
from jax.experimental.pallas import tpu as pltpu

C_PAD = 128   # conv channel dim padded 64 -> 128: lane-dense activations, aligned stores


# =====================================================================================
# Single fused kernel:  tmp1 = prj(x)  ;  out = relu(tmp1 + ConvBlock(x, gamma1, beta1))
# =====================================================================================
def _fused_iterblock_kernel(
        # --- prj (data consistency) operands ---
        x_ref, proj_ref, gmat_ref, a_ref, feat_ref, w7_ref, bconst_ref,
        g0_ref, bt0_ref, wf_ref,
        # --- conv operands (host-side im2col for conv1, channel-padded weights) ---
        patch1_ref, w1_ref, b1_ref, w2_ref, b2_ref, w3_ref, b3_ref,
        g1_ref, bt1_ref, g2_ref, bt2_ref, g3_ref, bt3_ref,
        # --- output + scratch ---
        out_ref, pad_scr, patch_scr):
    B, HW = x_ref.shape
    Hp, Wp, C = pad_scr.shape[1], pad_scr.shape[2], pad_scr.shape[3]
    H, W = Hp - 2, Wp - 2

    # ------------------------- prj_module / prj_fun -------------------------
    # intervening_res = A^T (A x - proj)  ==  x @ G - proj @ A   with G = A^T A
    X = x_ref[...]                                                           # [B, HW]
    IR = (jnp.dot(X, gmat_ref[...], preferred_element_type=jnp.float32)
          - jnp.dot(proj_ref[...], a_ref[...], preferred_element_type=jnp.float32))

    # clamped weight: computed on the VPU (no degenerate MXU matmul)
    weight = wf_ref[...] * g0_ref[...] + bt0_ref[...]                        # [B, 1]
    maxval = (jnp.sum(feat_ref[...] * w7_ref[...], axis=1, keepdims=True)
              + bconst_ref[...])                                             # [B, 1]
    cw = jnp.maximum(jnp.where(weight <= maxval, weight, maxval), 0.01)      # [B, 1]
    tmp1 = X - cw * IR                                                       # [B, HW]

    taps = [(ky, kx) for ky in range(3) for kx in range(3)]

    # ------------------------- conv1 (im2col done on host, K = 9) -------------------------
    h = (jnp.dot(patch1_ref[...], w1_ref[...], preferred_element_type=jnp.float32)
         + b1_ref[...])                                                      # [B*HW, C]
    pad_scr[...] = jnp.zeros_like(pad_scr)       # zeroed once; border stays 0 afterwards
    for b in range(B):                           # FiLM1 + relu, write padded activation
        blk = h[b * HW:(b + 1) * HW, :]
        blk = jnp.maximum(blk * g1_ref[b:b + 1, :] + bt1_ref[b:b + 1, :], 0.0)
        pad_scr[b, 1:H + 1, 1:W + 1, :] = blk.reshape(H, W, C)

    # ------------------------- conv2: one K = 9*C MXU matmul -------------------------
    for t, (ky, kx) in enumerate(taps):          # build [B*HW, 9*C] patch (aligned stores)
        patch_scr[:, t * C:(t + 1) * C] = \
            pad_scr[:, ky:ky + H, kx:kx + W, :].reshape(B * HW, C)
    h = (jnp.dot(patch_scr[...], w2_ref[...], preferred_element_type=jnp.float32)
         + b2_ref[...])                                                      # [B*HW, C]
    for b in range(B):                           # FiLM2 + relu
        blk = h[b * HW:(b + 1) * HW, :]
        blk = jnp.maximum(blk * g2_ref[b:b + 1, :] + bt2_ref[b:b + 1, :], 0.0)
        pad_scr[b, 1:H + 1, 1:W + 1, :] = blk.reshape(H, W, C)

    # ------------------------- conv3: transposed matmul -> lane-dense [1, B*HW] ----------
    for t, (ky, kx) in enumerate(taps):
        patch_scr[:, t * C:(t + 1) * C] = \
            pad_scr[:, ky:ky + H, kx:kx + W, :].reshape(B * HW, C)
    h3 = lax.dot_general(w3_ref[...], patch_scr[...],
                         dimension_numbers=(((1,), (1,)), ((), ())),
                         preferred_element_type=jnp.float32) + b3_ref[...]   # [1, B*HW]

    # ------------------------- IterBlock tail: relu(tmp1 + FiLM3(conv3)) -----------------
    for b in range(B):
        seg = h3[:, b * HW:(b + 1) * HW] * g3_ref[b:b + 1, :] + bt3_ref[b:b + 1, :]
        out_ref[b:b + 1, :] = jnp.maximum(seg + tmp1[b:b + 1, :], 0.0)


# =====================================================================================
# Wrapper: host-side layout plumbing (flattening, channel padding, conv1 im2col) + call
# =====================================================================================
def iter_block(input_data, proj, gamma_vec, beta_vec, feature_vec, params):
    f32 = jnp.float32
    B, _, H, W = input_data.shape
    HW = H * W
    Hp, Wp = H + 2, W + 2
    C = C_PAD

    x_flat = input_data.reshape(B, HW).astype(f32)
    proj_flat = proj.reshape(B, -1).astype(f32)
    P = proj_flat.shape[1]
    F = feature_vec.shape[1]

    A = params["A"]
    G = jnp.dot(A.T, A)                                    # [HW, HW]; precomputable once

    # conv1 im2col on host (pure layout plumbing on a kernel input, no arithmetic)
    xpad = jnp.pad(input_data[:, 0], ((0, 0), (1, 1), (1, 1)))
    patch1 = jnp.concatenate(
        [xpad[:, ky:ky + H, kx:kx + W].reshape(B * HW, 1)
         for ky in range(3) for kx in range(3)], axis=1)   # [B*HW, 9]

    # zero-pad conv channels 64 -> C so every in-kernel tensor is lane-dense / aligned
    w1m = jnp.pad(params["w1"].reshape(9, 64), ((0, 0), (0, C - 64)))         # [9, C]
    b1p = jnp.pad(params["b1"], ((0, 0), (0, C - 64)))                        # [1, C]
    w2m = (jnp.zeros((3, 3, C, C), f32)
           .at[:, :, :64, :64].set(params["w2"]).reshape(9 * C, C))           # [9C, C]
    b2p = jnp.pad(params["b2"], ((0, 0), (0, C - 64)))                        # [1, C]
    w3r = (jnp.zeros((3, 3, C, 1), f32)
           .at[:, :, :64, :].set(params["w3"]).reshape(1, 9 * C))             # [1, 9C]
    w7r = params["w7"].T                                                      # [1, F]

    # FiLM parameters, pre-split / padded on host (lane-aligned, no 129-lane slicing)
    g0, bt0 = gamma_vec[:, 0:1], beta_vec[:, 0:1]
    g1 = jnp.pad(gamma_vec[:, 1:65], ((0, 0), (0, C - 64)))
    bt1 = jnp.pad(beta_vec[:, 1:65], ((0, 0), (0, C - 64)))
    g2 = jnp.pad(gamma_vec[:, 65:129], ((0, 0), (0, C - 64)))
    bt2 = jnp.pad(beta_vec[:, 65:129], ((0, 0), (0, C - 64)))
    g3, bt3 = gamma_vec[:, 129:130], beta_vec[:, 129:130]

    def full(shape):
        return pl.BlockSpec(shape, lambda i, _n=len(shape): (0,) * _n)

    out_flat = pl.pallas_call(
        _fused_iterblock_kernel,
        out_shape=jax.ShapeDtypeStruct((B, HW), f32),      # lane-dense output
        grid=(1,),
        in_specs=[
            full((B, HW)), full((B, P)), full((HW, HW)), full((P, HW)),
            full((B, F)), full((1, F)), full((1, 1)),
            full((B, 1)), full((B, 1)), full((1, 1)),
            full((B * HW, 9)), full((9, C)), full((1, C)),
            full((9 * C, C)), full((1, C)), full((1, 9 * C)), full((1, 1)),
            full((B, C)), full((B, C)), full((B, C)), full((B, C)),
            full((B, 1)), full((B, 1)),
        ],
        out_specs=full((B, HW)),
        scratch_shapes=[
            pltpu.VMEM((B, Hp, Wp, C), f32),               # padded activations
            pltpu.VMEM((B * HW, 9 * C), f32),              # im2col patch matrix
        ],
        compiler_params=pltpu.CompilerParams(dimension_semantics=("arbitrary",)),
    )(x_flat, proj_flat, G, A, feature_vec, w7r, params["bconst"],
      g0, bt0, params["weight_fed"],
      patch1, w1m, b1p, w2m, b2p, w3r, params["b3"],
      g1, bt1, g2, bt2, g3, bt3)

    return out_flat.reshape(B, 1, H, W)


# =====================================================================================
# Pure-JAX reference (self-check)
# =====================================================================================
def reference(input_data, proj, gamma_vec, beta_vec, feature_vec, params):
    B, _, H, W = input_data.shape
    x_flat = input_data.reshape(B, -1)
    proj_flat = proj.reshape(B, -1)
    A = params["A"]
    R = x_flat @ A.T - proj_flat
    IR = R @ A
    g0 = gamma_vec[:, 0:1]
    bt0 = beta_vec[:, 0:1]
    weight = params["weight_fed"] * g0 + bt0
    maxval = feature_vec @ params["w7"] + params["bconst"]
    le = (weight <= maxval).astype(jnp.float32)
    wsel = le * weight + (1.0 - le) * maxval
    cw = jnp.maximum(wsel, 0.01)
    tmp1 = (x_flat - cw * IR).reshape(B, H, W, 1)

    xn = jnp.transpose(input_data, (0, 2, 3, 1))
    g1 = gamma_vec[:, 1:]
    b1 = beta_vec[:, 1:]

    def conv(x, w, b):
        return lax.conv_general_dilated(x, w, (1, 1), "SAME",
                                        dimension_numbers=("NHWC", "HWIO", "NHWC")) + b

    h = conv(xn, params["w1"], params["b1"])
    h = h * g1[:, 0:64][:, None, None, :] + b1[:, 0:64][:, None, None, :]
    h = jnp.maximum(h, 0.0)
    h = conv(h, params["w2"], params["b2"])
    h = h * g1[:, 64:128][:, None, None, :] + b1[:, 64:128][:, None, None, :]
    h = jnp.maximum(h, 0.0)
    h = conv(h, params["w3"], params["b3"])
    h = h * g1[:, 128:129][:, None, None, :] + b1[:, 128:129][:, None, None, :]
    out = jnp.maximum(h + tmp1, 0.0)
    return jnp.transpose(out, (0, 3, 1, 2))


# =====================================================================================
# Deterministic parameter init
# =====================================================================================
def init_params(key, P, HW):
    ks = jax.random.split(key, 7)
    p = {}
    p["w1"] = (jax.random.normal(ks[0], (3, 3, 1, 64)) * 0.20).astype(jnp.float32)
    p["b1"] = (jax.random.normal(ks[1], (1, 64)) * 0.05).astype(jnp.float32)
    p["w2"] = (jax.random.normal(ks[2], (3, 3, 64, 64)) * 0.04).astype(jnp.float32)
    p["b2"] = (jax.random.normal(ks[3], (1, 64)) * 0.05).astype(jnp.float32)
    p["w3"] = (jax.random.normal(ks[4], (3, 3, 64, 1)) * 0.04).astype(jnp.float32)
    p["b3"] = (jax.random.normal(ks[5], (1, 1)) * 0.05).astype(jnp.float32)
    p["weight_fed"] = jnp.full((1, 1), 0.5, jnp.float32)                 # nn.Parameter(Tensor(1))
    p["w7"] = jnp.array([[-0.8955, 0.0, -2.6443, 0.5331, 1.5326, 0.0, 0.0]],
                        jnp.float32).T                                   # (7, 1), fixed
    p["bconst"] = jnp.array([[1.0363]], jnp.float32)                     # fixed
    p["A"] = (jax.random.normal(ks[6], (P, HW)) * 0.05).astype(jnp.float32)
    return p


if __name__ == "__main__":
    B, H, W = 2, 16, 16
    NV, ND = 8, 16          # synthetic projection geometry -> P = 128 detector bins total
    P = NV * ND

    key = jax.random.PRNGKey(0)
    k1, k2, k3, k4, k5, kp = jax.random.split(key, 6)
    params = init_params(kp, P, H * W)

    x = jax.random.normal(k1, (B, 1, H, W), jnp.float32)
    proj = 0.5 * jax.random.normal(k2, (B, 1, NV, ND), jnp.float32)
    gamma_vec = 1.0 + 0.3 * jax.random.normal(k3, (B, 130), jnp.float32)
    beta_vec = 0.1 * jax.random.normal(k4, (B, 130), jnp.float32)
    feature_vec = jax.random.normal(k5, (B, 7), jnp.float32)

    out = iter_block(x, proj, gamma_vec, beta_vec, feature_vec, params)
    out = jax.block_until_ready(out)
    assert out.shape == (B, 1, H, W)

    ref = reference(x, proj, gamma_vec, beta_vec, feature_vec, params)
    np.testing.assert_allclose(np.asarray(out), np.asarray(ref), rtol=2e-3, atol=2e-3)

    print("KERNEL_OK")
</pallas_src>

<mosaic_0001>
module attributes {stable_mosaic.version = 11 : i64} {
  func.func @_fused_iterblock_kernel(%arg0: i32, %arg1: memref<2x256xf32, #tpu.memory_space<vmem>>, %arg2: memref<2x128xf32, #tpu.memory_space<vmem>>, %arg3: memref<256x256xf32, #tpu.memory_space<vmem>>, %arg4: memref<128x256xf32, #tpu.memory_space<vmem>>, %arg5: memref<2x7xf32, #tpu.memory_space<vmem>>, %arg6: memref<1x7xf32, #tpu.memory_space<vmem>>, %arg7: memref<1x1xf32, #tpu.memory_space<vmem>>, %arg8: memref<2x1xf32, #tpu.memory_space<vmem>>, %arg9: memref<2x1xf32, #tpu.memory_space<vmem>>, %arg10: memref<1x1xf32, #tpu.memory_space<vmem>>, %arg11: memref<512x9xf32, #tpu.memory_space<vmem>>, %arg12: memref<9x128xf32, #tpu.memory_space<vmem>>, %arg13: memref<1x128xf32, #tpu.memory_space<vmem>>, %arg14: memref<1152x128xf32, #tpu.memory_space<vmem>>, %arg15: memref<1x128xf32, #tpu.memory_space<vmem>>, %arg16: memref<1x1152xf32, #tpu.memory_space<vmem>>, %arg17: memref<1x1xf32, #tpu.memory_space<vmem>>, %arg18: memref<2x128xf32, #tpu.memory_space<vmem>>, %arg19: memref<2x128xf32, #tpu.memory_space<vmem>>, %arg20: memref<2x128xf32, #tpu.memory_space<vmem>>, %arg21: memref<2x128xf32, #tpu.memory_space<vmem>>, %arg22: memref<2x1xf32, #tpu.memory_space<vmem>>, %arg23: memref<2x1xf32, #tpu.memory_space<vmem>>, %arg24: memref<2x256xf32, #tpu.memory_space<vmem>>, %arg25: memref<2x18x18x128xf32, #tpu.memory_space<vmem>>, %arg26: memref<512x1152xf32, #tpu.memory_space<vmem>>) attributes {dimension_semantics = [#tpu.dimension_semantics<arbitrary>], iteration_bounds = array<i64: 1>, scalar_prefetch = 0 : i64, scratch_operands = 2 : i64, tpu.core_type = #tpu.core_type<tc>, window_params = [{pipeline_mode = #tpu.pipeline_mode<synchronous>, transform_indices = @transform_0, window_bounds = array<i64: 2, 256>}, {pipeline_mode = #tpu.pipeline_mode<synchronous>, transform_indices = @transform_1, window_bounds = array<i64: 2, 128>}, {pipeline_mode = #tpu.pipeline_mode<synchronous>, transform_indices = @transform_2, window_bounds = array<i64: 256, 256>}, {pipeline_mode = #tpu.pipeline_mode<synchronous>, transform_indices = @transform_3, window_bounds = array<i64: 128, 256>}, {pipeline_mode = #tpu.pipeline_mode<synchronous>, transform_indices = @transform_4, window_bounds = array<i64: 2, 7>}, {pipeline_mode = #tpu.pipeline_mode<synchronous>, transform_indices = @transform_5, window_bounds = array<i64: 1, 7>}, {pipeline_mode = #tpu.pipeline_mode<synchronous>, transform_indices = @transform_6, window_bounds = array<i64: 1, 1>}, {pipeline_mode = #tpu.pipeline_mode<synchronous>, transform_indices = @transform_7, window_bounds = array<i64: 2, 1>}, {pipeline_mode = #tpu.pipeline_mode<synchronous>, transform_indices = @transform_8, window_bounds = array<i64: 2, 1>}, {pipeline_mode = #tpu.pipeline_mode<synchronous>, transform_indices = @transform_9, window_bounds = array<i64: 1, 1>}, {pipeline_mode = #tpu.pipeline_mode<synchronous>, transform_indices = @transform_10, window_bounds = array<i64: 512, 9>}, {pipeline_mode = #tpu.pipeline_mode<synchronous>, transform_indices = @transform_11, window_bounds = array<i64: 9, 128>}, {pipeline_mode = #tpu.pipeline_mode<synchronous>, transform_indices = @transform_12, window_bounds = array<i64: 1, 128>}, {pipeline_mode = #tpu.pipeline_mode<synchronous>, transform_indices = @transform_13, window_bounds = array<i64: 1152, 128>}, {pipeline_mode = #tpu.pipeline_mode<synchronous>, transform_indices = @transform_14, window_bounds = array<i64: 1, 128>}, {pipeline_mode = #tpu.pipeline_mode<synchronous>, transform_indices = @transform_15, window_bounds = array<i64: 1, 1152>}, {pipeline_mode = #tpu.pipeline_mode<synchronous>, transform_indices = @transform_16, window_bounds = array<i64: 1, 1>}, {pipeline_mode = #tpu.pipeline_mode<synchronous>, transform_indices = @transform_17, window_bounds = array<i64: 2, 128>}, {pipeline_mode = #tpu.pipeline_mode<synchronous>, transform_indices = @transform_18, window_bounds = array<i64: 2, 128>}, {pipeline_mode = #tpu.pipeline_mode<synchronous>, transform_indices = @transform_19, window_bounds = array<i64: 2, 128>}, {pipeline_mode = #tpu.pipeline_mode<synchronous>, transform_indices = @transform_20, window_bounds = array<i64: 2, 128>}, {pipeline_mode = #tpu.pipeline_mode<synchronous>, transform_indices = @transform_21, window_bounds = array<i64: 2, 1>}, {pipeline_mode = #tpu.pipeline_mode<synchronous>, transform_indices = @transform_22, window_bounds = array<i64: 2, 1>}, {pipeline_mode = #tpu.pipeline_mode<synchronous>, transform_indices = @transform_23, window_bounds = array<i64: 2, 256>}]} {
    %c0 = arith.constant 0 : index
    %c0_0 = arith.constant 0 : index
    %0 = vector.load %arg1[%c0, %c0_0] : memref<2x256xf32, #tpu.memory_space<vmem>>, vector<2x256xf32>
    %c0_1 = arith.constant 0 : index
    %c0_2 = arith.constant 0 : index
    %1 = vector.load %arg3[%c0_1, %c0_2] : memref<256x256xf32, #tpu.memory_space<vmem>>, vector<256x256xf32>
    %cst = arith.constant dense<0.000000e+00> : vector<2x256xf32>
    %2 = tpu.matmul %0, %1, %cst {dimension_numbers = #tpu.dot_dimension_numbers<[1], [0], [0], [1], [0, 0, 1, 1], [], []>} : vector<2x256xf32>, vector<256x256xf32>, vector<2x256xf32> -> vector<2x256xf32>
    %c0_3 = arith.constant 0 : index
    %c0_4 = arith.constant 0 : index
    %3 = vector.load %arg2[%c0_3, %c0_4] : memref<2x128xf32, #tpu.memory_space<vmem>>, vector<2x128xf32>
    %c0_5 = arith.constant 0 : index
    %c0_6 = arith.constant 0 : index
    %4 = vector.load %arg4[%c0_5, %c0_6] : memref<128x256xf32, #tpu.memory_space<vmem>>, vector<128x256xf32>
    %cst_7 = arith.constant dense<0.000000e+00> : vector<2x256xf32>
    %5 = tpu.matmul %3, %4, %cst_7 {dimension_numbers = #tpu.dot_dimension_numbers<[1], [0], [0], [1], [0, 0, 1, 1], [], []>} : vector<2x128xf32>, vector<128x256xf32>, vector<2x256xf32> -> vector<2x256xf32>
    %6 = arith.subf %2, %5 : vector<2x256xf32>
    %c0_8 = arith.constant 0 : index
    %c0_9 = arith.constant 0 : index
    %7 = vector.load %arg10[%c0_8, %c0_9] : memref<1x1xf32, #tpu.memory_space<vmem>>, vector<1x1xf32>
    %c0_10 = arith.constant 0 : index
    %c0_11 = arith.constant 0 : index
    %8 = vector.load %arg8[%c0_10, %c0_11] : memref<2x1xf32, #tpu.memory_space<vmem>>, vector<2x1xf32>
    %9 = vector.broadcast %7 : vector<1x1xf32> to vector<2x1xf32>
    %10 = arith.mulf %9, %8 : vector<2x1xf32>
    %c0_12 = arith.constant 0 : index
    %c0_13 = arith.constant 0 : index
    %11 = vector.load %arg9[%c0_12, %c0_13] : memref<2x1xf32, #tpu.memory_space<vmem>>, vector<2x1xf32>
    %12 = arith.addf %10, %11 : vector<2x1xf32>
    %c0_14 = arith.constant 0 : index
    %c0_15 = arith.constant 0 : index
    %13 = vector.load %arg5[%c0_14, %c0_15] : memref<2x7xf32, #tpu.memory_space<vmem>>, vector<2x7xf32>
    %c0_16 = arith.constant 0 : index
    %c0_17 = arith.constant 0 : index
    %14 = vector.load %arg6[%c0_16, %c0_17] : memref<1x7xf32, #tpu.memory_space<vmem>>, vector<1x7xf32>
    %15 = vector.broadcast %14 : vector<1x7xf32> to vector<2x7xf32>
    %16 = arith.mulf %13, %15 : vector<2x7xf32>
    %cst_18 = arith.constant dense<0.000000e+00> : vector<2xf32>
    %17 = vector.multi_reduction <add>, %16, %cst_18 [1] : vector<2x7xf32> to vector<2xf32>
    %18 = vector.shape_cast %17 : vector<2xf32> to vector<2x1xf32>
    %c0_19 = arith.constant 0 : index
    %c0_20 = arith.constant 0 : index
    %19 = vector.load %arg7[%c0_19, %c0_20] : memref<1x1xf32, #tpu.memory_space<vmem>>, vector<1x1xf32>
    %20 = vector.broadcast %19 : vector<1x1xf32> to vector<2x1xf32>
    %21 = arith.addf %18, %20 : vector<2x1xf32>
    %22 = arith.cmpf ole, %12, %21 : vector<2x1xf32>
    %23 = arith.select %22, %12, %21 : vector<2x1xi1>, vector<2x1xf32>
    %cst_21 = arith.constant 0.00999999977 : f32
    %24 = vector.broadcast %cst_21 : f32 to vector<2x1xf32>
    %25 = arith.maximumf %23, %24 : vector<2x1xf32>
    %26 = vector.broadcast %25 : vector<2x1xf32> to vector<2x256xf32>
    %27 = arith.mulf %26, %6 : vector<2x256xf32>
    %28 = arith.subf %0, %27 : vector<2x256xf32>
    %c0_22 = arith.constant 0 : index
    %c0_23 = arith.constant 0 : index
    %29 = vector.load %arg11[%c0_22, %c0_23] : memref<512x9xf32, #tpu.memory_space<vmem>>, vector<512x9xf32>
    %c0_24 = arith.constant 0 : index
    %c0_25 = arith.constant 0 : index
    %30 = vector.load %arg12[%c0_24, %c0_25] : memref<9x128xf32, #tpu.memory_space<vmem>>, vector<9x128xf32>
    %cst_26 = arith.constant dense<0.000000e+00> : vector<512x128xf32>
    %31 = tpu.matmul %29, %30, %cst_26 {dimension_numbers = #tpu.dot_dimension_numbers<[1], [0], [0], [1], [0, 0, 1, 1], [], []>} : vector<512x9xf32>, vector<9x128xf32>, vector<512x128xf32> -> vector<512x128xf32>
    %c0_27 = arith.constant 0 : index
    %c0_28 = arith.constant 0 : index
    %32 = vector.load %arg13[%c0_27, %c0_28] : memref<1x128xf32, #tpu.memory_space<vmem>>, vector<1x128xf32>
    %33 = vector.broadcast %32 : vector<1x128xf32> to vector<512x128xf32>
    %34 = arith.addf %31, %33 : vector<512x128xf32>
    %cst_29 = arith.constant 0.000000e+00 : f32
    %35 = vector.broadcast %cst_29 : f32 to vector<2x18x18x128xf32>
    %c0_30 = arith.constant 0 : index
    %c0_31 = arith.constant 0 : index
    %c0_32 = arith.constant 0 : index
    %c0_33 = arith.constant 0 : index
    %36 = vector.load %arg25[%c0_30, %c0_31, %c0_32, %c0_33] : memref<2x18x18x128xf32, #tpu.memory_space<vmem>>, vector<2x18x18x128xf32>
    tpu.vector_store %arg25[%c0_30, %c0_31, %c0_32, %c0_33], %35 {strides = array<i32>} : memref<2x18x18x128xf32, #tpu.memory_space<vmem>>, vector<2x18x18x128xf32>,
    %37 = vector.extract_strided_slice %34 {offsets = [0, 0], sizes = [256, 128], strides = [1, 1]} : vector<512x128xf32> to vector<256x128xf32>
    %c0_34 = arith.constant 0 : index
    %c0_35 = arith.constant 0 : index
    %38 = vector.load %arg18[%c0_34, %c0_35] : memref<2x128xf32, #tpu.memory_space<vmem>>, vector<1x128xf32>
    %39 = vector.broadcast %38 : vector<1x128xf32> to vector<256x128xf32>
    %40 = arith.mulf %37, %39 : vector<256x128xf32>
    %c0_36 = arith.constant 0 : index
    %c0_37 = arith.constant 0 : index
    %41 = vector.load %arg19[%c0_36, %c0_37] : memref<2x128xf32, #tpu.memory_space<vmem>>, vector<1x128xf32>
    %42 = vector.broadcast %41 : vector<1x128xf32> to vector<256x128xf32>
    %43 = arith.addf %40, %42 : vector<256x128xf32>
    %cst_38 = arith.constant 0.000000e+00 : f32
    %44 = vector.broadcast %cst_38 : f32 to vector<256x128xf32>
    %45 = arith.maximumf %43, %44 : vector<256x128xf32>
    %46 = vector.shape_cast %45 : vector<256x128xf32> to vector<16x16x128xf32>
    %c0_39 = arith.constant 0 : index
    %c1 = arith.constant 1 : index
    %c1_40 = arith.constant 1 : index
    %c0_41 = arith.constant 0 : index
    %47 = vector.load %arg25[%c0_39, %c1, %c1_40, %c0_41] : memref<2x18x18x128xf32, #tpu.memory_space<vmem>>, vector<1x16x16x128xf32>
    %48 = vector.shape_cast %47 : vector<1x16x16x128xf32> to vector<16x16x128xf32>
    %49 = vector.shape_cast %46 : vector<16x16x128xf32> to vector<1x16x16x128xf32>
    tpu.vector_store %arg25[%c0_39, %c1, %c1_40, %c0_41], %49 {strides = array<i32>} : memref<2x18x18x128xf32, #tpu.memory_space<vmem>>, vector<1x16x16x128xf32>,
    %50 = vector.extract_strided_slice %34 {offsets = [256, 0], sizes = [256, 128], strides = [1, 1]} : vector<512x128xf32> to vector<256x128xf32>
    %c1_42 = arith.constant 1 : index
    %c0_43 = arith.constant 0 : index
    %51 = vector.load %arg18[%c1_42, %c0_43] : memref<2x128xf32, #tpu.memory_space<vmem>>, vector<1x128xf32>
    %52 = vector.broadcast %51 : vector<1x128xf32> to vector<256x128xf32>
    %53 = arith.mulf %50, %52 : vector<256x128xf32>
    %c1_44 = arith.constant 1 : index
    %c0_45 = arith.constant 0 : index
    %54 = vector.load %arg19[%c1_44, %c0_45] : memref<2x128xf32, #tpu.memory_space<vmem>>, vector<1x128xf32>
    %55 = vector.broadcast %54 : vector<1x128xf32> to vector<256x128xf32>
    %56 = arith.addf %53, %55 : vector<256x128xf32>
    %cst_46 = arith.constant 0.000000e+00 : f32
    %57 = vector.broadcast %cst_46 : f32 to vector<256x128xf32>
    %58 = arith.maximumf %56, %57 : vector<256x128xf32>
    %59 = vector.shape_cast %58 : vector<256x128xf32> to vector<16x16x128xf32>
    %c1_47 = arith.constant 1 : index
    %c1_48 = arith.constant 1 : index
    %c1_49 = arith.constant 1 : index
    %c0_50 = arith.constant 0 : index
    %60 = vector.load %arg25[%c1_47, %c1_48, %c1_49, %c0_50] : memref<2x18x18x128xf32, #tpu.memory_space<vmem>>, vector<1x16x16x128xf32>
    %61 = vector.shape_cast %60 : vector<1x16x16x128xf32> to vector<16x16x128xf32>
    %62 = vector.shape_cast %59 : vector<16x16x128xf32> to vector<1x16x16x128xf32>
    tpu.vector_store %arg25[%c1_47, %c1_48, %c1_49, %c0_50], %62 {strides = array<i32>} : memref<2x18x18x128xf32, #tpu.memory_space<vmem>>, vector<1x16x16x128xf32>,
    %c0_51 = arith.constant 0 : index
    %c0_52 = arith.constant 0 : index
    %c0_53 = arith.constant 0 : index
    %c0_54 = arith.constant 0 : index
    %63 = vector.load %arg25[%c0_51, %c0_52, %c0_53, %c0_54] : memref<2x18x18x128xf32, #tpu.memory_space<vmem>>, vector<2x16x16x128xf32>
    %64 = vector.shape_cast %63 : vector<2x16x16x128xf32> to vector<512x128xf32>
    %c0_55 = arith.constant 0 : index
    %c0_56 = arith.constant 0 : index
    %65 = vector.load %arg26[%c0_55, %c0_56] : memref<512x1152xf32, #tpu.memory_space<vmem>>, vector<512x128xf32>
    tpu.vector_store %arg26[%c0_55, %c0_56], %64 {strides = array<i32>} : memref<512x1152xf32, #tpu.memory_space<vmem>>, vector<512x128xf32>,
    %c0_57 = arith.constant 0 : index
    %c0_58 = arith.constant 0 : index
    %c1_59 = arith.constant 1 : index
    %c0_60 = arith.constant 0 : index
    %66 = vector.load %arg25[%c0_57, %c0_58, %c1_59, %c0_60] : memref<2x18x18x128xf32, #tpu.memory_space<vmem>>, vector<2x16x16x128xf32>
    %67 = vector.shape_cast %66 : vector<2x16x16x128xf32> to vector<512x128xf32>
    %c0_61 = arith.constant 0 : index
    %c128 = arith.constant 128 : index
    %68 = vector.load %arg26[%c0_61, %c128] : memref<512x1152xf32, #tpu.memory_space<vmem>>, vector<512x128xf32>
    tpu.vector_store %arg26[%c0_61, %c128], %67 {strides = array<i32>} : memref<512x1152xf32, #tpu.memory_space<vmem>>, vector<512x128xf32>,
    %c0_62 = arith.constant 0 : index
    %c0_63 = arith.constant 0 : index
    %c2 = arith.constant 2 : index
    %c0_64 = arith.constant 0 : index
    %69 = vector.load %arg25[%c0_62, %c0_63, %c2, %c0_64] : memref<2x18x18x128xf32, #tpu.memory_space<vmem>>, vector<2x16x16x128xf32>
    %70 = vector.shape_cast %69 : vector<2x16x16x128xf32> to vector<512x128xf32>
    %c0_65 = arith.constant 0 : index
    %c256 = arith.constant 256 : index
    %71 = vector.load %arg26[%c0_65, %c256] : memref<512x1152xf32, #tpu.memory_space<vmem>>, vector<512x128xf32>
    tpu.vector_store %arg26[%c0_65, %c256], %70 {strides = array<i32>} : memref<512x1152xf32, #tpu.memory_space<vmem>>, vector<512x128xf32>,
    %c0_66 = arith.constant 0 : index
    %c1_67 = arith.constant 1 : index
    %c0_68 = arith.constant 0 : index
    %c0_69 = arith.constant 0 : index
    %72 = vector.load %arg25[%c0_66, %c1_67, %c0_68, %c0_69] : memref<2x18x18x128xf32, #tpu.memory_space<vmem>>, vector<2x16x16x128xf32>
    %73 = vector.shape_cast %72 : vector<2x16x16x128xf32> to vector<512x128xf32>
    %c0_70 = arith.constant 0 : index
    %c384 = arith.constant 384 : index
    %74 = vector.load %arg26[%c0_70, %c384] : memref<512x1152xf32, #tpu.memory_space<vmem>>, vector<512x128xf32>
    tpu.vector_store %arg26[%c0_70, %c384], %73 {strides = array<i32>} : memref<512x1152xf32, #tpu.memory_space<vmem>>, vector<512x128xf32>,
    %c0_71 = arith.constant 0 : index
    %c1_72 = arith.constant 1 : index
    %c1_73 = arith.constant 1 : index
    %c0_74 = arith.constant 0 : index
    %75 = vector.load %arg25[%c0_71, %c1_72, %c1_73, %c0_74] : memref<2x18x18x128xf32, #tpu.memory_space<vmem>>, vector<2x16x16x128xf32>
    %76 = vector.shape_cast %75 : vector<2x16x16x128xf32> to vector<512x128xf32>
    %c0_75 = arith.constant 0 : index
    %c512 = arith.constant 512 : index
    %77 = vector.load %arg26[%c0_75, %c512] : memref<512x1152xf32, #tpu.memory_space<vmem>>, vector<512x128xf32>
    tpu.vector_store %arg26[%c0_75, %c512], %76 {strides = array<i32>} : memref<512x1152xf32, #tpu.memory_space<vmem>>, vector<512x128xf32>,
    %c0_76 = arith.constant 0 : index
    %c1_77 = arith.constant 1 : index
    %c2_78 = arith.constant 2 : index
    %c0_79 = arith.constant 0 : index
    %78 = vector.load %arg25[%c0_76, %c1_77, %c2_78, %c0_79] : memref<2x18x18x128xf32, #tpu.memory_space<vmem>>, vector<2x16x16x128xf32>
    %79 = vector.shape_cast %78 : vector<2x16x16x128xf32> to vector<512x128xf32>
    %c0_80 = arith.constant 0 : index
    %c640 = arith.constant 640 : index
    %80 = vector.load %arg26[%c0_80, %c640] : memref<512x1152xf32, #tpu.memory_space<vmem>>, vector<512x128xf32>
    tpu.vector_store %arg26[%c0_80, %c640], %79 {strides = array<i32>} : memref<512x1152xf32, #tpu.memory_space<vmem>>, vector<512x128xf32>,
    %c0_81 = arith.constant 0 : index
    %c2_82 = arith.constant 2 : index
    %c0_83 = arith.constant 0 : index
    %c0_84 = arith.constant 0 : index
    %81 = vector.load %arg25[%c0_81, %c2_82, %c0_83, %c0_84] : memref<2x18x18x128xf32, #tpu.memory_space<vmem>>, vector<2x16x16x128xf32>
    %82 = vector.shape_cast %81 : vector<2x16x16x128xf32> to vector<512x128xf32>
    %c0_85 = arith.constant 0 : index
    %c768 = arith.constant 768 : index
    %83 = vector.load %arg26[%c0_85, %c768] : memref<512x1152xf32, #tpu.memory_space<vmem>>, vector<512x128xf32>
    tpu.vector_store %arg26[%c0_85, %c768], %82 {strides = array<i32>} : memref<512x1152xf32, #tpu.memory_space<vmem>>, vector<512x128xf32>,
    %c0_86 = arith.constant 0 : index
    %c2_87 = arith.constant 2 : index
    %c1_88 = arith.constant 1 : index
    %c0_89 = arith.constant 0 : index
    %84 = vector.load %arg25[%c0_86, %c2_87, %c1_88, %c0_89] : memref<2x18x18x128xf32, #tpu.memory_space<vmem>>, vector<2x16x16x128xf32>
    %85 = vector.shape_cast %84 : vector<2x16x16x128xf32> to vector<512x128xf32>
    %c0_90 = arith.constant 0 : index
    %c896 = arith.constant 896 : index
    %86 = vector.load %arg26[%c0_90, %c896] : memref<512x1152xf32, #tpu.memory_space<vmem>>, vector<512x128xf32>
    tpu.vector_store %arg26[%c0_90, %c896], %85 {strides = array<i32>} : memref<512x1152xf32, #tpu.memory_space<vmem>>, vector<512x128xf32>,
    %c0_91 = arith.constant 0 : index
    %c2_92 = arith.constant 2 : index
    %c2_93 = arith.constant 2 : index
    %c0_94 = arith.constant 0 : index
    %87 = vector.load %arg25[%c0_91, %c2_92, %c2_93, %c0_94] : memref<2x18x18x128xf32, #tpu.memory_space<vmem>>, vector<2x16x16x128xf32>
    %88 = vector.shape_cast %87 : vector<2x16x16x128xf32> to vector<512x128xf32>
    %c0_95 = arith.constant 0 : index
    %c1024 = arith.constant 1024 : index
    %89 = vector.load %arg26[%c0_95, %c1024] : memref<512x1152xf32, #tpu.memory_space<vmem>>, vector<512x128xf32>
    tpu.vector_store %arg26[%c0_95, %c1024], %88 {strides = array<i32>} : memref<512x1152xf32, #tpu.memory_space<vmem>>, vector<512x128xf32>,
    %c0_96 = arith.constant 0 : index
    %c0_97 = arith.constant 0 : index
    %90 = vector.load %arg26[%c0_96, %c0_97] : memref<512x1152xf32, #tpu.memory_space<vmem>>, vector<512x1152xf32>
    %c0_98 = arith.constant 0 : index
    %c0_99 = arith.constant 0 : index
    %91 = vector.load %arg14[%c0_98, %c0_99] : memref<1152x128xf32, #tpu.memory_space<vmem>>, vector<1152x128xf32>
    %cst_100 = arith.constant dense<0.000000e+00> : vector<512x128xf32>
    %92 = tpu.matmul %90, %91, %cst_100 {dimension_numbers = #tpu.dot_dimension_numbers<[1], [0], [0], [1], [0, 0, 1, 1], [], []>} : vector<512x1152xf32>, vector<1152x128xf32>, vector<512x128xf32> -> vector<512x128xf32>
    %c0_101 = arith.constant 0 : index
    %c0_102 = arith.constant 0 : index
    %93 = vector.load %arg15[%c0_101, %c0_102] : memref<1x128xf32, #tpu.memory_space<vmem>>, vector<1x128xf32>
    %94 = vector.broadcast %93 : vector<1x128xf32> to vector<512x128xf32>
    %95 = arith.addf %92, %94 : vector<512x128xf32>
    %96 = vector.extract_strided_slice %95 {offsets = [0, 0], sizes = [256, 128], strides = [1, 1]} : vector<512x128xf32> to vector<256x128xf32>
    %c0_103 = arith.constant 0 : index
    %c0_104 = arith.constant 0 : index
    %97 = vector.load %arg20[%c0_103, %c0_104] : memref<2x128xf32, #tpu.memory_space<vmem>>, vector<1x128xf32>
    %98 = vector.broadcast %97 : vector<1x128xf32> to vector<256x128xf32>
    %99 = arith.mulf %96, %98 : vector<256x128xf32>
    %c0_105 = arith.constant 0 : index
    %c0_106 = arith.constant 0 : index
    %100 = vector.load %arg21[%c0_105, %c0_106] : memref<2x128xf32, #tpu.memory_space<vmem>>, vector<1x128xf32>
    %101 = vector.broadcast %100 : vector<1x128xf32> to vector<256x128xf32>
    %102 = arith.addf %99, %101 : vector<256x128xf32>
    %cst_107 = arith.constant 0.000000e+00 : f32
    %103 = vector.broadcast %cst_107 : f32 to vector<256x128xf32>
    %104 = arith.maximumf %102, %103 : vector<256x128xf32>
    %105 = vector.shape_cast %104 : vector<256x128xf32> to vector<16x16x128xf32>
    %c0_108 = arith.constant 0 : index
    %c1_109 = arith.constant 1 : index
    %c1_110 = arith.constant 1 : index
    %c0_111 = arith.constant 0 : index
    %106 = vector.load %arg25[%c0_108, %c1_109, %c1_110, %c0_111] : memref<2x18x18x128xf32, #tpu.memory_space<vmem>>, vector<1x16x16x128xf32>
    %107 = vector.shape_cast %106 : vector<1x16x16x128xf32> to vector<16x16x128xf32>
    %108 = vector.shape_cast %105 : vector<16x16x128xf32> to vector<1x16x16x128xf32>
    tpu.vector_store %arg25[%c0_108, %c1_109, %c1_110, %c0_111], %108 {strides = array<i32>} : memref<2x18x18x128xf32, #tpu.memory_space<vmem>>, vector<1x16x16x128xf32>,
    %109 = vector.extract_strided_slice %95 {offsets = [256, 0], sizes = [256, 128], strides = [1, 1]} : vector<512x128xf32> to vector<256x128xf32>
    %c1_112 = arith.constant 1 : index
    %c0_113 = arith.constant 0 : index
    %110 = vector.load %arg20[%c1_112, %c0_113] : memref<2x128xf32, #tpu.memory_space<vmem>>, vector<1x128xf32>
    %111 = vector.broadcast %110 : vector<1x128xf32> to vector<256x128xf32>
    %112 = arith.mulf %109, %111 : vector<256x128xf32>
    %c1_114 = arith.constant 1 : index
    %c0_115 = arith.constant 0 : index
    %113 = vector.load %arg21[%c1_114, %c0_115] : memref<2x128xf32, #tpu.memory_space<vmem>>, vector<1x128xf32>
    %114 = vector.broadcast %113 : vector<1x128xf32> to vector<256x128xf32>
    %115 = arith.addf %112, %114 : vector<256x128xf32>
    %cst_116 = arith.constant 0.000000e+00 : f32
    %116 = vector.broadcast %cst_116 : f32 to vector<256x128xf32>
    %117 = arith.maximumf %115, %116 : vector<256x128xf32>
    %118 = vector.shape_cast %117 : vector<256x128xf32> to vector<16x16x128xf32>
    %c1_117 = arith.constant 1 : index
    %c1_118 = arith.constant 1 : index
    %c1_119 = arith.constant 1 : index
    %c0_120 = arith.constant 0 : index
    %119 = vector.load %arg25[%c1_117, %c1_118, %c1_119, %c0_120] : memref<2x18x18x128xf32, #tpu.memory_space<vmem>>, vector<1x16x16x128xf32>
    %120 = vector.shape_cast %119 : vector<1x16x16x128xf32> to vector<16x16x128xf32>
    %121 = vector.shape_cast %118 : vector<16x16x128xf32> to vector<1x16x16x128xf32>
    tpu.vector_store %arg25[%c1_117, %c1_118, %c1_119, %c0_120], %121 {strides = array<i32>} : memref<2x18x18x128xf32, #tpu.memory_space<vmem>>, vector<1x16x16x128xf32>,
    %c0_121 = arith.constant 0 : index
    %c0_122 = arith.constant 0 : index
    %c0_123 = arith.constant 0 : index
    %c0_124 = arith.constant 0 : index
    %122 = vector.load %arg25[%c0_121, %c0_122, %c0_123, %c0_124] : memref<2x18x18x128xf32, #tpu.memory_space<vmem>>, vector<2x16x16x128xf32>
    %123 = vector.shape_cast %122 : vector<2x16x16x128xf32> to vector<512x128xf32>
    %c0_125 = arith.constant 0 : index
    %c0_126 = arith.constant 0 : index
    %124 = vector.load %arg26[%c0_125, %c0_126] : memref<512x1152xf32, #tpu.memory_space<vmem>>, vector<512x128xf32>
    tpu.vector_store %arg26[%c0_125, %c0_126], %123 {strides = array<i32>} : memref<512x1152xf32, #tpu.memory_space<vmem>>, vector<512x128xf32>,
    %c0_127 = arith.constant 0 : index
    %c0_128 = arith.constant 0 : index
    %c1_129 = arith.constant 1 : index
    %c0_130 = arith.constant 0 : index
    %125 = vector.load %arg25[%c0_127, %c0_128, %c1_129, %c0_130] : memref<2x18x18x128xf32, #tpu.memory_space<vmem>>, vector<2x16x16x128xf32>
    %126 = vector.shape_cast %125 : vector<2x16x16x128xf32> to vector<512x128xf32>
    %c0_131 = arith.constant 0 : index
    %c128_132 = arith.constant 128 : index
    %127 = vector.load %arg26[%c0_131, %c128_132] : memref<512x1152xf32, #tpu.memory_space<vmem>>, vector<512x128xf32>
    tpu.vector_store %arg26[%c0_131, %c128_132], %126 {strides = array<i32>} : memref<512x1152xf32, #tpu.memory_space<vmem>>, vector<512x128xf32>,
    %c0_133 = arith.constant 0 : index
    %c0_134 = arith.constant 0 : index
    %c2_135 = arith.constant 2 : index
    %c0_136 = arith.constant 0 : index
    %128 = vector.load %arg25[%c0_133, %c0_134, %c2_135, %c0_136] : memref<2x18x18x128xf32, #tpu.memory_space<vmem>>, vector<2x16x16x128xf32>
    %129 = vector.shape_cast %128 : vector<2x16x16x128xf32> to vector<512x128xf32>
    %c0_137 = arith.constant 0 : index
    %c256_138 = arith.constant 256 : index
    %130 = vector.load %arg26[%c0_137, %c256_138] : memref<512x1152xf32, #tpu.memory_space<vmem>>, vector<512x128xf32>
    tpu.vector_store %arg26[%c0_137, %c256_138], %129 {strides = array<i32>} : memref<512x1152xf32, #tpu.memory_space<vmem>>, vector<512x128xf32>,
    %c0_139 = arith.constant 0 : index
    %c1_140 = arith.constant 1 : index
    %c0_141 = arith.constant 0 : index
    %c0_142 = arith.constant 0 : index
    %131 = vector.load %arg25[%c0_139, %c1_140, %c0_141, %c0_142] : memref<2x18x18x128xf32, #tpu.memory_space<vmem>>, vector<2x16x16x128xf32>
    %132 = vector.shape_cast %131 : vector<2x16x16x128xf32> to vector<512x128xf32>
    %c0_143 = arith.constant 0 : index
    %c384_144 = arith.constant 384 : index
    %133 = vector.load %arg26[%c0_143, %c384_144] : memref<512x1152xf32, #tpu.memory_space<vmem>>, vector<512x128xf32>
    tpu.vector_store %arg26[%c0_143, %c384_144], %132 {strides = array<i32>} : memref<512x1152xf32, #tpu.memory_space<vmem>>, vector<512x128xf32>,
    %c0_145 = arith.constant 0 : index
    %c1_146 = arith.constant 1 : index
    %c1_147 = arith.constant 1 : index
    %c0_148 = arith.constant 0 : index
    %134 = vector.load %arg25[%c0_145, %c1_146, %c1_147, %c0_148] : memref<2x18x18x128xf32, #tpu.memory_space<vmem>>, vector<2x16x16x128xf32>
    %135 = vector.shape_cast %134 : vector<2x16x16x128xf32> to vector<512x128xf32>
    %c0_149 = arith.constant 0 : index
    %c512_150 = arith.constant 512 : index
    %136 = vector.load %arg26[%c0_149, %c512_150] : memref<512x1152xf32, #tpu.memory_space<vmem>>, vector<512x128xf32>
    tpu.vector_store %arg26[%c0_149, %c512_150], %135 {strides = array<i32>} : memref<512x1152xf32, #tpu.memory_space<vmem>>, vector<512x128xf32>,
    %c0_151 = arith.constant 0 : index
    %c1_152 = arith.constant 1 : index
    %c2_153 = arith.constant 2 : index
    %c0_154 = arith.constant 0 : index
    %137 = vector.load %arg25[%c0_151, %c1_152, %c2_153, %c0_154] : memref<2x18x18x128xf32, #tpu.memory_space<vmem>>, vector<2x16x16x128xf32>
    %138 = vector.shape_cast %137 : vector<2x16x16x128xf32> to vector<512x128xf32>
    %c0_155 = arith.constant 0 : index
    %c640_156 = arith.constant 640 : index
    %139 = vector.load %arg26[%c0_155, %c640_156] : memref<512x1152xf32, #tpu.memory_space<vmem>>, vector<512x128xf32>
    tpu.vector_store %arg26[%c0_155, %c640_156], %138 {strides = array<i32>} : memref<512x1152xf32, #tpu.memory_space<vmem>>, vector<512x128xf32>,
    %c0_157 = arith.constant 0 : index
    %c2_158 = arith.constant 2 : index
    %c0_159 = arith.constant 0 : index
    %c0_160 = arith.constant 0 : index
    %140 = vector.load %arg25[%c0_157, %c2_158, %c0_159, %c0_160] : memref<2x18x18x128xf32, #tpu.memory_space<vmem>>, vector<2x16x16x128xf32>
    %141 = vector.shape_cast %140 : vector<2x16x16x128xf32> to vector<512x128xf32>
    %c0_161 = arith.constant 0 : index
    %c768_162 = arith.constant 768 : index
    %142 = vector.load %arg26[%c0_161, %c768_162] : memref<512x1152xf32, #tpu.memory_space<vmem>>, vector<512x128xf32>
    tpu.vector_store %arg26[%c0_161, %c768_162], %141 {strides = array<i32>} : memref<512x1152xf32, #tpu.memory_space<vmem>>, vector<512x128xf32>,
    %c0_163 = arith.constant 0 : index
    %c2_164 = arith.constant 2 : index
    %c1_165 = arith.constant 1 : index
    %c0_166 = arith.constant 0 : index
    %143 = vector.load %arg25[%c0_163, %c2_164, %c1_165, %c0_166] : memref<2x18x18x128xf32, #tpu.memory_space<vmem>>, vector<2x16x16x128xf32>
    %144 = vector.shape_cast %143 : vector<2x16x16x128xf32> to vector<512x128xf32>
    %c0_167 = arith.constant 0 : index
    %c896_168 = arith.constant 896 : index
    %145 = vector.load %arg26[%c0_167, %c896_168] : memref<512x1152xf32, #tpu.memory_space<vmem>>, vector<512x128xf32>
    tpu.vector_store %arg26[%c0_167, %c896_168], %144 {strides = array<i32>} : memref<512x1152xf32, #tpu.memory_space<vmem>>, vector<512x128xf32>,
    %c0_169 = arith.constant 0 : index
    %c2_170 = arith.constant 2 : index
    %c2_171 = arith.constant 2 : index
    %c0_172 = arith.constant 0 : index
    %146 = vector.load %arg25[%c0_169, %c2_170, %c2_171, %c0_172] : memref<2x18x18x128xf32, #tpu.memory_space<vmem>>, vector<2x16x16x128xf32>
    %147 = vector.shape_cast %146 : vector<2x16x16x128xf32> to vector<512x128xf32>
    %c0_173 = arith.constant 0 : index
    %c1024_174 = arith.constant 1024 : index
    %148 = vector.load %arg26[%c0_173, %c1024_174] : memref<512x1152xf32, #tpu.memory_space<vmem>>, vector<512x128xf32>
    tpu.vector_store %arg26[%c0_173, %c1024_174], %147 {strides = array<i32>} : memref<512x1152xf32, #tpu.memory_space<vmem>>, vector<512x128xf32>,
    %c0_175 = arith.constant 0 : index
    %c0_176 = arith.constant 0 : index
    %149 = vector.load %arg16[%c0_175, %c0_176] : memref<1x1152xf32, #tpu.memory_space<vmem>>, vector<1x1152xf32>
    %c0_177 = arith.constant 0 : index
    %c0_178 = arith.constant 0 : index
    %150 = vector.load %arg26[%c0_177, %c0_178] : memref<512x1152xf32, #tpu.memory_space<vmem>>, vector<512x1152xf32>
    %cst_179 = arith.constant dense<0.000000e+00> : vector<1x512xf32>
    %151 = tpu.matmul %149, %150, %cst_179 {dimension_numbers = #tpu.dot_dimension_numbers<[1], [1], [0], [0], [0, 0, 1, 0], [], []>} : vector<1x1152xf32>, vector<512x1152xf32>, vector<1x512xf32> -> vector<1x512xf32>
    %c0_180 = arith.constant 0 : index
    %c0_181 = arith.constant 0 : index
    %152 = vector.load %arg17[%c0_180, %c0_181] : memref<1x1xf32, #tpu.memory_space<vmem>>, vector<1x1xf32>
    %153 = vector.broadcast %152 : vector<1x1xf32> to vector<1x512xf32>
    %154 = arith.addf %151, %153 : vector<1x512xf32>
    %155 = vector.extract_strided_slice %154 {offsets = [0, 0], sizes = [1, 256], strides = [1, 1]} : vector<1x512xf32> to vector<1x256xf32>
    %c0_182 = arith.constant 0 : index
    %c0_183 = arith.constant 0 : index
    %156 = vector.load %arg22[%c0_182, %c0_183] : memref<2x1xf32, #tpu.memory_space<vmem>>, vector<1x1xf32>
    %157 = vector.broadcast %156 : vector<1x1xf32> to vector<1x256xf32>
    %158 = arith.mulf %155, %157 : vector<1x256xf32>
    %c0_184 = arith.constant 0 : index
    %c0_185 = arith.constant 0 : index
    %159 = vector.load %arg23[%c0_184, %c0_185] : memref<2x1xf32, #tpu.memory_space<vmem>>, vector<1x1xf32>
    %160 = vector.broadcast %159 : vector<1x1xf32> to vector<1x256xf32>
    %161 = arith.addf %158, %160 : vector<1x256xf32>
    %162 = vector.extract_strided_slice %28 {offsets = [0, 0], sizes = [1, 256], strides = [1, 1]} : vector<2x256xf32> to vector<1x256xf32>
    %163 = arith.addf %161, %162 : vector<1x256xf32>
    %cst_186 = arith.constant 0.000000e+00 : f32
    %164 = vector.broadcast %cst_186 : f32 to vector<1x256xf32>
    %165 = arith.maximumf %163, %164 : vector<1x256xf32>
    %c0_187 = arith.constant 0 : index
    %c0_188 = arith.constant 0 : index
    %166 = vector.load %arg24[%c0_187, %c0_188] : memref<2x256xf32, #tpu.memory_space<vmem>>, vector<1x256xf32>
    tpu.vector_store %arg24[%c0_187, %c0_188], %165 {strides = array<i32>} : memref<2x256xf32, #tpu.memory_space<vmem>>, vector<1x256xf32>,
    %167 = vector.extract_strided_slice %154 {offsets = [0, 256], sizes = [1, 256], strides = [1, 1]} : vector<1x512xf32> to vector<1x256xf32>
    %c1_189 = arith.constant 1 : index
    %c0_190 = arith.constant 0 : index
    %168 = vector.load %arg22[%c1_189, %c0_190] : memref<2x1xf32, #tpu.memory_space<vmem>>, vector<1x1xf32>
    %169 = vector.broadcast %168 : vector<1x1xf32> to vector<1x256xf32>
    %170 = arith.mulf %167, %169 : vector<1x256xf32>
    %c1_191 = arith.constant 1 : index
    %c0_192 = arith.constant 0 : index
    %171 = vector.load %arg23[%c1_191, %c0_192] : memref<2x1xf32, #tpu.memory_space<vmem>>, vector<1x1xf32>
    %172 = vector.broadcast %171 : vector<1x1xf32> to vector<1x256xf32>
    %173 = arith.addf %170, %172 : vector<1x256xf32>
    %174 = vector.extract_strided_slice %28 {offsets = [1, 0], sizes = [1, 256], strides = [1, 1]} : vector<2x256xf32> to vector<1x256xf32>
    %175 = arith.addf %173, %174 : vector<1x256xf32>
    %cst_193 = arith.constant 0.000000e+00 : f32
    %176 = vector.broadcast %cst_193 : f32 to vector<1x256xf32>
    %177 = arith.maximumf %175, %176 : vector<1x256xf32>
    %c1_194 = arith.constant 1 : index
    %c0_195 = arith.constant 0 : index
    %178 = vector.load %arg24[%c1_194, %c0_195] : memref<2x256xf32, #tpu.memory_space<vmem>>, vector<1x256xf32>
    tpu.vector_store %arg24[%c1_194, %c0_195], %177 {strides = array<i32>} : memref<2x256xf32, #tpu.memory_space<vmem>>, vector<1x256xf32>,
    return
  }
  func.func @transform_0(%arg0: i32) -> (i32, i32) {
    %c0_i32 = arith.constant 0 : i32
    %c0_i32_0 = arith.constant 0 : i32
    %c0_i32_1 = arith.constant 0 : i32
    return %c0_i32, %c0_i32_0 : i32, i32
  }
  func.func @transform_1(%arg0: i32) -> (i32, i32) {
    %c0_i32 = arith.constant 0 : i32
    %c0_i32_0 = arith.constant 0 : i32
    %c0_i32_1 = arith.constant 0 : i32
    return %c0_i32, %c0_i32_0 : i32, i32
  }
  func.func @transform_2(%arg0: i32) -> (i32, i32) {
    %c0_i32 = arith.constant 0 : i32
    %c0_i32_0 = arith.constant 0 : i32
    %c0_i32_1 = arith.constant 0 : i32
    return %c0_i32, %c0_i32_0 : i32, i32
  }
  func.func @transform_3(%arg0: i32) -> (i32, i32) {
    %c0_i32 = arith.constant 0 : i32
    %c0_i32_0 = arith.constant 0 : i32
    %c0_i32_1 = arith.constant 0 : i32
    return %c0_i32, %c0_i32_0 : i32, i32
  }
  func.func @transform_4(%arg0: i32) -> (i32, i32) {
    %c0_i32 = arith.constant 0 : i32
    %c0_i32_0 = arith.constant 0 : i32
    %c0_i32_1 = arith.constant 0 : i32
    return %c0_i32, %c0_i32_0 : i32, i32
  }
  func.func @transform_5(%arg0: i32) -> (i32, i32) {
    %c0_i32 = arith.constant 0 : i32
    %c0_i32_0 = arith.constant 0 : i32
    %c0_i32_1 = arith.constant 0 : i32
    return %c0_i32, %c0_i32_0 : i32, i32
  }
  func.func @transform_6(%arg0: i32) -> (i32, i32) {
    %c0_i32 = arith.constant 0 : i32
    %c0_i32_0 = arith.constant 0 : i32
    %c0_i32_1 = arith.constant 0 : i32
    return %c0_i32, %c0_i32_0 : i32, i32
  }
  func.func @transform_7(%arg0: i32) -> (i32, i32) {
    %c0_i32 = arith.constant 0 : i32
    %c0_i32_0 = arith.constant 0 : i32
    %c0_i32_1 = arith.constant 0 : i32
    return %c0_i32, %c0_i32_0 : i32, i32
  }
  func.func @transform_8(%arg0: i32) -> (i32, i32) {
    %c0_i32 = arith.constant 0 : i32
    %c0_i32_0 = arith.constant 0 : i32
    %c0_i32_1 = arith.constant 0 : i32
    return %c0_i32, %c0_i32_0 : i32, i32
  }
  func.func @transform_9(%arg0: i32) -> (i32, i32) {
    %c0_i32 = arith.constant 0 : i32
    %c0_i32_0 = arith.constant 0 : i32
    %c0_i32_1 = arith.constant 0 : i32
    return %c0_i32, %c0_i32_0 : i32, i32
  }
  func.func @transform_10(%arg0: i32) -> (i32, i32) {
    %c0_i32 = arith.constant 0 : i32
    %c0_i32_0 = arith.constant 0 : i32
    %c0_i32_1 = arith.constant 0 : i32
    return %c0_i32, %c0_i32_0 : i32, i32
  }
  func.func @transform_11(%arg0: i32) -> (i32, i32) {
    %c0_i32 = arith.constant 0 : i32
    %c0_i32_0 = arith.constant 0 : i32
    %c0_i32_1 = arith.constant 0 : i32
    return %c0_i32, %c0_i32_0 : i32, i32
  }
  func.func @transform_12(%arg0: i32) -> (i32, i32) {
    %c0_i32 = arith.constant 0 : i32
    %c0_i32_0 = arith.constant 0 : i32
    %c0_i32_1 = arith.constant 0 : i32
    return %c0_i32, %c0_i32_0 : i32, i32
  }
  func.func @transform_13(%arg0: i32) -> (i32, i32) {
    %c0_i32 = arith.constant 0 : i32
    %c0_i32_0 = arith.constant 0 : i32
    %c0_i32_1 = arith.constant 0 : i32
    return %c0_i32, %c0_i32_0 : i32, i32
  }
  func.func @transform_14(%arg0: i32) -> (i32, i32) {
    %c0_i32 = arith.constant 0 : i32
    %c0_i32_0 = arith.constant 0 : i32
    %c0_i32_1 = arith.constant 0 : i32
    return %c0_i32, %c0_i32_0 : i32, i32
  }
  func.func @transform_15(%arg0: i32) -> (i32, i32) {
    %c0_i32 = arith.constant 0 : i32
    %c0_i32_0 = arith.constant 0 : i32
    %c0_i32_1 = arith.constant 0 : i32
    return %c0_i32, %c0_i32_0 : i32, i32
  }
  func.func @transform_16(%arg0: i32) -> (i32, i32) {
    %c0_i32 = arith.constant 0 : i32
    %c0_i32_0 = arith.constant 0 : i32
    %c0_i32_1 = arith.constant 0 : i32
    return %c0_i32, %c0_i32_0 : i32, i32
  }
  func.func @transform_17(%arg0: i32) -> (i32, i32) {
    %c0_i32 = arith.constant 0 : i32
    %c0_i32_0 = arith.constant 0 : i32
    %c0_i32_1 = arith.constant 0 : i32
    return %c0_i32, %c0_i32_0 : i32, i32
  }
  func.func @transform_18(%arg0: i32) -> (i32, i32) {
    %c0_i32 = arith.constant 0 : i32
    %c0_i32_0 = arith.constant 0 : i32
    %c0_i32_1 = arith.constant 0 : i32
    return %c0_i32, %c0_i32_0 : i32, i32
  }
  func.func @transform_19(%arg0: i32) -> (i32, i32) {
    %c0_i32 = arith.constant 0 : i32
    %c0_i32_0 = arith.constant 0 : i32
    %c0_i32_1 = arith.constant 0 : i32
    return %c0_i32, %c0_i32_0 : i32, i32
  }
  func.func @transform_20(%arg0: i32) -> (i32, i32) {
    %c0_i32 = arith.constant 0 : i32
    %c0_i32_0 = arith.constant 0 : i32
    %c0_i32_1 = arith.constant 0 : i32
    return %c0_i32, %c0_i32_0 : i32, i32
  }
  func.func @transform_21(%arg0: i32) -> (i32, i32) {
    %c0_i32 = arith.constant 0 : i32
    %c0_i32_0 = arith.constant 0 : i32
    %c0_i32_1 = arith.constant 0 : i32
    return %c0_i32, %c0_i32_0 : i32, i32
  }
  func.func @transform_22(%arg0: i32) -> (i32, i32) {
    %c0_i32 = arith.constant 0 : i32
    %c0_i32_0 = arith.constant 0 : i32
    %c0_i32_1 = arith.constant 0 : i32
    return %c0_i32, %c0_i32_0 : i32, i32
  }
  func.func @transform_23(%arg0: i32) -> (i32, i32) {
    %c0_i32 = arith.constant 0 : i32
    %c0_i32_0 = arith.constant 0 : i32
    %c0_i32_1 = arith.constant 0 : i32
    return %c0_i32, %c0_i32_0 : i32, i32
  }
}

</mosaic_0001>

<llo_original>
// kernel: tpu_custom_call.1
$region0: #{tpu_custom_call.1}
  #allocation0 [shape = 'u32[]', space=smem, size = 0x4, offset = 0x4, fixed_abs, tag = 'smem constant byte address 0x4 - core index']
  #allocation1 [shape = 'u32[72,128]{1,0:T(1,128)}', space=vmem, size = 0x9000, scoped, tag = 'internal scratch']
  #allocation2 [shape = 'f32[2,18,18,128]{3,2,1,0:T(8,128)}', space=vmem, size = 0x6c000, scoped, tag = 'scratch operand']
  #allocation3 [shape = 'f32[512,1152]{1,0:T(8,128)}', space=vmem, size = 0x240000, scoped, tag = 'scratch operand']
  #allocation4 [shape = 'f32[1,1]{1,0:T(1,128)S(1)}', space=vmem, size = 0x200, scoped, tag = 'scoped memory for tpu_custom_call.1']
  #allocation5 [shape = 'f32[1,1]{1,0:T(1,128)S(1)}', space=vmem, size = 0x200, scoped, tag = 'scoped memory for tpu_custom_call.1']
  #allocation6 [shape = 'f32[1,1]{1,0:T(1,128)S(1)}', space=vmem, size = 0x200, scoped, tag = 'scoped memory for tpu_custom_call.1']
  %s0 = inlined_call_operand.vmem [shape: f32[2,256], index: 0, kind: input, shape index: {}]
  %s1 = inlined_call_operand.vmem [shape: f32[2,128], index: 1, kind: input, shape index: {}]
  %s2 = inlined_call_operand.vmem [shape: f32[256,256], index: 2, kind: input, shape index: {}]
  %s3 = inlined_call_operand.hbm [shape: f32[128,256], index: 3, kind: input, shape index: {}]
  %s4 = inlined_call_operand.vmem [shape: f32[2,7], index: 4, kind: input, shape index: {}]
  %s5 = inlined_call_operand.vmem [shape: f32[1,7], index: 5, kind: input, shape index: {}]
  %s6 = inlined_call_operand.<no memory space> [shape: f32[1,1], index: 6, kind: input, shape index: {}]
  %s7 = inlined_call_operand.vmem [shape: f32[2,1], index: 7, kind: input, shape index: {}]
  %s8 = inlined_call_operand.vmem [shape: f32[2,1], index: 8, kind: input, shape index: {}]
  %s9 = inlined_call_operand.<no memory space> [shape: f32[1,1], index: 9, kind: input, shape index: {}]
  %s10 = inlined_call_operand.vmem [shape: f32[512,9], index: 10, kind: input, shape index: {}]
  %s11 = inlined_call_operand.vmem [shape: f32[9,128], index: 11, kind: input, shape index: {}]
  %s12 = inlined_call_operand.vmem [shape: f32[1,128], index: 12, kind: input, shape index: {}]
  %s13 = inlined_call_operand.hbm [shape: f32[1152,128], index: 13, kind: input, shape index: {}]
  %s14 = inlined_call_operand.vmem [shape: f32[1,128], index: 14, kind: input, shape index: {}]
  %s15 = inlined_call_operand.vmem [shape: f32[1,1152], index: 15, kind: input, shape index: {}]
  %s16 = inlined_call_operand.<no memory space> [shape: f32[1,1], index: 16, kind: input, shape index: {}]
  %s17 = inlined_call_operand.vmem [shape: f32[2,128], index: 17, kind: input, shape index: {}]
  %s18 = inlined_call_operand.vmem [shape: f32[2,128], index: 18, kind: input, shape index: {}]
  %s19 = inlined_call_operand.vmem [shape: f32[2,128], index: 19, kind: input, shape index: {}]
  %s20 = inlined_call_operand.vmem [shape: f32[2,128], index: 20, kind: input, shape index: {}]
  %s21 = inlined_call_operand.vmem [shape: f32[2,1], index: 21, kind: input, shape index: {}]
  %s22 = inlined_call_operand.vmem [shape: f32[2,1], index: 22, kind: input, shape index: {}]
  %s23 = inlined_call_operand.hbm [shape: f32[2,256], index: 23, kind: output, shape index: {}]
  %s24 = sld [smem:[#allocation0]]
  $region110: #{tpu_custom_call.1} parent=0
    _
  %s26 = ssub.s32 1, %s24
  %s27 = scalar_select 0, %s26, %s24
  %v28 = vstv %s6
  %29 = vst [vmem:[#allocation4] sm:$0x1] %v28
  %v30 = vstv %s9
  %31 = vst [vmem:[#allocation5] sm:$0x1] %v30
  %v32 = vstv %s16
  %33 = vst [vmem:[#allocation6] sm:$0x1] %v32
  $region1: #{tpu_custom_call.1} parent=0
    #allocation7 [shape = 'u8[131072]{0}', space=vmem, size = 0x20000, scoped, tag = 'input window, operand 3, single buffered']
    #allocation8 [shape = 's32[1]{0}', space=sflag, size = 0x4, scoped, tag = 'scoped memory for tpu_custom_call.1']
    #allocation9 [shape = 's32[1]{0}', space=sflag, size = 0x4, scoped, tag = 'scoped memory for tpu_custom_call.1']
    #allocation10 [shape = 'u8[589824]{0}', space=vmem, size = 0x90000, scoped, tag = 'input window, operand 13, single buffered']
    #allocation11 [shape = 's32[1]{0}', space=sflag, size = 0x4, scoped, tag = 'scoped memory for tpu_custom_call.1']
    #allocation12 [shape = 'u8[2048]{0}', space=vmem, size = 0x800, scoped, tag = 'output window, operand 0, single buffered']
    %34 = vsyncpa [#allocation8], 0
    %35 = vsyncpa [#allocation11], 0
    %36 = vsyncpa [#allocation9], 0
    // Predicated region
    $region2: #{tpu_custom_call.1} parent=1 // pred_check
      _
    $region3: #{tpu_custom_call.1} parent=1 // pred_check_branch
      %38 = sbr.rel (0) target = $region5
    $region4: #{tpu_custom_call.1} parent=1 // pred_region
      _
    $region5: #{tpu_custom_call.1} parent=1 // pred_fallthru
      _
    // Predicated region
    $region6: #{tpu_custom_call.1} parent=1 // pred_check
      _
    $region7: #{tpu_custom_call.1} parent=1 // pred_check_branch
      %40 = sbr.rel (0) target = $region9
    $region8: #{tpu_custom_call.1} parent=1 // pred_region
      _
    $region9: #{tpu_custom_call.1} parent=1 // pred_fallthru
      _
    // Predicated region
    $region10: #{tpu_custom_call.1} parent=1 // pred_check
      _
    $region11: #{tpu_custom_call.1} parent=1 // pred_check_branch
      %42 = sbr.rel (0) target = $region13
    $region12: #{tpu_custom_call.1} parent=1 // pred_region
      _
    $region13: #{tpu_custom_call.1} parent=1 // pred_fallthru
      _
    // Predicated region
    $region14: #{tpu_custom_call.1} parent=1 // pred_check
      _
    $region15: #{tpu_custom_call.1} parent=1 // pred_check_branch
      %44 = sbr.rel (0) target = $region17
    $region16: #{tpu_custom_call.1} parent=1 // pred_region
      %46 = vsyncadd [#allocation8], 0
      %s47 = sshll.u32 %s3, 4
      %s48 = int_to_ptr.hbm [resolvable:$true] %s47
      %s49 = sshll.u32 [#allocation7], 4
      %s50 = int_to_ptr.vmem [resolvable:$true] %s49
      %55 = dma.hbm_to_vmem [thread:$0]  %s48, 4096, %s50, [#allocation8], 256, 256, 16
    $region17: #{tpu_custom_call.1} parent=1 // pred_fallthru
      _
    // Predicated region
    $region18: #{tpu_custom_call.1} parent=1 // pred_check
      _
    $region19: #{tpu_custom_call.1} parent=1 // pred_check_branch
      %57 = sbr.rel (0) target = $region21
    $region20: #{tpu_custom_call.1} parent=1 // pred_region
      _
    $region21: #{tpu_custom_call.1} parent=1 // pred_fallthru
      _
    // Predicated region
    $region22: #{tpu_custom_call.1} parent=1 // pred_check
      _
    $region23: #{tpu_custom_call.1} parent=1 // pred_check_branch
      %59 = sbr.rel (0) target = $region25
    $region24: #{tpu_custom_call.1} parent=1 // pred_region
      _
    $region25: #{tpu_custom_call.1} parent=1 // pred_fallthru
      _
    // Predicated region
    $region26: #{tpu_custom_call.1} parent=1 // pred_check
      _
    $region27: #{tpu_custom_call.1} parent=1 // pred_check_branch
      %61 = sbr.rel (0) target = $region29
    $region28: #{tpu_custom_call.1} parent=1 // pred_region
      _
    $region29: #{tpu_custom_call.1} parent=1 // pred_fallthru
      _
    // Predicated region
    $region30: #{tpu_custom_call.1} parent=1 // pred_check
      _
    $region31: #{tpu_custom_call.1} parent=1 // pred_check_branch
      %63 = sbr.rel (0) target = $region33
    $region32: #{tpu_custom_call.1} parent=1 // pred_region
      _
    $region33: #{tpu_custom_call.1} parent=1 // pred_fallthru
      _
    // Predicated region
    $region34: #{tpu_custom_call.1} parent=1 // pred_check
      _
    $region35: #{tpu_custom_call.1} parent=1 // pred_check_branch
      %65 = sbr.rel (0) target = $region37
    $region36: #{tpu_custom_call.1} parent=1 // pred_region
      _
    $region37: #{tpu_custom_call.1} parent=1 // pred_fallthru
      _
    // Predicated region
    $region38: #{tpu_custom_call.1} parent=1 // pred_check
      _
    $region39: #{tpu_custom_call.1} parent=1 // pred_check_branch
      %67 = sbr.rel (0) target = $region41
    $region40: #{tpu_custom_call.1} parent=1 // pred_region
      _
    $region41: #{tpu_custom_call.1} parent=1 // pred_fallthru
      _
    // Predicated region
    $region42: #{tpu_custom_call.1} parent=1 // pred_check
      _
    $region43: #{tpu_custom_call.1} parent=1 // pred_check_branch
      %69 = sbr.rel (0) target = $region45
    $region44: #{tpu_custom_call.1} parent=1 // pred_region
      _
    $region45: #{tpu_custom_call.1} parent=1 // pred_fallthru
      _
    // Predicated region
    $region46: #{tpu_custom_call.1} parent=1 // pred_check
      _
    $region47: #{tpu_custom_call.1} parent=1 // pred_check_branch
      %71 = sbr.rel (0) target = $region49
    $region48: #{tpu_custom_call.1} parent=1 // pred_region
      _
    $region49: #{tpu_custom_call.1} parent=1 // pred_fallthru
      _
    // Predicated region
    $region50: #{tpu_custom_call.1} parent=1 // pred_check
      _
    $region51: #{tpu_custom_call.1} parent=1 // pred_check_branch
      %73 = sbr.rel (0) target = $region53
    $region52: #{tpu_custom_call.1} parent=1 // pred_region
      _
    $region53: #{tpu_custom_call.1} parent=1 // pred_fallthru
      _
    // Predicated region
    $region54: #{tpu_custom_call.1} parent=1 // pred_check
      _
    $region55: #{tpu_custom_call.1} parent=1 // pred_check_branch
      %75 = sbr.rel (0) target = $region57
    $region56: #{tpu_custom_call.1} parent=1 // pred_region
      %77 = vsyncadd [#allocation11], 0
      %s78 = sshll.u32 %s13, 4
      %s79 = int_to_ptr.hbm [resolvable:$true] %s78
      %s80 = sshll.u32 [#allocation10], 4
      %s81 = int_to_ptr.vmem [resolvable:$true] %s80
      %86 = dma.hbm_to_vmem [thread:$0]  %s79, 18432, %s81, [#allocation11], 128, 128, 8
    $region57: #{tpu_custom_call.1} parent=1 // pred_fallthru
      _
    // Predicated region
    $region58: #{tpu_custom_call.1} parent=1 // pred_check
      _
    $region59: #{tpu_custom_call.1} parent=1 // pred_check_branch
      %88 = sbr.rel (0) target = $region61
    $region60: #{tpu_custom_call.1} parent=1 // pred_region
      _
    $region61: #{tpu_custom_call.1} parent=1 // pred_fallthru
      _
    // Predicated region
    $region62: #{tpu_custom_call.1} parent=1 // pred_check
      _
    $region63: #{tpu_custom_call.1} parent=1 // pred_check_branch
      %90 = sbr.rel (0) target = $region65
    $region64: #{tpu_custom_call.1} parent=1 // pred_region
      _
    $region65: #{tpu_custom_call.1} parent=1 // pred_fallthru
      _
    // Predicated region
    $region66: #{tpu_custom_call.1} parent=1 // pred_check
      _
    $region67: #{tpu_custom_call.1} parent=1 // pred_check_branch
      %92 = sbr.rel (0) target = $region69
    $region68: #{tpu_custom_call.1} parent=1 // pred_region
      _
    $region69: #{tpu_custom_call.1} parent=1 // pred_fallthru
      _
    // Predicated region
    $region70: #{tpu_custom_call.1} parent=1 // pred_check
      _
    $region71: #{tpu_custom_call.1} parent=1 // pred_check_branch
      %94 = sbr.rel (0) target = $region73
    $region72: #{tpu_custom_call.1} parent=1 // pred_region
      _
    $region73: #{tpu_custom_call.1} parent=1 // pred_fallthru
      _
    // Predicated region
    $region74: #{tpu_custom_call.1} parent=1 // pred_check
      _
    $region75: #{tpu_custom_call.1} parent=1 // pred_check_branch
      %96 = sbr.rel (0) target = $region77
    $region76: #{tpu_custom_call.1} parent=1 // pred_region
      _
    $region77: #{tpu_custom_call.1} parent=1 // pred_fallthru
      _
    // Predicated region
    $region78: #{tpu_custom_call.1} parent=1 // pred_check
      _
    $region79: #{tpu_custom_call.1} parent=1 // pred_check_branch
      %98 = sbr.rel (0) target = $region81
    $region80: #{tpu_custom_call.1} parent=1 // pred_region
      _
    $region81: #{tpu_custom_call.1} parent=1 // pred_fallthru
      _
    // Predicated region
    $region82: #{tpu_custom_call.1} parent=1 // pred_check
      _
    $region83: #{tpu_custom_call.1} parent=1 // pred_check_branch
      %100 = sbr.rel (0) target = $region85
    $region84: #{tpu_custom_call.1} parent=1 // pred_region
      _
    $region85: #{tpu_custom_call.1} parent=1 // pred_fallthru
      _
    // Predicated region
    $region86: #{tpu_custom_call.1} parent=1 // pred_check
      _
    $region87: #{tpu_custom_call.1} parent=1 // pred_check_branch
      %102 = sbr.rel (0) target = $region89
    $region88: #{tpu_custom_call.1} parent=1 // pred_region
      _
    $region89: #{tpu_custom_call.1} parent=1 // pred_fallthru
      _
    // Predicated region
    $region90: #{tpu_custom_call.1} parent=1 // pred_check
      _
    $region91: #{tpu_custom_call.1} parent=1 // pred_check_branch
      %104 = sbr.rel (0) target = $region93
    $region92: #{tpu_custom_call.1} parent=1 // pred_region
      _
    $region93: #{tpu_custom_call.1} parent=1 // pred_fallthru
      _
    // Predicated region
    $region94: #{tpu_custom_call.1} parent=1 // pred_check
      _
    $region95: #{tpu_custom_call.1} parent=1 // pred_check_branch
      %106 = sbr.rel (0) target = $region97
    $region96: #{tpu_custom_call.1} parent=1 // pred_region
      %108 = dma.done [#allocation8], 4096
    $region97: #{tpu_custom_call.1} parent=1 // pred_fallthru
      _
    // Predicated region
    $region98: #{tpu_custom_call.1} parent=1 // pred_check
      _
    $region99: #{tpu_custom_call.1} parent=1 // pred_check_branch
      %110 = sbr.rel (0) target = $region101
    $region100: #{tpu_custom_call.1} parent=1 // pred_region
      %112 = dma.done [#allocation11], 18432
    $region101: #{tpu_custom_call.1} parent=1 // pred_fallthru
      _
    %v113 = vld [vmem:[%s0] sm:$0xf]
    %v114 = vld [vmem:[%s2] sm:$0xff]
    %v115 = vld [vmem:[%s2 + $0x8] sm:$0xff]
    %v116 = vld [vmem:[%s2 + $0x10] sm:$0xff]
    %v117 = vld [vmem:[%s2 + $0x18] sm:$0xff]
    %v118 = vld [vmem:[%s2 + $0x20] sm:$0xff]
    %v119 = vld [vmem:[%s2 + $0x28] sm:$0xff]
    %v120 = vld [vmem:[%s2 + $0x30] sm:$0xff]
    %v121 = vld [vmem:[%s2 + $0x38] sm:$0xff]
    %v122 = vld [vmem:[%s2 + $0x40] sm:$0xff]
    %v123 = vld [vmem:[%s2 + $0x48] sm:$0xff]
    %v124 = vld [vmem:[%s2 + $0x50] sm:$0xff]
    %v125 = vld [vmem:[%s2 + $0x58] sm:$0xff]
    %v126 = vld [vmem:[%s2 + $0x60] sm:$0xff]
    %v127 = vld [vmem:[%s2 + $0x68] sm:$0xff]
    %v128 = vld [vmem:[%s2 + $0x70] sm:$0xff]
    %v129 = vld [vmem:[%s2 + $0x78] sm:$0xff]
    %v130 = vld [vmem:[%s2 + $0x80] sm:$0xff]
    %v131 = vld [vmem:[%s2 + $0x88] sm:$0xff]
    %v132 = vld [vmem:[%s2 + $0x90] sm:$0xff]
    %v133 = vld [vmem:[%s2 + $0x98] sm:$0xff]
    %v134 = vld [vmem:[%s2 + $0xa0] sm:$0xff]
    %v135 = vld [vmem:[%s2 + $0xa8] sm:$0xff]
    %v136 = vld [vmem:[%s2 + $0xb0] sm:$0xff]
    %v137 = vld [vmem:[%s2 + $0xb8] sm:$0xff]
    %v138 = vld [vmem:[%s2 + $0xc0] sm:$0xff]
    %v139 = vld [vmem:[%s2 + $0xc8] sm:$0xff]
    %v140 = vld [vmem:[%s2 + $0xd0] sm:$0xff]
    %v141 = vld [vmem:[%s2 + $0xd8] sm:$0xff]
    %v142 = vld [vmem:[%s2 + $0xe0] sm:$0xff]
    %v143 = vld [vmem:[%s2 + $0xe8] sm:$0xff]
    %v144 = vld [vmem:[%s2 + $0xf0] sm:$0xff]
    %v145 = vld [vmem:[%s2 + $0xf8] sm:$0xff]
    %v146 = vld [vmem:[%s2 + $0x100] sm:$0xff]
    %v147 = vld [vmem:[%s2 + $0x108] sm:$0xff]
    %v148 = vld [vmem:[%s2 + $0x110] sm:$0xff]
    %v149 = vld [vmem:[%s2 + $0x118] sm:$0xff]
    %v150 = vld [vmem:[%s2 + $0x120] sm:$0xff]
    %v151 = vld [vmem:[%s2 + $0x128] sm:$0xff]
    %v152 = vld [vmem:[%s2 + $0x130] sm:$0xff]
    %v153 = vld [vmem:[%s2 + $0x138] sm:$0xff]
    %v154 = vld [vmem:[%s2 + $0x140] sm:$0xff]
    %v155 = vld [vmem:[%s2 + $0x148] sm:$0xff]
    %v156 = vld [vmem:[%s2 + $0x150] sm:$0xff]
    %v157 = vld [vmem:[%s2 + $0x158] sm:$0xff]
    %v158 = vld [vmem:[%s2 + $0x160] sm:$0xff]
    %v159 = vld [vmem:[%s2 + $0x168] sm:$0xff]
    %v160 = vld [vmem:[%s2 + $0x170] sm:$0xff]
    %v161 = vld [vmem:[%s2 + $0x178] sm:$0xff]
    %v162 = vld [vmem:[%s2 + $0x180] sm:$0xff]
    %v163 = vld [vmem:[%s2 + $0x188] sm:$0xff]
    %v164 = vld [vmem:[%s2 + $0x190] sm:$0xff]
    %v165 = vld [vmem:[%s2 + $0x198] sm:$0xff]
    %v166 = vld [vmem:[%s2 + $0x1a0] sm:$0xff]
    %v167 = vld [vmem:[%s2 + $0x1a8] sm:$0xff]
    %v168 = vld [vmem:[%s2 + $0x1b0] sm:$0xff]
    %v169 = vld [vmem:[%s2 + $0x1b8] sm:$0xff]
    %v170 = vld [vmem:[%s2 + $0x1c0] sm:$0xff]
    %v171 = vld [vmem:[%s2 + $0x1c8] sm:$0xff]
    %v172 = vld [vmem:[%s2 + $0x1d0] sm:$0xff]
    %v173 = vld [vmem:[%s2 + $0x1d8] sm:$0xff]
    %v174 = vld [vmem:[%s2 + $0x1e0] sm:$0xff]
    %v175 = vld [vmem:[%s2 + $0x1e8] sm:$0xff]
    %v176 = vld [vmem:[%s2 + $0x1f0] sm:$0xff]
    %v177 = vld [vmem:[%s2 + $0x1f8] sm:$0xff]
    %179 = vst [vmem:[#allocation1] ss:$4 sm:$0xff] %v113
    %v180 = vld.sshfl [vmem:[#allocation1] sm:$0xff pattern:$0x73625140]
    %v181 = vld.sshfl [vmem:[#allocation1 + $0x8] sm:$0xff pattern:$0x73625140]
    %184 = vmatpush.msra.mxu0 %v144
    %185 = vmatpush.msra.mxu0 %v142
    %186 = vmatpush.msra.mxu0 %v140
    %187 = vmatpush.msra.mxu0 %v138
    %188 = vmatpush.msra.mxu0 %v136
    %189 = vmatpush.msra.mxu0 %v134
    %190 = vmatpush.msra.mxu0 %v132
    %191 = vmatpush.msra.mxu0 %v130
    %192 = vmatpush.msra.mxu0 %v128
    %193 = vmatpush.msra.mxu0 %v126
    %194 = vmatpush.msra.mxu0 %v124
    %195 = vmatpush.msra.mxu0 %v122
    %196 = vmatpush.msra.mxu0 %v120
    %197 = vmatpush.msra.mxu0 %v118
    %198 = vmatpush.msra.mxu0 %v116
    %199 = vmatpush.msra.mxu0 %v114
    %200 = vmatmul.f32.gmra.mxu0 %v180
    %v201 = vpop.f32.mrf.mxu0
    %v202 = vadd.f32 0.0, %v201
    %203 = vdwg.mxu0
    %204 = vmatpush.msra.mxu0 %v176
    %205 = vmatpush.msra.mxu0 %v174
    %206 = vmatpush.msra.mxu0 %v172
    %207 = vmatpush.msra.mxu0 %v170
    %208 = vmatpush.msra.mxu0 %v168
    %209 = vmatpush.msra.mxu0 %v166
    %210 = vmatpush.msra.mxu0 %v164
    %211 = vmatpush.msra.mxu0 %v162
    %212 = vmatpush.msra.mxu0 %v160
    %213 = vmatpush.msra.mxu0 %v158
    %214 = vmatpush.msra.mxu0 %v156
    %215 = vmatpush.msra.mxu0 %v154
    %216 = vmatpush.msra.mxu0 %v152
    %217 = vmatpush.msra.mxu0 %v150
    %218 = vmatpush.msra.mxu0 %v148
    %219 = vmatpush.msra.mxu0 %v146
    %220 = vmatmul.f32.gmra.mxu0 %v181
    %v221 = vpop.f32.mrf.mxu0
    %v222 = vadd.f32 %v202, %v221
    %223 = vdwg.mxu0
    %224 = vmatpush.msra.mxu0 %v145
    %225 = vmatpush.msra.mxu0 %v143
    %226 = vmatpush.msra.mxu0 %v141
    %227 = vmatpush.msra.mxu0 %v139
    %228 = vmatpush.msra.mxu0 %v137
    %229 = vmatpush.msra.mxu0 %v135
    %230 = vmatpush.msra.mxu0 %v133
    %231 = vmatpush.msra.mxu0 %v131
    %232 = vmatpush.msra.mxu0 %v129
    %233 = vmatpush.msra.mxu0 %v127
    %234 = vmatpush.msra.mxu0 %v125
    %235 = vmatpush.msra.mxu0 %v123
    %236 = vmatpush.msra.mxu0 %v121
    %237 = vmatpush.msra.mxu0 %v119
    %238 = vmatpush.msra.mxu0 %v117
    %239 = vmatpush.msra.mxu0 %v115
    %240 = vmatmul.f32.gmra.mxu0 %v180
    %v241 = vpop.f32.mrf.mxu0
    %v242 = vadd.f32 0.0, %v241
    %243 = vdwg.mxu0
    %244 = vmatpush.msra.mxu0 %v177
    %245 = vmatpush.msra.mxu0 %v175
    %246 = vmatpush.msra.mxu0 %v173
    %247 = vmatpush.msra.mxu0 %v171
    %248 = vmatpush.msra.mxu0 %v169
    %249 = vmatpush.msra.mxu0 %v167
    %250 = vmatpush.msra.mxu0 %v165
    %251 = vmatpush.msra.mxu0 %v163
    %252 = vmatpush.msra.mxu0 %v161
    %253 = vmatpush.msra.mxu0 %v159
    %254 = vmatpush.msra.mxu0 %v157
    %255 = vmatpush.msra.mxu0 %v155
    %256 = vmatpush.msra.mxu0 %v153
    %257 = vmatpush.msra.mxu0 %v151
    %258 = vmatpush.msra.mxu0 %v149
    %259 = vmatpush.msra.mxu0 %v147
    %260 = vmatmul.f32.gmra.mxu0 %v181
    %v261 = vpop.f32.mrf.mxu0
    %v262 = vadd.f32 %v242, %v261
    %263 = vdwg.mxu0
    %v264 = vld [vmem:[%s1] sm:$0x3]
    %v265 = vld [vmem:[#allocation7] sm:$0xff]
    %v266 = vld [vmem:[#allocation7 + $0x8] sm:$0xff]
    %v267 = vld [vmem:[#allocation7 + $0x10] sm:$0xff]
    %v268 = vld [vmem:[#allocation7 + $0x18] sm:$0xff]
    %v269 = vld [vmem:[#allocation7 + $0x20] sm:$0xff]
    %v270 = vld [vmem:[#allocation7 + $0x28] sm:$0xff]
    %v271 = vld [vmem:[#allocation7 + $0x30] sm:$0xff]
    %v272 = vld [vmem:[#allocation7 + $0x38] sm:$0xff]
    %v273 = vld [vmem:[#allocation7 + $0x40] sm:$0xff]
    %v274 = vld [vmem:[#allocation7 + $0x48] sm:$0xff]
    %v275 = vld [vmem:[#allocation7 + $0x50] sm:$0xff]
    %v276 = vld [vmem:[#allocation7 + $0x58] sm:$0xff]
    %v277 = vld [vmem:[#allocation7 + $0x60] sm:$0xff]
    %v278 = vld [vmem:[#allocation7 + $0x68] sm:$0xff]
    %v279 = vld [vmem:[#allocation7 + $0x70] sm:$0xff]
    %v280 = vld [vmem:[#allocation7 + $0x78] sm:$0xff]
    %v281 = vld [vmem:[#allocation7 + $0x80] sm:$0xff]
    %v282 = vld [vmem:[#allocation7 + $0x88] sm:$0xff]
    %v283 = vld [vmem:[#allocation7 + $0x90] sm:$0xff]
    %v284 = vld [vmem:[#allocation7 + $0x98] sm:$0xff]
    %v285 = vld [vmem:[#allocation7 + $0xa0] sm:$0xff]
    %v286 = vld [vmem:[#allocation7 + $0xa8] sm:$0xff]
    %v287 = vld [vmem:[#allocation7 + $0xb0] sm:$0xff]
    %v288 = vld [vmem:[#allocation7 + $0xb8] sm:$0xff]
    %v289 = vld [vmem:[#allocation7 + $0xc0] sm:$0xff]
    %v290 = vld [vmem:[#allocation7 + $0xc8] sm:$0xff]
    %v291 = vld [vmem:[#allocation7 + $0xd0] sm:$0xff]
    %v292 = vld [vmem:[#allocation7 + $0xd8] sm:$0xff]
    %v293 = vld [vmem:[#allocation7 + $0xe0] sm:$0xff]
    %v294 = vld [vmem:[#allocation7 + $0xe8] sm:$0xff]
    %v295 = vld [vmem:[#allocation7 + $0xf0] sm:$0xff]
    %v296 = vld [vmem:[#allocation7 + $0xf8] sm:$0xff]
    %297 = vmatpush.msra.mxu0 %v295
    %298 = vmatpush.msra.mxu0 %v293
    %299 = vmatpush.msra.mxu0 %v291
    %300 = vmatpush.msra.mxu0 %v289
    %301 = vmatpush.msra.mxu0 %v287
    %302 = vmatpush.msra.mxu0 %v285
    %303 = vmatpush.msra.mxu0 %v283
    %304 = vmatpush.msra.mxu0 %v281
    %305 = vmatpush.msra.mxu0 %v279
    %306 = vmatpush.msra.mxu0 %v277
    %307 = vmatpush.msra.mxu0 %v275
    %308 = vmatpush.msra.mxu0 %v273
    %309 = vmatpush.msra.mxu0 %v271
    %310 = vmatpush.msra.mxu0 %v269
    %311 = vmatpush.msra.mxu0 %v267
    %312 = vmatpush.msra.mxu0 %v265
    %313 = vmatmul.f32.gmra.mxu0 %v264
    %v314 = vpop.f32.mrf.mxu0
    %v315 = vadd.f32 0.0, %v314
    %316 = vdwg.mxu0
    %317 = vmatpush.msra.mxu0 %v296
    %318 = vmatpush.msra.mxu0 %v294
    %319 = vmatpush.msra.mxu0 %v292
    %320 = vmatpush.msra.mxu0 %v290
    %321 = vmatpush.msra.mxu0 %v288
    %322 = vmatpush.msra.mxu0 %v286
    %323 = vmatpush.msra.mxu0 %v284
    %324 = vmatpush.msra.mxu0 %v282
    %325 = vmatpush.msra.mxu0 %v280
    %326 = vmatpush.msra.mxu0 %v278
    %327 = vmatpush.msra.mxu0 %v276
    %328 = vmatpush.msra.mxu0 %v274
    %329 = vmatpush.msra.mxu0 %v272
    %330 = vmatpush.msra.mxu0 %v270
    %331 = vmatpush.msra.mxu0 %v268
    %332 = vmatpush.msra.mxu0 %v266
    %333 = vmatmul.f32.gmra.mxu0 %v264
    %v334 = vpop.f32.mrf.mxu0
    %v335 = vadd.f32 0.0, %v334
    %336 = vdwg.mxu0
    %v337 = vsub.f32 %v222, %v315
    %v338 = vsub.f32 %v262, %v335
    %v339 = vld [vmem:[#allocation5] sm:$0x1]
    %v340 = vld [vmem:[%s7] sm:$0x3]
    %v342 = vperm.slane %v339, 0
    %v344 = vmul.f32 %v342, %v340
    %v345 = vld [vmem:[%s8] sm:$0x3]
    %v346 = vadd.f32 %v344, %v345
    %v347 = vld [vmem:[%s4] sm:$0x3]
    %v348 = vld [vmem:[%s5] sm:$0x1]
    %v350 = vperm.slane %v348, 0
    %v352 = vmul.f32 %v347, %v350
    %vm353 = vcmask 50176
    %v354 = vsel %vm353, %v352, 0.0
    %355 = vadd.xlane.f32.xlu0 %v354
    %v356 = vpop.xlane.xlu0 %355
    %v357 = vld [vmem:[#allocation4] sm:$0x1]
    %v359 = vperm.slane %v357, 0
    %v361 = vadd.f32 %v356, %v359
    %vm362 = vcmp.le.f32.partialorder %v346, %v361
    %v363 = vsel %vm362, %v346, %v361
    %v364 = vmax.f32 %v363, 0.01
    %366 = vset.pattern.permute.xlu0 0
    %367 = vperm.xlu0 %366, %v364
    %v368 = vpop.permute.xlu0 %367
    %v370 = vmul.f32 %v368, %v337
    %v371 = vmul.f32 %v368, %v338
    %v374 = vrot.slane %v371, 6
    %vm375 = vcmask 1041408
    %v376 = vsel %vm375, %v370, %v374
    %v378 = vsub.f32 %v113, %v376
    %v379 = vld [vmem:[%s10] sm:$0xff]
    %v380 = vld [vmem:[%s10 + $0x8] sm:$0xff]
    %v381 = vld [vmem:[%s10 + $0x10] sm:$0xff]
    %v382 = vld [vmem:[%s10 + $0x18] sm:$0xff]
    %v383 = vld [vmem:[%s10 + $0x20] sm:$0xff]
    %v384 = vld [vmem:[%s10 + $0x28] sm:$0xff]
    %v385 = vld [vmem:[%s10 + $0x30] sm:$0xff]
    %v386 = vld [vmem:[%s10 + $0x38] sm:$0xff]
    %v387 = vld [vmem:[%s10 + $0x40] sm:$0xff]
    %v388 = vld [vmem:[%s10 + $0x48] sm:$0xff]
    %v389 = vld [vmem:[%s10 + $0x50] sm:$0xff]
    %v390 = vld [vmem:[%s10 + $0x58] sm:$0xff]
    %v391 = vld [vmem:[%s10 + $0x60] sm:$0xff]
    %v392 = vld [vmem:[%s10 + $0x68] sm:$0xff]
    %v393 = vld [vmem:[%s10 + $0x70] sm:$0xff]
    %v394 = vld [vmem:[%s10 + $0x78] sm:$0xff]
    %v395 = vld [vmem:[%s10 + $0x80] sm:$0xff]
    %v396 = vld [vmem:[%s10 + $0x88] sm:$0xff]
    %v397 = vld [vmem:[%s10 + $0x90] sm:$0xff]
    %v398 = vld [vmem:[%s10 + $0x98] sm:$0xff]
    %v399 = vld [vmem:[%s10 + $0xa0] sm:$0xff]
    %v400 = vld [vmem:[%s10 + $0xa8] sm:$0xff]
    %v401 = vld [vmem:[%s10 + $0xb0] sm:$0xff]
    %v402 = vld [vmem:[%s10 + $0xb8] sm:$0xff]
    %v403 = vld [vmem:[%s10 + $0xc0] sm:$0xff]
    %v404 = vld [vmem:[%s10 + $0xc8] sm:$0xff]
    %v405 = vld [vmem:[%s10 + $0xd0] sm:$0xff]
    %v406 = vld [vmem:[%s10 + $0xd8] sm:$0xff]
    %v407 = vld [vmem:[%s10 + $0xe0] sm:$0xff]
    %v408 = vld [vmem:[%s10 + $0xe8] sm:$0xff]
    %v409 = vld [vmem:[%s10 + $0xf0] sm:$0xff]
    %v410 = vld [vmem:[%s10 + $0xf8] sm:$0xff]
    %v411 = vld [vmem:[%s10 + $0x100] sm:$0xff]
    %v412 = vld [vmem:[%s10 + $0x108] sm:$0xff]
    %v413 = vld [vmem:[%s10 + $0x110] sm:$0xff]
    %v414 = vld [vmem:[%s10 + $0x118] sm:$0xff]
    %v415 = vld [vmem:[%s10 + $0x120] sm:$0xff]
    %v416 = vld [vmem:[%s10 + $0x128] sm:$0xff]
    %v417 = vld [vmem:[%s10 + $0x130] sm:$0xff]
    %v418 = vld [vmem:[%s10 + $0x138] sm:$0xff]
    %v419 = vld [vmem:[%s10 + $0x140] sm:$0xff]
    %v420 = vld [vmem:[%s10 + $0x148] sm:$0xff]
    %v421 = vld [vmem:[%s10 + $0x150] sm:$0xff]
    %v422 = vld [vmem:[%s10 + $0x158] sm:$0xff]
    %v423 = vld [vmem:[%s10 + $0x160] sm:$0xff]
    %v424 = vld [vmem:[%s10 + $0x168] sm:$0xff]
    %v425 = vld [vmem:[%s10 + $0x170] sm:$0xff]
    %v426 = vld [vmem:[%s10 + $0x178] sm:$0xff]
    %v427 = vld [vmem:[%s10 + $0x180] sm:$0xff]
    %v428 = vld [vmem:[%s10 + $0x188] sm:$0xff]
    %v429 = vld [vmem:[%s10 + $0x190] sm:$0xff]
    %v430 = vld [vmem:[%s10 + $0x198] sm:$0xff]
    %v431 = vld [vmem:[%s10 + $0x1a0] sm:$0xff]
    %v432 = vld [vmem:[%s10 + $0x1a8] sm:$0xff]
    %v433 = vld [vmem:[%s10 + $0x1b0] sm:$0xff]
    %v434 = vld [vmem:[%s10 + $0x1b8] sm:$0xff]
    %v435 = vld [vmem:[%s10 + $0x1c0] sm:$0xff]
    %v436 = vld [vmem:[%s10 + $0x1c8] sm:$0xff]
    %v437 = vld [vmem:[%s10 + $0x1d0] sm:$0xff]
    %v438 = vld [vmem:[%s10 + $0x1d8] sm:$0xff]
    %v439 = vld [vmem:[%s10 + $0x1e0] sm:$0xff]
    %v440 = vld [vmem:[%s10 + $0x1e8] sm:$0xff]
    %v441 = vld [vmem:[%s10 + $0x1f0] sm:$0xff]
    %v442 = vld [vmem:[%s10 + $0x1f8] sm:$0xff]
    %v443 = vld [vmem:[%s11] sm:$0xff]
    %v444 = vld [vmem:[%s11 + $0x8] sm:$0x1]
    %v445 = vld [vmem:[%s12] sm:$0x1]
    %v447 = vperm.slane %v445, 0
    %vm449 = vcmask 72704
    %v451 = vsel %vm449, %v379, 0
    %v454 = vsel %vm449, %v380, 0
    %v457 = vsel %vm449, %v381, 0
    %v460 = vsel %vm449, %v382, 0
    %v463 = vsel %vm449, %v383, 0
    %v466 = vsel %vm449, %v384, 0
    %v469 = vsel %vm449, %v385, 0
    %v472 = vsel %vm449, %v386, 0
    %v475 = vsel %vm449, %v387, 0
    %v478 = vsel %vm449, %v388, 0
    %v481 = vsel %vm449, %v389, 0
    %v484 = vsel %vm449, %v390, 0
    %v487 = vsel %vm449, %v391, 0
    %v490 = vsel %vm449, %v392, 0
    %v493 = vsel %vm449, %v393, 0
    %v496 = vsel %vm449, %v394, 0
    %v499 = vsel %vm449, %v395, 0
    %v502 = vsel %vm449, %v396, 0
    %v505 = vsel %vm449, %v397, 0
    %v508 = vsel %vm449, %v398, 0
    %v511 = vsel %vm449, %v399, 0
    %v514 = vsel %vm449, %v400, 0
    %v517 = vsel %vm449, %v401, 0
    %v520 = vsel %vm449, %v402, 0
    %v523 = vsel %vm449, %v403, 0
    %v526 = vsel %vm449, %v404, 0
    %v529 = vsel %vm449, %v405, 0
    %v532 = vsel %vm449, %v406, 0
    %v535 = vsel %vm449, %v407, 0
    %v538 = vsel %vm449, %v408, 0
    %v541 = vsel %vm449, %v409, 0
    %v544 = vsel %vm449, %v410, 0
    %v547 = vsel %vm449, %v411, 0
    %v550 = vsel %vm449, %v412, 0
    %v553 = vsel %vm449, %v413, 0
    %v556 = vsel %vm449, %v414, 0
    %v559 = vsel %vm449, %v415, 0
    %v562 = vsel %vm449, %v416, 0
    %v565 = vsel %vm449, %v417, 0
    %v568 = vsel %vm449, %v418, 0
    %v571 = vsel %vm449, %v419, 0
    %v574 = vsel %vm449, %v420, 0
    %v577 = vsel %vm449, %v421, 0
    %v580 = vsel %vm449, %v422, 0
    %v583 = vsel %vm449, %v423, 0
    %v586 = vsel %vm449, %v424, 0
    %v589 = vsel %vm449, %v425, 0
    %v592 = vsel %vm449, %v426, 0
    %v595 = vsel %vm449, %v427, 0
    %v598 = vsel %vm449, %v428, 0
    %v601 = vsel %vm449, %v429, 0
    %v604 = vsel %vm449, %v430, 0
    %v607 = vsel %vm449, %v431, 0
    %v610 = vsel %vm449, %v432, 0
    %v613 = vsel %vm449, %v433, 0
    %v616 = vsel %vm449, %v434, 0
    %v619 = vsel %vm449, %v435, 0
    %v622 = vsel %vm449, %v436, 0
    %v625 = vsel %vm449, %v437, 0
    %v628 = vsel %vm449, %v438, 0
    %v631 = vsel %vm449, %v439, 0
    %v634 = vsel %vm449, %v440, 0
    %v637 = vsel %vm449, %v441, 0
    %v640 = vsel %vm449, %v442, 0
    %vm642 = vcmask 1040384
    %v644 = vsel %vm642, %v444, 0
    %646 = vmatpush.msra.mxu0 0.0
    %647 = vmatpush.msra.mxu0 0.0
    %648 = vmatpush.msra.mxu0 0.0
    %649 = vmatpush.msra.mxu0 0.0
    %650 = vmatpush.msra.mxu0 0.0
    %651 = vmatpush.msra.mxu0 0.0
    %652 = vmatpush.msra.mxu0 0.0
    %653 = vmatpush.msra.mxu0 0.0
    %654 = vmatpush.msra.mxu0 0.0
    %655 = vmatpush.msra.mxu0 0.0
    %656 = vmatpush.msra.mxu0 0.0
    %657 = vmatpush.msra.mxu0 0.0
    %658 = vmatpush.msra.mxu0 0.0
    %659 = vmatpush.msra.mxu0 0.0
    %660 = vmatpush.msra.mxu0 %v644
    %661 = vmatpush.msra.mxu0 %v443
    %662 = vmatmul.f32.gmra.mxu0 %v451
    %v663 = vpop.f32.mrf.mxu0
    %v664 = vadd.f32 %v447, %v663
    %665 = vmatmul.f32.gmra.mxu0 %v454
    %v666 = vpop.f32.mrf.mxu0
    %v667 = vadd.f32 %v447, %v666
    %668 = vmatmul.f32.gmra.mxu0 %v457
    %v669 = vpop.f32.mrf.mxu0
    %v670 = vadd.f32 %v447, %v669
    %671 = vmatmul.f32.gmra.mxu0 %v460
    %v672 = vpop.f32.mrf.mxu0
    %v673 = vadd.f32 %v447, %v672
    %674 = vmatmul.f32.gmra.mxu0 %v463
    %v675 = vpop.f32.mrf.mxu0
    %v676 = vadd.f32 %v447, %v675
    %677 = vmatmul.f32.gmra.mxu0 %v466
    %v678 = vpop.f32.mrf.mxu0
    %v679 = vadd.f32 %v447, %v678
    %680 = vmatmul.f32.gmra.mxu0 %v469
    %v681 = vpop.f32.mrf.mxu0
    %v682 = vadd.f32 %v447, %v681
    %683 = vmatmul.f32.gmra.mxu0 %v472
    %v684 = vpop.f32.mrf.mxu0
    %v685 = vadd.f32 %v447, %v684
    %686 = vmatmul.f32.gmra.mxu0 %v475
    %v687 = vpop.f32.mrf.mxu0
    %v688 = vadd.f32 %v447, %v687
    %689 = vmatmul.f32.gmra.mxu0 %v478
    %v690 = vpop.f32.mrf.mxu0
    %v691 = vadd.f32 %v447, %v690
    %692 = vmatmul.f32.gmra.mxu0 %v481
    %v693 = vpop.f32.mrf.mxu0
    %v694 = vadd.f32 %v447, %v693
    %695 = vmatmul.f32.gmra.mxu0 %v484
    %v696 = vpop.f32.mrf.mxu0
    %v697 = vadd.f32 %v447, %v696
    %698 = vmatmul.f32.gmra.mxu0 %v487
    %v699 = vpop.f32.mrf.mxu0
    %v700 = vadd.f32 %v447, %v699
    %701 = vmatmul.f32.gmra.mxu0 %v490
    %v702 = vpop.f32.mrf.mxu0
    %v703 = vadd.f32 %v447, %v702
    %704 = vmatmul.f32.gmra.mxu0 %v493
    %v705 = vpop.f32.mrf.mxu0
    %v706 = vadd.f32 %v447, %v705
    %707 = vmatmul.f32.gmra.mxu0 %v496
    %v708 = vpop.f32.mrf.mxu0
    %v709 = vadd.f32 %v447, %v708
    %710 = vmatmul.f32.gmra.mxu0 %v499
    %v711 = vpop.f32.mrf.mxu0
    %v712 = vadd.f32 %v447, %v711
    %713 = vmatmul.f32.gmra.mxu0 %v502
    %v714 = vpop.f32.mrf.mxu0
    %v715 = vadd.f32 %v447, %v714
    %716 = vmatmul.f32.gmra.mxu0 %v505
    %v717 = vpop.f32.mrf.mxu0
    %v718 = vadd.f32 %v447, %v717
    %719 = vmatmul.f32.gmra.mxu0 %v508
    %v720 = vpop.f32.mrf.mxu0
    %v721 = vadd.f32 %v447, %v720
    %722 = vmatmul.f32.gmra.mxu0 %v511
    %v723 = vpop.f32.mrf.mxu0
    %v724 = vadd.f32 %v447, %v723
    %725 = vmatmul.f32.gmra.mxu0 %v514
    %v726 = vpop.f32.mrf.mxu0
    %v727 = vadd.f32 %v447, %v726
    %728 = vmatmul.f32.gmra.mxu0 %v517
    %v729 = vpop.f32.mrf.mxu0
    %v730 = vadd.f32 %v447, %v729
    %731 = vmatmul.f32.gmra.mxu0 %v520
    %v732 = vpop.f32.mrf.mxu0
    %v733 = vadd.f32 %v447, %v732
    %734 = vmatmul.f32.gmra.mxu0 %v523
    %v735 = vpop.f32.mrf.mxu0
    %v736 = vadd.f32 %v447, %v735
    %737 = vmatmul.f32.gmra.mxu0 %v526
    %v738 = vpop.f32.mrf.mxu0
    %v739 = vadd.f32 %v447, %v738
    %740 = vmatmul.f32.gmra.mxu0 %v529
    %v741 = vpop.f32.mrf.mxu0
    %v742 = vadd.f32 %v447, %v741
    %743 = vmatmul.f32.gmra.mxu0 %v532
    %v744 = vpop.f32.mrf.mxu0
    %v745 = vadd.f32 %v447, %v744
    %746 = vmatmul.f32.gmra.mxu0 %v535
    %v747 = vpop.f32.mrf.mxu0
    %v748 = vadd.f32 %v447, %v747
    %749 = vmatmul.f32.gmra.mxu0 %v538
    %v750 = vpop.f32.mrf.mxu0
    %v751 = vadd.f32 %v447, %v750
    %752 = vmatmul.f32.gmra.mxu0 %v541
    %v753 = vpop.f32.mrf.mxu0
    %v754 = vadd.f32 %v447, %v753
    %755 = vmatmul.f32.gmra.mxu0 %v544
    %v756 = vpop.f32.mrf.mxu0
    %v757 = vadd.f32 %v447, %v756
    %758 = vmatmul.f32.gmra.mxu0 %v547
    %v759 = vpop.f32.mrf.mxu0
    %v760 = vadd.f32 %v447, %v759
    %761 = vmatmul.f32.gmra.mxu0 %v550
    %v762 = vpop.f32.mrf.mxu0
    %v763 = vadd.f32 %v447, %v762
    %764 = vmatmul.f32.gmra.mxu0 %v553
    %v765 = vpop.f32.mrf.mxu0
    %v766 = vadd.f32 %v447, %v765
    %767 = vmatmul.f32.gmra.mxu0 %v556
    %v768 = vpop.f32.mrf.mxu0
    %v769 = vadd.f32 %v447, %v768
    %770 = vmatmul.f32.gmra.mxu0 %v559
    %v771 = vpop.f32.mrf.mxu0
    %v772 = vadd.f32 %v447, %v771
    %773 = vmatmul.f32.gmra.mxu0 %v562
    %v774 = vpop.f32.mrf.mxu0
    %v775 = vadd.f32 %v447, %v774
    %776 = vmatmul.f32.gmra.mxu0 %v565
    %v777 = vpop.f32.mrf.mxu0
    %v778 = vadd.f32 %v447, %v777
    %779 = vmatmul.f32.gmra.mxu0 %v568
    %v780 = vpop.f32.mrf.mxu0
    %v781 = vadd.f32 %v447, %v780
    %782 = vmatmul.f32.gmra.mxu0 %v571
    %v783 = vpop.f32.mrf.mxu0
    %v784 = vadd.f32 %v447, %v783
    %785 = vmatmul.f32.gmra.mxu0 %v574
    %v786 = vpop.f32.mrf.mxu0
    %v787 = vadd.f32 %v447, %v786
    %788 = vmatmul.f32.gmra.mxu0 %v577
    %v789 = vpop.f32.mrf.mxu0
    %v790 = vadd.f32 %v447, %v789
    %791 = vmatmul.f32.gmra.mxu0 %v580
    %v792 = vpop.f32.mrf.mxu0
    %v793 = vadd.f32 %v447, %v792
    %794 = vmatmul.f32.gmra.mxu0 %v583
    %v795 = vpop.f32.mrf.mxu0
    %v796 = vadd.f32 %v447, %v795
    %797 = vmatmul.f32.gmra.mxu0 %v586
    %v798 = vpop.f32.mrf.mxu0
    %v799 = vadd.f32 %v447, %v798
    %800 = vmatmul.f32.gmra.mxu0 %v589
    %v801 = vpop.f32.mrf.mxu0
    %v802 = vadd.f32 %v447, %v801
    %803 = vmatmul.f32.gmra.mxu0 %v592
    %v804 = vpop.f32.mrf.mxu0
    %v805 = vadd.f32 %v447, %v804
    %806 = vmatmul.f32.gmra.mxu0 %v595
    %v807 = vpop.f32.mrf.mxu0
    %v808 = vadd.f32 %v447, %v807
    %809 = vmatmul.f32.gmra.mxu0 %v598
    %v810 = vpop.f32.mrf.mxu0
    %v811 = vadd.f32 %v447, %v810
    %812 = vmatmul.f32.gmra.mxu0 %v601
    %v813 = vpop.f32.mrf.mxu0
    %v814 = vadd.f32 %v447, %v813
    %815 = vmatmul.f32.gmra.mxu0 %v604
    %v816 = vpop.f32.mrf.mxu0
    %v817 = vadd.f32 %v447, %v816
    %818 = vmatmul.f32.gmra.mxu0 %v607
    %v819 = vpop.f32.mrf.mxu0
    %v820 = vadd.f32 %v447, %v819
    %821 = vmatmul.f32.gmra.mxu0 %v610
    %v822 = vpop.f32.mrf.mxu0
    %v823 = vadd.f32 %v447, %v822
    %824 = vmatmul.f32.gmra.mxu0 %v613
    %v825 = vpop.f32.mrf.mxu0
    %v826 = vadd.f32 %v447, %v825
    %827 = vmatmul.f32.gmra.mxu0 %v616
    %v828 = vpop.f32.mrf.mxu0
    %v829 = vadd.f32 %v447, %v828
    %830 = vmatmul.f32.gmra.mxu0 %v619
    %v831 = vpop.f32.mrf.mxu0
    %v832 = vadd.f32 %v447, %v831
    %833 = vmatmul.f32.gmra.mxu0 %v622
    %v834 = vpop.f32.mrf.mxu0
    %v835 = vadd.f32 %v447, %v834
    %836 = vmatmul.f32.gmra.mxu0 %v625
    %v837 = vpop.f32.mrf.mxu0
    %v838 = vadd.f32 %v447, %v837
    %839 = vmatmul.f32.gmra.mxu0 %v628
    %v840 = vpop.f32.mrf.mxu0
    %v841 = vadd.f32 %v447, %v840
    %842 = vmatmul.f32.gmra.mxu0 %v631
    %v843 = vpop.f32.mrf.mxu0
    %v844 = vadd.f32 %v447, %v843
    %845 = vmatmul.f32.gmra.mxu0 %v634
    %v846 = vpop.f32.mrf.mxu0
    %v847 = vadd.f32 %v447, %v846
    %848 = vmatmul.f32.gmra.mxu0 %v637
    %v849 = vpop.f32.mrf.mxu0
    %v850 = vadd.f32 %v447, %v849
    %851 = vmatmul.f32.gmra.mxu0 %v640
    %v852 = vpop.f32.mrf.mxu0
    %v853 = vadd.f32 %v447, %v852
    %854 = vdwg.mxu0
    %855 = vst [vmem:[#allocation2] sm:$0xff] 0.0
    %856 = vst [vmem:[#allocation2 + $0x8] sm:$0xff] 0.0
    %857 = vst [vmem:[#allocation2 + $0x10] sm:$0x3] 0.0
    %858 = vst [vmem:[#allocation2 + $0x18] sm:$0xff] 0.0
    %859 = vst [vmem:[#allocation2 + $0x20] sm:$0xff] 0.0
    %860 = vst [vmem:[#allocation2 + $0x28] sm:$0x3] 0.0
    %861 = vst [vmem:[#allocation2 + $0x30] sm:$0xff] 0.0
    %862 = vst [vmem:[#allocation2 + $0x38] sm:$0xff] 0.0
    %863 = vst [vmem:[#allocation2 + $0x40] sm:$0x3] 0.0
    %864 = vst [vmem:[#allocation2 + $0x48] sm:$0xff] 0.0
    %865 = vst [vmem:[#allocation2 + $0x50] sm:$0xff] 0.0
    %866 = vst [vmem:[#allocation2 + $0x58] sm:$0x3] 0.0
    %867 = vst [vmem:[#allocation2 + $0x60] sm:$0xff] 0.0
    %868 = vst [vmem:[#allocation2 + $0x68] sm:$0xff] 0.0
    %869 = vst [vmem:[#allocation2 + $0x70] sm:$0x3] 0.0
    %870 = vst [vmem:[#allocation2 + $0x78] sm:$0xff] 0.0
    %871 = vst [vmem:[#allocation2 + $0x80] sm:$0xff] 0.0
    %872 = vst [vmem:[#allocation2 + $0x88] sm:$0x3] 0.0
    %873 = vst [vmem:[#allocation2 + $0x90] sm:$0xff] 0.0
    %874 = vst [vmem:[#allocation2 + $0x98] sm:$0xff] 0.0
    %875 = vst [vmem:[#allocation2 + $0xa0] sm:$0x3] 0.0
    %876 = vst [vmem:[#allocation2 + $0xa8] sm:$0xff] 0.0
    %877 = vst [vmem:[#allocation2 + $0xb0] sm:$0xff] 0.0
    %878 = vst [vmem:[#allocation2 + $0xb8] sm:$0x3] 0.0
    %879 = vst [vmem:[#allocation2 + $0xc0] sm:$0xff] 0.0
    %880 = vst [vmem:[#allocation2 + $0xc8] sm:$0xff] 0.0
    %881 = vst [vmem:[#allocation2 + $0xd0] sm:$0x3] 0.0
    %882 = vst [vmem:[#allocation2 + $0xd8] sm:$0xff] 0.0
    %883 = vst [vmem:[#allocation2 + $0xe0] sm:$0xff] 0.0
    %884 = vst [vmem:[#allocation2 + $0xe8] sm:$0x3] 0.0
    %885 = vst [vmem:[#allocation2 + $0xf0] sm:$0xff] 0.0
    %886 = vst [vmem:[#allocation2 + $0xf8] sm:$0xff] 0.0
    %887 = vst [vmem:[#allocation2 + $0x100] sm:$0x3] 0.0
    %888 = vst [vmem:[#allocation2 + $0x108] sm:$0xff] 0.0
    %889 = vst [vmem:[#allocation2 + $0x110] sm:$0xff] 0.0
    %890 = vst [vmem:[#allocation2 + $0x118] sm:$0x3] 0.0
    %891 = vst [vmem:[#allocation2 + $0x120] sm:$0xff] 0.0
    %892 = vst [vmem:[#allocation2 + $0x128] sm:$0xff] 0.0
    %893 = vst [vmem:[#allocation2 + $0x130] sm:$0x3] 0.0
    %894 = vst [vmem:[#allocation2 + $0x138] sm:$0xff] 0.0
    %895 = vst [vmem:[#allocation2 + $0x140] sm:$0xff] 0.0
    %896 = vst [vmem:[#allocation2 + $0x148] sm:$0x3] 0.0
    %897 = vst [vmem:[#allocation2 + $0x150] sm:$0xff] 0.0
    %898 = vst [vmem:[#allocation2 + $0x158] sm:$0xff] 0.0
    %899 = vst [vmem:[#allocation2 + $0x160] sm:$0x3] 0.0
    %900 = vst [vmem:[#allocation2 + $0x168] sm:$0xff] 0.0
    %901 = vst [vmem:[#allocation2 + $0x170] sm:$0xff] 0.0
    %902 = vst [vmem:[#allocation2 + $0x178] sm:$0x3] 0.0
    %903 = vst [vmem:[#allocation2 + $0x180] sm:$0xff] 0.0
    %904 = vst [vmem:[#allocation2 + $0x188] sm:$0xff] 0.0
    %905 = vst [vmem:[#allocation2 + $0x190] sm:$0x3] 0.0
    %906 = vst [vmem:[#allocation2 + $0x198] sm:$0xff] 0.0
    %907 = vst [vmem:[#allocation2 + $0x1a0] sm:$0xff] 0.0
    %908 = vst [vmem:[#allocation2 + $0x1a8] sm:$0x3] 0.0
    %909 = vst [vmem:[#allocation2 + $0x1b0] sm:$0xff] 0.0
    %910 = vst [vmem:[#allocation2 + $0x1b8] sm:$0xff] 0.0
    %911 = vst [vmem:[#allocation2 + $0x1c0] sm:$0x3] 0.0
    %912 = vst [vmem:[#allocation2 + $0x1c8] sm:$0xff] 0.0
    %913 = vst [vmem:[#allocation2 + $0x1d0] sm:$0xff] 0.0
    %914 = vst [vmem:[#allocation2 + $0x1d8] sm:$0x3] 0.0
    %915 = vst [vmem:[#allocation2 + $0x1e0] sm:$0xff] 0.0
    %916 = vst [vmem:[#allocation2 + $0x1e8] sm:$0xff] 0.0
    %917 = vst [vmem:[#allocation2 + $0x1f0] sm:$0x3] 0.0
    %918 = vst [vmem:[#allocation2 + $0x1f8] sm:$0xff] 0.0
    %919 = vst [vmem:[#allocation2 + $0x200] sm:$0xff] 0.0
    %920 = vst [vmem:[#allocation2 + $0x208] sm:$0x3] 0.0
    %921 = vst [vmem:[#allocation2 + $0x210] sm:$0xff] 0.0
    %922 = vst [vmem:[#allocation2 + $0x218] sm:$0xff] 0.0
    %923 = vst [vmem:[#allocation2 + $0x220] sm:$0x3] 0.0
    %924 = vst [vmem:[#allocation2 + $0x228] sm:$0xff] 0.0
    %925 = vst [vmem:[#allocation2 + $0x230] sm:$0xff] 0.0
    %926 = vst [vmem:[#allocation2 + $0x238] sm:$0x3] 0.0
    %927 = vst [vmem:[#allocation2 + $0x240] sm:$0xff] 0.0
    %928 = vst [vmem:[#allocation2 + $0x248] sm:$0xff] 0.0
    %929 = vst [vmem:[#allocation2 + $0x250] sm:$0x3] 0.0
    %930 = vst [vmem:[#allocation2 + $0x258] sm:$0xff] 0.0
    %931 = vst [vmem:[#allocation2 + $0x260] sm:$0xff] 0.0
    %932 = vst [vmem:[#allocation2 + $0x268] sm:$0x3] 0.0
    %933 = vst [vmem:[#allocation2 + $0x270] sm:$0xff] 0.0
    %934 = vst [vmem:[#allocation2 + $0x278] sm:$0xff] 0.0
    %935 = vst [vmem:[#allocation2 + $0x280] sm:$0x3] 0.0
    %936 = vst [vmem:[#allocation2 + $0x288] sm:$0xff] 0.0
    %937 = vst [vmem:[#allocation2 + $0x290] sm:$0xff] 0.0
    %938 = vst [vmem:[#allocation2 + $0x298] sm:$0x3] 0.0
    %939 = vst [vmem:[#allocation2 + $0x2a0] sm:$0xff] 0.0
    %940 = vst [vmem:[#allocation2 + $0x2a8] sm:$0xff] 0.0
    %941 = vst [vmem:[#allocation2 + $0x2b0] sm:$0x3] 0.0
    %942 = vst [vmem:[#allocation2 + $0x2b8] sm:$0xff] 0.0
    %943 = vst [vmem:[#allocation2 + $0x2c0] sm:$0xff] 0.0
    %944 = vst [vmem:[#allocation2 + $0x2c8] sm:$0x3] 0.0
    %945 = vst [vmem:[#allocation2 + $0x2d0] sm:$0xff] 0.0
    %946 = vst [vmem:[#allocation2 + $0x2d8] sm:$0xff] 0.0
    %947 = vst [vmem:[#allocation2 + $0x2e0] sm:$0x3] 0.0
    %948 = vst [vmem:[#allocation2 + $0x2e8] sm:$0xff] 0.0
    %949 = vst [vmem:[#allocation2 + $0x2f0] sm:$0xff] 0.0
    %950 = vst [vmem:[#allocation2 + $0x2f8] sm:$0x3] 0.0
    %951 = vst [vmem:[#allocation2 + $0x300] sm:$0xff] 0.0
    %952 = vst [vmem:[#allocation2 + $0x308] sm:$0xff] 0.0
    %953 = vst [vmem:[#allocation2 + $0x310] sm:$0x3] 0.0
    %954 = vst [vmem:[#allocation2 + $0x318] sm:$0xff] 0.0
    %955 = vst [vmem:[#allocation2 + $0x320] sm:$0xff] 0.0
    %956 = vst [vmem:[#allocation2 + $0x328] sm:$0x3] 0.0
    %957 = vst [vmem:[#allocation2 + $0x330] sm:$0xff] 0.0
    %958 = vst [vmem:[#allocation2 + $0x338] sm:$0xff] 0.0
    %959 = vst [vmem:[#allocation2 + $0x340] sm:$0x3] 0.0
    %960 = vst [vmem:[#allocation2 + $0x348] sm:$0xff] 0.0
    %961 = vst [vmem:[#allocation2 + $0x350] sm:$0xff] 0.0
    %962 = vst [vmem:[#allocation2 + $0x358] sm:$0x3] 0.0
    %v963 = vld [vmem:[%s17] sm:$0x1]
    %v964 = vperm.slane %v963, 0
    %v965 = vmul.f32 %v664, %v964
    %v966 = vmul.f32 %v667, %v964
    %v967 = vmul.f32 %v670, %v964
    %v968 = vmul.f32 %v673, %v964
    %v969 = vmul.f32 %v676, %v964
    %v970 = vmul.f32 %v679, %v964
    %v971 = vmul.f32 %v682, %v964
    %v972 = vmul.f32 %v685, %v964
    %v973 = vmul.f32 %v688, %v964
    %v974 = vmul.f32 %v691, %v964
    %v975 = vmul.f32 %v694, %v964
    %v976 = vmul.f32 %v697, %v964
    %v977 = vmul.f32 %v700, %v964
    %v978 = vmul.f32 %v703, %v964
    %v979 = vmul.f32 %v706, %v964
    %v980 = vmul.f32 %v709, %v964
    %v981 = vmul.f32 %v712, %v964
    %v982 = vmul.f32 %v715, %v964
    %v983 = vmul.f32 %v718, %v964
    %v984 = vmul.f32 %v721, %v964
    %v985 = vmul.f32 %v724, %v964
    %v986 = vmul.f32 %v727, %v964
    %v987 = vmul.f32 %v730, %v964
    %v988 = vmul.f32 %v733, %v964
    %v989 = vmul.f32 %v736, %v964
    %v990 = vmul.f32 %v739, %v964
    %v991 = vmul.f32 %v742, %v964
    %v992 = vmul.f32 %v745, %v964
    %v993 = vmul.f32 %v748, %v964
    %v994 = vmul.f32 %v751, %v964
    %v995 = vmul.f32 %v754, %v964
    %v996 = vmul.f32 %v757, %v964
    %v997 = vld [vmem:[%s18] sm:$0x1]
    %v998 = vperm.slane %v997, 0
    %v999 = vadd.f32 %v965, %v998
    %v1000 = vadd.f32 %v966, %v998
    %v1001 = vadd.f32 %v967, %v998
    %v1002 = vadd.f32 %v968, %v998
    %v1003 = vadd.f32 %v969, %v998
    %v1004 = vadd.f32 %v970, %v998
    %v1005 = vadd.f32 %v971, %v998
    %v1006 = vadd.f32 %v972, %v998
    %v1007 = vadd.f32 %v973, %v998
    %v1008 = vadd.f32 %v974, %v998
    %v1009 = vadd.f32 %v975, %v998
    %v1010 = vadd.f32 %v976, %v998
    %v1011 = vadd.f32 %v977, %v998
    %v1012 = vadd.f32 %v978, %v998
    %v1013 = vadd.f32 %v979, %v998
    %v1014 = vadd.f32 %v980, %v998
    %v1015 = vadd.f32 %v981, %v998
    %v1016 = vadd.f32 %v982, %v998
    %v1017 = vadd.f32 %v983, %v998
    %v1018 = vadd.f32 %v984, %v998
    %v1019 = vadd.f32 %v985, %v998
    %v1020 = vadd.f32 %v986, %v998
    %v1021 = vadd.f32 %v987, %v998
    %v1022 = vadd.f32 %v988, %v998
    %v1023 = vadd.f32 %v989, %v998
    %v1024 = vadd.f32 %v990, %v998
    %v1025 = vadd.f32 %v991, %v998
    %v1026 = vadd.f32 %v992, %v998
    %v1027 = vadd.f32 %v993, %v998
    %v1028 = vadd.f32 %v994, %v998
    %v1029 = vadd.f32 %v995, %v998
    %v1030 = vadd.f32 %v996, %v998
    %v1031 = vmax.f32 %v999, 0.0
    %v1032 = vmax.f32 %v1000, 0.0
    %v1033 = vmax.f32 %v1001, 0.0
    %v1034 = vmax.f32 %v1002, 0.0
    %v1035 = vmax.f32 %v1003, 0.0
    %v1036 = vmax.f32 %v1004, 0.0
    %v1037 = vmax.f32 %v1005, 0.0
    %v1038 = vmax.f32 %v1006, 0.0
    %v1039 = vmax.f32 %v1007, 0.0
    %v1040 = vmax.f32 %v1008, 0.0
    %v1041 = vmax.f32 %v1009, 0.0
    %v1042 = vmax.f32 %v1010, 0.0
    %v1043 = vmax.f32 %v1011, 0.0
    %v1044 = vmax.f32 %v1012, 0.0
    %v1045 = vmax.f32 %v1013, 0.0
    %v1046 = vmax.f32 %v1014, 0.0
    %v1047 = vmax.f32 %v1015, 0.0
    %v1048 = vmax.f32 %v1016, 0.0
    %v1049 = vmax.f32 %v1017, 0.0
    %v1050 = vmax.f32 %v1018, 0.0
    %v1051 = vmax.f32 %v1019, 0.0
    %v1052 = vmax.f32 %v1020, 0.0
    %v1053 = vmax.f32 %v1021, 0.0
    %v1054 = vmax.f32 %v1022, 0.0
    %v1055 = vmax.f32 %v1023, 0.0
    %v1056 = vmax.f32 %v1024, 0.0
    %v1057 = vmax.f32 %v1025, 0.0
    %v1058 = vmax.f32 %v1026, 0.0
    %v1059 = vmax.f32 %v1027, 0.0
    %v1060 = vmax.f32 %v1028, 0.0
    %v1061 = vmax.f32 %v1029, 0.0
    %v1062 = vmax.f32 %v1030, 0.0
    %s1063 = scalar_lea.vmem [#allocation2], 24
    %1064 = vst [vmem:[%s1063 + $0x1] sm:$0xff] %v1031
    %1065 = vst [vmem:[%s1063 + $0x9] sm:$0xff] %v1032
    %1066 = vst [vmem:[%s1063 + $0x19] sm:$0xff] %v1033
    %1067 = vst [vmem:[%s1063 + $0x21] sm:$0xff] %v1034
    %1068 = vst [vmem:[%s1063 + $0x31] sm:$0xff] %v1035
    %1069 = vst [vmem:[%s1063 + $0x39] sm:$0xff] %v1036
    %1070 = vst [vmem:[%s1063 + $0x49] sm:$0xff] %v1037
    %1071 = vst [vmem:[%s1063 + $0x51] sm:$0xff] %v1038
    %1072 = vst [vmem:[%s1063 + $0x61] sm:$0xff] %v1039
    %1073 = vst [vmem:[%s1063 + $0x69] sm:$0xff] %v1040
    %1074 = vst [vmem:[%s1063 + $0x79] sm:$0xff] %v1041
    %1075 = vst [vmem:[%s1063 + $0x81] sm:$0xff] %v1042
    %1076 = vst [vmem:[%s1063 + $0x91] sm:$0xff] %v1043
    %1077 = vst [vmem:[%s1063 + $0x99] sm:$0xff] %v1044
    %1078 = vst [vmem:[%s1063 + $0xa9] sm:$0xff] %v1045
    %1079 = vst [vmem:[%s1063 + $0xb1] sm:$0xff] %v1046
    %1080 = vst [vmem:[%s1063 + $0xc1] sm:$0xff] %v1047
    %1081 = vst [vmem:[%s1063 + $0xc9] sm:$0xff] %v1048
    %1082 = vst [vmem:[%s1063 + $0xd9] sm:$0xff] %v1049
    %1083 = vst [vmem:[%s1063 + $0xe1] sm:$0xff] %v1050
    %1084 = vst [vmem:[%s1063 + $0xf1] sm:$0xff] %v1051
    %1085 = vst [vmem:[%s1063 + $0xf9] sm:$0xff] %v1052
    %1086 = vst [vmem:[%s1063 + $0x109] sm:$0xff] %v1053
    %1087 = vst [vmem:[%s1063 + $0x111] sm:$0xff] %v1054
    %1088 = vst [vmem:[%s1063 + $0x121] sm:$0xff] %v1055
    %1089 = vst [vmem:[%s1063 + $0x129] sm:$0xff] %v1056
    %1090 = vst [vmem:[%s1063 + $0x139] sm:$0xff] %v1057
    %1091 = vst [vmem:[%s1063 + $0x141] sm:$0xff] %v1058
    %1092 = vst [vmem:[%s1063 + $0x151] sm:$0xff] %v1059
    %1093 = vst [vmem:[%s1063 + $0x159] sm:$0xff] %v1060
    %1094 = vst [vmem:[%s1063 + $0x169] sm:$0xff] %v1061
    %1095 = vst [vmem:[%s1063 + $0x171] sm:$0xff] %v1062
    %v1096 = vld [vmem:[%s17 + $0x1] sm:$0x1]
    %v1097 = vperm.slane %v1096, 0
    %v1098 = vmul.f32 %v760, %v1097
    %v1099 = vmul.f32 %v763, %v1097
    %v1100 = vmul.f32 %v766, %v1097
    %v1101 = vmul.f32 %v769, %v1097
    %v1102 = vmul.f32 %v772, %v1097
    %v1103 = vmul.f32 %v775, %v1097
    %v1104 = vmul.f32 %v778, %v1097
    %v1105 = vmul.f32 %v781, %v1097
    %v1106 = vmul.f32 %v784, %v1097
    %v1107 = vmul.f32 %v787, %v1097
    %v1108 = vmul.f32 %v790, %v1097
    %v1109 = vmul.f32 %v793, %v1097
    %v1110 = vmul.f32 %v796, %v1097
    %v1111 = vmul.f32 %v799, %v1097
    %v1112 = vmul.f32 %v802, %v1097
    %v1113 = vmul.f32 %v805, %v1097
    %v1114 = vmul.f32 %v808, %v1097
    %v1115 = vmul.f32 %v811, %v1097
    %v1116 = vmul.f32 %v814, %v1097
    %v1117 = vmul.f32 %v817, %v1097
    %v1118 = vmul.f32 %v820, %v1097
    %v1119 = vmul.f32 %v823, %v1097
    %v1120 = vmul.f32 %v826, %v1097
    %v1121 = vmul.f32 %v829, %v1097
    %v1122 = vmul.f32 %v832, %v1097
    %v1123 = vmul.f32 %v835, %v1097
    %v1124 = vmul.f32 %v838, %v1097
    %v1125 = vmul.f32 %v841, %v1097
    %v1126 = vmul.f32 %v844, %v1097
    %v1127 = vmul.f32 %v847, %v1097
    %v1128 = vmul.f32 %v850, %v1097
    %v1129 = vmul.f32 %v853, %v1097
    %v1130 = vld [vmem:[%s18 + $0x1] sm:$0x1]
    %v1131 = vperm.slane %v1130, 0
    %v1132 = vadd.f32 %v1098, %v1131
    %v1133 = vadd.f32 %v1099, %v1131
    %v1134 = vadd.f32 %v1100, %v1131
    %v1135 = vadd.f32 %v1101, %v1131
    %v1136 = vadd.f32 %v1102, %v1131
    %v1137 = vadd.f32 %v1103, %v1131
    %v1138 = vadd.f32 %v1104, %v1131
    %v1139 = vadd.f32 %v1105, %v1131
    %v1140 = vadd.f32 %v1106, %v1131
    %v1141 = vadd.f32 %v1107, %v1131
    %v1142 = vadd.f32 %v1108, %v1131
    %v1143 = vadd.f32 %v1109, %v1131
    %v1144 = vadd.f32 %v1110, %v1131
    %v1145 = vadd.f32 %v1111, %v1131
    %v1146 = vadd.f32 %v1112, %v1131
    %v1147 = vadd.f32 %v1113, %v1131
    %v1148 = vadd.f32 %v1114, %v1131
    %v1149 = vadd.f32 %v1115, %v1131
    %v1150 = vadd.f32 %v1116, %v1131
    %v1151 = vadd.f32 %v1117, %v1131
    %v1152 = vadd.f32 %v1118, %v1131
    %v1153 = vadd.f32 %v1119, %v1131
    %v1154 = vadd.f32 %v1120, %v1131
    %v1155 = vadd.f32 %v1121, %v1131
    %v1156 = vadd.f32 %v1122, %v1131
    %v1157 = vadd.f32 %v1123, %v1131
    %v1158 = vadd.f32 %v1124, %v1131
    %v1159 = vadd.f32 %v1125, %v1131
    %v1160 = vadd.f32 %v1126, %v1131
    %v1161 = vadd.f32 %v1127, %v1131
    %v1162 = vadd.f32 %v1128, %v1131
    %v1163 = vadd.f32 %v1129, %v1131
    %v1164 = vmax.f32 %v1132, 0.0
    %v1165 = vmax.f32 %v1133, 0.0
    %v1166 = vmax.f32 %v1134, 0.0
    %v1167 = vmax.f32 %v1135, 0.0
    %v1168 = vmax.f32 %v1136, 0.0
    %v1169 = vmax.f32 %v1137, 0.0
    %v1170 = vmax.f32 %v1138, 0.0
    %v1171 = vmax.f32 %v1139, 0.0
    %v1172 = vmax.f32 %v1140, 0.0
    %v1173 = vmax.f32 %v1141, 0.0
    %v1174 = vmax.f32 %v1142, 0.0
    %v1175 = vmax.f32 %v1143, 0.0
    %v1176 = vmax.f32 %v1144, 0.0
    %v1177 = vmax.f32 %v1145, 0.0
    %v1178 = vmax.f32 %v1146, 0.0
    %v1179 = vmax.f32 %v1147, 0.0
    %v1180 = vmax.f32 %v1148, 0.0
    %v1181 = vmax.f32 %v1149, 0.0
    %v1182 = vmax.f32 %v1150, 0.0
    %v1183 = vmax.f32 %v1151, 0.0
    %v1184 = vmax.f32 %v1152, 0.0
    %v1185 = vmax.f32 %v1153, 0.0
    %v1186 = vmax.f32 %v1154, 0.0
    %v1187 = vmax.f32 %v1155, 0.0
    %v1188 = vmax.f32 %v1156, 0.0
    %v1189 = vmax.f32 %v1157, 0.0
    %v1190 = vmax.f32 %v1158, 0.0
    %v1191 = vmax.f32 %v1159, 0.0
    %v1192 = vmax.f32 %v1160, 0.0
    %v1193 = vmax.f32 %v1161, 0.0
    %v1194 = vmax.f32 %v1162, 0.0
    %v1195 = vmax.f32 %v1163, 0.0
    %s1196 = scalar_lea.vmem [#allocation2], 456
    %1197 = vst [vmem:[%s1196 + $0x1] sm:$0xff] %v1164
    %1198 = vst [vmem:[%s1196 + $0x9] sm:$0xff] %v1165
    %1199 = vst [vmem:[%s1196 + $0x19] sm:$0xff] %v1166
    %1200 = vst [vmem:[%s1196 + $0x21] sm:$0xff] %v1167
    %1201 = vst [vmem:[%s1196 + $0x31] sm:$0xff] %v1168
    %1202 = vst [vmem:[%s1196 + $0x39] sm:$0xff] %v1169
    %1203 = vst [vmem:[%s1196 + $0x49] sm:$0xff] %v1170
    %1204 = vst [vmem:[%s1196 + $0x51] sm:$0xff] %v1171
    %1205 = vst [vmem:[%s1196 + $0x61] sm:$0xff] %v1172
    %1206 = vst [vmem:[%s1196 + $0x69] sm:$0xff] %v1173
    %1207 = vst [vmem:[%s1196 + $0x79] sm:$0xff] %v1174
    %1208 = vst [vmem:[%s1196 + $0x81] sm:$0xff] %v1175
    %1209 = vst [vmem:[%s1196 + $0x91] sm:$0xff] %v1176
    %1210 = vst [vmem:[%s1196 + $0x99] sm:$0xff] %v1177
    %1211 = vst [vmem:[%s1196 + $0xa9] sm:$0xff] %v1178
    %1212 = vst [vmem:[%s1196 + $0xb1] sm:$0xff] %v1179
    %1213 = vst [vmem:[%s1196 + $0xc1] sm:$0xff] %v1180
    %1214 = vst [vmem:[%s1196 + $0xc9] sm:$0xff] %v1181
    %1215 = vst [vmem:[%s1196 + $0xd9] sm:$0xff] %v1182
    %1216 = vst [vmem:[%s1196 + $0xe1] sm:$0xff] %v1183
    %1217 = vst [vmem:[%s1196 + $0xf1] sm:$0xff] %v1184
    %1218 = vst [vmem:[%s1196 + $0xf9] sm:$0xff] %v1185
    %1219 = vst [vmem:[%s1196 + $0x109] sm:$0xff] %v1186
    %1220 = vst [vmem:[%s1196 + $0x111] sm:$0xff] %v1187
    %1221 = vst [vmem:[%s1196 + $0x121] sm:$0xff] %v1188
    %1222 = vst [vmem:[%s1196 + $0x129] sm:$0xff] %v1189
    %1223 = vst [vmem:[%s1196 + $0x139] sm:$0xff] %v1190
    %1224 = vst [vmem:[%s1196 + $0x141] sm:$0xff] %v1191
    %1225 = vst [vmem:[%s1196 + $0x151] sm:$0xff] %v1192
    %1226 = vst [vmem:[%s1196 + $0x159] sm:$0xff] %v1193
    %1227 = vst [vmem:[%s1196 + $0x169] sm:$0xff] %v1194
    %1228 = vst [vmem:[%s1196 + $0x171] sm:$0xff] %v1195
    %v1229 = vld [vmem:[#allocation2] sm:$0xff]
    %v1230 = vld [vmem:[#allocation2 + $0x8] sm:$0xff]
    %v1231 = vld [vmem:[#allocation2 + $0x18] sm:$0xff]
    %v1232 = vld [vmem:[#allocation2 + $0x20] sm:$0xff]
    %v1233 = vld [vmem:[#allocation2 + $0x30] sm:$0xff]
    %v1234 = vld [vmem:[#allocation2 + $0x38] sm:$0xff]
    %v1235 = vld [vmem:[#allocation2 + $0x48] sm:$0xff]
    %v1236 = vld [vmem:[#allocation2 + $0x50] sm:$0xff]
    %v1237 = vld [vmem:[#allocation2 + $0x60] sm:$0xff]
    %v1238 = vld [vmem:[#allocation2 + $0x68] sm:$0xff]
    %v1239 = vld [vmem:[#allocation2 + $0x78] sm:$0xff]
    %v1240 = vld [vmem:[#allocation2 + $0x80] sm:$0xff]
    %v1241 = vld [vmem:[#allocation2 + $0x90] sm:$0xff]
    %v1242 = vld [vmem:[#allocation2 + $0x98] sm:$0xff]
    %v1243 = vld [vmem:[#allocation2 + $0xa8] sm:$0xff]
    %v1244 = vld [vmem:[#allocation2 + $0xb0] sm:$0xff]
    %v1245 = vld [vmem:[#allocation2 + $0xc0] sm:$0xff]
    %v1246 = vld [vmem:[#allocation2 + $0xc8] sm:$0xff]
    %v1247 = vld [vmem:[#allocation2 + $0xd8] sm:$0xff]
    %v1248 = vld [vmem:[#allocation2 + $0xe0] sm:$0xff]
    %v1249 = vld [vmem:[#allocation2 + $0xf0] sm:$0xff]
    %v1250 = vld [vmem:[#allocation2 + $0xf8] sm:$0xff]
    %v1251 = vld [vmem:[#allocation2 + $0x108] sm:$0xff]
    %v1252 = vld [vmem:[#allocation2 + $0x110] sm:$0xff]
    %v1253 = vld [vmem:[#allocation2 + $0x120] sm:$0xff]
    %v1254 = vld [vmem:[#allocation2 + $0x128] sm:$0xff]
    %v1255 = vld [vmem:[#allocation2 + $0x138] sm:$0xff]
    %v1256 = vld [vmem:[#allocation2 + $0x140] sm:$0xff]
    %v1257 = vld [vmem:[#allocation2 + $0x150] sm:$0xff]
    %v1258 = vld [vmem:[#allocation2 + $0x158] sm:$0xff]
    %v1259 = vld [vmem:[#allocation2 + $0x168] sm:$0xff]
    %v1260 = vld [vmem:[#allocation2 + $0x170] sm:$0xff]
    %v1261 = vld [vmem:[#allocation2 + $0x1b0] sm:$0xff]
    %v1262 = vld [vmem:[#allocation2 + $0x1b8] sm:$0xff]
    %v1263 = vld [vmem:[#allocation2 + $0x1c8] sm:$0xff]
    %v1264 = vld [vmem:[#allocation2 + $0x1d0] sm:$0xff]
    %v1265 = vld [vmem:[#allocation2 + $0x1e0] sm:$0xff]
    %v1266 = vld [vmem:[#allocation2 + $0x1e8] sm:$0xff]
    %v1267 = vld [vmem:[#allocation2 + $0x1f8] sm:$0xff]
    %v1268 = vld [vmem:[#allocation2 + $0x200] sm:$0xff]
    %v1269 = vld [vmem:[#allocation2 + $0x210] sm:$0xff]
    %v1270 = vld [vmem:[#allocation2 + $0x218] sm:$0xff]
    %v1271 = vld [vmem:[#allocation2 + $0x228] sm:$0xff]
    %v1272 = vld [vmem:[#allocation2 + $0x230] sm:$0xff]
    %v1273 = vld [vmem:[#allocation2 + $0x240] sm:$0xff]
    %v1274 = vld [vmem:[#allocation2 + $0x248] sm:$0xff]
    %v1275 = vld [vmem:[#allocation2 + $0x258] sm:$0xff]
    %v1276 = vld [vmem:[#allocation2 + $0x260] sm:$0xff]
    %v1277 = vld [vmem:[#allocation2 + $0x270] sm:$0xff]
    %v1278 = vld [vmem:[#allocation2 + $0x278] sm:$0xff]
    %v1279 = vld [vmem:[#allocation2 + $0x288] sm:$0xff]
    %v1280 = vld [vmem:[#allocation2 + $0x290] sm:$0xff]
    %v1281 = vld [vmem:[#allocation2 + $0x2a0] sm:$0xff]
    %v1282 = vld [vmem:[#allocation2 + $0x2a8] sm:$0xff]
    %v1283 = vld [vmem:[#allocation2 + $0x2b8] sm:$0xff]
    %v1284 = vld [vmem:[#allocation2 + $0x2c0] sm:$0xff]
    %v1285 = vld [vmem:[#allocation2 + $0x2d0] sm:$0xff]
    %v1286 = vld [vmem:[#allocation2 + $0x2d8] sm:$0xff]
    %v1287 = vld [vmem:[#allocation2 + $0x2e8] sm:$0xff]
    %v1288 = vld [vmem:[#allocation2 + $0x2f0] sm:$0xff]
    %v1289 = vld [vmem:[#allocation2 + $0x300] sm:$0xff]
    %v1290 = vld [vmem:[#allocation2 + $0x308] sm:$0xff]
    %v1291 = vld [vmem:[#allocation2 + $0x318] sm:$0xff]
    %v1292 = vld [vmem:[#allocation2 + $0x320] sm:$0xff]
    %1293 = vst [vmem:[#allocation3] sm:$0xff] %v1229
    %1294 = vst [vmem:[#allocation3 + $0x48] sm:$0xff] %v1230
    %1295 = vst [vmem:[#allocation3 + $0x90] sm:$0xff] %v1231
    %1296 = vst [vmem:[#allocation3 + $0xd8] sm:$0xff] %v1232
    %1297 = vst [vmem:[#allocation3 + $0x120] sm:$0xff] %v1233
    %1298 = vst [vmem:[#allocation3 + $0x168] sm:$0xff] %v1234
    %1299 = vst [vmem:[#allocation3 + $0x1b0] sm:$0xff] %v1235
    %1300 = vst [vmem:[#allocation3 + $0x1f8] sm:$0xff] %v1236
    %1301 = vst [vmem:[#allocation3 + $0x240] sm:$0xff] %v1237
    %1302 = vst [vmem:[#allocation3 + $0x288] sm:$0xff] %v1238
    %1303 = vst [vmem:[#allocation3 + $0x2d0] sm:$0xff] %v1239
    %1304 = vst [vmem:[#allocation3 + $0x318] sm:$0xff] %v1240
    %1305 = vst [vmem:[#allocation3 + $0x360] sm:$0xff] %v1241
    %1306 = vst [vmem:[#allocation3 + $0x3a8] sm:$0xff] %v1242
    %1307 = vst [vmem:[#allocation3 + $0x3f0] sm:$0xff] %v1243
    %1308 = vst [vmem:[#allocation3 + $0x438] sm:$0xff] %v1244
    %1309 = vst [vmem:[#allocation3 + $0x480] sm:$0xff] %v1245
    %1310 = vst [vmem:[#allocation3 + $0x4c8] sm:$0xff] %v1246
    %1311 = vst [vmem:[#allocation3 + $0x510] sm:$0xff] %v1247
    %1312 = vst [vmem:[#allocation3 + $0x558] sm:$0xff] %v1248
    %1313 = vst [vmem:[#allocation3 + $0x5a0] sm:$0xff] %v1249
    %1314 = vst [vmem:[#allocation3 + $0x5e8] sm:$0xff] %v1250
    %1315 = vst [vmem:[#allocation3 + $0x630] sm:$0xff] %v1251
    %1316 = vst [vmem:[#allocation3 + $0x678] sm:$0xff] %v1252
    %1317 = vst [vmem:[#allocation3 + $0x6c0] sm:$0xff] %v1253
    %1318 = vst [vmem:[#allocation3 + $0x708] sm:$0xff] %v1254
    %1319 = vst [vmem:[#allocation3 + $0x750] sm:$0xff] %v1255
    %1320 = vst [vmem:[#allocation3 + $0x798] sm:$0xff] %v1256
    %1321 = vst [vmem:[#allocation3 + $0x7e0] sm:$0xff] %v1257
    %1322 = vst [vmem:[#allocation3 + $0x828] sm:$0xff] %v1258
    %1323 = vst [vmem:[#allocation3 + $0x870] sm:$0xff] %v1259
    %1324 = vst [vmem:[#allocation3 + $0x8b8] sm:$0xff] %v1260
    %1325 = vst [vmem:[#allocation3 + $0x900] sm:$0xff] %v1261
    %1326 = vst [vmem:[#allocation3 + $0x948] sm:$0xff] %v1262
    %1327 = vst [vmem:[#allocation3 + $0x990] sm:$0xff] %v1263
    %1328 = vst [vmem:[#allocation3 + $0x9d8] sm:$0xff] %v1264
    %1329 = vst [vmem:[#allocation3 + $0xa20] sm:$0xff] %v1265
    %1330 = vst [vmem:[#allocation3 + $0xa68] sm:$0xff] %v1266
    %1331 = vst [vmem:[#allocation3 + $0xab0] sm:$0xff] %v1267
    %1332 = vst [vmem:[#allocation3 + $0xaf8] sm:$0xff] %v1268
    %1333 = vst [vmem:[#allocation3 + $0xb40] sm:$0xff] %v1269
    %1334 = vst [vmem:[#allocation3 + $0xb88] sm:$0xff] %v1270
    %1335 = vst [vmem:[#allocation3 + $0xbd0] sm:$0xff] %v1271
    %1336 = vst [vmem:[#allocation3 + $0xc18] sm:$0xff] %v1272
    %1337 = vst [vmem:[#allocation3 + $0xc60] sm:$0xff] %v1273
    %1338 = vst [vmem:[#allocation3 + $0xca8] sm:$0xff] %v1274
    %1339 = vst [vmem:[#allocation3 + $0xcf0] sm:$0xff] %v1275
    %1340 = vst [vmem:[#allocation3 + $0xd38] sm:$0xff] %v1276
    %1341 = vst [vmem:[#allocation3 + $0xd80] sm:$0xff] %v1277
    %1342 = vst [vmem:[#allocation3 + $0xdc8] sm:$0xff] %v1278
    %1343 = vst [vmem:[#allocation3 + $0xe10] sm:$0xff] %v1279
    %1344 = vst [vmem:[#allocation3 + $0xe58] sm:$0xff] %v1280
    %1345 = vst [vmem:[#allocation3 + $0xea0] sm:$0xff] %v1281
    %1346 = vst [vmem:[#allocation3 + $0xee8] sm:$0xff] %v1282
    %1347 = vst [vmem:[#allocation3 + $0xf30] sm:$0xff] %v1283
    %1348 = vst [vmem:[#allocation3 + $0xf78] sm:$0xff] %v1284
    %1349 = vst [vmem:[#allocation3 + $0xfc0] sm:$0xff] %v1285
    %1350 = vst [vmem:[#allocation3 + $0x1008] sm:$0xff] %v1286
    %1351 = vst [vmem:[#allocation3 + $0x1050] sm:$0xff] %v1287
    %1352 = vst [vmem:[#allocation3 + $0x1098] sm:$0xff] %v1288
    %1353 = vst [vmem:[#allocation3 + $0x10e0] sm:$0xff] %v1289
    %1354 = vst [vmem:[#allocation3 + $0x1128] sm:$0xff] %v1290
    %1355 = vst [vmem:[#allocation3 + $0x1170] sm:$0xff] %v1291
    %1356 = vst [vmem:[#allocation3 + $0x11b8] sm:$0xff] %v1292
    %v1357 = vld [vmem:[#allocation2 + $0x1] sm:$0xff]
    %v1358 = vld [vmem:[#allocation2 + $0x9] sm:$0xff]
    %v1359 = vld [vmem:[#allocation2 + $0x19] sm:$0xff]
    %v1360 = vld [vmem:[#allocation2 + $0x21] sm:$0xff]
    %v1361 = vld [vmem:[#allocation2 + $0x31] sm:$0xff]
    %v1362 = vld [vmem:[#allocation2 + $0x39] sm:$0xff]
    %v1363 = vld [vmem:[#allocation2 + $0x49] sm:$0xff]
    %v1364 = vld [vmem:[#allocation2 + $0x51] sm:$0xff]
    %v1365 = vld [vmem:[#allocation2 + $0x61] sm:$0xff]
    %v1366 = vld [vmem:[#allocation2 + $0x69] sm:$0xff]
    %v1367 = vld [vmem:[#allocation2 + $0x79] sm:$0xff]
    %v1368 = vld [vmem:[#allocation2 + $0x81] sm:$0xff]
    %v1369 = vld [vmem:[#allocation2 + $0x91] sm:$0xff]
    %v1370 = vld [vmem:[#allocation2 + $0x99] sm:$0xff]
    %v1371 = vld [vmem:[#allocation2 + $0xa9] sm:$0xff]
    %v1372 = vld [vmem:[#allocation2 + $0xb1] sm:$0xff]
    %v1373 = vld [vmem:[#allocation2 + $0xc1] sm:$0xff]
    %v1374 = vld [vmem:[#allocation2 + $0xc9] sm:$0xff]
    %v1375 = vld [vmem:[#allocation2 + $0xd9] sm:$0xff]
    %v1376 = vld [vmem:[#allocation2 + $0xe1] sm:$0xff]
    %v1377 = vld [vmem:[#allocation2 + $0xf1] sm:$0xff]
    %v1378 = vld [vmem:[#allocation2 + $0xf9] sm:$0xff]
    %v1379 = vld [vmem:[#allocation2 + $0x109] sm:$0xff]
    %v1380 = vld [vmem:[#allocation2 + $0x111] sm:$0xff]
    %v1381 = vld [vmem:[#allocation2 + $0x121] sm:$0xff]
    %v1382 = vld [vmem:[#allocation2 + $0x129] sm:$0xff]
    %v1383 = vld [vmem:[#allocation2 + $0x139] sm:$0xff]
    %v1384 = vld [vmem:[#allocation2 + $0x141] sm:$0xff]
    %v1385 = vld [vmem:[#allocation2 + $0x151] sm:$0xff]
    %v1386 = vld [vmem:[#allocation2 + $0x159] sm:$0xff]
    %v1387 = vld [vmem:[#allocation2 + $0x169] sm:$0xff]
    %v1388 = vld [vmem:[#allocation2 + $0x171] sm:$0xff]
    %v1389 = vld [vmem:[#allocation2 + $0x1b1] sm:$0xff]
    %v1390 = vld [vmem:[#allocation2 + $0x1b9] sm:$0xff]
    %v1391 = vld [vmem:[#allocation2 + $0x1c9] sm:$0xff]
    %v1392 = vld [vmem:[#allocation2 + $0x1d1] sm:$0xff]
    %v1393 = vld [vmem:[#allocation2 + $0x1e1] sm:$0xff]
    %v1394 = vld [vmem:[#allocation2 + $0x1e9] sm:$0xff]
    %v1395 = vld [vmem:[#allocation2 + $0x1f9] sm:$0xff]
    %v1396 = vld [vmem:[#allocation2 + $0x201] sm:$0xff]
    %v1397 = vld [vmem:[#allocation2 + $0x211] sm:$0xff]
    %v1398 = vld [vmem:[#allocation2 + $0x219] sm:$0xff]
    %v1399 = vld [vmem:[#allocation2 + $0x229] sm:$0xff]
    %v1400 = vld [vmem:[#allocation2 + $0x231] sm:$0xff]
    %v1401 = vld [vmem:[#allocation2 + $0x241] sm:$0xff]
    %v1402 = vld [vmem:[#allocation2 + $0x249] sm:$0xff]
    %v1403 = vld [vmem:[#allocation2 + $0x259] sm:$0xff]
    %v1404 = vld [vmem:[#allocation2 + $0x261] sm:$0xff]
    %v1405 = vld [vmem:[#allocation2 + $0x271] sm:$0xff]
    %v1406 = vld [vmem:[#allocation2 + $0x279] sm:$0xff]
    %v1407 = vld [vmem:[#allocation2 + $0x289] sm:$0xff]
    %v1408 = vld [vmem:[#allocation2 + $0x291] sm:$0xff]
    %v1409 = vld [vmem:[#allocation2 + $0x2a1] sm:$0xff]
    %v1410 = vld [vmem:[#allocation2 + $0x2a9] sm:$0xff]
    %v1411 = vld [vmem:[#allocation2 + $0x2b9] sm:$0xff]
    %v1412 = vld [vmem:[#allocation2 + $0x2c1] sm:$0xff]
    %v1413 = vld [vmem:[#allocation2 + $0x2d1] sm:$0xff]
    %v1414 = vld [vmem:[#allocation2 + $0x2d9] sm:$0xff]
    %v1415 = vld [vmem:[#allocation2 + $0x2e9] sm:$0xff]
    %v1416 = vld [vmem:[#allocation2 + $0x2f1] sm:$0xff]
    %v1417 = vld [vmem:[#allocation2 + $0x301] sm:$0xff]
    %v1418 = vld [vmem:[#allocation2 + $0x309] sm:$0xff]
    %v1419 = vld [vmem:[#allocation2 + $0x319] sm:$0xff]
    %v1420 = vld [vmem:[#allocation2 + $0x321] sm:$0xff]
    %1421 = vst [vmem:[#allocation3 + $0x8] sm:$0xff] %v1357
    %1422 = vst [vmem:[#allocation3 + $0x50] sm:$0xff] %v1358
    %1423 = vst [vmem:[#allocation3 + $0x98] sm:$0xff] %v1359
    %1424 = vst [vmem:[#allocation3 + $0xe0] sm:$0xff] %v1360
    %1425 = vst [vmem:[#allocation3 + $0x128] sm:$0xff] %v1361
    %1426 = vst [vmem:[#allocation3 + $0x170] sm:$0xff] %v1362
    %1427 = vst [vmem:[#allocation3 + $0x1b8] sm:$0xff] %v1363
    %1428 = vst [vmem:[#allocation3 + $0x200] sm:$0xff] %v1364
    %1429 = vst [vmem:[#allocation3 + $0x248] sm:$0xff] %v1365
    %1430 = vst [vmem:[#allocation3 + $0x290] sm:$0xff] %v1366
    %1431 = vst [vmem:[#allocation3 + $0x2d8] sm:$0xff] %v1367
    %1432 = vst [vmem:[#allocation3 + $0x320] sm:$0xff] %v1368
    %1433 = vst [vmem:[#allocation3 + $0x368] sm:$0xff] %v1369
    %1434 = vst [vmem:[#allocation3 + $0x3b0] sm:$0xff] %v1370
    %1435 = vst [vmem:[#allocation3 + $0x3f8] sm:$0xff] %v1371
    %1436 = vst [vmem:[#allocation3 + $0x440] sm:$0xff] %v1372
    %1437 = vst [vmem:[#allocation3 + $0x488] sm:$0xff] %v1373
    %1438 = vst [vmem:[#allocation3 + $0x4d0] sm:$0xff] %v1374
    %1439 = vst [vmem:[#allocation3 + $0x518] sm:$0xff] %v1375
    %1440 = vst [vmem:[#allocation3 + $0x560] sm:$0xff] %v1376
    %1441 = vst [vmem:[#allocation3 + $0x5a8] sm:$0xff] %v1377
    %1442 = vst [vmem:[#allocation3 + $0x5f0] sm:$0xff] %v1378
    %1443 = vst [vmem:[#allocation3 + $0x638] sm:$0xff] %v1379
    %1444 = vst [vmem:[#allocation3 + $0x680] sm:$0xff] %v1380
    %1445 = vst [vmem:[#allocation3 + $0x6c8] sm:$0xff] %v1381
    %1446 = vst [vmem:[#allocation3 + $0x710] sm:$0xff] %v1382
    %1447 = vst [vmem:[#allocation3 + $0x758] sm:$0xff] %v1383
    %1448 = vst [vmem:[#allocation3 + $0x7a0] sm:$0xff] %v1384
    %1449 = vst [vmem:[#allocation3 + $0x7e8] sm:$0xff] %v1385
    %1450 = vst [vmem:[#allocation3 + $0x830] sm:$0xff] %v1386
    %1451 = vst [vmem:[#allocation3 + $0x878] sm:$0xff] %v1387
    %1452 = vst [vmem:[#allocation3 + $0x8c0] sm:$0xff] %v1388
    %1453 = vst [vmem:[#allocation3 + $0x908] sm:$0xff] %v1389
    %1454 = vst [vmem:[#allocation3 + $0x950] sm:$0xff] %v1390
    %1455 = vst [vmem:[#allocation3 + $0x998] sm:$0xff] %v1391
    %1456 = vst [vmem:[#allocation3 + $0x9e0] sm:$0xff] %v1392
    %1457 = vst [vmem:[#allocation3 + $0xa28] sm:$0xff] %v1393
    %1458 = vst [vmem:[#allocation3 + $0xa70] sm:$0xff] %v1394
    %1459 = vst [vmem:[#allocation3 + $0xab8] sm:$0xff] %v1395
    %1460 = vst [vmem:[#allocation3 + $0xb00] sm:$0xff] %v1396
    %1461 = vst [vmem:[#allocation3 + $0xb48] sm:$0xff] %v1397
    %1462 = vst [vmem:[#allocation3 + $0xb90] sm:$0xff] %v1398
    %1463 = vst [vmem:[#allocation3 + $0xbd8] sm:$0xff] %v1399
    %1464 = vst [vmem:[#allocation3 + $0xc20] sm:$0xff] %v1400
    %1465 = vst [vmem:[#allocation3 + $0xc68] sm:$0xff] %v1401
    %1466 = vst [vmem:[#allocation3 + $0xcb0] sm:$0xff] %v1402
    %1467 = vst [vmem:[#allocation3 + $0xcf8] sm:$0xff] %v1403
    %1468 = vst [vmem:[#allocation3 + $0xd40] sm:$0xff] %v1404
    %1469 = vst [vmem:[#allocation3 + $0xd88] sm:$0xff] %v1405
    %1470 = vst [vmem:[#allocation3 + $0xdd0] sm:$0xff] %v1406
    %1471 = vst [vmem:[#allocation3 + $0xe18] sm:$0xff] %v1407
    %1472 = vst [vmem:[#allocation3 + $0xe60] sm:$0xff] %v1408
    %1473 = vst [vmem:[#allocation3 + $0xea8] sm:$0xff] %v1409
    %1474 = vst [vmem:[#allocation3 + $0xef0] sm:$0xff] %v1410
    %1475 = vst [vmem:[#allocation3 + $0xf38] sm:$0xff] %v1411
    %1476 = vst [vmem:[#allocation3 + $0xf80] sm:$0xff] %v1412
    %1477 = vst [vmem:[#allocation3 + $0xfc8] sm:$0xff] %v1413
    %1478 = vst [vmem:[#allocation3 + $0x1010] sm:$0xff] %v1414
    %1479 = vst [vmem:[#allocation3 + $0x1058] sm:$0xff] %v1415
    %1480 = vst [vmem:[#allocation3 + $0x10a0] sm:$0xff] %v1416
    %1481 = vst [vmem:[#allocation3 + $0x10e8] sm:$0xff] %v1417
    %1482 = vst [vmem:[#allocation3 + $0x1130] sm:$0xff] %v1418
    %1483 = vst [vmem:[#allocation3 + $0x1178] sm:$0xff] %v1419
    %1484 = vst [vmem:[#allocation3 + $0x11c0] sm:$0xff] %v1420
    %v1485 = vld [vmem:[#allocation2 + $0x2] sm:$0xff]
    %v1486 = vld [vmem:[#allocation2 + $0xa] sm:$0xff]
    %v1487 = vld [vmem:[#allocation2 + $0x1a] sm:$0xff]
    %v1488 = vld [vmem:[#allocation2 + $0x22] sm:$0xff]
    %v1489 = vld [vmem:[#allocation2 + $0x32] sm:$0xff]
    %v1490 = vld [vmem:[#allocation2 + $0x3a] sm:$0xff]
    %v1491 = vld [vmem:[#allocation2 + $0x4a] sm:$0xff]
    %v1492 = vld [vmem:[#allocation2 + $0x52] sm:$0xff]
    %v1493 = vld [vmem:[#allocation2 + $0x62] sm:$0xff]
    %v1494 = vld [vmem:[#allocation2 + $0x6a] sm:$0xff]
    %v1495 = vld [vmem:[#allocation2 + $0x7a] sm:$0xff]
    %v1496 = vld [vmem:[#allocation2 + $0x82] sm:$0xff]
    %v1497 = vld [vmem:[#allocation2 + $0x92] sm:$0xff]
    %v1498 = vld [vmem:[#allocation2 + $0x9a] sm:$0xff]
    %v1499 = vld [vmem:[#allocation2 + $0xaa] sm:$0xff]
    %v1500 = vld [vmem:[#allocation2 + $0xb2] sm:$0xff]
    %v1501 = vld [vmem:[#allocation2 + $0xc2] sm:$0xff]
    %v1502 = vld [vmem:[#allocation2 + $0xca] sm:$0xff]
    %v1503 = vld [vmem:[#allocation2 + $0xda] sm:$0xff]
    %v1504 = vld [vmem:[#allocation2 + $0xe2] sm:$0xff]
    %v1505 = vld [vmem:[#allocation2 + $0xf2] sm:$0xff]
    %v1506 = vld [vmem:[#allocation2 + $0xfa] sm:$0xff]
    %v1507 = vld [vmem:[#allocation2 + $0x10a] sm:$0xff]
    %v1508 = vld [vmem:[#allocation2 + $0x112] sm:$0xff]
    %v1509 = vld [vmem:[#allocation2 + $0x122] sm:$0xff]
    %v1510 = vld [vmem:[#allocation2 + $0x12a] sm:$0xff]
    %v1511 = vld [vmem:[#allocation2 + $0x13a] sm:$0xff]
    %v1512 = vld [vmem:[#allocation2 + $0x142] sm:$0xff]
    %v1513 = vld [vmem:[#allocation2 + $0x152] sm:$0xff]
    %v1514 = vld [vmem:[#allocation2 + $0x15a] sm:$0xff]
    %v1515 = vld [vmem:[#allocation2 + $0x16a] sm:$0xff]
    %v1516 = vld [vmem:[#allocation2 + $0x172] sm:$0xff]
    %v1517 = vld [vmem:[#allocation2 + $0x1b2] sm:$0xff]
    %v1518 = vld [vmem:[#allocation2 + $0x1ba] sm:$0xff]
    %v1519 = vld [vmem:[#allocation2 + $0x1ca] sm:$0xff]
    %v1520 = vld [vmem:[#allocation2 + $0x1d2] sm:$0xff]
    %v1521 = vld [vmem:[#allocation2 + $0x1e2] sm:$0xff]
    %v1522 = vld [vmem:[#allocation2 + $0x1ea] sm:$0xff]
    %v1523 = vld [vmem:[#allocation2 + $0x1fa] sm:$0xff]
    %v1524 = vld [vmem:[#allocation2 + $0x202] sm:$0xff]
    %v1525 = vld [vmem:[#allocation2 + $0x212] sm:$0xff]
    %v1526 = vld [vmem:[#allocation2 + $0x21a] sm:$0xff]
    %v1527 = vld [vmem:[#allocation2 + $0x22a] sm:$0xff]
    %v1528 = vld [vmem:[#allocation2 + $0x232] sm:$0xff]
    %v1529 = vld [vmem:[#allocation2 + $0x242] sm:$0xff]
    %v1530 = vld [vmem:[#allocation2 + $0x24a] sm:$0xff]
    %v1531 = vld [vmem:[#allocation2 + $0x25a] sm:$0xff]
    %v1532 = vld [vmem:[#allocation2 + $0x262] sm:$0xff]
    %v1533 = vld [vmem:[#allocation2 + $0x272] sm:$0xff]
    %v1534 = vld [vmem:[#allocation2 + $0x27a] sm:$0xff]
    %v1535 = vld [vmem:[#allocation2 + $0x28a] sm:$0xff]
    %v1536 = vld [vmem:[#allocation2 + $0x292] sm:$0xff]
    %v1537 = vld [vmem:[#allocation2 + $0x2a2] sm:$0xff]
    %v1538 = vld [vmem:[#allocation2 + $0x2aa] sm:$0xff]
    %v1539 = vld [vmem:[#allocation2 + $0x2ba] sm:$0xff]
    %v1540 = vld [vmem:[#allocation2 + $0x2c2] sm:$0xff]
    %v1541 = vld [vmem:[#allocation2 + $0x2d2] sm:$0xff]
    %v1542 = vld [vmem:[#allocation2 + $0x2da] sm:$0xff]
    %v1543 = vld [vmem:[#allocation2 + $0x2ea] sm:$0xff]
    %v1544 = vld [vmem:[#allocation2 + $0x2f2] sm:$0xff]
    %v1545 = vld [vmem:[#allocation2 + $0x302] sm:$0xff]
    %v1546 = vld [vmem:[#allocation2 + $0x30a] sm:$0xff]
    %v1547 = vld [vmem:[#allocation2 + $0x31a] sm:$0xff]
    %v1548 = vld [vmem:[#allocation2 + $0x322] sm:$0xff]
    %1549 = vst [vmem:[#allocation3 + $0x10] sm:$0xff] %v1485
    %1550 = vst [vmem:[#allocation3 + $0x58] sm:$0xff] %v1486
    %1551 = vst [vmem:[#allocation3 + $0xa0] sm:$0xff] %v1487
    %1552 = vst [vmem:[#allocation3 + $0xe8] sm:$0xff] %v1488
    %1553 = vst [vmem:[#allocation3 + $0x130] sm:$0xff] %v1489
    %1554 = vst [vmem:[#allocation3 + $0x178] sm:$0xff] %v1490
    %1555 = vst [vmem:[#allocation3 + $0x1c0] sm:$0xff] %v1491
    %1556 = vst [vmem:[#allocation3 + $0x208] sm:$0xff] %v1492
    %1557 = vst [vmem:[#allocation3 + $0x250] sm:$0xff] %v1493
    %1558 = vst [vmem:[#allocation3 + $0x298] sm:$0xff] %v1494
    %1559 = vst [vmem:[#allocation3 + $0x2e0] sm:$0xff] %v1495
    %1560 = vst [vmem:[#allocation3 + $0x328] sm:$0xff] %v1496
    %1561 = vst [vmem:[#allocation3 + $0x370] sm:$0xff] %v1497
    %1562 = vst [vmem:[#allocation3 + $0x3b8] sm:$0xff] %v1498
    %1563 = vst [vmem:[#allocation3 + $0x400] sm:$0xff] %v1499
    %1564 = vst [vmem:[#allocation3 + $0x448] sm:$0xff] %v1500
    %1565 = vst [vmem:[#allocation3 + $0x490] sm:$0xff] %v1501
    %1566 = vst [vmem:[#allocation3 + $0x4d8] sm:$0xff] %v1502
    %1567 = vst [vmem:[#allocation3 + $0x520] sm:$0xff] %v1503
    %1568 = vst [vmem:[#allocation3 + $0x568] sm:$0xff] %v1504
    %1569 = vst [vmem:[#allocation3 + $0x5b0] sm:$0xff] %v1505
    %1570 = vst [vmem:[#allocation3 + $0x5f8] sm:$0xff] %v1506
    %1571 = vst [vmem:[#allocation3 + $0x640] sm:$0xff] %v1507
    %1572 = vst [vmem:[#allocation3 + $0x688] sm:$0xff] %v1508
    %1573 = vst [vmem:[#allocation3 + $0x6d0] sm:$0xff] %v1509
    %1574 = vst [vmem:[#allocation3 + $0x718] sm:$0xff] %v1510
    %1575 = vst [vmem:[#allocation3 + $0x760] sm:$0xff] %v1511
    %1576 = vst [vmem:[#allocation3 + $0x7a8] sm:$0xff] %v1512
    %1577 = vst [vmem:[#allocation3 + $0x7f0] sm:$0xff] %v1513
    %1578 = vst [vmem:[#allocation3 + $0x838] sm:$0xff] %v1514
    %1579 = vst [vmem:[#allocation3 + $0x880] sm:$0xff] %v1515
    %1580 = vst [vmem:[#allocation3 + $0x8c8] sm:$0xff] %v1516
    %1581 = vst [vmem:[#allocation3 + $0x910] sm:$0xff] %v1517
    %1582 = vst [vmem:[#allocation3 + $0x958] sm:$0xff] %v1518
    %1583 = vst [vmem:[#allocation3 + $0x9a0] sm:$0xff] %v1519
    %1584 = vst [vmem:[#allocation3 + $0x9e8] sm:$0xff] %v1520
    %1585 = vst [vmem:[#allocation3 + $0xa30] sm:$0xff] %v1521
    %1586 = vst [vmem:[#allocation3 + $0xa78] sm:$0xff] %v1522
    %1587 = vst [vmem:[#allocation3 + $0xac0] sm:$0xff] %v1523
    %1588 = vst [vmem:[#allocation3 + $0xb08] sm:$0xff] %v1524
    %1589 = vst [vmem:[#allocation3 + $0xb50] sm:$0xff] %v1525
    %1590 = vst [vmem:[#allocation3 + $0xb98] sm:$0xff] %v1526
    %1591 = vst [vmem:[#allocation3 + $0xbe0] sm:$0xff] %v1527
    %1592 = vst [vmem:[#allocation3 + $0xc28] sm:$0xff] %v1528
    %1593 = vst [vmem:[#allocation3 + $0xc70] sm:$0xff] %v1529
    %1594 = vst [vmem:[#allocation3 + $0xcb8] sm:$0xff] %v1530
    %1595 = vst [vmem:[#allocation3 + $0xd00] sm:$0xff] %v1531
    %1596 = vst [vmem:[#allocation3 + $0xd48] sm:$0xff] %v1532
    %1597 = vst [vmem:[#allocation3 + $0xd90] sm:$0xff] %v1533
    %1598 = vst [vmem:[#allocation3 + $0xdd8] sm:$0xff] %v1534
    %1599 = vst [vmem:[#allocation3 + $0xe20] sm:$0xff] %v1535
    %1600 = vst [vmem:[#allocation3 + $0xe68] sm:$0xff] %v1536
    %1601 = vst [vmem:[#allocation3 + $0xeb0] sm:$0xff] %v1537
    %1602 = vst [vmem:[#allocation3 + $0xef8] sm:$0xff] %v1538
    %1603 = vst [vmem:[#allocation3 + $0xf40] sm:$0xff] %v1539
    %1604 = vst [vmem:[#allocation3 + $0xf88] sm:$0xff] %v1540
    %1605 = vst [vmem:[#allocation3 + $0xfd0] sm:$0xff] %v1541
    %1606 = vst [vmem:[#allocation3 + $0x1018] sm:$0xff] %v1542
    %1607 = vst [vmem:[#allocation3 + $0x1060] sm:$0xff] %v1543
    %1608 = vst [vmem:[#allocation3 + $0x10a8] sm:$0xff] %v1544
    %1609 = vst [vmem:[#allocation3 + $0x10f0] sm:$0xff] %v1545
    %1610 = vst [vmem:[#allocation3 + $0x1138] sm:$0xff] %v1546
    %1611 = vst [vmem:[#allocation3 + $0x1180] sm:$0xff] %v1547
    %1612 = vst [vmem:[#allocation3 + $0x11c8] sm:$0xff] %v1548
    %v1613 = vld [vmem:[%s1063] sm:$0xff]
    %v1614 = vld [vmem:[%s1063 + $0x8] sm:$0xff]
    %v1615 = vld [vmem:[%s1063 + $0x18] sm:$0xff]
    %v1616 = vld [vmem:[%s1063 + $0x20] sm:$0xff]
    %v1617 = vld [vmem:[%s1063 + $0x30] sm:$0xff]
    %v1618 = vld [vmem:[%s1063 + $0x38] sm:$0xff]
    %v1619 = vld [vmem:[%s1063 + $0x48] sm:$0xff]
    %v1620 = vld [vmem:[%s1063 + $0x50] sm:$0xff]
    %v1621 = vld [vmem:[%s1063 + $0x60] sm:$0xff]
    %v1622 = vld [vmem:[%s1063 + $0x68] sm:$0xff]
    %v1623 = vld [vmem:[%s1063 + $0x78] sm:$0xff]
    %v1624 = vld [vmem:[%s1063 + $0x80] sm:$0xff]
    %v1625 = vld [vmem:[%s1063 + $0x90] sm:$0xff]
    %v1626 = vld [vmem:[%s1063 + $0x98] sm:$0xff]
    %v1627 = vld [vmem:[%s1063 + $0xa8] sm:$0xff]
    %v1628 = vld [vmem:[%s1063 + $0xb0] sm:$0xff]
    %v1629 = vld [vmem:[%s1063 + $0xc0] sm:$0xff]
    %v1630 = vld [vmem:[%s1063 + $0xc8] sm:$0xff]
    %v1631 = vld [vmem:[%s1063 + $0xd8] sm:$0xff]
    %v1632 = vld [vmem:[%s1063 + $0xe0] sm:$0xff]
    %v1633 = vld [vmem:[%s1063 + $0xf0] sm:$0xff]
    %v1634 = vld [vmem:[%s1063 + $0xf8] sm:$0xff]
    %v1635 = vld [vmem:[%s1063 + $0x108] sm:$0xff]
    %v1636 = vld [vmem:[%s1063 + $0x110] sm:$0xff]
    %v1637 = vld [vmem:[%s1063 + $0x120] sm:$0xff]
    %v1638 = vld [vmem:[%s1063 + $0x128] sm:$0xff]
    %v1639 = vld [vmem:[%s1063 + $0x138] sm:$0xff]
    %v1640 = vld [vmem:[%s1063 + $0x140] sm:$0xff]
    %v1641 = vld [vmem:[%s1063 + $0x150] sm:$0xff]
    %v1642 = vld [vmem:[%s1063 + $0x158] sm:$0xff]
    %v1643 = vld [vmem:[%s1063 + $0x168] sm:$0xff]
    %v1644 = vld [vmem:[%s1063 + $0x170] sm:$0xff]
    %v1645 = vld [vmem:[%s1063 + $0x1b0] sm:$0xff]
    %v1646 = vld [vmem:[%s1063 + $0x1b8] sm:$0xff]
    %v1647 = vld [vmem:[%s1063 + $0x1c8] sm:$0xff]
    %v1648 = vld [vmem:[%s1063 + $0x1d0] sm:$0xff]
    %v1649 = vld [vmem:[%s1063 + $0x1e0] sm:$0xff]
    %v1650 = vld [vmem:[%s1063 + $0x1e8] sm:$0xff]
    %v1651 = vld [vmem:[%s1063 + $0x1f8] sm:$0xff]
    %v1652 = vld [vmem:[%s1063 + $0x200] sm:$0xff]
    %v1653 = vld [vmem:[%s1063 + $0x210] sm:$0xff]
    %v1654 = vld [vmem:[%s1063 + $0x218] sm:$0xff]
    %v1655 = vld [vmem:[%s1063 + $0x228] sm:$0xff]
    %v1656 = vld [vmem:[%s1063 + $0x230] sm:$0xff]
    %v1657 = vld [vmem:[%s1063 + $0x240] sm:$0xff]
    %v1658 = vld [vmem:[%s1063 + $0x248] sm:$0xff]
    %v1659 = vld [vmem:[%s1063 + $0x258] sm:$0xff]
    %v1660 = vld [vmem:[%s1063 + $0x260] sm:$0xff]
    %v1661 = vld [vmem:[%s1063 + $0x270] sm:$0xff]
    %v1662 = vld [vmem:[%s1063 + $0x278] sm:$0xff]
    %v1663 = vld [vmem:[%s1063 + $0x288] sm:$0xff]
    %v1664 = vld [vmem:[%s1063 + $0x290] sm:$0xff]
    %v1665 = vld [vmem:[%s1063 + $0x2a0] sm:$0xff]
    %v1666 = vld [vmem:[%s1063 + $0x2a8] sm:$0xff]
    %v1667 = vld [vmem:[%s1063 + $0x2b8] sm:$0xff]
    %v1668 = vld [vmem:[%s1063 + $0x2c0] sm:$0xff]
    %v1669 = vld [vmem:[%s1063 + $0x2d0] sm:$0xff]
    %v1670 = vld [vmem:[%s1063 + $0x2d8] sm:$0xff]
    %v1671 = vld [vmem:[%s1063 + $0x2e8] sm:$0xff]
    %v1672 = vld [vmem:[%s1063 + $0x2f0] sm:$0xff]
    %v1673 = vld [vmem:[%s1063 + $0x300] sm:$0xff]
    %v1674 = vld [vmem:[%s1063 + $0x308] sm:$0xff]
    %v1675 = vld [vmem:[%s1063 + $0x318] sm:$0xff]
    %v1676 = vld [vmem:[%s1063 + $0x320] sm:$0xff]
    %1677 = vst [vmem:[#allocation3 + $0x18] sm:$0xff] %v1613
    %1678 = vst [vmem:[#allocation3 + $0x60] sm:$0xff] %v1614
    %1679 = vst [vmem:[#allocation3 + $0xa8] sm:$0xff] %v1615
    %1680 = vst [vmem:[#allocation3 + $0xf0] sm:$0xff] %v1616
    %1681 = vst [vmem:[#allocation3 + $0x138] sm:$0xff] %v1617
    %1682 = vst [vmem:[#allocation3 + $0x180] sm:$0xff] %v1618
    %1683 = vst [vmem:[#allocation3 + $0x1c8] sm:$0xff] %v1619
    %1684 = vst [vmem:[#allocation3 + $0x210] sm:$0xff] %v1620
    %1685 = vst [vmem:[#allocation3 + $0x258] sm:$0xff] %v1621
    %1686 = vst [vmem:[#allocation3 + $0x2a0] sm:$0xff] %v1622
    %1687 = vst [vmem:[#allocation3 + $0x2e8] sm:$0xff] %v1623
    %1688 = vst [vmem:[#allocation3 + $0x330] sm:$0xff] %v1624
    %1689 = vst [vmem:[#allocation3 + $0x378] sm:$0xff] %v1625
    %1690 = vst [vmem:[#allocation3 + $0x3c0] sm:$0xff] %v1626
    %1691 = vst [vmem:[#allocation3 + $0x408] sm:$0xff] %v1627
    %1692 = vst [vmem:[#allocation3 + $0x450] sm:$0xff] %v1628
    %1693 = vst [vmem:[#allocation3 + $0x498] sm:$0xff] %v1629
    %1694 = vst [vmem:[#allocation3 + $0x4e0] sm:$0xff] %v1630
    %1695 = vst [vmem:[#allocation3 + $0x528] sm:$0xff] %v1631
    %1696 = vst [vmem:[#allocation3 + $0x570] sm:$0xff] %v1632
    %1697 = vst [vmem:[#allocation3 + $0x5b8] sm:$0xff] %v1633
    %1698 = vst [vmem:[#allocation3 + $0x600] sm:$0xff] %v1634
    %1699 = vst [vmem:[#allocation3 + $0x648] sm:$0xff] %v1635
    %1700 = vst [vmem:[#allocation3 + $0x690] sm:$0xff] %v1636
    %1701 = vst [vmem:[#allocation3 + $0x6d8] sm:$0xff] %v1637
    %1702 = vst [vmem:[#allocation3 + $0x720] sm:$0xff] %v1638
    %1703 = vst [vmem:[#allocation3 + $0x768] sm:$0xff] %v1639
    %1704 = vst [vmem:[#allocation3 + $0x7b0] sm:$0xff] %v1640
    %1705 = vst [vmem:[#allocation3 + $0x7f8] sm:$0xff] %v1641
    %1706 = vst [vmem:[#allocation3 + $0x840] sm:$0xff] %v1642
    %1707 = vst [vmem:[#allocation3 + $0x888] sm:$0xff] %v1643
    %1708 = vst [vmem:[#allocation3 + $0x8d0] sm:$0xff] %v1644
    %1709 = vst [vmem:[#allocation3 + $0x918] sm:$0xff] %v1645
    %1710 = vst [vmem:[#allocation3 + $0x960] sm:$0xff] %v1646
    %1711 = vst [vmem:[#allocation3 + $0x9a8] sm:$0xff] %v1647
    %1712 = vst [vmem:[#allocation3 + $0x9f0] sm:$0xff] %v1648
    %1713 = vst [vmem:[#allocation3 + $0xa38] sm:$0xff] %v1649
    %1714 = vst [vmem:[#allocation3 + $0xa80] sm:$0xff] %v1650
    %1715 = vst [vmem:[#allocation3 + $0xac8] sm:$0xff] %v1651
    %1716 = vst [vmem:[#allocation3 + $0xb10] sm:$0xff] %v1652
    %1717 = vst [vmem:[#allocation3 + $0xb58] sm:$0xff] %v1653
    %1718 = vst [vmem:[#allocation3 + $0xba0] sm:$0xff] %v1654
    %1719 = vst [vmem:[#allocation3 + $0xbe8] sm:$0xff] %v1655
    %1720 = vst [vmem:[#allocation3 + $0xc30] sm:$0xff] %v1656
    %1721 = vst [vmem:[#allocation3 + $0xc78] sm:$0xff] %v1657
    %1722 = vst [vmem:[#allocation3 + $0xcc0] sm:$0xff] %v1658
    %1723 = vst [vmem:[#allocation3 + $0xd08] sm:$0xff] %v1659
    %1724 = vst [vmem:[#allocation3 + $0xd50] sm:$0xff] %v1660
    %1725 = vst [vmem:[#allocation3 + $0xd98] sm:$0xff] %v1661
    %1726 = vst [vmem:[#allocation3 + $0xde0] sm:$0xff] %v1662
    %1727 = vst [vmem:[#allocation3 + $0xe28] sm:$0xff] %v1663
    %1728 = vst [vmem:[#allocation3 + $0xe70] sm:$0xff] %v1664
    %1729 = vst [vmem:[#allocation3 + $0xeb8] sm:$0xff] %v1665
    %1730 = vst [vmem:[#allocation3 + $0xf00] sm:$0xff] %v1666
    %1731 = vst [vmem:[#allocation3 + $0xf48] sm:$0xff] %v1667
    %1732 = vst [vmem:[#allocation3 + $0xf90] sm:$0xff] %v1668
    %1733 = vst [vmem:[#allocation3 + $0xfd8] sm:$0xff] %v1669
    %1734 = vst [vmem:[#allocation3 + $0x1020] sm:$0xff] %v1670
    %1735 = vst [vmem:[#allocation3 + $0x1068] sm:$0xff] %v1671
    %1736 = vst [vmem:[#allocation3 + $0x10b0] sm:$0xff] %v1672
    %1737 = vst [vmem:[#allocation3 + $0x10f8] sm:$0xff] %v1673
    %1738 = vst [vmem:[#allocation3 + $0x1140] sm:$0xff] %v1674
    %1739 = vst [vmem:[#allocation3 + $0x1188] sm:$0xff] %v1675
    %1740 = vst [vmem:[#allocation3 + $0x11d0] sm:$0xff] %v1676
    %v1741 = vld [vmem:[%s1063 + $0x1] sm:$0xff]
    %v1742 = vld [vmem:[%s1063 + $0x9] sm:$0xff]
    %v1743 = vld [vmem:[%s1063 + $0x19] sm:$0xff]
    %v1744 = vld [vmem:[%s1063 + $0x21] sm:$0xff]
    %v1745 = vld [vmem:[%s1063 + $0x31] sm:$0xff]
    %v1746 = vld [vmem:[%s1063 + $0x39] sm:$0xff]
    %v1747 = vld [vmem:[%s1063 + $0x49] sm:$0xff]
    %v1748 = vld [vmem:[%s1063 + $0x51] sm:$0xff]
    %v1749 = vld [vmem:[%s1063 + $0x61] sm:$0xff]
    %v1750 = vld [vmem:[%s1063 + $0x69] sm:$0xff]
    %v1751 = vld [vmem:[%s1063 + $0x79] sm:$0xff]
    %v1752 = vld [vmem:[%s1063 + $0x81] sm:$0xff]
    %v1753 = vld [vmem:[%s1063 + $0x91] sm:$0xff]
    %v1754 = vld [vmem:[%s1063 + $0x99] sm:$0xff]
    %v1755 = vld [vmem:[%s1063 + $0xa9] sm:$0xff]
    %v1756 = vld [vmem:[%s1063 + $0xb1] sm:$0xff]
    %v1757 = vld [vmem:[%s1063 + $0xc1] sm:$0xff]
    %v1758 = vld [vmem:[%s1063 + $0xc9] sm:$0xff]
    %v1759 = vld [vmem:[%s1063 + $0xd9] sm:$0xff]
    %v1760 = vld [vmem:[%s1063 + $0xe1] sm:$0xff]
    %v1761 = vld [vmem:[%s1063 + $0xf1] sm:$0xff]
    %v1762 = vld [vmem:[%s1063 + $0xf9] sm:$0xff]
    %v1763 = vld [vmem:[%s1063 + $0x109] sm:$0xff]
    %v1764 = vld [vmem:[%s1063 + $0x111] sm:$0xff]
    %v1765 = vld [vmem:[%s1063 + $0x121] sm:$0xff]
    %v1766 = vld [vmem:[%s1063 + $0x129] sm:$0xff]
    %v1767 = vld [vmem:[%s1063 + $0x139] sm:$0xff]
    %v1768 = vld [vmem:[%s1063 + $0x141] sm:$0xff]
    %v1769 = vld [vmem:[%s1063 + $0x151] sm:$0xff]
    %v1770 = vld [vmem:[%s1063 + $0x159] sm:$0xff]
    %v1771 = vld [vmem:[%s1063 + $0x169] sm:$0xff]
    %v1772 = vld [vmem:[%s1063 + $0x171] sm:$0xff]
    %v1773 = vld [vmem:[%s1063 + $0x1b1] sm:$0xff]
    %v1774 = vld [vmem:[%s1063 + $0x1b9] sm:$0xff]
    %v1775 = vld [vmem:[%s1063 + $0x1c9] sm:$0xff]
    %v1776 = vld [vmem:[%s1063 + $0x1d1] sm:$0xff]
    %v1777 = vld [vmem:[%s1063 + $0x1e1] sm:$0xff]
    %v1778 = vld [vmem:[%s1063 + $0x1e9] sm:$0xff]
    %v1779 = vld [vmem:[%s1063 + $0x1f9] sm:$0xff]
    %v1780 = vld [vmem:[%s1063 + $0x201] sm:$0xff]
    %v1781 = vld [vmem:[%s1063 + $0x211] sm:$0xff]
    %v1782 = vld [vmem:[%s1063 + $0x219] sm:$0xff]
    %v1783 = vld [vmem:[%s1063 + $0x229] sm:$0xff]
    %v1784 = vld [vmem:[%s1063 + $0x231] sm:$0xff]
    %v1785 = vld [vmem:[%s1063 + $0x241] sm:$0xff]
    %v1786 = vld [vmem:[%s1063 + $0x249] sm:$0xff]
    %v1787 = vld [vmem:[%s1063 + $0x259] sm:$0xff]
    %v1788 = vld [vmem:[%s1063 + $0x261] sm:$0xff]
    %v1789 = vld [vmem:[%s1063 + $0x271] sm:$0xff]
    %v1790 = vld [vmem:[%s1063 + $0x279] sm:$0xff]
    %v1791 = vld [vmem:[%s1063 + $0x289] sm:$0xff]
    %v1792 = vld [vmem:[%s1063 + $0x291] sm:$0xff]
    %v1793 = vld [vmem:[%s1063 + $0x2a1] sm:$0xff]
    %v1794 = vld [vmem:[%s1063 + $0x2a9] sm:$0xff]
    %v1795 = vld [vmem:[%s1063 + $0x2b9] sm:$0xff]
    %v1796 = vld [vmem:[%s1063 + $0x2c1] sm:$0xff]
    %v1797 = vld [vmem:[%s1063 + $0x2d1] sm:$0xff]
    %v1798 = vld [vmem:[%s1063 + $0x2d9] sm:$0xff]
    %v1799 = vld [vmem:[%s1063 + $0x2e9] sm:$0xff]
    %v1800 = vld [vmem:[%s1063 + $0x2f1] sm:$0xff]
    %v1801 = vld [vmem:[%s1063 + $0x301] sm:$0xff]
    %v1802 = vld [vmem:[%s1063 + $0x309] sm:$0xff]
    %v1803 = vld [vmem:[%s1063 + $0x319] sm:$0xff]
    %v1804 = vld [vmem:[%s1063 + $0x321] sm:$0xff]
    %1805 = vst [vmem:[#allocation3 + $0x20] sm:$0xff] %v1741
    %1806 = vst [vmem:[#allocation3 + $0x68] sm:$0xff] %v1742
    %1807 = vst [vmem:[#allocation3 + $0xb0] sm:$0xff] %v1743
    %1808 = vst [vmem:[#allocation3 + $0xf8] sm:$0xff] %v1744
    %1809 = vst [vmem:[#allocation3 + $0x140] sm:$0xff] %v1745
    %1810 = vst [vmem:[#allocation3 + $0x188] sm:$0xff] %v1746
    %1811 = vst [vmem:[#allocation3 + $0x1d0] sm:$0xff] %v1747
    %1812 = vst [vmem:[#allocation3 + $0x218] sm:$0xff] %v1748
    %1813 = vst [vmem:[#allocation3 + $0x260] sm:$0xff] %v1749
    %1814 = vst [vmem:[#allocation3 + $0x2a8] sm:$0xff] %v1750
    %1815 = vst [vmem:[#allocation3 + $0x2f0] sm:$0xff] %v1751
    %1816 = vst [vmem:[#allocation3 + $0x338] sm:$0xff] %v1752
    %1817 = vst [vmem:[#allocation3 + $0x380] sm:$0xff] %v1753
    %1818 = vst [vmem:[#allocation3 + $0x3c8] sm:$0xff] %v1754
    %1819 = vst [vmem:[#allocation3 + $0x410] sm:$0xff] %v1755
    %1820 = vst [vmem:[#allocation3 + $0x458] sm:$0xff] %v1756
    %1821 = vst [vmem:[#allocation3 + $0x4a0] sm:$0xff] %v1757
    %1822 = vst [vmem:[#allocation3 + $0x4e8] sm:$0xff] %v1758
    %1823 = vst [vmem:[#allocation3 + $0x530] sm:$0xff] %v1759
    %1824 = vst [vmem:[#allocation3 + $0x578] sm:$0xff] %v1760
    %1825 = vst [vmem:[#allocation3 + $0x5c0] sm:$0xff] %v1761
    %1826 = vst [vmem:[#allocation3 + $0x608] sm:$0xff] %v1762
    %1827 = vst [vmem:[#allocation3 + $0x650] sm:$0xff] %v1763
    %1828 = vst [vmem:[#allocation3 + $0x698] sm:$0xff] %v1764
    %1829 = vst [vmem:[#allocation3 + $0x6e0] sm:$0xff] %v1765
    %1830 = vst [vmem:[#allocation3 + $0x728] sm:$0xff] %v1766
    %1831 = vst [vmem:[#allocation3 + $0x770] sm:$0xff] %v1767
    %1832 = vst [vmem:[#allocation3 + $0x7b8] sm:$0xff] %v1768
    %1833 = vst [vmem:[#allocation3 + $0x800] sm:$0xff] %v1769
    %1834 = vst [vmem:[#allocation3 + $0x848] sm:$0xff] %v1770
    %1835 = vst [vmem:[#allocation3 + $0x890] sm:$0xff] %v1771
    %1836 = vst [vmem:[#allocation3 + $0x8d8] sm:$0xff] %v1772
    %1837 = vst [vmem:[#allocation3 + $0x920] sm:$0xff] %v1773
    %1838 = vst [vmem:[#allocation3 + $0x968] sm:$0xff] %v1774
    %1839 = vst [vmem:[#allocation3 + $0x9b0] sm:$0xff] %v1775
    %1840 = vst [vmem:[#allocation3 + $0x9f8] sm:$0xff] %v1776
    %1841 = vst [vmem:[#allocation3 + $0xa40] sm:$0xff] %v1777
    %1842 = vst [vmem:[#allocation3 + $0xa88] sm:$0xff] %v1778
    %1843 = vst [vmem:[#allocation3 + $0xad0] sm:$0xff] %v1779
    %1844 = vst [vmem:[#allocation3 + $0xb18] sm:$0xff] %v1780
    %1845 = vst [vmem:[#allocation3 + $0xb60] sm:$0xff] %v1781
    %1846 = vst [vmem:[#allocation3 + $0xba8] sm:$0xff] %v1782
    %1847 = vst [vmem:[#allocation3 + $0xbf0] sm:$0xff] %v1783
    %1848 = vst [vmem:[#allocation3 + $0xc38] sm:$0xff] %v1784
    %1849 = vst [vmem:[#allocation3 + $0xc80] sm:$0xff] %v1785
    %1850 = vst [vmem:[#allocation3 + $0xcc8] sm:$0xff] %v1786
    %1851 = vst [vmem:[#allocation3 + $0xd10] sm:$0xff] %v1787
    %1852 = vst [vmem:[#allocation3 + $0xd58] sm:$0xff] %v1788
    %1853 = vst [vmem:[#allocation3 + $0xda0] sm:$0xff] %v1789
    %1854 = vst [vmem:[#allocation3 + $0xde8] sm:$0xff] %v1790
    %1855 = vst [vmem:[#allocation3 + $0xe30] sm:$0xff] %v1791
    %1856 = vst [vmem:[#allocation3 + $0xe78] sm:$0xff] %v1792
    %1857 = vst [vmem:[#allocation3 + $0xec0] sm:$0xff] %v1793
    %1858 = vst [vmem:[#allocation3 + $0xf08] sm:$0xff] %v1794
    %1859 = vst [vmem:[#allocation3 + $0xf50] sm:$0xff] %v1795
    %1860 = vst [vmem:[#allocation3 + $0xf98] sm:$0xff] %v1796
    %1861 = vst [vmem:[#allocation3 + $0xfe0] sm:$0xff] %v1797
    %1862 = vst [vmem:[#allocation3 + $0x1028] sm:$0xff] %v1798
    %1863 = vst [vmem:[#allocation3 + $0x1070] sm:$0xff] %v1799
    %1864 = vst [vmem:[#allocation3 + $0x10b8] sm:$0xff] %v1800
    %1865 = vst [vmem:[#allocation3 + $0x1100] sm:$0xff] %v1801
    %1866 = vst [vmem:[#allocation3 + $0x1148] sm:$0xff] %v1802
    %1867 = vst [vmem:[#allocation3 + $0x1190] sm:$0xff] %v1803
    %1868 = vst [vmem:[#allocation3 + $0x11d8] sm:$0xff] %v1804
    %v1869 = vld [vmem:[%s1063 + $0x2] sm:$0xff]
    %v1870 = vld [vmem:[%s1063 + $0xa] sm:$0xff]
    %v1871 = vld [vmem:[%s1063 + $0x1a] sm:$0xff]
    %v1872 = vld [vmem:[%s1063 + $0x22] sm:$0xff]
    %v1873 = vld [vmem:[%s1063 + $0x32] sm:$0xff]
    %v1874 = vld [vmem:[%s1063 + $0x3a] sm:$0xff]
    %v1875 = vld [vmem:[%s1063 + $0x4a] sm:$0xff]
    %v1876 = vld [vmem:[%s1063 + $0x52] sm:$0xff]
    %v1877 = vld [vmem:[%s1063 + $0x62] sm:$0xff]
    %v1878 = vld [vmem:[%s1063 + $0x6a] sm:$0xff]
    %v1879 = vld [vmem:[%s1063 + $0x7a] sm:$0xff]
    %v1880 = vld [vmem:[%s1063 + $0x82] sm:$0xff]
    %v1881 = vld [vmem:[%s1063 + $0x92] sm:$0xff]
    %v1882 = vld [vmem:[%s1063 + $0x9a] sm:$0xff]
    %v1883 = vld [vmem:[%s1063 + $0xaa] sm:$0xff]
    %v1884 = vld [vmem:[%s1063 + $0xb2] sm:$0xff]
    %v1885 = vld [vmem:[%s1063 + $0xc2] sm:$0xff]
    %v1886 = vld [vmem:[%s1063 + $0xca] sm:$0xff]
    %v1887 = vld [vmem:[%s1063 + $0xda] sm:$0xff]
    %v1888 = vld [vmem:[%s1063 + $0xe2] sm:$0xff]
    %v1889 = vld [vmem:[%s1063 + $0xf2] sm:$0xff]
    %v1890 = vld [vmem:[%s1063 + $0xfa] sm:$0xff]
    %v1891 = vld [vmem:[%s1063 + $0x10a] sm:$0xff]
    %v1892 = vld [vmem:[%s1063 + $0x112] sm:$0xff]
    %v1893 = vld [vmem:[%s1063 + $0x122] sm:$0xff]
    %v1894 = vld [vmem:[%s1063 + $0x12a] sm:$0xff]
    %v1895 = vld [vmem:[%s1063 + $0x13a] sm:$0xff]
    %v1896 = vld [vmem:[%s1063 + $0x142] sm:$0xff]
    %v1897 = vld [vmem:[%s1063 + $0x152] sm:$0xff]
    %v1898 = vld [vmem:[%s1063 + $0x15a] sm:$0xff]
    %v1899 = vld [vmem:[%s1063 + $0x16a] sm:$0xff]
    %v1900 = vld [vmem:[%s1063 + $0x172] sm:$0xff]
    %v1901 = vld [vmem:[%s1063 + $0x1b2] sm:$0xff]
    %v1902 = vld [vmem:[%s1063 + $0x1ba] sm:$0xff]
    %v1903 = vld [vmem:[%s1063 + $0x1ca] sm:$0xff]
    %v1904 = vld [vmem:[%s1063 + $0x1d2] sm:$0xff]
    %v1905 = vld [vmem:[%s1063 + $0x1e2] sm:$0xff]
    %v1906 = vld [vmem:[%s1063 + $0x1ea] sm:$0xff]
    %v1907 = vld [vmem:[%s1063 + $0x1fa] sm:$0xff]
    %v1908 = vld [vmem:[%s1063 + $0x202] sm:$0xff]
    %v1909 = vld [vmem:[%s1063 + $0x212] sm:$0xff]
    %v1910 = vld [vmem:[%s1063 + $0x21a] sm:$0xff]
    %v1911 = vld [vmem:[%s1063 + $0x22a] sm:$0xff]
    %v1912 = vld [vmem:[%s1063 + $0x232] sm:$0xff]
    %v1913 = vld [vmem:[%s1063 + $0x242] sm:$0xff]
    %v1914 = vld [vmem:[%s1063 + $0x24a] sm:$0xff]
    %v1915 = vld [vmem:[%s1063 + $0x25a] sm:$0xff]
    %v1916 = vld [vmem:[%s1063 + $0x262] sm:$0xff]
    %v1917 = vld [vmem:[%s1063 + $0x272] sm:$0xff]
    %v1918 = vld [vmem:[%s1063 + $0x27a] sm:$0xff]
    %v1919 = vld [vmem:[%s1063 + $0x28a] sm:$0xff]
    %v1920 = vld [vmem:[%s1063 + $0x292] sm:$0xff]
    %v1921 = vld [vmem:[%s1063 + $0x2a2] sm:$0xff]
    %v1922 = vld [vmem:[%s1063 + $0x2aa] sm:$0xff]
    %v1923 = vld [vmem:[%s1063 + $0x2ba] sm:$0xff]
    %v1924 = vld [vmem:[%s1063 + $0x2c2] sm:$0xff]
    %v1925 = vld [vmem:[%s1063 + $0x2d2] sm:$0xff]
    %v1926 = vld [vmem:[%s1063 + $0x2da] sm:$0xff]
    %v1927 = vld [vmem:[%s1063 + $0x2ea] sm:$0xff]
    %v1928 = vld [vmem:[%s1063 + $0x2f2] sm:$0xff]
    %v1929 = vld [vmem:[%s1063 + $0x302] sm:$0xff]
    %v1930 = vld [vmem:[%s1063 + $0x30a] sm:$0xff]
    %v1931 = vld [vmem:[%s1063 + $0x31a] sm:$0xff]
    %v1932 = vld [vmem:[%s1063 + $0x322] sm:$0xff]
    %1933 = vst [vmem:[#allocation3 + $0x28] sm:$0xff] %v1869
    %1934 = vst [vmem:[#allocation3 + $0x70] sm:$0xff] %v1870
    %1935 = vst [vmem:[#allocation3 + $0xb8] sm:$0xff] %v1871
    %1936 = vst [vmem:[#allocation3 + $0x100] sm:$0xff] %v1872
    %1937 = vst [vmem:[#allocation3 + $0x148] sm:$0xff] %v1873
    %1938 = vst [vmem:[#allocation3 + $0x190] sm:$0xff] %v1874
    %1939 = vst [vmem:[#allocation3 + $0x1d8] sm:$0xff] %v1875
    %1940 = vst [vmem:[#allocation3 + $0x220] sm:$0xff] %v1876
    %1941 = vst [vmem:[#allocation3 + $0x268] sm:$0xff] %v1877
    %1942 = vst [vmem:[#allocation3 + $0x2b0] sm:$0xff] %v1878
    %1943 = vst [vmem:[#allocation3 + $0x2f8] sm:$0xff] %v1879
    %1944 = vst [vmem:[#allocation3 + $0x340] sm:$0xff] %v1880
    %1945 = vst [vmem:[#allocation3 + $0x388] sm:$0xff] %v1881
    %1946 = vst [vmem:[#allocation3 + $0x3d0] sm:$0xff] %v1882
    %1947 = vst [vmem:[#allocation3 + $0x418] sm:$0xff] %v1883
    %1948 = vst [vmem:[#allocation3 + $0x460] sm:$0xff] %v1884
    %1949 = vst [vmem:[#allocation3 + $0x4a8] sm:$0xff] %v1885
    %1950 = vst [vmem:[#allocation3 + $0x4f0] sm:$0xff] %v1886
    %1951 = vst [vmem:[#allocation3 + $0x538] sm:$0xff] %v1887
    %1952 = vst [vmem:[#allocation3 + $0x580] sm:$0xff] %v1888
    %1953 = vst [vmem:[#allocation3 + $0x5c8] sm:$0xff] %v1889
    %1954 = vst [vmem:[#allocation3 + $0x610] sm:$0xff] %v1890
    %1955 = vst [vmem:[#allocation3 + $0x658] sm:$0xff] %v1891
    %1956 = vst [vmem:[#allocation3 + $0x6a0] sm:$0xff] %v1892
    %1957 = vst [vmem:[#allocation3 + $0x6e8] sm:$0xff] %v1893
    %1958 = vst [vmem:[#allocation3 + $0x730] sm:$0xff] %v1894
    %1959 = vst [vmem:[#allocation3 + $0x778] sm:$0xff] %v1895
    %1960 = vst [vmem:[#allocation3 + $0x7c0] sm:$0xff] %v1896
    %1961 = vst [vmem:[#allocation3 + $0x808] sm:$0xff] %v1897
    %1962 = vst [vmem:[#allocation3 + $0x850] sm:$0xff] %v1898
    %1963 = vst [vmem:[#allocation3 + $0x898] sm:$0xff] %v1899
    %1964 = vst [vmem:[#allocation3 + $0x8e0] sm:$0xff] %v1900
    %1965 = vst [vmem:[#allocation3 + $0x928] sm:$0xff] %v1901
    %1966 = vst [vmem:[#allocation3 + $0x970] sm:$0xff] %v1902
    %1967 = vst [vmem:[#allocation3 + $0x9b8] sm:$0xff] %v1903
    %1968 = vst [vmem:[#allocation3 + $0xa00] sm:$0xff] %v1904
    %1969 = vst [vmem:[#allocation3 + $0xa48] sm:$0xff] %v1905
    %1970 = vst [vmem:[#allocation3 + $0xa90] sm:$0xff] %v1906
    %1971 = vst [vmem:[#allocation3 + $0xad8] sm:$0xff] %v1907
    %1972 = vst [vmem:[#allocation3 + $0xb20] sm:$0xff] %v1908
    %1973 = vst [vmem:[#allocation3 + $0xb68] sm:$0xff] %v1909
    %1974 = vst [vmem:[#allocation3 + $0xbb0] sm:$0xff] %v1910
    %1975 = vst [vmem:[#allocation3 + $0xbf8] sm:$0xff] %v1911
    %1976 = vst [vmem:[#allocation3 + $0xc40] sm:$0xff] %v1912
    %1977 = vst [vmem:[#allocation3 + $0xc88] sm:$0xff] %v1913
    %1978 = vst [vmem:[#allocation3 + $0xcd0] sm:$0xff] %v1914
    %1979 = vst [vmem:[#allocation3 + $0xd18] sm:$0xff] %v1915
    %1980 = vst [vmem:[#allocation3 + $0xd60] sm:$0xff] %v1916
    %1981 = vst [vmem:[#allocation3 + $0xda8] sm:$0xff] %v1917
    %1982 = vst [vmem:[#allocation3 + $0xdf0] sm:$0xff] %v1918
    %1983 = vst [vmem:[#allocation3 + $0xe38] sm:$0xff] %v1919
    %1984 = vst [vmem:[#allocation3 + $0xe80] sm:$0xff] %v1920
    %1985 = vst [vmem:[#allocation3 + $0xec8] sm:$0xff] %v1921
    %1986 = vst [vmem:[#allocation3 + $0xf10] sm:$0xff] %v1922
    %1987 = vst [vmem:[#allocation3 + $0xf58] sm:$0xff] %v1923
    %1988 = vst [vmem:[#allocation3 + $0xfa0] sm:$0xff] %v1924
    %1989 = vst [vmem:[#allocation3 + $0xfe8] sm:$0xff] %v1925
    %1990 = vst [vmem:[#allocation3 + $0x1030] sm:$0xff] %v1926
    %1991 = vst [vmem:[#allocation3 + $0x1078] sm:$0xff] %v1927
    %1992 = vst [vmem:[#allocation3 + $0x10c0] sm:$0xff] %v1928
    %1993 = vst [vmem:[#allocation3 + $0x1108] sm:$0xff] %v1929
    %1994 = vst [vmem:[#allocation3 + $0x1150] sm:$0xff] %v1930
    %1995 = vst [vmem:[#allocation3 + $0x1198] sm:$0xff] %v1931
    %1996 = vst [vmem:[#allocation3 + $0x11e0] sm:$0xff] %v1932
    %s1997 = scalar_lea.vmem [#allocation2], 48
    %v1998 = vld [vmem:[%s1997] sm:$0xff]
    %v1999 = vld [vmem:[%s1997 + $0x8] sm:$0xff]
    %v2000 = vld [vmem:[%s1997 + $0x18] sm:$0xff]
    %v2001 = vld [vmem:[%s1997 + $0x20] sm:$0xff]
    %v2002 = vld [vmem:[%s1997 + $0x30] sm:$0xff]
    %v2003 = vld [vmem:[%s1997 + $0x38] sm:$0xff]
    %v2004 = vld [vmem:[%s1997 + $0x48] sm:$0xff]
    %v2005 = vld [vmem:[%s1997 + $0x50] sm:$0xff]
    %v2006 = vld [vmem:[%s1997 + $0x60] sm:$0xff]
    %v2007 = vld [vmem:[%s1997 + $0x68] sm:$0xff]
    %v2008 = vld [vmem:[%s1997 + $0x78] sm:$0xff]
    %v2009 = vld [vmem:[%s1997 + $0x80] sm:$0xff]
    %v2010 = vld [vmem:[%s1997 + $0x90] sm:$0xff]
    %v2011 = vld [vmem:[%s1997 + $0x98] sm:$0xff]
    %v2012 = vld [vmem:[%s1997 + $0xa8] sm:$0xff]
    %v2013 = vld [vmem:[%s1997 + $0xb0] sm:$0xff]
    %v2014 = vld [vmem:[%s1997 + $0xc0] sm:$0xff]
    %v2015 = vld [vmem:[%s1997 + $0xc8] sm:$0xff]
    %v2016 = vld [vmem:[%s1997 + $0xd8] sm:$0xff]
    %v2017 = vld [vmem:[%s1997 + $0xe0] sm:$0xff]
    %v2018 = vld [vmem:[%s1997 + $0xf0] sm:$0xff]
    %v2019 = vld [vmem:[%s1997 + $0xf8] sm:$0xff]
    %v2020 = vld [vmem:[%s1997 + $0x108] sm:$0xff]
    %v2021 = vld [vmem:[%s1997 + $0x110] sm:$0xff]
    %v2022 = vld [vmem:[%s1997 + $0x120] sm:$0xff]
    %v2023 = vld [vmem:[%s1997 + $0x128] sm:$0xff]
    %v2024 = vld [vmem:[%s1997 + $0x138] sm:$0xff]
    %v2025 = vld [vmem:[%s1997 + $0x140] sm:$0xff]
    %v2026 = vld [vmem:[%s1997 + $0x150] sm:$0xff]
    %v2027 = vld [vmem:[%s1997 + $0x158] sm:$0xff]
    %v2028 = vld [vmem:[%s1997 + $0x168] sm:$0xff]
    %v2029 = vld [vmem:[%s1997 + $0x170] sm:$0xff]
    %v2030 = vld [vmem:[%s1997 + $0x1b0] sm:$0xff]
    %v2031 = vld [vmem:[%s1997 + $0x1b8] sm:$0xff]
    %v2032 = vld [vmem:[%s1997 + $0x1c8] sm:$0xff]
    %v2033 = vld [vmem:[%s1997 + $0x1d0] sm:$0xff]
    %v2034 = vld [vmem:[%s1997 + $0x1e0] sm:$0xff]
    %v2035 = vld [vmem:[%s1997 + $0x1e8] sm:$0xff]
    %v2036 = vld [vmem:[%s1997 + $0x1f8] sm:$0xff]
    %v2037 = vld [vmem:[%s1997 + $0x200] sm:$0xff]
    %v2038 = vld [vmem:[%s1997 + $0x210] sm:$0xff]
    %v2039 = vld [vmem:[%s1997 + $0x218] sm:$0xff]
    %v2040 = vld [vmem:[%s1997 + $0x228] sm:$0xff]
    %v2041 = vld [vmem:[%s1997 + $0x230] sm:$0xff]
    %v2042 = vld [vmem:[%s1997 + $0x240] sm:$0xff]
    %v2043 = vld [vmem:[%s1997 + $0x248] sm:$0xff]
    %v2044 = vld [vmem:[%s1997 + $0x258] sm:$0xff]
    %v2045 = vld [vmem:[%s1997 + $0x260] sm:$0xff]
    %v2046 = vld [vmem:[%s1997 + $0x270] sm:$0xff]
    %v2047 = vld [vmem:[%s1997 + $0x278] sm:$0xff]
    %v2048 = vld [vmem:[%s1997 + $0x288] sm:$0xff]
    %v2049 = vld [vmem:[%s1997 + $0x290] sm:$0xff]
    %v2050 = vld [vmem:[%s1997 + $0x2a0] sm:$0xff]
    %v2051 = vld [vmem:[%s1997 + $0x2a8] sm:$0xff]
    %v2052 = vld [vmem:[%s1997 + $0x2b8] sm:$0xff]
    %v2053 = vld [vmem:[%s1997 + $0x2c0] sm:$0xff]
    %v2054 = vld [vmem:[%s1997 + $0x2d0] sm:$0xff]
    %v2055 = vld [vmem:[%s1997 + $0x2d8] sm:$0xff]
    %v2056 = vld [vmem:[%s1997 + $0x2e8] sm:$0xff]
    %v2057 = vld [vmem:[%s1997 + $0x2f0] sm:$0xff]
    %v2058 = vld [vmem:[%s1997 + $0x300] sm:$0xff]
    %v2059 = vld [vmem:[%s1997 + $0x308] sm:$0xff]
    %v2060 = vld [vmem:[%s1997 + $0x318] sm:$0xff]
    %v2061 = vld [vmem:[%s1997 + $0x320] sm:$0xff]
    %2062 = vst [vmem:[#allocation3 + $0x30] sm:$0xff] %v1998
    %2063 = vst [vmem:[#allocation3 + $0x78] sm:$0xff] %v1999
    %2064 = vst [vmem:[#allocation3 + $0xc0] sm:$0xff] %v2000
    %2065 = vst [vmem:[#allocation3 + $0x108] sm:$0xff] %v2001
    %2066 = vst [vmem:[#allocation3 + $0x150] sm:$0xff] %v2002
    %2067 = vst [vmem:[#allocation3 + $0x198] sm:$0xff] %v2003
    %2068 = vst [vmem:[#allocation3 + $0x1e0] sm:$0xff] %v2004
    %2069 = vst [vmem:[#allocation3 + $0x228] sm:$0xff] %v2005
    %2070 = vst [vmem:[#allocation3 + $0x270] sm:$0xff] %v2006
    %2071 = vst [vmem:[#allocation3 + $0x2b8] sm:$0xff] %v2007
    %2072 = vst [vmem:[#allocation3 + $0x300] sm:$0xff] %v2008
    %2073 = vst [vmem:[#allocation3 + $0x348] sm:$0xff] %v2009
    %2074 = vst [vmem:[#allocation3 + $0x390] sm:$0xff] %v2010
    %2075 = vst [vmem:[#allocation3 + $0x3d8] sm:$0xff] %v2011
    %2076 = vst [vmem:[#allocation3 + $0x420] sm:$0xff] %v2012
    %2077 = vst [vmem:[#allocation3 + $0x468] sm:$0xff] %v2013
    %2078 = vst [vmem:[#allocation3 + $0x4b0] sm:$0xff] %v2014
    %2079 = vst [vmem:[#allocation3 + $0x4f8] sm:$0xff] %v2015
    %2080 = vst [vmem:[#allocation3 + $0x540] sm:$0xff] %v2016
    %2081 = vst [vmem:[#allocation3 + $0x588] sm:$0xff] %v2017
    %2082 = vst [vmem:[#allocation3 + $0x5d0] sm:$0xff] %v2018
    %2083 = vst [vmem:[#allocation3 + $0x618] sm:$0xff] %v2019
    %2084 = vst [vmem:[#allocation3 + $0x660] sm:$0xff] %v2020
    %2085 = vst [vmem:[#allocation3 + $0x6a8] sm:$0xff] %v2021
    %2086 = vst [vmem:[#allocation3 + $0x6f0] sm:$0xff] %v2022
    %2087 = vst [vmem:[#allocation3 + $0x738] sm:$0xff] %v2023
    %2088 = vst [vmem:[#allocation3 + $0x780] sm:$0xff] %v2024
    %2089 = vst [vmem:[#allocation3 + $0x7c8] sm:$0xff] %v2025
    %2090 = vst [vmem:[#allocation3 + $0x810] sm:$0xff] %v2026
    %2091 = vst [vmem:[#allocation3 + $0x858] sm:$0xff] %v2027
    %2092 = vst [vmem:[#allocation3 + $0x8a0] sm:$0xff] %v2028
    %2093 = vst [vmem:[#allocation3 + $0x8e8] sm:$0xff] %v2029
    %2094 = vst [vmem:[#allocation3 + $0x930] sm:$0xff] %v2030
    %2095 = vst [vmem:[#allocation3 + $0x978] sm:$0xff] %v2031
    %2096 = vst [vmem:[#allocation3 + $0x9c0] sm:$0xff] %v2032
    %2097 = vst [vmem:[#allocation3 + $0xa08] sm:$0xff] %v2033
    %2098 = vst [vmem:[#allocation3 + $0xa50] sm:$0xff] %v2034
    %2099 = vst [vmem:[#allocation3 + $0xa98] sm:$0xff] %v2035
    %2100 = vst [vmem:[#allocation3 + $0xae0] sm:$0xff] %v2036
    %2101 = vst [vmem:[#allocation3 + $0xb28] sm:$0xff] %v2037
    %2102 = vst [vmem:[#allocation3 + $0xb70] sm:$0xff] %v2038
    %2103 = vst [vmem:[#allocation3 + $0xbb8] sm:$0xff] %v2039
    %2104 = vst [vmem:[#allocation3 + $0xc00] sm:$0xff] %v2040
    %2105 = vst [vmem:[#allocation3 + $0xc48] sm:$0xff] %v2041
    %2106 = vst [vmem:[#allocation3 + $0xc90] sm:$0xff] %v2042
    %2107 = vst [vmem:[#allocation3 + $0xcd8] sm:$0xff] %v2043
    %2108 = vst [vmem:[#allocation3 + $0xd20] sm:$0xff] %v2044
    %2109 = vst [vmem:[#allocation3 + $0xd68] sm:$0xff] %v2045
    %2110 = vst [vmem:[#allocation3 + $0xdb0] sm:$0xff] %v2046
    %2111 = vst [vmem:[#allocation3 + $0xdf8] sm:$0xff] %v2047
    %2112 = vst [vmem:[#allocation3 + $0xe40] sm:$0xff] %v2048
    %2113 = vst [vmem:[#allocation3 + $0xe88] sm:$0xff] %v2049
    %2114 = vst [vmem:[#allocation3 + $0xed0] sm:$0xff] %v2050
    %2115 = vst [vmem:[#allocation3 + $0xf18] sm:$0xff] %v2051
    %2116 = vst [vmem:[#allocation3 + $0xf60] sm:$0xff] %v2052
    %2117 = vst [vmem:[#allocation3 + $0xfa8] sm:$0xff] %v2053
    %2118 = vst [vmem:[#allocation3 + $0xff0] sm:$0xff] %v2054
    %2119 = vst [vmem:[#allocation3 + $0x1038] sm:$0xff] %v2055
    %2120 = vst [vmem:[#allocation3 + $0x1080] sm:$0xff] %v2056
    %2121 = vst [vmem:[#allocation3 + $0x10c8] sm:$0xff] %v2057
    %2122 = vst [vmem:[#allocation3 + $0x1110] sm:$0xff] %v2058
    %2123 = vst [vmem:[#allocation3 + $0x1158] sm:$0xff] %v2059
    %2124 = vst [vmem:[#allocation3 + $0x11a0] sm:$0xff] %v2060
    %2125 = vst [vmem:[#allocation3 + $0x11e8] sm:$0xff] %v2061
    %v2126 = vld [vmem:[%s1997 + $0x1] sm:$0xff]
    %v2127 = vld [vmem:[%s1997 + $0x9] sm:$0xff]
    %v2128 = vld [vmem:[%s1997 + $0x19] sm:$0xff]
    %v2129 = vld [vmem:[%s1997 + $0x21] sm:$0xff]
    %v2130 = vld [vmem:[%s1997 + $0x31] sm:$0xff]
    %v2131 = vld [vmem:[%s1997 + $0x39] sm:$0xff]
    %v2132 = vld [vmem:[%s1997 + $0x49] sm:$0xff]
    %v2133 = vld [vmem:[%s1997 + $0x51] sm:$0xff]
    %v2134 = vld [vmem:[%s1997 + $0x61] sm:$0xff]
    %v2135 = vld [vmem:[%s1997 + $0x69] sm:$0xff]
    %v2136 = vld [vmem:[%s1997 + $0x79] sm:$0xff]
    %v2137 = vld [vmem:[%s1997 + $0x81] sm:$0xff]
    %v2138 = vld [vmem:[%s1997 + $0x91] sm:$0xff]
    %v2139 = vld [vmem:[%s1997 + $0x99] sm:$0xff]
    %v2140 = vld [vmem:[%s1997 + $0xa9] sm:$0xff]
    %v2141 = vld [vmem:[%s1997 + $0xb1] sm:$0xff]
    %v2142 = vld [vmem:[%s1997 + $0xc1] sm:$0xff]
    %v2143 = vld [vmem:[%s1997 + $0xc9] sm:$0xff]
    %v2144 = vld [vmem:[%s1997 + $0xd9] sm:$0xff]
    %v2145 = vld [vmem:[%s1997 + $0xe1] sm:$0xff]
    %v2146 = vld [vmem:[%s1997 + $0xf1] sm:$0xff]
    %v2147 = vld [vmem:[%s1997 + $0xf9] sm:$0xff]
    %v2148 = vld [vmem:[%s1997 + $0x109] sm:$0xff]
    %v2149 = vld [vmem:[%s1997 + $0x111] sm:$0xff]
    %v2150 = vld [vmem:[%s1997 + $0x121] sm:$0xff]
    %v2151 = vld [vmem:[%s1997 + $0x129] sm:$0xff]
    %v2152 = vld [vmem:[%s1997 + $0x139] sm:$0xff]
    %v2153 = vld [vmem:[%s1997 + $0x141] sm:$0xff]
    %v2154 = vld [vmem:[%s1997 + $0x151] sm:$0xff]
    %v2155 = vld [vmem:[%s1997 + $0x159] sm:$0xff]
    %v2156 = vld [vmem:[%s1997 + $0x169] sm:$0xff]
    %v2157 = vld [vmem:[%s1997 + $0x171] sm:$0xff]
    %v2158 = vld [vmem:[%s1997 + $0x1b1] sm:$0xff]
    %v2159 = vld [vmem:[%s1997 + $0x1b9] sm:$0xff]
    %v2160 = vld [vmem:[%s1997 + $0x1c9] sm:$0xff]
    %v2161 = vld [vmem:[%s1997 + $0x1d1] sm:$0xff]
    %v2162 = vld [vmem:[%s1997 + $0x1e1] sm:$0xff]
    %v2163 = vld [vmem:[%s1997 + $0x1e9] sm:$0xff]
    %v2164 = vld [vmem:[%s1997 + $0x1f9] sm:$0xff]
    %v2165 = vld [vmem:[%s1997 + $0x201] sm:$0xff]
    %v2166 = vld [vmem:[%s1997 + $0x211] sm:$0xff]
    %v2167 = vld [vmem:[%s1997 + $0x219] sm:$0xff]
    %v2168 = vld [vmem:[%s1997 + $0x229] sm:$0xff]
    %v2169 = vld [vmem:[%s1997 + $0x231] sm:$0xff]
    %v2170 = vld [vmem:[%s1997 + $0x241] sm:$0xff]
    %v2171 = vld [vmem:[%s1997 + $0x249] sm:$0xff]
    %v2172 = vld [vmem:[%s1997 + $0x259] sm:$0xff]
    %v2173 = vld [vmem:[%s1997 + $0x261] sm:$0xff]
    %v2174 = vld [vmem:[%s1997 + $0x271] sm:$0xff]
    %v2175 = vld [vmem:[%s1997 + $0x279] sm:$0xff]
    %v2176 = vld [vmem:[%s1997 + $0x289] sm:$0xff]
    %v2177 = vld [vmem:[%s1997 + $0x291] sm:$0xff]
    %v2178 = vld [vmem:[%s1997 + $0x2a1] sm:$0xff]
    %v2179 = vld [vmem:[%s1997 + $0x2a9] sm:$0xff]
    %v2180 = vld [vmem:[%s1997 + $0x2b9] sm:$0xff]
    %v2181 = vld [vmem:[%s1997 + $0x2c1] sm:$0xff]
    %v2182 = vld [vmem:[%s1997 + $0x2d1] sm:$0xff]
    %v2183 = vld [vmem:[%s1997 + $0x2d9] sm:$0xff]
    %v2184 = vld [vmem:[%s1997 + $0x2e9] sm:$0xff]
    %v2185 = vld [vmem:[%s1997 + $0x2f1] sm:$0xff]
    %v2186 = vld [vmem:[%s1997 + $0x301] sm:$0xff]
    %v2187 = vld [vmem:[%s1997 + $0x309] sm:$0xff]
    %v2188 = vld [vmem:[%s1997 + $0x319] sm:$0xff]
    %v2189 = vld [vmem:[%s1997 + $0x321] sm:$0xff]
    %2190 = vst [vmem:[#allocation3 + $0x38] sm:$0xff] %v2126
    %2191 = vst [vmem:[#allocation3 + $0x80] sm:$0xff] %v2127
    %2192 = vst [vmem:[#allocation3 + $0xc8] sm:$0xff] %v2128
    %2193 = vst [vmem:[#allocation3 + $0x110] sm:$0xff] %v2129
    %2194 = vst [vmem:[#allocation3 + $0x158] sm:$0xff] %v2130
    %2195 = vst [vmem:[#allocation3 + $0x1a0] sm:$0xff] %v2131
    %2196 = vst [vmem:[#allocation3 + $0x1e8] sm:$0xff] %v2132
    %2197 = vst [vmem:[#allocation3 + $0x230] sm:$0xff] %v2133
    %2198 = vst [vmem:[#allocation3 + $0x278] sm:$0xff] %v2134
    %2199 = vst [vmem:[#allocation3 + $0x2c0] sm:$0xff] %v2135
    %2200 = vst [vmem:[#allocation3 + $0x308] sm:$0xff] %v2136
    %2201 = vst [vmem:[#allocation3 + $0x350] sm:$0xff] %v2137
    %2202 = vst [vmem:[#allocation3 + $0x398] sm:$0xff] %v2138
    %2203 = vst [vmem:[#allocation3 + $0x3e0] sm:$0xff] %v2139
    %2204 = vst [vmem:[#allocation3 + $0x428] sm:$0xff] %v2140
    %2205 = vst [vmem:[#allocation3 + $0x470] sm:$0xff] %v2141
    %2206 = vst [vmem:[#allocation3 + $0x4b8] sm:$0xff] %v2142
    %2207 = vst [vmem:[#allocation3 + $0x500] sm:$0xff] %v2143
    %2208 = vst [vmem:[#allocation3 + $0x548] sm:$0xff] %v2144
    %2209 = vst [vmem:[#allocation3 + $0x590] sm:$0xff] %v2145
    %2210 = vst [vmem:[#allocation3 + $0x5d8] sm:$0xff] %v2146
    %2211 = vst [vmem:[#allocation3 + $0x620] sm:$0xff] %v2147
    %2212 = vst [vmem:[#allocation3 + $0x668] sm:$0xff] %v2148
    %2213 = vst [vmem:[#allocation3 + $0x6b0] sm:$0xff] %v2149
    %2214 = vst [vmem:[#allocation3 + $0x6f8] sm:$0xff] %v2150
    %2215 = vst [vmem:[#allocation3 + $0x740] sm:$0xff] %v2151
    %2216 = vst [vmem:[#allocation3 + $0x788] sm:$0xff] %v2152
    %2217 = vst [vmem:[#allocation3 + $0x7d0] sm:$0xff] %v2153
    %2218 = vst [vmem:[#allocation3 + $0x818] sm:$0xff] %v2154
    %2219 = vst [vmem:[#allocation3 + $0x860] sm:$0xff] %v2155
    %2220 = vst [vmem:[#allocation3 + $0x8a8] sm:$0xff] %v2156
    %2221 = vst [vmem:[#allocation3 + $0x8f0] sm:$0xff] %v2157
    %2222 = vst [vmem:[#allocation3 + $0x938] sm:$0xff] %v2158
    %2223 = vst [vmem:[#allocation3 + $0x980] sm:$0xff] %v2159
    %2224 = vst [vmem:[#allocation3 + $0x9c8] sm:$0xff] %v2160
    %2225 = vst [vmem:[#allocation3 + $0xa10] sm:$0xff] %v2161
    %2226 = vst [vmem:[#allocation3 + $0xa58] sm:$0xff] %v2162
    %2227 = vst [vmem:[#allocation3 + $0xaa0] sm:$0xff] %v2163
    %2228 = vst [vmem:[#allocation3 + $0xae8] sm:$0xff] %v2164
    %2229 = vst [vmem:[#allocation3 + $0xb30] sm:$0xff] %v2165
    %2230 = vst [vmem:[#allocation3 + $0xb78] sm:$0xff] %v2166
    %2231 = vst [vmem:[#allocation3 + $0xbc0] sm:$0xff] %v2167
    %2232 = vst [vmem:[#allocation3 + $0xc08] sm:$0xff] %v2168
    %2233 = vst [vmem:[#allocation3 + $0xc50] sm:$0xff] %v2169
    %2234 = vst [vmem:[#allocation3 + $0xc98] sm:$0xff] %v2170
    %2235 = vst [vmem:[#allocation3 + $0xce0] sm:$0xff] %v2171
    %2236 = vst [vmem:[#allocation3 + $0xd28] sm:$0xff] %v2172
    %2237 = vst [vmem:[#allocation3 + $0xd70] sm:$0xff] %v2173
    %2238 = vst [vmem:[#allocation3 + $0xdb8] sm:$0xff] %v2174
    %2239 = vst [vmem:[#allocation3 + $0xe00] sm:$0xff] %v2175
    %2240 = vst [vmem:[#allocation3 + $0xe48] sm:$0xff] %v2176
    %2241 = vst [vmem:[#allocation3 + $0xe90] sm:$0xff] %v2177
    %2242 = vst [vmem:[#allocation3 + $0xed8] sm:$0xff] %v2178
    %2243 = vst [vmem:[#allocation3 + $0xf20] sm:$0xff] %v2179
    %2244 = vst [vmem:[#allocation3 + $0xf68] sm:$0xff] %v2180
    %2245 = vst [vmem:[#allocation3 + $0xfb0] sm:$0xff] %v2181
    %2246 = vst [vmem:[#allocation3 + $0xff8] sm:$0xff] %v2182
    %2247 = vst [vmem:[#allocation3 + $0x1040] sm:$0xff] %v2183
    %2248 = vst [vmem:[#allocation3 + $0x1088] sm:$0xff] %v2184
    %2249 = vst [vmem:[#allocation3 + $0x10d0] sm:$0xff] %v2185
    %2250 = vst [vmem:[#allocation3 + $0x1118] sm:$0xff] %v2186
    %2251 = vst [vmem:[#allocation3 + $0x1160] sm:$0xff] %v2187
    %2252 = vst [vmem:[#allocation3 + $0x11a8] sm:$0xff] %v2188
    %2253 = vst [vmem:[#allocation3 + $0x11f0] sm:$0xff] %v2189
    %v2254 = vld [vmem:[%s1997 + $0x2] sm:$0xff]
    %v2255 = vld [vmem:[%s1997 + $0xa] sm:$0xff]
    %v2256 = vld [vmem:[%s1997 + $0x1a] sm:$0xff]
    %v2257 = vld [vmem:[%s1997 + $0x22] sm:$0xff]
    %v2258 = vld [vmem:[%s1997 + $0x32] sm:$0xff]
    %v2259 = vld [vmem:[%s1997 + $0x3a] sm:$0xff]
    %v2260 = vld [vmem:[%s1997 + $0x4a] sm:$0xff]
    %v2261 = vld [vmem:[%s1997 + $0x52] sm:$0xff]
    %v2262 = vld [vmem:[%s1997 + $0x62] sm:$0xff]
    %v2263 = vld [vmem:[%s1997 + $0x6a] sm:$0xff]
    %v2264 = vld [vmem:[%s1997 + $0x7a] sm:$0xff]
    %v2265 = vld [vmem:[%s1997 + $0x82] sm:$0xff]
    %v2266 = vld [vmem:[%s1997 + $0x92] sm:$0xff]
    %v2267 = vld [vmem:[%s1997 + $0x9a] sm:$0xff]
    %v2268 = vld [vmem:[%s1997 + $0xaa] sm:$0xff]
    %v2269 = vld [vmem:[%s1997 + $0xb2] sm:$0xff]
    %v2270 = vld [vmem:[%s1997 + $0xc2] sm:$0xff]
    %v2271 = vld [vmem:[%s1997 + $0xca] sm:$0xff]
    %v2272 = vld [vmem:[%s1997 + $0xda] sm:$0xff]
    %v2273 = vld [vmem:[%s1997 + $0xe2] sm:$0xff]
    %v2274 = vld [vmem:[%s1997 + $0xf2] sm:$0xff]
    %v2275 = vld [vmem:[%s1997 + $0xfa] sm:$0xff]
    %v2276 = vld [vmem:[%s1997 + $0x10a] sm:$0xff]
    %v2277 = vld [vmem:[%s1997 + $0x112] sm:$0xff]
    %v2278 = vld [vmem:[%s1997 + $0x122] sm:$0xff]
    %v2279 = vld [vmem:[%s1997 + $0x12a] sm:$0xff]
    %v2280 = vld [vmem:[%s1997 + $0x13a] sm:$0xff]
    %v2281 = vld [vmem:[%s1997 + $0x142] sm:$0xff]
    %v2282 = vld [vmem:[%s1997 + $0x152] sm:$0xff]
    %v2283 = vld [vmem:[%s1997 + $0x15a] sm:$0xff]
    %v2284 = vld [vmem:[%s1997 + $0x16a] sm:$0xff]
    %v2285 = vld [vmem:[%s1997 + $0x172] sm:$0xff]
    %v2286 = vld [vmem:[%s1997 + $0x1b2] sm:$0xff]
    %v2287 = vld [vmem:[%s1997 + $0x1ba] sm:$0xff]
    %v2288 = vld [vmem:[%s1997 + $0x1ca] sm:$0xff]
    %v2289 = vld [vmem:[%s1997 + $0x1d2] sm:$0xff]
    %v2290 = vld [vmem:[%s1997 + $0x1e2] sm:$0xff]
    %v2291 = vld [vmem:[%s1997 + $0x1ea] sm:$0xff]
    %v2292 = vld [vmem:[%s1997 + $0x1fa] sm:$0xff]
    %v2293 = vld [vmem:[%s1997 + $0x202] sm:$0xff]
    %v2294 = vld [vmem:[%s1997 + $0x212] sm:$0xff]
    %v2295 = vld [vmem:[%s1997 + $0x21a] sm:$0xff]
    %v2296 = vld [vmem:[%s1997 + $0x22a] sm:$0xff]
    %v2297 = vld [vmem:[%s1997 + $0x232] sm:$0xff]
    %v2298 = vld [vmem:[%s1997 + $0x242] sm:$0xff]
    %v2299 = vld [vmem:[%s1997 + $0x24a] sm:$0xff]
    %v2300 = vld [vmem:[%s1997 + $0x25a] sm:$0xff]
    %v2301 = vld [vmem:[%s1997 + $0x262] sm:$0xff]
    %v2302 = vld [vmem:[%s1997 + $0x272] sm:$0xff]
    %v2303 = vld [vmem:[%s1997 + $0x27a] sm:$0xff]
    %v2304 = vld [vmem:[%s1997 + $0x28a] sm:$0xff]
    %v2305 = vld [vmem:[%s1997 + $0x292] sm:$0xff]
    %v2306 = vld [vmem:[%s1997 + $0x2a2] sm:$0xff]
    %v2307 = vld [vmem:[%s1997 + $0x2aa] sm:$0xff]
    %v2308 = vld [vmem:[%s1997 + $0x2ba] sm:$0xff]
    %v2309 = vld [vmem:[%s1997 + $0x2c2] sm:$0xff]
    %v2310 = vld [vmem:[%s1997 + $0x2d2] sm:$0xff]
    %v2311 = vld [vmem:[%s1997 + $0x2da] sm:$0xff]
    %v2312 = vld [vmem:[%s1997 + $0x2ea] sm:$0xff]
    %v2313 = vld [vmem:[%s1997 + $0x2f2] sm:$0xff]
    %v2314 = vld [vmem:[%s1997 + $0x302] sm:$0xff]
    %v2315 = vld [vmem:[%s1997 + $0x30a] sm:$0xff]
    %v2316 = vld [vmem:[%s1997 + $0x31a] sm:$0xff]
    %v2317 = vld [vmem:[%s1997 + $0x322] sm:$0xff]
    %2318 = vst [vmem:[#allocation3 + $0x40] sm:$0xff] %v2254
    %2319 = vst [vmem:[#allocation3 + $0x88] sm:$0xff] %v2255
    %2320 = vst [vmem:[#allocation3 + $0xd0] sm:$0xff] %v2256
    %2321 = vst [vmem:[#allocation3 + $0x118] sm:$0xff] %v2257
    %2322 = vst [vmem:[#allocation3 + $0x160] sm:$0xff] %v2258
    %2323 = vst [vmem:[#allocation3 + $0x1a8] sm:$0xff] %v2259
    %2324 = vst [vmem:[#allocation3 + $0x1f0] sm:$0xff] %v2260
    %2325 = vst [vmem:[#allocation3 + $0x238] sm:$0xff] %v2261
    %2326 = vst [vmem:[#allocation3 + $0x280] sm:$0xff] %v2262
    %2327 = vst [vmem:[#allocation3 + $0x2c8] sm:$0xff] %v2263
    %2328 = vst [vmem:[#allocation3 + $0x310] sm:$0xff] %v2264
    %2329 = vst [vmem:[#allocation3 + $0x358] sm:$0xff] %v2265
    %2330 = vst [vmem:[#allocation3 + $0x3a0] sm:$0xff] %v2266
    %2331 = vst [vmem:[#allocation3 + $0x3e8] sm:$0xff] %v2267
    %2332 = vst [vmem:[#allocation3 + $0x430] sm:$0xff] %v2268
    %2333 = vst [vmem:[#allocation3 + $0x478] sm:$0xff] %v2269
    %2334 = vst [vmem:[#allocation3 + $0x4c0] sm:$0xff] %v2270
    %2335 = vst [vmem:[#allocation3 + $0x508] sm:$0xff] %v2271
    %2336 = vst [vmem:[#allocation3 + $0x550] sm:$0xff] %v2272
    %2337 = vst [vmem:[#allocation3 + $0x598] sm:$0xff] %v2273
    %2338 = vst [vmem:[#allocation3 + $0x5e0] sm:$0xff] %v2274
    %2339 = vst [vmem:[#allocation3 + $0x628] sm:$0xff] %v2275
    %2340 = vst [vmem:[#allocation3 + $0x670] sm:$0xff] %v2276
    %2341 = vst [vmem:[#allocation3 + $0x6b8] sm:$0xff] %v2277
    %2342 = vst [vmem:[#allocation3 + $0x700] sm:$0xff] %v2278
    %2343 = vst [vmem:[#allocation3 + $0x748] sm:$0xff] %v2279
    %2344 = vst [vmem:[#allocation3 + $0x790] sm:$0xff] %v2280
    %2345 = vst [vmem:[#allocation3 + $0x7d8] sm:$0xff] %v2281
    %2346 = vst [vmem:[#allocation3 + $0x820] sm:$0xff] %v2282
    %2347 = vst [vmem:[#allocation3 + $0x868] sm:$0xff] %v2283
    %2348 = vst [vmem:[#allocation3 + $0x8b0] sm:$0xff] %v2284
    %2349 = vst [vmem:[#allocation3 + $0x8f8] sm:$0xff] %v2285
    %2350 = vst [vmem:[#allocation3 + $0x940] sm:$0xff] %v2286
    %2351 = vst [vmem:[#allocation3 + $0x988] sm:$0xff] %v2287
    %2352 = vst [vmem:[#allocation3 + $0x9d0] sm:$0xff] %v2288
    %2353 = vst [vmem:[#allocation3 + $0xa18] sm:$0xff] %v2289
    %2354 = vst [vmem:[#allocation3 + $0xa60] sm:$0xff] %v2290
    %2355 = vst [vmem:[#allocation3 + $0xaa8] sm:$0xff] %v2291
    %2356 = vst [vmem:[#allocation3 + $0xaf0] sm:$0xff] %v2292
    %2357 = vst [vmem:[#allocation3 + $0xb38] sm:$0xff] %v2293
    %2358 = vst [vmem:[#allocation3 + $0xb80] sm:$0xff] %v2294
    %2359 = vst [vmem:[#allocation3 + $0xbc8] sm:$0xff] %v2295
    %2360 = vst [vmem:[#allocation3 + $0xc10] sm:$0xff] %v2296
    %2361 = vst [vmem:[#allocation3 + $0xc58] sm:$0xff] %v2297
    %2362 = vst [vmem:[#allocation3 + $0xca0] sm:$0xff] %v2298
    %2363 = vst [vmem:[#allocation3 + $0xce8] sm:$0xff] %v2299
    %2364 = vst [vmem:[#allocation3 + $0xd30] sm:$0xff] %v2300
    %2365 = vst [vmem:[#allocation3 + $0xd78] sm:$0xff] %v2301
    %2366 = vst [vmem:[#allocation3 + $0xdc0] sm:$0xff] %v2302
    %2367 = vst [vmem:[#allocation3 + $0xe08] sm:$0xff] %v2303
    %2368 = vst [vmem:[#allocation3 + $0xe50] sm:$0xff] %v2304
    %2369 = vst [vmem:[#allocation3 + $0xe98] sm:$0xff] %v2305
    %2370 = vst [vmem:[#allocation3 + $0xee0] sm:$0xff] %v2306
    %2371 = vst [vmem:[#allocation3 + $0xf28] sm:$0xff] %v2307
    %2372 = vst [vmem:[#allocation3 + $0xf70] sm:$0xff] %v2308
    %2373 = vst [vmem:[#allocation3 + $0xfb8] sm:$0xff] %v2309
    %2374 = vst [vmem:[#allocation3 + $0x1000] sm:$0xff] %v2310
    %2375 = vst [vmem:[#allocation3 + $0x1048] sm:$0xff] %v2311
    %2376 = vst [vmem:[#allocation3 + $0x1090] sm:$0xff] %v2312
    %2377 = vst [vmem:[#allocation3 + $0x10d8] sm:$0xff] %v2313
    %2378 = vst [vmem:[#allocation3 + $0x1120] sm:$0xff] %v2314
    %2379 = vst [vmem:[#allocation3 + $0x1168] sm:$0xff] %v2315
    %2380 = vst [vmem:[#allocation3 + $0x11b0] sm:$0xff] %v2316
    %2381 = vst [vmem:[#allocation3 + $0x11f8] sm:$0xff] %v2317
    %v2382 = vld [vmem:[#allocation3] sm:$0xff]
    %v2383 = vld [vmem:[#allocation3 + $0x8] sm:$0xff]
    %v2384 = vld [vmem:[#allocation3 + $0x10] sm:$0xff]
    %v2385 = vld [vmem:[#allocation3 + $0x18] sm:$0xff]
    %v2386 = vld [vmem:[#allocation3 + $0x20] sm:$0xff]
    %v2387 = vld [vmem:[#allocation3 + $0x28] sm:$0xff]
    %v2388 = vld [vmem:[#allocation3 + $0x30] sm:$0xff]
    %v2389 = vld [vmem:[#allocation3 + $0x38] sm:$0xff]
    %v2390 = vld [vmem:[#allocation3 + $0x40] sm:$0xff]
    %v2391 = vld [vmem:[#allocation3 + $0x48] sm:$0xff]
    %v2392 = vld [vmem:[#allocation3 + $0x50] sm:$0xff]
    %v2393 = vld [vmem:[#allocation3 + $0x58] sm:$0xff]
    %v2394 = vld [vmem:[#allocation3 + $0x60] sm:$0xff]
    %v2395 = vld [vmem:[#allocation3 + $0x68] sm:$0xff]
    %v2396 = vld [vmem:[#allocation3 + $0x70] sm:$0xff]
    %v2397 = vld [vmem:[#allocation3 + $0x78] sm:$0xff]
    %v2398 = vld [vmem:[#allocation3 + $0x80] sm:$0xff]
    %v2399 = vld [vmem:[#allocation3 + $0x88] sm:$0xff]
    %v2400 = vld [vmem:[#allocation3 + $0x90] sm:$0xff]
    %v2401 = vld [vmem:[#allocation3 + $0x98] sm:$0xff]
    %v2402 = vld [vmem:[#allocation3 + $0xa0] sm:$0xff]
    %v2403 = vld [vmem:[#allocation3 + $0xa8] sm:$0xff]
    %v2404 = vld [vmem:[#allocation3 + $0xb0] sm:$0xff]
    %v2405 = vld [vmem:[#allocation3 + $0xb8] sm:$0xff]
    %v2406 = vld [vmem:[#allocation3 + $0xc0] sm:$0xff]
    %v2407 = vld [vmem:[#allocation3 + $0xc8] sm:$0xff]
    %v2408 = vld [vmem:[#allocation3 + $0xd0] sm:$0xff]
    %v2409 = vld [vmem:[#allocation3 + $0xd8] sm:$0xff]
    %v2410 = vld [vmem:[#allocation3 + $0xe0] sm:$0xff]
    %v2411 = vld [vmem:[#allocation3 + $0xe8] sm:$0xff]
    %v2412 = vld [vmem:[#allocation3 + $0xf0] sm:$0xff]
    %v2413 = vld [vmem:[#allocation3 + $0xf8] sm:$0xff]
    %v2414 = vld [vmem:[#allocation3 + $0x100] sm:$0xff]
    %v2415 = vld [vmem:[#allocation3 + $0x108] sm:$0xff]
    %v2416 = vld [vmem:[#allocation3 + $0x110] sm:$0xff]
    %v2417 = vld [vmem:[#allocation3 + $0x118] sm:$0xff]
    %v2418 = vld [vmem:[#allocation3 + $0x120] sm:$0xff]
    %v2419 = vld [vmem:[#allocation3 + $0x128] sm:$0xff]
    %v2420 = vld [vmem:[#allocation3 + $0x130] sm:$0xff]
    %v2421 = vld [vmem:[#allocation3 + $0x138] sm:$0xff]
    %v2422 = vld [vmem:[#allocation3 + $0x140] sm:$0xff]
    %v2423 = vld [vmem:[#allocation3 + $0x148] sm:$0xff]
    %v2424 = vld [vmem:[#allocation3 + $0x150] sm:$0xff]
    %v2425 = vld [vmem:[#allocation3 + $0x158] sm:$0xff]
    %v2426 = vld [vmem:[#allocation3 + $0x160] sm:$0xff]
    %v2427 = vld [vmem:[#allocation3 + $0x168] sm:$0xff]
    %v2428 = vld [vmem:[#allocation3 + $0x170] sm:$0xff]
    %v2429 = vld [vmem:[#allocation3 + $0x178] sm:$0xff]
    %v2430 = vld [vmem:[#allocation3 + $0x180] sm:$0xff]
    %v2431 = vld [vmem:[#allocation3 + $0x188] sm:$0xff]
    %v2432 = vld [vmem:[#allocation3 + $0x190] sm:$0xff]
    %v2433 = vld [vmem:[#allocation3 + $0x198] sm:$0xff]
    %v2434 = vld [vmem:[#allocation3 + $0x1a0] sm:$0xff]
    %v2435 = vld [vmem:[#allocation3 + $0x1a8] sm:$0xff]
    %v2436 = vld [vmem:[#allocation3 + $0x1b0] sm:$0xff]
    %v2437 = vld [vmem:[#allocation3 + $0x1b8] sm:$0xff]
    %v2438 = vld [vmem:[#allocation3 + $0x1c0] sm:$0xff]
    %v2439 = vld [vmem:[#allocation3 + $0x1c8] sm:$0xff]
    %v2440 = vld [vmem:[#allocation3 + $0x1d0] sm:$0xff]
    %v2441 = vld [vmem:[#allocation3 + $0x1d8] sm:$0xff]
    %v2442 = vld [vmem:[#allocation3 + $0x1e0] sm:$0xff]
    %v2443 = vld [vmem:[#allocation3 + $0x1e8] sm:$0xff]
    %v2444 = vld [vmem:[#allocation3 + $0x1f0] sm:$0xff]
    %v2445 = vld [vmem:[#allocation3 + $0x1f8] sm:$0xff]
    %v2446 = vld [vmem:[#allocation3 + $0x200] sm:$0xff]
    %v2447 = vld [vmem:[#allocation3 + $0x208] sm:$0xff]
    %v2448 = vld [vmem:[#allocation3 + $0x210] sm:$0xff]
    %v2449 = vld [vmem:[#allocation3 + $0x218] sm:$0xff]
    %v2450 = vld [vmem:[#allocation3 + $0x220] sm:$0xff]
    %v2451 = vld [vmem:[#allocation3 + $0x228] sm:$0xff]
    %v2452 = vld [vmem:[#allocation3 + $0x230] sm:$0xff]
    %v2453 = vld [vmem:[#allocation3 + $0x238] sm:$0xff]
    %v2454 = vld [vmem:[#allocation3 + $0x240] sm:$0xff]
    %v2455 = vld [vmem:[#allocation3 + $0x248] sm:$0xff]
    %v2456 = vld [vmem:[#allocation3 + $0x250] sm:$0xff]
    %v2457 = vld [vmem:[#allocation3 + $0x258] sm:$0xff]
    %v2458 = vld [vmem:[#allocation3 + $0x260] sm:$0xff]
    %v2459 = vld [vmem:[#allocation3 + $0x268] sm:$0xff]
    %v2460 = vld [vmem:[#allocation3 + $0x270] sm:$0xff]
    %v2461 = vld [vmem:[#allocation3 + $0x278] sm:$0xff]
    %v2462 = vld [vmem:[#allocation3 + $0x280] sm:$0xff]
    %v2463 = vld [vmem:[#allocation3 + $0x288] sm:$0xff]
    %v2464 = vld [vmem:[#allocation3 + $0x290] sm:$0xff]
    %v2465 = vld [vmem:[#allocation3 + $0x298] sm:$0xff]
    %v2466 = vld [vmem:[#allocation3 + $0x2a0] sm:$0xff]
    %v2467 = vld [vmem:[#allocation3 + $0x2a8] sm:$0xff]
    %v2468 = vld [vmem:[#allocation3 + $0x2b0] sm:$0xff]
    %v2469 = vld [vmem:[#allocation3 + $0x2b8] sm:$0xff]
    %v2470 = vld [vmem:[#allocation3 + $0x2c0] sm:$0xff]
    %v2471 = vld [vmem:[#allocation3 + $0x2c8] sm:$0xff]
    %v2472 = vld [vmem:[#allocation3 + $0x2d0] sm:$0xff]
    %v2473 = vld [vmem:[#allocation3 + $0x2d8] sm:$0xff]
    %v2474 = vld [vmem:[#allocation3 + $0x2e0] sm:$0xff]
    %v2475 = vld [vmem:[#allocation3 + $0x2e8] sm:$0xff]
    %v2476 = vld [vmem:[#allocation3 + $0x2f0] sm:$0xff]
    %v2477 = vld [vmem:[#allocation3 + $0x2f8] sm:$0xff]
    %v2478 = vld [vmem:[#allocation3 + $0x300] sm:$0xff]
    %v2479 = vld [vmem:[#allocation3 + $0x308] sm:$0xff]
    %v2480 = vld [vmem:[#allocation3 + $0x310] sm:$0xff]
    %v2481 = vld [vmem:[#allocation3 + $0x318] sm:$0xff]
    %v2482 = vld [vmem:[#allocation3 + $0x320] sm:$0xff]
    %v2483 = vld [vmem:[#allocation3 + $0x328] sm:$0xff]
    %v2484 = vld [vmem:[#allocation3 + $0x330] sm:$0xff]
    %v2485 = vld [vmem:[#allocation3 + $0x338] sm:$0xff]
    %v2486 = vld [vmem:[#allocation3 + $0x340] sm:$0xff]
    %v2487 = vld [vmem:[#allocation3 + $0x348] sm:$0xff]
    %v2488 = vld [vmem:[#allocation3 + $0x350] sm:$0xff]
    %v2489 = vld [vmem:[#allocation3 + $0x358] sm:$0xff]
    %v2490 = vld [vmem:[#allocation3 + $0x360] sm:$0xff]
    %v2491 = vld [vmem:[#allocation3 + $0x368] sm:$0xff]
    %v2492 = vld [vmem:[#allocation3 + $0x370] sm:$0xff]
    %v2493 = vld [vmem:[#allocation3 + $0x378] sm:$0xff]
    %v2494 = vld [vmem:[#allocation3 + $0x380] sm:$0xff]
    %v2495 = vld [vmem:[#allocation3 + $0x388] sm:$0xff]
    %v2496 = vld [vmem:[#allocation3 + $0x390] sm:$0xff]
    %v2497 = vld [vmem:[#allocation3 + $0x398] sm:$0xff]
    %v2498 = vld [vmem:[#allocation3 + $0x3a0] sm:$0xff]
    %v2499 = vld [vmem:[#allocation3 + $0x3a8] sm:$0xff]
    %v2500 = vld [vmem:[#allocation3 + $0x3b0] sm:$0xff]
    %v2501 = vld [vmem:[#allocation3 + $0x3b8] sm:$0xff]
    %v2502 = vld [vmem:[#allocation3 + $0x3c0] sm:$0xff]
    %v2503 = vld [vmem:[#allocation3 + $0x3c8] sm:$0xff]
    %v2504 = vld [vmem:[#allocation3 + $0x3d0] sm:$0xff]
    %v2505 = vld [vmem:[#allocation3 + $0x3d8] sm:$0xff]
    %v2506 = vld [vmem:[#allocation3 + $0x3e0] sm:$0xff]
    %v2507 = vld [vmem:[#allocation3 + $0x3e8] sm:$0xff]
    %v2508 = vld [vmem:[#allocation3 + $0x3f0] sm:$0xff]
    %v2509 = vld [vmem:[#allocation3 + $0x3f8] sm:$0xff]
    %v2510 = vld [vmem:[#allocation3 + $0x400] sm:$0xff]
    %v2511 = vld [vmem:[#allocation3 + $0x408] sm:$0xff]
    %v2512 = vld [vmem:[#allocation3 + $0x410] sm:$0xff]
    %v2513 = vld [vmem:[#allocation3 + $0x418] sm:$0xff]
    %v2514 = vld [vmem:[#allocation3 + $0x420] sm:$0xff]
    %v2515 = vld [vmem:[#allocation3 + $0x428] sm:$0xff]
    %v2516 = vld [vmem:[#allocation3 + $0x430] sm:$0xff]
    %v2517 = vld [vmem:[#allocation3 + $0x438] sm:$0xff]
    %v2518 = vld [vmem:[#allocation3 + $0x440] sm:$0xff]
    %v2519 = vld [vmem:[#allocation3 + $0x448] sm:$0xff]
    %v2520 = vld [vmem:[#allocation3 + $0x450] sm:$0xff]
    %v2521 = vld [vmem:[#allocation3 + $0x458] sm:$0xff]
    %v2522 = vld [vmem:[#allocation3 + $0x460] sm:$0xff]
    %v2523 = vld [vmem:[#allocation3 + $0x468] sm:$0xff]
    %v2524 = vld [vmem:[#allocation3 + $0x470] sm:$0xff]
    %v2525 = vld [vmem:[#allocation3 + $0x478] sm:$0xff]
    %v2526 = vld [vmem:[#allocation3 + $0x480] sm:$0xff]
    %v2527 = vld [vmem:[#allocation3 + $0x488] sm:$0xff]
    %v2528 = vld [vmem:[#allocation3 + $0x490] sm:$0xff]
    %v2529 = vld [vmem:[#allocation3 + $0x498] sm:$0xff]
    %v2530 = vld [vmem:[#allocation3 + $0x4a0] sm:$0xff]
    %v2531 = vld [vmem:[#allocation3 + $0x4a8] sm:$0xff]
    %v2532 = vld [vmem:[#allocation3 + $0x4b0] sm:$0xff]
    %v2533 = vld [vmem:[#allocation3 + $0x4b8] sm:$0xff]
    %v2534 = vld [vmem:[#allocation3 + $0x4c0] sm:$0xff]
    %v2535 = vld [vmem:[#allocation3 + $0x4c8] sm:$0xff]
    %v2536 = vld [vmem:[#allocation3 + $0x4d0] sm:$0xff]
    %v2537 = vld [vmem:[#allocation3 + $0x4d8] sm:$0xff]
    %v2538 = vld [vmem:[#allocation3 + $0x4e0] sm:$0xff]
    %v2539 = vld [vmem:[#allocation3 + $0x4e8] sm:$0xff]
    %v2540 = vld [vmem:[#allocation3 + $0x4f0] sm:$0xff]
    %v2541 = vld [vmem:[#allocation3 + $0x4f8] sm:$0xff]
    %v2542 = vld [vmem:[#allocation3 + $0x500] sm:$0xff]
    %v2543 = vld [vmem:[#allocation3 + $0x508] sm:$0xff]
    %v2544 = vld [vmem:[#allocation3 + $0x510] sm:$0xff]
    %v2545 = vld [vmem:[#allocation3 + $0x518] sm:$0xff]
    %v2546 = vld [vmem:[#allocation3 + $0x520] sm:$0xff]
    %v2547 = vld [vmem:[#allocation3 + $0x528] sm:$0xff]
    %v2548 = vld [vmem:[#allocation3 + $0x530] sm:$0xff]
    %v2549 = vld [vmem:[#allocation3 + $0x538] sm:$0xff]
    %v2550 = vld [vmem:[#allocation3 + $0x540] sm:$0xff]
    %v2551 = vld [vmem:[#allocation3 + $0x548] sm:$0xff]
    %v2552 = vld [vmem:[#allocation3 + $0x550] sm:$0xff]
    %v2553 = vld [vmem:[#allocation3 + $0x558] sm:$0xff]
    %v2554 = vld [vmem:[#allocation3 + $0x560] sm:$0xff]
    %v2555 = vld [vmem:[#allocation3 + $0x568] sm:$0xff]
    %v2556 = vld [vmem:[#allocation3 + $0x570] sm:$0xff]
    %v2557 = vld [vmem:[#allocation3 + $0x578] sm:$0xff]
    %v2558 = vld [vmem:[#allocation3 + $0x580] sm:$0xff]
    %v2559 = vld [vmem:[#allocation3 + $0x588] sm:$0xff]
    %v2560 = vld [vmem:[#allocation3 + $0x590] sm:$0xff]
    %v2561 = vld [vmem:[#allocation3 + $0x598] sm:$0xff]
    %v2562 = vld [vmem:[#allocation3 + $0x5a0] sm:$0xff]
    %v2563 = vld [vmem:[#allocation3 + $0x5a8] sm:$0xff]
    %v2564 = vld [vmem:[#allocation3 + $0x5b0] sm:$0xff]
    %v2565 = vld [vmem:[#allocation3 + $0x5b8] sm:$0xff]
    %v2566 = vld [vmem:[#allocation3 + $0x5c0] sm:$0xff]
    %v2567 = vld [vmem:[#allocation3 + $0x5c8] sm:$0xff]
    %v2568 = vld [vmem:[#allocation3 + $0x5d0] sm:$0xff]
    %v2569 = vld [vmem:[#allocation3 + $0x5d8] sm:$0xff]
    %v2570 = vld [vmem:[#allocation3 + $0x5e0] sm:$0xff]
    %v2571 = vld [vmem:[#allocation3 + $0x5e8] sm:$0xff]
    %v2572 = vld [vmem:[#allocation3 + $0x5f0] sm:$0xff]
    %v2573 = vld [vmem:[#allocation3 + $0x5f8] sm:$0xff]
    %v2574 = vld [vmem:[#allocation3 + $0x600] sm:$0xff]
    %v2575 = vld [vmem:[#allocation3 + $0x608] sm:$0xff]
    %v2576 = vld [vmem:[#allocation3 + $0x610] sm:$0xff]
    %v2577 = vld [vmem:[#allocation3 + $0x618] sm:$0xff]
    %v2578 = vld [vmem:[#allocation3 + $0x620] sm:$0xff]
    %v2579 = vld [vmem:[#allocation3 + $0x628] sm:$0xff]
    %v2580 = vld [vmem:[#allocation3 + $0x630] sm:$0xff]
    %v2581 = vld [vmem:[#allocation3 + $0x638] sm:$0xff]
    %v2582 = vld [vmem:[#allocation3 + $0x640] sm:$0xff]
    %v2583 = vld [vmem:[#allocation3 + $0x648] sm:$0xff]
    %v2584 = vld [vmem:[#allocation3 + $0x650] sm:$0xff]
    %v2585 = vld [vmem:[#allocation3 + $0x658] sm:$0xff]
    %v2586 = vld [vmem:[#allocation3 + $0x660] sm:$0xff]
    %v2587 = vld [vmem:[#allocation3 + $0x668] sm:$0xff]
    %v2588 = vld [vmem:[#allocation3 + $0x670] sm:$0xff]
    %v2589 = vld [vmem:[#allocation3 + $0x678] sm:$0xff]
    %v2590 = vld [vmem:[#allocation3 + $0x680] sm:$0xff]
    %v2591 = vld [vmem:[#allocation3 + $0x688] sm:$0xff]
    %v2592 = vld [vmem:[#allocation3 + $0x690] sm:$0xff]
    %v2593 = vld [vmem:[#allocation3 + $0x698] sm:$0xff]
    %v2594 = vld [vmem:[#allocation3 + $0x6a0] sm:$0xff]
    %v2595 = vld [vmem:[#allocation3 + $0x6a8] sm:$0xff]
    %v2596 = vld [vmem:[#allocation3 + $0x6b0] sm:$0xff]
    %v2597 = vld [vmem:[#allocation3 + $0x6b8] sm:$0xff]
    %v2598 = vld [vmem:[#allocation3 + $0x6c0] sm:$0xff]
    %v2599 = vld [vmem:[#allocation3 + $0x6c8] sm:$0xff]
    %v2600 = vld [vmem:[#allocation3 + $0x6d0] sm:$0xff]
    %v2601 = vld [vmem:[#allocation3 + $0x6d8] sm:$0xff]
    %v2602 = vld [vmem:[#allocation3 + $0x6e0] sm:$0xff]
    %v2603 = vld [vmem:[#allocation3 + $0x6e8] sm:$0xff]
    %v2604 = vld [vmem:[#allocation3 + $0x6f0] sm:$0xff]
    %v2605 = vld [vmem:[#allocation3 + $0x6f8] sm:$0xff]
    %v2606 = vld [vmem:[#allocation3 + $0x700] sm:$0xff]
    %v2607 = vld [vmem:[#allocation3 + $0x708] sm:$0xff]
    %v2608 = vld [vmem:[#allocation3 + $0x710] sm:$0xff]
    %v2609 = vld [vmem:[#allocation3 + $0x718] sm:$0xff]
    %v2610 = vld [vmem:[#allocation3 + $0x720] sm:$0xff]
    %v2611 = vld [vmem:[#allocation3 + $0x728] sm:$0xff]
    %v2612 = vld [vmem:[#allocation3 + $0x730] sm:$0xff]
    %v2613 = vld [vmem:[#allocation3 + $0x738] sm:$0xff]
    %v2614 = vld [vmem:[#allocation3 + $0x740] sm:$0xff]
    %v2615 = vld [vmem:[#allocation3 + $0x748] sm:$0xff]
    %v2616 = vld [vmem:[#allocation3 + $0x750] sm:$0xff]
    %v2617 = vld [vmem:[#allocation3 + $0x758] sm:$0xff]
    %v2618 = vld [vmem:[#allocation3 + $0x760] sm:$0xff]
    %v2619 = vld [vmem:[#allocation3 + $0x768] sm:$0xff]
    %v2620 = vld [vmem:[#allocation3 + $0x770] sm:$0xff]
    %v2621 = vld [vmem:[#allocation3 + $0x778] sm:$0xff]
    %v2622 = vld [vmem:[#allocation3 + $0x780] sm:$0xff]
    %v2623 = vld [vmem:[#allocation3 + $0x788] sm:$0xff]
    %v2624 = vld [vmem:[#allocation3 + $0x790] sm:$0xff]
    %v2625 = vld [vmem:[#allocation3 + $0x798] sm:$0xff]
    %v2626 = vld [vmem:[#allocation3 + $0x7a0] sm:$0xff]
    %v2627 = vld [vmem:[#allocation3 + $0x7a8] sm:$0xff]
    %v2628 = vld [vmem:[#allocation3 + $0x7b0] sm:$0xff]
    %v2629 = vld [vmem:[#allocation3 + $0x7b8] sm:$0xff]
    %v2630 = vld [vmem:[#allocation3 + $0x7c0] sm:$0xff]
    %v2631 = vld [vmem:[#allocation3 + $0x7c8] sm:$0xff]
    %v2632 = vld [vmem:[#allocation3 + $0x7d0] sm:$0xff]
    %v2633 = vld [vmem:[#allocation3 + $0x7d8] sm:$0xff]
    %v2634 = vld [vmem:[#allocation3 + $0x7e0] sm:$0xff]
    %v2635 = vld [vmem:[#allocation3 + $0x7e8] sm:$0xff]
    %v2636 = vld [vmem:[#allocation3 + $0x7f0] sm:$0xff]
    %v2637 = vld [vmem:[#allocation3 + $0x7f8] sm:$0xff]
    %v2638 = vld [vmem:[#allocation3 + $0x800] sm:$0xff]
    %v2639 = vld [vmem:[#allocation3 + $0x808] sm:$0xff]
    %v2640 = vld [vmem:[#allocation3 + $0x810] sm:$0xff]
    %v2641 = vld [vmem:[#allocation3 + $0x818] sm:$0xff]
    %v2642 = vld [vmem:[#allocation3 + $0x820] sm:$0xff]
    %v2643 = vld [vmem:[#allocation3 + $0x828] sm:$0xff]
    %v2644 = vld [vmem:[#allocation3 + $0x830] sm:$0xff]
    %v2645 = vld [vmem:[#allocation3 + $0x838] sm:$0xff]
    %v2646 = vld [vmem:[#allocation3 + $0x840] sm:$0xff]
    %v2647 = vld [vmem:[#allocation3 + $0x848] sm:$0xff]
    %v2648 = vld [vmem:[#allocation3 + $0x850] sm:$0xff]
    %v2649 = vld [vmem:[#allocation3 + $0x858] sm:$0xff]
    %v2650 = vld [vmem:[#allocation3 + $0x860] sm:$0xff]
    %v2651 = vld [vmem:[#allocation3 + $0x868] sm:$0xff]
    %v2652 = vld [vmem:[#allocation3 + $0x870] sm:$0xff]
    %v2653 = vld [vmem:[#allocation3 + $0x878] sm:$0xff]
    %v2654 = vld [vmem:[#allocation3 + $0x880] sm:$0xff]
    %v2655 = vld [vmem:[#allocation3 + $0x888] sm:$0xff]
    %v2656 = vld [vmem:[#allocation3 + $0x890] sm:$0xff]
    %v2657 = vld [vmem:[#allocation3 + $0x898] sm:$0xff]
    %v2658 = vld [vmem:[#allocation3 + $0x8a0] sm:$0xff]
    %v2659 = vld [vmem:[#allocation3 + $0x8a8] sm:$0xff]
    %v2660 = vld [vmem:[#allocation3 + $0x8b0] sm:$0xff]
    %v2661 = vld [vmem:[#allocation3 + $0x8b8] sm:$0xff]
    %v2662 = vld [vmem:[#allocation3 + $0x8c0] sm:$0xff]
    %v2663 = vld [vmem:[#allocation3 + $0x8c8] sm:$0xff]
    %v2664 = vld [vmem:[#allocation3 + $0x8d0] sm:$0xff]
    %v2665 = vld [vmem:[#allocation3 + $0x8d8] sm:$0xff]
    %v2666 = vld [vmem:[#allocation3 + $0x8e0] sm:$0xff]
    %v2667 = vld [vmem:[#allocation3 + $0x8e8] sm:$0xff]
    %v2668 = vld [vmem:[#allocation3 + $0x8f0] sm:$0xff]
    %v2669 = vld [vmem:[#allocation3 + $0x8f8] sm:$0xff]
    %v2670 = vld [vmem:[#allocation3 + $0x900] sm:$0xff]
    %v2671 = vld [vmem:[#allocation3 + $0x908] sm:$0xff]
    %v2672 = vld [vmem:[#allocation3 + $0x910] sm:$0xff]
    %v2673 = vld [vmem:[#allocation3 + $0x918] sm:$0xff]
    %v2674 = vld [vmem:[#allocation3 + $0x920] sm:$0xff]
    %v2675 = vld [vmem:[#allocation3 + $0x928] sm:$0xff]
    %v2676 = vld [vmem:[#allocation3 + $0x930] sm:$0xff]
    %v2677 = vld [vmem:[#allocation3 + $0x938] sm:$0xff]
    %v2678 = vld [vmem:[#allocation3 + $0x940] sm:$0xff]
    %v2679 = vld [vmem:[#allocation3 + $0x948] sm:$0xff]
    %v2680 = vld [vmem:[#allocation3 + $0x950] sm:$0xff]
    %v2681 = vld [vmem:[#allocation3 + $0x958] sm:$0xff]
    %v2682 = vld [vmem:[#allocation3 + $0x960] sm:$0xff]
    %v2683 = vld [vmem:[#allocation3 + $0x968] sm:$0xff]
    %v2684 = vld [vmem:[#allocation3 + $0x970] sm:$0xff]
    %v2685 = vld [vmem:[#allocation3 + $0x978] sm:$0xff]
    %v2686 = vld [vmem:[#allocation3 + $0x980] sm:$0xff]
    %v2687 = vld [vmem:[#allocation3 + $0x988] sm:$0xff]
    %v2688 = vld [vmem:[#allocation3 + $0x990] sm:$0xff]
    %v2689 = vld [vmem:[#allocation3 + $0x998] sm:$0xff]
    %v2690 = vld [vmem:[#allocation3 + $0x9a0] sm:$0xff]
    %v2691 = vld [vmem:[#allocation3 + $0x9a8] sm:$0xff]
    %v2692 = vld [vmem:[#allocation3 + $0x9b0] sm:$0xff]
    %v2693 = vld [vmem:[#allocation3 + $0x9b8] sm:$0xff]
    %v2694 = vld [vmem:[#allocation3 + $0x9c0] sm:$0xff]
    %v2695 = vld [vmem:[#allocation3 + $0x9c8] sm:$0xff]
    %v2696 = vld [vmem:[#allocation3 + $0x9d0] sm:$0xff]
    %v2697 = vld [vmem:[#allocation3 + $0x9d8] sm:$0xff]
    %v2698 = vld [vmem:[#allocation3 + $0x9e0] sm:$0xff]
    %v2699 = vld [vmem:[#allocation3 + $0x9e8] sm:$0xff]
    %v2700 = vld [vmem:[#allocation3 + $0x9f0] sm:$0xff]
    %v2701 = vld [vmem:[#allocation3 + $0x9f8] sm:$0xff]
    %v2702 = vld [vmem:[#allocation3 + $0xa00] sm:$0xff]
    %v2703 = vld [vmem:[#allocation3 + $0xa08] sm:$0xff]
    %v2704 = vld [vmem:[#allocation3 + $0xa10] sm:$0xff]
    %v2705 = vld [vmem:[#allocation3 + $0xa18] sm:$0xff]
    %v2706 = vld [vmem:[#allocation3 + $0xa20] sm:$0xff]
    %v2707 = vld [vmem:[#allocation3 + $0xa28] sm:$0xff]
    %v2708 = vld [vmem:[#allocation3 + $0xa30] sm:$0xff]
    %v2709 = vld [vmem:[#allocation3 + $0xa38] sm:$0xff]
    %v2710 = vld [vmem:[#allocation3 + $0xa40] sm:$0xff]
    %v2711 = vld [vmem:[#allocation3 + $0xa48] sm:$0xff]
    %v2712 = vld [vmem:[#allocation3 + $0xa50] sm:$0xff]
    %v2713 = vld [vmem:[#allocation3 + $0xa58] sm:$0xff]
    %v2714 = vld [vmem:[#allocation3 + $0xa60] sm:$0xff]
    %v2715 = vld [vmem:[#allocation3 + $0xa68] sm:$0xff]
    %v2716 = vld [vmem:[#allocation3 + $0xa70] sm:$0xff]
    %v2717 = vld [vmem:[#allocation3 + $0xa78] sm:$0xff]
    %v2718 = vld [vmem:[#allocation3 + $0xa80] sm:$0xff]
    %v2719 = vld [vmem:[#allocation3 + $0xa88] sm:$0xff]
    %v2720 = vld [vmem:[#allocation3 + $0xa90] sm:$0xff]
    %v2721 = vld [vmem:[#allocation3 + $0xa98] sm:$0xff]
    %v2722 = vld [vmem:[#allocation3 + $0xaa0] sm:$0xff]
    %v2723 = vld [vmem:[#allocation3 + $0xaa8] sm:$0xff]
    %v2724 = vld [vmem:[#allocation3 + $0xab0] sm:$0xff]
    %v2725 = vld [vmem:[#allocation3 + $0xab8] sm:$0xff]
    %v2726 = vld [vmem:[#allocation3 + $0xac0] sm:$0xff]
    %v2727 = vld [vmem:[#allocation3 + $0xac8] sm:$0xff]
    %v2728 = vld [vmem:[#allocation3 + $0xad0] sm:$0xff]
    %v2729 = vld [vmem:[#allocation3 + $0xad8] sm:$0xff]
    %v2730 = vld [vmem:[#allocation3 + $0xae0] sm:$0xff]
    %v2731 = vld [vmem:[#allocation3 + $0xae8] sm:$0xff]
    %v2732 = vld [vmem:[#allocation3 + $0xaf0] sm:$0xff]
    %v2733 = vld [vmem:[#allocation3 + $0xaf8] sm:$0xff]
    %v2734 = vld [vmem:[#allocation3 + $0xb00] sm:$0xff]
    %v2735 = vld [vmem:[#allocation3 + $0xb08] sm:$0xff]
    %v2736 = vld [vmem:[#allocation3 + $0xb10] sm:$0xff]
    %v2737 = vld [vmem:[#allocation3 + $0xb18] sm:$0xff]
    %v2738 = vld [vmem:[#allocation3 + $0xb20] sm:$0xff]
    %v2739 = vld [vmem:[#allocation3 + $0xb28] sm:$0xff]
    %v2740 = vld [vmem:[#allocation3 + $0xb30] sm:$0xff]
    %v2741 = vld [vmem:[#allocation3 + $0xb38] sm:$0xff]
    %v2742 = vld [vmem:[#allocation3 + $0xb40] sm:$0xff]
    %v2743 = vld [vmem:[#allocation3 + $0xb48] sm:$0xff]
    %v2744 = vld [vmem:[#allocation3 + $0xb50] sm:$0xff]
    %v2745 = vld [vmem:[#allocation3 + $0xb58] sm:$0xff]
    %v2746 = vld [vmem:[#allocation3 + $0xb60] sm:$0xff]
    %v2747 = vld [vmem:[#allocation3 + $0xb68] sm:$0xff]
    %v2748 = vld [vmem:[#allocation3 + $0xb70] sm:$0xff]
    %v2749 = vld [vmem:[#allocation3 + $0xb78] sm:$0xff]
    %v2750 = vld [vmem:[#allocation3 + $0xb80] sm:$0xff]
    %v2751 = vld [vmem:[#allocation3 + $0xb88] sm:$0xff]
    %v2752 = vld [vmem:[#allocation3 + $0xb90] sm:$0xff]
    %v2753 = vld [vmem:[#allocation3 + $0xb98] sm:$0xff]
    %v2754 = vld [vmem:[#allocation3 + $0xba0] sm:$0xff]
    %v2755 = vld [vmem:[#allocation3 + $0xba8] sm:$0xff]
    %v2756 = vld [vmem:[#allocation3 + $0xbb0] sm:$0xff]
    %v2757 = vld [vmem:[#allocation3 + $0xbb8] sm:$0xff]
    %v2758 = vld [vmem:[#allocation3 + $0xbc0] sm:$0xff]
    %v2759 = vld [vmem:[#allocation3 + $0xbc8] sm:$0xff]
    %v2760 = vld [vmem:[#allocation3 + $0xbd0] sm:$0xff]
    %v2761 = vld [vmem:[#allocation3 + $0xbd8] sm:$0xff]
    %v2762 = vld [vmem:[#allocation3 + $0xbe0] sm:$0xff]
    %v2763 = vld [vmem:[#allocation3 + $0xbe8] sm:$0xff]
    %v2764 = vld [vmem:[#allocation3 + $0xbf0] sm:$0xff]
    %v2765 = vld [vmem:[#allocation3 + $0xbf8] sm:$0xff]
    %v2766 = vld [vmem:[#allocation3 + $0xc00] sm:$0xff]
    %v2767 = vld [vmem:[#allocation3 + $0xc08] sm:$0xff]
    %v2768 = vld [vmem:[#allocation3 + $0xc10] sm:$0xff]
    %v2769 = vld [vmem:[#allocation3 + $0xc18] sm:$0xff]
    %v2770 = vld [vmem:[#allocation3 + $0xc20] sm:$0xff]
    %v2771 = vld [vmem:[#allocation3 + $0xc28] sm:$0xff]
    %v2772 = vld [vmem:[#allocation3 + $0xc30] sm:$0xff]
    %v2773 = vld [vmem:[#allocation3 + $0xc38] sm:$0xff]
    %v2774 = vld [vmem:[#allocation3 + $0xc40] sm:$0xff]
    %v2775 = vld [vmem:[#allocation3 + $0xc48] sm:$0xff]
    %v2776 = vld [vmem:[#allocation3 + $0xc50] sm:$0xff]
    %v2777 = vld [vmem:[#allocation3 + $0xc58] sm:$0xff]
    %v2778 = vld [vmem:[#allocation3 + $0xc60] sm:$0xff]
    %v2779 = vld [vmem:[#allocation3 + $0xc68] sm:$0xff]
    %v2780 = vld [vmem:[#allocation3 + $0xc70] sm:$0xff]
    %v2781 = vld [vmem:[#allocation3 + $0xc78] sm:$0xff]
    %v2782 = vld [vmem:[#allocation3 + $0xc80] sm:$0xff]
    %v2783 = vld [vmem:[#allocation3 + $0xc88] sm:$0xff]
    %v2784 = vld [vmem:[#allocation3 + $0xc90] sm:$0xff]
    %v2785 = vld [vmem:[#allocation3 + $0xc98] sm:$0xff]
    %v2786 = vld [vmem:[#allocation3 + $0xca0] sm:$0xff]
    %v2787 = vld [vmem:[#allocation3 + $0xca8] sm:$0xff]
    %v2788 = vld [vmem:[#allocation3 + $0xcb0] sm:$0xff]
    %v2789 = vld [vmem:[#allocation3 + $0xcb8] sm:$0xff]
    %v2790 = vld [vmem:[#allocation3 + $0xcc0] sm:$0xff]
    %v2791 = vld [vmem:[#allocation3 + $0xcc8] sm:$0xff]
    %v2792 = vld [vmem:[#allocation3 + $0xcd0] sm:$0xff]
    %v2793 = vld [vmem:[#allocation3 + $0xcd8] sm:$0xff]
    %v2794 = vld [vmem:[#allocation3 + $0xce0] sm:$0xff]
    %v2795 = vld [vmem:[#allocation3 + $0xce8] sm:$0xff]
    %v2796 = vld [vmem:[#allocation3 + $0xcf0] sm:$0xff]
    %v2797 = vld [vmem:[#allocation3 + $0xcf8] sm:$0xff]
    %v2798 = vld [vmem:[#allocation3 + $0xd00] sm:$0xff]
    %v2799 = vld [vmem:[#allocation3 + $0xd08] sm:$0xff]
    %v2800 = vld [vmem:[#allocation3 + $0xd10] sm:$0xff]
    %v2801 = vld [vmem:[#allocation3 + $0xd18] sm:$0xff]
    %v2802 = vld [vmem:[#allocation3 + $0xd20] sm:$0xff]
    %v2803 = vld [vmem:[#allocation3 + $0xd28] sm:$0xff]
    %v2804 = vld [vmem:[#allocation3 + $0xd30] sm:$0xff]
    %v2805 = vld [vmem:[#allocation3 + $0xd38] sm:$0xff]
    %v2806 = vld [vmem:[#allocation3 + $0xd40] sm:$0xff]
    %v2807 = vld [vmem:[#allocation3 + $0xd48] sm:$0xff]
    %v2808 = vld [vmem:[#allocation3 + $0xd50] sm:$0xff]
    %v2809 = vld [vmem:[#allocation3 + $0xd58] sm:$0xff]
    %v2810 = vld [vmem:[#allocation3 + $0xd60] sm:$0xff]
    %v2811 = vld [vmem:[#allocation3 + $0xd68] sm:$0xff]
    %v2812 = vld [vmem:[#allocation3 + $0xd70] sm:$0xff]
    %v2813 = vld [vmem:[#allocation3 + $0xd78] sm:$0xff]
    %v2814 = vld [vmem:[#allocation3 + $0xd80] sm:$0xff]
    %v2815 = vld [vmem:[#allocation3 + $0xd88] sm:$0xff]
    %v2816 = vld [vmem:[#allocation3 + $0xd90] sm:$0xff]
    %v2817 = vld [vmem:[#allocation3 + $0xd98] sm:$0xff]
    %v2818 = vld [vmem:[#allocation3 + $0xda0] sm:$0xff]
    %v2819 = vld [vmem:[#allocation3 + $0xda8] sm:$0xff]
    %v2820 = vld [vmem:[#allocation3 + $0xdb0] sm:$0xff]
    %v2821 = vld [vmem:[#allocation3 + $0xdb8] sm:$0xff]
    %v2822 = vld [vmem:[#allocation3 + $0xdc0] sm:$0xff]
    %v2823 = vld [vmem:[#allocation3 + $0xdc8] sm:$0xff]
    %v2824 = vld [vmem:[#allocation3 + $0xdd0] sm:$0xff]
    %v2825 = vld [vmem:[#allocation3 + $0xdd8] sm:$0xff]
    %v2826 = vld [vmem:[#allocation3 + $0xde0] sm:$0xff]
    %v2827 = vld [vmem:[#allocation3 + $0xde8] sm:$0xff]
    %v2828 = vld [vmem:[#allocation3 + $0xdf0] sm:$0xff]
    %v2829 = vld [vmem:[#allocation3 + $0xdf8] sm:$0xff]
    %v2830 = vld [vmem:[#allocation3 + $0xe00] sm:$0xff]
    %v2831 = vld [vmem:[#allocation3 + $0xe08] sm:$0xff]
    %v2832 = vld [vmem:[#allocation3 + $0xe10] sm:$0xff]
    %v2833 = vld [vmem:[#allocation3 + $0xe18] sm:$0xff]
    %v2834 = vld [vmem:[#allocation3 + $0xe20] sm:$0xff]
    %v2835 = vld [vmem:[#allocation3 + $0xe28] sm:$0xff]
    %v2836 = vld [vmem:[#allocation3 + $0xe30] sm:$0xff]
    %v2837 = vld [vmem:[#allocation3 + $0xe38] sm:$0xff]
    %v2838 = vld [vmem:[#allocation3 + $0xe40] sm:$0xff]
    %v2839 = vld [vmem:[#allocation3 + $0xe48] sm:$0xff]
    %v2840 = vld [vmem:[#allocation3 + $0xe50] sm:$0xff]
    %v2841 = vld [vmem:[#allocation3 + $0xe58] sm:$0xff]
    %v2842 = vld [vmem:[#allocation3 + $0xe60] sm:$0xff]
    %v2843 = vld [vmem:[#allocation3 + $0xe68] sm:$0xff]
    %v2844 = vld [vmem:[#allocation3 + $0xe70] sm:$0xff]
    %v2845 = vld [vmem:[#allocation3 + $0xe78] sm:$0xff]
    %v2846 = vld [vmem:[#allocation3 + $0xe80] sm:$0xff]
    %v2847 = vld [vmem:[#allocation3 + $0xe88] sm:$0xff]
    %v2848 = vld [vmem:[#allocation3 + $0xe90] sm:$0xff]
    %v2849 = vld [vmem:[#allocation3 + $0xe98] sm:$0xff]
    %v2850 = vld [vmem:[#allocation3 + $0xea0] sm:$0xff]
    %v2851 = vld [vmem:[#allocation3 + $0xea8] sm:$0xff]
    %v2852 = vld [vmem:[#allocation3 + $0xeb0] sm:$0xff]
    %v2853 = vld [vmem:[#allocation3 + $0xeb8] sm:$0xff]
    %v2854 = vld [vmem:[#allocation3 + $0xec0] sm:$0xff]
    %v2855 = vld [vmem:[#allocation3 + $0xec8] sm:$0xff]
    %v2856 = vld [vmem:[#allocation3 + $0xed0] sm:$0xff]
    %v2857 = vld [vmem:[#allocation3 + $0xed8] sm:$0xff]
    %v2858 = vld [vmem:[#allocation3 + $0xee0] sm:$0xff]
    %v2859 = vld [vmem:[#allocation3 + $0xee8] sm:$0xff]
    %v2860 = vld [vmem:[#allocation3 + $0xef0] sm:$0xff]
    %v2861 = vld [vmem:[#allocation3 + $0xef8] sm:$0xff]
    %v2862 = vld [vmem:[#allocation3 + $0xf00] sm:$0xff]
    %v2863 = vld [vmem:[#allocation3 + $0xf08] sm:$0xff]
    %v2864 = vld [vmem:[#allocation3 + $0xf10] sm:$0xff]
    %v2865 = vld [vmem:[#allocation3 + $0xf18] sm:$0xff]
    %v2866 = vld [vmem:[#allocation3 + $0xf20] sm:$0xff]
    %v2867 = vld [vmem:[#allocation3 + $0xf28] sm:$0xff]
    %v2868 = vld [vmem:[#allocation3 + $0xf30] sm:$0xff]
    %v2869 = vld [vmem:[#allocation3 + $0xf38] sm:$0xff]
    %v2870 = vld [vmem:[#allocation3 + $0xf40] sm:$0xff]
    %v2871 = vld [vmem:[#allocation3 + $0xf48] sm:$0xff]
    %v2872 = vld [vmem:[#allocation3 + $0xf50] sm:$0xff]
    %v2873 = vld [vmem:[#allocation3 + $0xf58] sm:$0xff]
    %v2874 = vld [vmem:[#allocation3 + $0xf60] sm:$0xff]
    %v2875 = vld [vmem:[#allocation3 + $0xf68] sm:$0xff]
    %v2876 = vld [vmem:[#allocation3 + $0xf70] sm:$0xff]
    %v2877 = vld [vmem:[#allocation3 + $0xf78] sm:$0xff]
    %v2878 = vld [vmem:[#allocation3 + $0xf80] sm:$0xff]
    %v2879 = vld [vmem:[#allocation3 + $0xf88] sm:$0xff]
    %v2880 = vld [vmem:[#allocation3 + $0xf90] sm:$0xff]
    %v2881 = vld [vmem:[#allocation3 + $0xf98] sm:$0xff]
    %v2882 = vld [vmem:[#allocation3 + $0xfa0] sm:$0xff]
    %v2883 = vld [vmem:[#allocation3 + $0xfa8] sm:$0xff]
    %v2884 = vld [vmem:[#allocation3 + $0xfb0] sm:$0xff]
    %v2885 = vld [vmem:[#allocation3 + $0xfb8] sm:$0xff]
    %v2886 = vld [vmem:[#allocation3 + $0xfc0] sm:$0xff]
    %v2887 = vld [vmem:[#allocation3 + $0xfc8] sm:$0xff]
    %v2888 = vld [vmem:[#allocation3 + $0xfd0] sm:$0xff]
    %v2889 = vld [vmem:[#allocation3 + $0xfd8] sm:$0xff]
    %v2890 = vld [vmem:[#allocation3 + $0xfe0] sm:$0xff]
    %v2891 = vld [vmem:[#allocation3 + $0xfe8] sm:$0xff]
    %v2892 = vld [vmem:[#allocation3 + $0xff0] sm:$0xff]
    %v2893 = vld [vmem:[#allocation3 + $0xff8] sm:$0xff]
    %v2894 = vld [vmem:[#allocation3 + $0x1000] sm:$0xff]
    %v2895 = vld [vmem:[#allocation3 + $0x1008] sm:$0xff]
    %v2896 = vld [vmem:[#allocation3 + $0x1010] sm:$0xff]
    %v2897 = vld [vmem:[#allocation3 + $0x1018] sm:$0xff]
    %v2898 = vld [vmem:[#allocation3 + $0x1020] sm:$0xff]
    %v2899 = vld [vmem:[#allocation3 + $0x1028] sm:$0xff]
    %v2900 = vld [vmem:[#allocation3 + $0x1030] sm:$0xff]
    %v2901 = vld [vmem:[#allocation3 + $0x1038] sm:$0xff]
    %v2902 = vld [vmem:[#allocation3 + $0x1040] sm:$0xff]
    %v2903 = vld [vmem:[#allocation3 + $0x1048] sm:$0xff]
    %v2904 = vld [vmem:[#allocation3 + $0x1050] sm:$0xff]
    %v2905 = vld [vmem:[#allocation3 + $0x1058] sm:$0xff]
    %v2906 = vld [vmem:[#allocation3 + $0x1060] sm:$0xff]
    %v2907 = vld [vmem:[#allocation3 + $0x1068] sm:$0xff]
    %v2908 = vld [vmem:[#allocation3 + $0x1070] sm:$0xff]
    %v2909 = vld [vmem:[#allocation3 + $0x1078] sm:$0xff]
    %v2910 = vld [vmem:[#allocation3 + $0x1080] sm:$0xff]
    %v2911 = vld [vmem:[#allocation3 + $0x1088] sm:$0xff]
    %v2912 = vld [vmem:[#allocation3 + $0x1090] sm:$0xff]
    %v2913 = vld [vmem:[#allocation3 + $0x1098] sm:$0xff]
    %v2914 = vld [vmem:[#allocation3 + $0x10a0] sm:$0xff]
    %v2915 = vld [vmem:[#allocation3 + $0x10a8] sm:$0xff]
    %v2916 = vld [vmem:[#allocation3 + $0x10b0] sm:$0xff]
    %v2917 = vld [vmem:[#allocation3 + $0x10b8] sm:$0xff]
    %v2918 = vld [vmem:[#allocation3 + $0x10c0] sm:$0xff]
    %v2919 = vld [vmem:[#allocation3 + $0x10c8] sm:$0xff]
    %v2920 = vld [vmem:[#allocation3 + $0x10d0] sm:$0xff]
    %v2921 = vld [vmem:[#allocation3 + $0x10d8] sm:$0xff]
    %v2922 = vld [vmem:[#allocation3 + $0x10e0] sm:$0xff]
    %v2923 = vld [vmem:[#allocation3 + $0x10e8] sm:$0xff]
    %v2924 = vld [vmem:[#allocation3 + $0x10f0] sm:$0xff]
    %v2925 = vld [vmem:[#allocation3 + $0x10f8] sm:$0xff]
    %v2926 = vld [vmem:[#allocation3 + $0x1100] sm:$0xff]
    %v2927 = vld [vmem:[#allocation3 + $0x1108] sm:$0xff]
    %v2928 = vld [vmem:[#allocation3 + $0x1110] sm:$0xff]
    %v2929 = vld [vmem:[#allocation3 + $0x1118] sm:$0xff]
    %v2930 = vld [vmem:[#allocation3 + $0x1120] sm:$0xff]
    %v2931 = vld [vmem:[#allocation3 + $0x1128] sm:$0xff]
    %v2932 = vld [vmem:[#allocation3 + $0x1130] sm:$0xff]
    %v2933 = vld [vmem:[#allocation3 + $0x1138] sm:$0xff]
    %v2934 = vld [vmem:[#allocation3 + $0x1140] sm:$0xff]
    %v2935 = vld [vmem:[#allocation3 + $0x1148] sm:$0xff]
    %v2936 = vld [vmem:[#allocation3 + $0x1150] sm:$0xff]
    %v2937 = vld [vmem:[#allocation3 + $0x1158] sm:$0xff]
    %v2938 = vld [vmem:[#allocation3 + $0x1160] sm:$0xff]
    %v2939 = vld [vmem:[#allocation3 + $0x1168] sm:$0xff]
    %v2940 = vld [vmem:[#allocation3 + $0x1170] sm:$0xff]
    %v2941 = vld [vmem:[#allocation3 + $0x1178] sm:$0xff]
    %v2942 = vld [vmem:[#allocation3 + $0x1180] sm:$0xff]
    %v2943 = vld [vmem:[#allocation3 + $0x1188] sm:$0xff]
    %v2944 = vld [vmem:[#allocation3 + $0x1190] sm:$0xff]
    %v2945 = vld [vmem:[#allocation3 + $0x1198] sm:$0xff]
    %v2946 = vld [vmem:[#allocation3 + $0x11a0] sm:$0xff]
    %v2947 = vld [vmem:[#allocation3 + $0x11a8] sm:$0xff]
    %v2948 = vld [vmem:[#allocation3 + $0x11b0] sm:$0xff]
    %v2949 = vld [vmem:[#allocation3 + $0x11b8] sm:$0xff]
    %v2950 = vld [vmem:[#allocation3 + $0x11c0] sm:$0xff]
    %v2951 = vld [vmem:[#allocation3 + $0x11c8] sm:$0xff]
    %v2952 = vld [vmem:[#allocation3 + $0x11d0] sm:$0xff]
    %v2953 = vld [vmem:[#allocation3 + $0x11d8] sm:$0xff]
    %v2954 = vld [vmem:[#allocation3 + $0x11e0] sm:$0xff]
    %v2955 = vld [vmem:[#allocation3 + $0x11e8] sm:$0xff]
    %v2956 = vld [vmem:[#allocation3 + $0x11f0] sm:$0xff]
    %v2957 = vld [vmem:[#allocation3 + $0x11f8] sm:$0xff]
    %v2958 = vld [vmem:[#allocation10] sm:$0xff]
    %v2959 = vld [vmem:[#allocation10 + $0x8] sm:$0xff]
    %v2960 = vld [vmem:[#allocation10 + $0x10] sm:$0xff]
    %v2961 = vld [vmem:[#allocation10 + $0x18] sm:$0xff]
    %v2962 = vld [vmem:[#allocation10 + $0x20] sm:$0xff]
    %v2963 = vld [vmem:[#allocation10 + $0x28] sm:$0xff]
    %v2964 = vld [vmem:[#allocation10 + $0x30] sm:$0xff]
    %v2965 = vld [vmem:[#allocation10 + $0x38] sm:$0xff]
    %v2966 = vld [vmem:[#allocation10 + $0x40] sm:$0xff]
    %v2967 = vld [vmem:[#allocation10 + $0x48] sm:$0xff]
    %v2968 = vld [vmem:[#allocation10 + $0x50] sm:$0xff]
    %v2969 = vld [vmem:[#allocation10 + $0x58] sm:$0xff]
    %v2970 = vld [vmem:[#allocation10 + $0x60] sm:$0xff]
    %v2971 = vld [vmem:[#allocation10 + $0x68] sm:$0xff]
    %v2972 = vld [vmem:[#allocation10 + $0x70] sm:$0xff]
    %v2973 = vld [vmem:[#allocation10 + $0x78] sm:$0xff]
    %v2974 = vld [vmem:[#allocation10 + $0x80] sm:$0xff]
    %v2975 = vld [vmem:[#allocation10 + $0x88] sm:$0xff]
    %v2976 = vld [vmem:[#allocation10 + $0x90] sm:$0xff]
    %v2977 = vld [vmem:[#allocation10 + $0x98] sm:$0xff]
    %v2978 = vld [vmem:[#allocation10 + $0xa0] sm:$0xff]
    %v2979 = vld [vmem:[#allocation10 + $0xa8] sm:$0xff]
    %v2980 = vld [vmem:[#allocation10 + $0xb0] sm:$0xff]
    %v2981 = vld [vmem:[#allocation10 + $0xb8] sm:$0xff]
    %v2982 = vld [vmem:[#allocation10 + $0xc0] sm:$0xff]
    %v2983 = vld [vmem:[#allocation10 + $0xc8] sm:$0xff]
    %v2984 = vld [vmem:[#allocation10 + $0xd0] sm:$0xff]
    %v2985 = vld [vmem:[#allocation10 + $0xd8] sm:$0xff]
    %v2986 = vld [vmem:[#allocation10 + $0xe0] sm:$0xff]
    %v2987 = vld [vmem:[#allocation10 + $0xe8] sm:$0xff]
    %v2988 = vld [vmem:[#allocation10 + $0xf0] sm:$0xff]
    %v2989 = vld [vmem:[#allocation10 + $0xf8] sm:$0xff]
    %v2990 = vld [vmem:[#allocation10 + $0x100] sm:$0xff]
    %v2991 = vld [vmem:[#allocation10 + $0x108] sm:$0xff]
    %v2992 = vld [vmem:[#allocation10 + $0x110] sm:$0xff]
    %v2993 = vld [vmem:[#allocation10 + $0x118] sm:$0xff]
    %v2994 = vld [vmem:[#allocation10 + $0x120] sm:$0xff]
    %v2995 = vld [vmem:[#allocation10 + $0x128] sm:$0xff]
    %v2996 = vld [vmem:[#allocation10 + $0x130] sm:$0xff]
    %v2997 = vld [vmem:[#allocation10 + $0x138] sm:$0xff]
    %v2998 = vld [vmem:[#allocation10 + $0x140] sm:$0xff]
    %v2999 = vld [vmem:[#allocation10 + $0x148] sm:$0xff]
    %v3000 = vld [vmem:[#allocation10 + $0x150] sm:$0xff]
    %v3001 = vld [vmem:[#allocation10 + $0x158] sm:$0xff]
    %v3002 = vld [vmem:[#allocation10 + $0x160] sm:$0xff]
    %v3003 = vld [vmem:[#allocation10 + $0x168] sm:$0xff]
    %v3004 = vld [vmem:[#allocation10 + $0x170] sm:$0xff]
    %v3005 = vld [vmem:[#allocation10 + $0x178] sm:$0xff]
    %v3006 = vld [vmem:[#allocation10 + $0x180] sm:$0xff]
    %v3007 = vld [vmem:[#allocation10 + $0x188] sm:$0xff]
    %v3008 = vld [vmem:[#allocation10 + $0x190] sm:$0xff]
    %v3009 = vld [vmem:[#allocation10 + $0x198] sm:$0xff]
    %v3010 = vld [vmem:[#allocation10 + $0x1a0] sm:$0xff]
    %v3011 = vld [vmem:[#allocation10 + $0x1a8] sm:$0xff]
    %v3012 = vld [vmem:[#allocation10 + $0x1b0] sm:$0xff]
    %v3013 = vld [vmem:[#allocation10 + $0x1b8] sm:$0xff]
    %v3014 = vld [vmem:[#allocation10 + $0x1c0] sm:$0xff]
    %v3015 = vld [vmem:[#allocation10 + $0x1c8] sm:$0xff]
    %v3016 = vld [vmem:[#allocation10 + $0x1d0] sm:$0xff]
    %v3017 = vld [vmem:[#allocation10 + $0x1d8] sm:$0xff]
    %v3018 = vld [vmem:[#allocation10 + $0x1e0] sm:$0xff]
    %v3019 = vld [vmem:[#allocation10 + $0x1e8] sm:$0xff]
    %v3020 = vld [vmem:[#allocation10 + $0x1f0] sm:$0xff]
    %v3021 = vld [vmem:[#allocation10 + $0x1f8] sm:$0xff]
    %v3022 = vld [vmem:[#allocation10 + $0x200] sm:$0xff]
    %v3023 = vld [vmem:[#allocation10 + $0x208] sm:$0xff]
    %v3024 = vld [vmem:[#allocation10 + $0x210] sm:$0xff]
    %v3025 = vld [vmem:[#allocation10 + $0x218] sm:$0xff]
    %v3026 = vld [vmem:[#allocation10 + $0x220] sm:$0xff]
    %v3027 = vld [vmem:[#allocation10 + $0x228] sm:$0xff]
    %v3028 = vld [vmem:[#allocation10 + $0x230] sm:$0xff]
    %v3029 = vld [vmem:[#allocation10 + $0x238] sm:$0xff]
    %v3030 = vld [vmem:[#allocation10 + $0x240] sm:$0xff]
    %v3031 = vld [vmem:[#allocation10 + $0x248] sm:$0xff]
    %v3032 = vld [vmem:[#allocation10 + $0x250] sm:$0xff]
    %v3033 = vld [vmem:[#allocation10 + $0x258] sm:$0xff]
    %v3034 = vld [vmem:[#allocation10 + $0x260] sm:$0xff]
    %v3035 = vld [vmem:[#allocation10 + $0x268] sm:$0xff]
    %v3036 = vld [vmem:[#allocation10 + $0x270] sm:$0xff]
    %v3037 = vld [vmem:[#allocation10 + $0x278] sm:$0xff]
    %v3038 = vld [vmem:[#allocation10 + $0x280] sm:$0xff]
    %v3039 = vld [vmem:[#allocation10 + $0x288] sm:$0xff]
    %v3040 = vld [vmem:[#allocation10 + $0x290] sm:$0xff]
    %v3041 = vld [vmem:[#allocation10 + $0x298] sm:$0xff]
    %v3042 = vld [vmem:[#allocation10 + $0x2a0] sm:$0xff]
    %v3043 = vld [vmem:[#allocation10 + $0x2a8] sm:$0xff]
    %v3044 = vld [vmem:[#allocation10 + $0x2b0] sm:$0xff]
    %v3045 = vld [vmem:[#allocation10 + $0x2b8] sm:$0xff]
    %v3046 = vld [vmem:[#allocation10 + $0x2c0] sm:$0xff]
    %v3047 = vld [vmem:[#allocation10 + $0x2c8] sm:$0xff]
    %v3048 = vld [vmem:[#allocation10 + $0x2d0] sm:$0xff]
    %v3049 = vld [vmem:[#allocation10 + $0x2d8] sm:$0xff]
    %v3050 = vld [vmem:[#allocation10 + $0x2e0] sm:$0xff]
    %v3051 = vld [vmem:[#allocation10 + $0x2e8] sm:$0xff]
    %v3052 = vld [vmem:[#allocation10 + $0x2f0] sm:$0xff]
    %v3053 = vld [vmem:[#allocation10 + $0x2f8] sm:$0xff]
    %v3054 = vld [vmem:[#allocation10 + $0x300] sm:$0xff]
    %v3055 = vld [vmem:[#allocation10 + $0x308] sm:$0xff]
    %v3056 = vld [vmem:[#allocation10 + $0x310] sm:$0xff]
    %v3057 = vld [vmem:[#allocation10 + $0x318] sm:$0xff]
    %v3058 = vld [vmem:[#allocation10 + $0x320] sm:$0xff]
    %v3059 = vld [vmem:[#allocation10 + $0x328] sm:$0xff]
    %v3060 = vld [vmem:[#allocation10 + $0x330] sm:$0xff]
    %v3061 = vld [vmem:[#allocation10 + $0x338] sm:$0xff]
    %v3062 = vld [vmem:[#allocation10 + $0x340] sm:$0xff]
    %v3063 = vld [vmem:[#allocation10 + $0x348] sm:$0xff]
    %v3064 = vld [vmem:[#allocation10 + $0x350] sm:$0xff]
    %v3065 = vld [vmem:[#allocation10 + $0x358] sm:$0xff]
    %v3066 = vld [vmem:[#allocation10 + $0x360] sm:$0xff]
    %v3067 = vld [vmem:[#allocation10 + $0x368] sm:$0xff]
    %v3068 = vld [vmem:[#allocation10 + $0x370] sm:$0xff]
    %v3069 = vld [vmem:[#allocation10 + $0x378] sm:$0xff]
    %v3070 = vld [vmem:[#allocation10 + $0x380] sm:$0xff]
    %v3071 = vld [vmem:[#allocation10 + $0x388] sm:$0xff]
    %v3072 = vld [vmem:[#allocation10 + $0x390] sm:$0xff]
    %v3073 = vld [vmem:[#allocation10 + $0x398] sm:$0xff]
    %v3074 = vld [vmem:[#allocation10 + $0x3a0] sm:$0xff]
    %v3075 = vld [vmem:[#allocation10 + $0x3a8] sm:$0xff]
    %v3076 = vld [vmem:[#allocation10 + $0x3b0] sm:$0xff]
    %v3077 = vld [vmem:[#allocation10 + $0x3b8] sm:$0xff]
    %v3078 = vld [vmem:[#allocation10 + $0x3c0] sm:$0xff]
    %v3079 = vld [vmem:[#allocation10 + $0x3c8] sm:$0xff]
    %v3080 = vld [vmem:[#allocation10 + $0x3d0] sm:$0xff]
    %v3081 = vld [vmem:[#allocation10 + $0x3d8] sm:$0xff]
    %v3082 = vld [vmem:[#allocation10 + $0x3e0] sm:$0xff]
    %v3083 = vld [vmem:[#allocation10 + $0x3e8] sm:$0xff]
    %v3084 = vld [vmem:[#allocation10 + $0x3f0] sm:$0xff]
    %v3085 = vld [vmem:[#allocation10 + $0x3f8] sm:$0xff]
    %v3086 = vld [vmem:[#allocation10 + $0x400] sm:$0xff]
    %v3087 = vld [vmem:[#allocation10 + $0x408] sm:$0xff]
    %v3088 = vld [vmem:[#allocation10 + $0x410] sm:$0xff]
    %v3089 = vld [vmem:[#allocation10 + $0x418] sm:$0xff]
    %v3090 = vld [vmem:[#allocation10 + $0x420] sm:$0xff]
    %v3091 = vld [vmem:[#allocation10 + $0x428] sm:$0xff]
    %v3092 = vld [vmem:[#allocation10 + $0x430] sm:$0xff]
    %v3093 = vld [vmem:[#allocation10 + $0x438] sm:$0xff]
    %v3094 = vld [vmem:[#allocation10 + $0x440] sm:$0xff]
    %v3095 = vld [vmem:[#allocation10 + $0x448] sm:$0xff]
    %v3096 = vld [vmem:[#allocation10 + $0x450] sm:$0xff]
    %v3097 = vld [vmem:[#allocation10 + $0x458] sm:$0xff]
    %v3098 = vld [vmem:[#allocation10 + $0x460] sm:$0xff]
    %v3099 = vld [vmem:[#allocation10 + $0x468] sm:$0xff]
    %v3100 = vld [vmem:[#allocation10 + $0x470] sm:$0xff]
    %v3101 = vld [vmem:[#allocation10 + $0x478] sm:$0xff]
    %v3102 = vld [vmem:[%s14] sm:$0x1]
    %v3104 = vperm.slane %v3102, 0
    %3106 = vmatpush.msra.mxu0 %v2973
    %3107 = vmatpush.msra.mxu0 %v2972
    %3108 = vmatpush.msra.mxu0 %v2971
    %3109 = vmatpush.msra.mxu0 %v2970
    %3110 = vmatpush.msra.mxu0 %v2969
    %3111 = vmatpush.msra.mxu0 %v2968
    %3112 = vmatpush.msra.mxu0 %v2967
    %3113 = vmatpush.msra.mxu0 %v2966
    %3114 = vmatpush.msra.mxu0 %v2965
    %3115 = vmatpush.msra.mxu0 %v2964
    %3116 = vmatpush.msra.mxu0 %v2963
    %3117 = vmatpush.msra.mxu0 %v2962
    %3118 = vmatpush.msra.mxu0 %v2961
    %3119 = vmatpush.msra.mxu0 %v2960
    %3120 = vmatpush.msra.mxu0 %v2959
    %3121 = vmatpush.msra.mxu0 %v2958
    %3122 = vmatmul.f32.gmra.mxu0 %v2382
    %v3123 = vpop.f32.mrf.mxu0
    %v3124 = vadd.f32 %v3104, %v3123
    %3125 = vmatmul.f32.gmra.mxu0 %v2391
    %v3126 = vpop.f32.mrf.mxu0
    %v3127 = vadd.f32 %v3104, %v3126
    %3128 = vmatmul.f32.gmra.mxu0 %v2400
    %v3129 = vpop.f32.mrf.mxu0
    %v3130 = vadd.f32 %v3104, %v3129
    %3131 = vmatmul.f32.gmra.mxu0 %v2409
    %v3132 = vpop.f32.mrf.mxu0
    %v3133 = vadd.f32 %v3104, %v3132
    %3134 = vmatmul.f32.gmra.mxu0 %v2418
    %v3135 = vpop.f32.mrf.mxu0
    %v3136 = vadd.f32 %v3104, %v3135
    %3137 = vmatmul.f32.gmra.mxu0 %v2427
    %v3138 = vpop.f32.mrf.mxu0
    %v3139 = vadd.f32 %v3104, %v3138
    %3140 = vmatmul.f32.gmra.mxu0 %v2436
    %v3141 = vpop.f32.mrf.mxu0
    %v3142 = vadd.f32 %v3104, %v3141
    %3143 = vmatmul.f32.gmra.mxu0 %v2445
    %v3144 = vpop.f32.mrf.mxu0
    %v3145 = vadd.f32 %v3104, %v3144
    %3146 = vmatmul.f32.gmra.mxu0 %v2454
    %v3147 = vpop.f32.mrf.mxu0
    %v3148 = vadd.f32 %v3104, %v3147
    %3149 = vmatmul.f32.gmra.mxu0 %v2463
    %v3150 = vpop.f32.mrf.mxu0
    %v3151 = vadd.f32 %v3104, %v3150
    %3152 = vmatmul.f32.gmra.mxu0 %v2472
    %v3153 = vpop.f32.mrf.mxu0
    %v3154 = vadd.f32 %v3104, %v3153
    %3155 = vmatmul.f32.gmra.mxu0 %v2481
    %v3156 = vpop.f32.mrf.mxu0
    %v3157 = vadd.f32 %v3104, %v3156
    %3158 = vmatmul.f32.gmra.mxu0 %v2490
    %v3159 = vpop.f32.mrf.mxu0
    %v3160 = vadd.f32 %v3104, %v3159
    %3161 = vmatmul.f32.gmra.mxu0 %v2499
    %v3162 = vpop.f32.mrf.mxu0
    %v3163 = vadd.f32 %v3104, %v3162
    %3164 = vmatmul.f32.gmra.mxu0 %v2508
    %v3165 = vpop.f32.mrf.mxu0
    %v3166 = vadd.f32 %v3104, %v3165
    %3167 = vmatmul.f32.gmra.mxu0 %v2517
    %v3168 = vpop.f32.mrf.mxu0
    %v3169 = vadd.f32 %v3104, %v3168
    %3170 = vmatmul.f32.gmra.mxu0 %v2526
    %v3171 = vpop.f32.mrf.mxu0
    %v3172 = vadd.f32 %v3104, %v3171
    %3173 = vmatmul.f32.gmra.mxu0 %v2535
    %v3174 = vpop.f32.mrf.mxu0
    %v3175 = vadd.f32 %v3104, %v3174
    %3176 = vmatmul.f32.gmra.mxu0 %v2544
    %v3177 = vpop.f32.mrf.mxu0
    %v3178 = vadd.f32 %v3104, %v3177
    %3179 = vmatmul.f32.gmra.mxu0 %v2553
    %v3180 = vpop.f32.mrf.mxu0
    %v3181 = vadd.f32 %v3104, %v3180
    %3182 = vmatmul.f32.gmra.mxu0 %v2562
    %v3183 = vpop.f32.mrf.mxu0
    %v3184 = vadd.f32 %v3104, %v3183
    %3185 = vmatmul.f32.gmra.mxu0 %v2571
    %v3186 = vpop.f32.mrf.mxu0
    %v3187 = vadd.f32 %v3104, %v3186
    %3188 = vmatmul.f32.gmra.mxu0 %v2580
    %v3189 = vpop.f32.mrf.mxu0
    %v3190 = vadd.f32 %v3104, %v3189
    %3191 = vmatmul.f32.gmra.mxu0 %v2589
    %v3192 = vpop.f32.mrf.mxu0
    %v3193 = vadd.f32 %v3104, %v3192
    %3194 = vmatmul.f32.gmra.mxu0 %v2598
    %v3195 = vpop.f32.mrf.mxu0
    %v3196 = vadd.f32 %v3104, %v3195
    %3197 = vmatmul.f32.gmra.mxu0 %v2607
    %v3198 = vpop.f32.mrf.mxu0
    %v3199 = vadd.f32 %v3104, %v3198
    %3200 = vmatmul.f32.gmra.mxu0 %v2616
    %v3201 = vpop.f32.mrf.mxu0
    %v3202 = vadd.f32 %v3104, %v3201
    %3203 = vmatmul.f32.gmra.mxu0 %v2625
    %v3204 = vpop.f32.mrf.mxu0
    %v3205 = vadd.f32 %v3104, %v3204
    %3206 = vmatmul.f32.gmra.mxu0 %v2634
    %v3207 = vpop.f32.mrf.mxu0
    %v3208 = vadd.f32 %v3104, %v3207
    %3209 = vmatmul.f32.gmra.mxu0 %v2643
    %v3210 = vpop.f32.mrf.mxu0
    %v3211 = vadd.f32 %v3104, %v3210
    %3212 = vmatmul.f32.gmra.mxu0 %v2652
    %v3213 = vpop.f32.mrf.mxu0
    %v3214 = vadd.f32 %v3104, %v3213
    %3215 = vmatmul.f32.gmra.mxu0 %v2661
    %v3216 = vpop.f32.mrf.mxu0
    %v3217 = vadd.f32 %v3104, %v3216
    %3218 = vmatmul.f32.gmra.mxu0 %v2670
    %v3219 = vpop.f32.mrf.mxu0
    %v3220 = vadd.f32 %v3104, %v3219
    %3221 = vmatmul.f32.gmra.mxu0 %v2679
    %v3222 = vpop.f32.mrf.mxu0
    %v3223 = vadd.f32 %v3104, %v3222
    %3224 = vmatmul.f32.gmra.mxu0 %v2688
    %v3225 = vpop.f32.mrf.mxu0
    %v3226 = vadd.f32 %v3104, %v3225
    %3227 = vmatmul.f32.gmra.mxu0 %v2697
    %v3228 = vpop.f32.mrf.mxu0
    %v3229 = vadd.f32 %v3104, %v3228
    %3230 = vmatmul.f32.gmra.mxu0 %v2706
    %v3231 = vpop.f32.mrf.mxu0
    %v3232 = vadd.f32 %v3104, %v3231
    %3233 = vmatmul.f32.gmra.mxu0 %v2715
    %v3234 = vpop.f32.mrf.mxu0
    %v3235 = vadd.f32 %v3104, %v3234
    %3236 = vmatmul.f32.gmra.mxu0 %v2724
    %v3237 = vpop.f32.mrf.mxu0
    %v3238 = vadd.f32 %v3104, %v3237
    %3239 = vmatmul.f32.gmra.mxu0 %v2733
    %v3240 = vpop.f32.mrf.mxu0
    %v3241 = vadd.f32 %v3104, %v3240
    %3242 = vmatmul.f32.gmra.mxu0 %v2742
    %v3243 = vpop.f32.mrf.mxu0
    %v3244 = vadd.f32 %v3104, %v3243
    %3245 = vmatmul.f32.gmra.mxu0 %v2751
    %v3246 = vpop.f32.mrf.mxu0
    %v3247 = vadd.f32 %v3104, %v3246
    %3248 = vmatmul.f32.gmra.mxu0 %v2760
    %v3249 = vpop.f32.mrf.mxu0
    %v3250 = vadd.f32 %v3104, %v3249
    %3251 = vmatmul.f32.gmra.mxu0 %v2769
    %v3252 = vpop.f32.mrf.mxu0
    %v3253 = vadd.f32 %v3104, %v3252
    %3254 = vmatmul.f32.gmra.mxu0 %v2778
    %v3255 = vpop.f32.mrf.mxu0
    %v3256 = vadd.f32 %v3104, %v3255
    %3257 = vmatmul.f32.gmra.mxu0 %v2787
    %v3258 = vpop.f32.mrf.mxu0
    %v3259 = vadd.f32 %v3104, %v3258
    %3260 = vmatmul.f32.gmra.mxu0 %v2796
    %v3261 = vpop.f32.mrf.mxu0
    %v3262 = vadd.f32 %v3104, %v3261
    %3263 = vmatmul.f32.gmra.mxu0 %v2805
    %v3264 = vpop.f32.mrf.mxu0
    %v3265 = vadd.f32 %v3104, %v3264
    %3266 = vmatmul.f32.gmra.mxu0 %v2814
    %v3267 = vpop.f32.mrf.mxu0
    %v3268 = vadd.f32 %v3104, %v3267
    %3269 = vmatmul.f32.gmra.mxu0 %v2823
    %v3270 = vpop.f32.mrf.mxu0
    %v3271 = vadd.f32 %v3104, %v3270
    %3272 = vmatmul.f32.gmra.mxu0 %v2832
    %v3273 = vpop.f32.mrf.mxu0
    %v3274 = vadd.f32 %v3104, %v3273
    %3275 = vmatmul.f32.gmra.mxu0 %v2841
    %v3276 = vpop.f32.mrf.mxu0
    %v3277 = vadd.f32 %v3104, %v3276
    %3278 = vmatmul.f32.gmra.mxu0 %v2850
    %v3279 = vpop.f32.mrf.mxu0
    %v3280 = vadd.f32 %v3104, %v3279
    %3281 = vmatmul.f32.gmra.mxu0 %v2859
    %v3282 = vpop.f32.mrf.mxu0
    %v3283 = vadd.f32 %v3104, %v3282
    %3284 = vmatmul.f32.gmra.mxu0 %v2868
    %v3285 = vpop.f32.mrf.mxu0
    %v3286 = vadd.f32 %v3104, %v3285
    %3287 = vmatmul.f32.gmra.mxu0 %v2877
    %v3288 = vpop.f32.mrf.mxu0
    %v3289 = vadd.f32 %v3104, %v3288
    %3290 = vmatmul.f32.gmra.mxu0 %v2886
    %v3291 = vpop.f32.mrf.mxu0
    %v3292 = vadd.f32 %v3104, %v3291
    %3293 = vmatmul.f32.gmra.mxu0 %v2895
    %v3294 = vpop.f32.mrf.mxu0
    %v3295 = vadd.f32 %v3104, %v3294
    %3296 = vmatmul.f32.gmra.mxu0 %v2904
    %v3297 = vpop.f32.mrf.mxu0
    %v3298 = vadd.f32 %v3104, %v3297
    %3299 = vmatmul.f32.gmra.mxu0 %v2913
    %v3300 = vpop.f32.mrf.mxu0
    %v3301 = vadd.f32 %v3104, %v3300
    %3302 = vmatmul.f32.gmra.mxu0 %v2922
    %v3303 = vpop.f32.mrf.mxu0
    %v3304 = vadd.f32 %v3104, %v3303
    %3305 = vmatmul.f32.gmra.mxu0 %v2931
    %v3306 = vpop.f32.mrf.mxu0
    %v3307 = vadd.f32 %v3104, %v3306
    %3308 = vmatmul.f32.gmra.mxu0 %v2940
    %v3309 = vpop.f32.mrf.mxu0
    %v3310 = vadd.f32 %v3104, %v3309
    %3311 = vmatmul.f32.gmra.mxu0 %v2949
    %v3312 = vpop.f32.mrf.mxu0
    %v3313 = vadd.f32 %v3104, %v3312
    %3314 = vdwg.mxu0
    %3315 = vmatpush.msra.mxu0 %v2989
    %3316 = vmatpush.msra.mxu0 %v2988
    %3317 = vmatpush.msra.mxu0 %v2987
    %3318 = vmatpush.msra.mxu0 %v2986
    %3319 = vmatpush.msra.mxu0 %v2985
    %3320 = vmatpush.msra.mxu0 %v2984
    %3321 = vmatpush.msra.mxu0 %v2983
    %3322 = vmatpush.msra.mxu0 %v2982
    %3323 = vmatpush.msra.mxu0 %v2981
    %3324 = vmatpush.msra.mxu0 %v2980
    %3325 = vmatpush.msra.mxu0 %v2979
    %3326 = vmatpush.msra.mxu0 %v2978
    %3327 = vmatpush.msra.mxu0 %v2977
    %3328 = vmatpush.msra.mxu0 %v2976
    %3329 = vmatpush.msra.mxu0 %v2975
    %3330 = vmatpush.msra.mxu0 %v2974
    %3331 = vmatmul.f32.gmra.mxu0 %v2383
    %v3332 = vpop.f32.mrf.mxu0
    %v3333 = vadd.f32 %v3124, %v3332
    %3334 = vmatmul.f32.gmra.mxu0 %v2392
    %v3335 = vpop.f32.mrf.mxu0
    %v3336 = vadd.f32 %v3127, %v3335
    %3337 = vmatmul.f32.gmra.mxu0 %v2401
    %v3338 = vpop.f32.mrf.mxu0
    %v3339 = vadd.f32 %v3130, %v3338
    %3340 = vmatmul.f32.gmra.mxu0 %v2410
    %v3341 = vpop.f32.mrf.mxu0
    %v3342 = vadd.f32 %v3133, %v3341
    %3343 = vmatmul.f32.gmra.mxu0 %v2419
    %v3344 = vpop.f32.mrf.mxu0
    %v3345 = vadd.f32 %v3136, %v3344
    %3346 = vmatmul.f32.gmra.mxu0 %v2428
    %v3347 = vpop.f32.mrf.mxu0
    %v3348 = vadd.f32 %v3139, %v3347
    %3349 = vmatmul.f32.gmra.mxu0 %v2437
    %v3350 = vpop.f32.mrf.mxu0
    %v3351 = vadd.f32 %v3142, %v3350
    %3352 = vmatmul.f32.gmra.mxu0 %v2446
    %v3353 = vpop.f32.mrf.mxu0
    %v3354 = vadd.f32 %v3145, %v3353
    %3355 = vmatmul.f32.gmra.mxu0 %v2455
    %v3356 = vpop.f32.mrf.mxu0
    %v3357 = vadd.f32 %v3148, %v3356
    %3358 = vmatmul.f32.gmra.mxu0 %v2464
    %v3359 = vpop.f32.mrf.mxu0
    %v3360 = vadd.f32 %v3151, %v3359
    %3361 = vmatmul.f32.gmra.mxu0 %v2473
    %v3362 = vpop.f32.mrf.mxu0
    %v3363 = vadd.f32 %v3154, %v3362
    %3364 = vmatmul.f32.gmra.mxu0 %v2482
    %v3365 = vpop.f32.mrf.mxu0
    %v3366 = vadd.f32 %v3157, %v3365
    %3367 = vmatmul.f32.gmra.mxu0 %v2491
    %v3368 = vpop.f32.mrf.mxu0
    %v3369 = vadd.f32 %v3160, %v3368
    %3370 = vmatmul.f32.gmra.mxu0 %v2500
    %v3371 = vpop.f32.mrf.mxu0
    %v3372 = vadd.f32 %v3163, %v3371
    %3373 = vmatmul.f32.gmra.mxu0 %v2509
    %v3374 = vpop.f32.mrf.mxu0
    %v3375 = vadd.f32 %v3166, %v3374
    %3376 = vmatmul.f32.gmra.mxu0 %v2518
    %v3377 = vpop.f32.mrf.mxu0
    %v3378 = vadd.f32 %v3169, %v3377
    %3379 = vmatmul.f32.gmra.mxu0 %v2527
    %v3380 = vpop.f32.mrf.mxu0
    %v3381 = vadd.f32 %v3172, %v3380
    %3382 = vmatmul.f32.gmra.mxu0 %v2536
    %v3383 = vpop.f32.mrf.mxu0
    %v3384 = vadd.f32 %v3175, %v3383
    %3385 = vmatmul.f32.gmra.mxu0 %v2545
    %v3386 = vpop.f32.mrf.mxu0
    %v3387 = vadd.f32 %v3178, %v3386
    %3388 = vmatmul.f32.gmra.mxu0 %v2554
    %v3389 = vpop.f32.mrf.mxu0
    %v3390 = vadd.f32 %v3181, %v3389
    %3391 = vmatmul.f32.gmra.mxu0 %v2563
    %v3392 = vpop.f32.mrf.mxu0
    %v3393 = vadd.f32 %v3184, %v3392
    %3394 = vmatmul.f32.gmra.mxu0 %v2572
    %v3395 = vpop.f32.mrf.mxu0
    %v3396 = vadd.f32 %v3187, %v3395
    %3397 = vmatmul.f32.gmra.mxu0 %v2581
    %v3398 = vpop.f32.mrf.mxu0
    %v3399 = vadd.f32 %v3190, %v3398
    %3400 = vmatmul.f32.gmra.mxu0 %v2590
    %v3401 = vpop.f32.mrf.mxu0
    %v3402 = vadd.f32 %v3193, %v3401
    %3403 = vmatmul.f32.gmra.mxu0 %v2599
    %v3404 = vpop.f32.mrf.mxu0
    %v3405 = vadd.f32 %v3196, %v3404
    %3406 = vmatmul.f32.gmra.mxu0 %v2608
    %v3407 = vpop.f32.mrf.mxu0
    %v3408 = vadd.f32 %v3199, %v3407
    %3409 = vmatmul.f32.gmra.mxu0 %v2617
    %v3410 = vpop.f32.mrf.mxu0
    %v3411 = vadd.f32 %v3202, %v3410
    %3412 = vmatmul.f32.gmra.mxu0 %v2626
    %v3413 = vpop.f32.mrf.mxu0
    %v3414 = vadd.f32 %v3205, %v3413
    %3415 = vmatmul.f32.gmra.mxu0 %v2635
    %v3416 = vpop.f32.mrf.mxu0
    %v3417 = vadd.f32 %v3208, %v3416
    %3418 = vmatmul.f32.gmra.mxu0 %v2644
    %v3419 = vpop.f32.mrf.mxu0
    %v3420 = vadd.f32 %v3211, %v3419
    %3421 = vmatmul.f32.gmra.mxu0 %v2653
    %v3422 = vpop.f32.mrf.mxu0
    %v3423 = vadd.f32 %v3214, %v3422
    %3424 = vmatmul.f32.gmra.mxu0 %v2662
    %v3425 = vpop.f32.mrf.mxu0
    %v3426 = vadd.f32 %v3217, %v3425
    %3427 = vmatmul.f32.gmra.mxu0 %v2671
    %v3428 = vpop.f32.mrf.mxu0
    %v3429 = vadd.f32 %v3220, %v3428
    %3430 = vmatmul.f32.gmra.mxu0 %v2680
    %v3431 = vpop.f32.mrf.mxu0
    %v3432 = vadd.f32 %v3223, %v3431
    %3433 = vmatmul.f32.gmra.mxu0 %v2689
    %v3434 = vpop.f32.mrf.mxu0
    %v3435 = vadd.f32 %v3226, %v3434
    %3436 = vmatmul.f32.gmra.mxu0 %v2698
    %v3437 = vpop.f32.mrf.mxu0
    %v3438 = vadd.f32 %v3229, %v3437
    %3439 = vmatmul.f32.gmra.mxu0 %v2707
    %v3440 = vpop.f32.mrf.mxu0
    %v3441 = vadd.f32 %v3232, %v3440
    %3442 = vmatmul.f32.gmra.mxu0 %v2716
    %v3443 = vpop.f32.mrf.mxu0
    %v3444 = vadd.f32 %v3235, %v3443
    %3445 = vmatmul.f32.gmra.mxu0 %v2725
    %v3446 = vpop.f32.mrf.mxu0
    %v3447 = vadd.f32 %v3238, %v3446
    %3448 = vmatmul.f32.gmra.mxu0 %v2734
    %v3449 = vpop.f32.mrf.mxu0
    %v3450 = vadd.f32 %v3241, %v3449
    %3451 = vmatmul.f32.gmra.mxu0 %v2743
    %v3452 = vpop.f32.mrf.mxu0
    %v3453 = vadd.f32 %v3244, %v3452
    %3454 = vmatmul.f32.gmra.mxu0 %v2752
    %v3455 = vpop.f32.mrf.mxu0
    %v3456 = vadd.f32 %v3247, %v3455
    %3457 = vmatmul.f32.gmra.mxu0 %v2761
    %v3458 = vpop.f32.mrf.mxu0
    %v3459 = vadd.f32 %v3250, %v3458
    %3460 = vmatmul.f32.gmra.mxu0 %v2770
    %v3461 = vpop.f32.mrf.mxu0
    %v3462 = vadd.f32 %v3253, %v3461
    %3463 = vmatmul.f32.gmra.mxu0 %v2779
    %v3464 = vpop.f32.mrf.mxu0
    %v3465 = vadd.f32 %v3256, %v3464
    %3466 = vmatmul.f32.gmra.mxu0 %v2788
    %v3467 = vpop.f32.mrf.mxu0
    %v3468 = vadd.f32 %v3259, %v3467
    %3469 = vmatmul.f32.gmra.mxu0 %v2797
    %v3470 = vpop.f32.mrf.mxu0
    %v3471 = vadd.f32 %v3262, %v3470
    %3472 = vmatmul.f32.gmra.mxu0 %v2806
    %v3473 = vpop.f32.mrf.mxu0
    %v3474 = vadd.f32 %v3265, %v3473
    %3475 = vmatmul.f32.gmra.mxu0 %v2815
    %v3476 = vpop.f32.mrf.mxu0
    %v3477 = vadd.f32 %v3268, %v3476
    %3478 = vmatmul.f32.gmra.mxu0 %v2824
    %v3479 = vpop.f32.mrf.mxu0
    %v3480 = vadd.f32 %v3271, %v3479
    %3481 = vmatmul.f32.gmra.mxu0 %v2833
    %v3482 = vpop.f32.mrf.mxu0
    %v3483 = vadd.f32 %v3274, %v3482
    %3484 = vmatmul.f32.gmra.mxu0 %v2842
    %v3485 = vpop.f32.mrf.mxu0
    %v3486 = vadd.f32 %v3277, %v3485
    %3487 = vmatmul.f32.gmra.mxu0 %v2851
    %v3488 = vpop.f32.mrf.mxu0
    %v3489 = vadd.f32 %v3280, %v3488
    %3490 = vmatmul.f32.gmra.mxu0 %v2860
    %v3491 = vpop.f32.mrf.mxu0
    %v3492 = vadd.f32 %v3283, %v3491
    %3493 = vmatmul.f32.gmra.mxu0 %v2869
    %v3494 = vpop.f32.mrf.mxu0
    %v3495 = vadd.f32 %v3286, %v3494
    %3496 = vmatmul.f32.gmra.mxu0 %v2878
    %v3497 = vpop.f32.mrf.mxu0
    %v3498 = vadd.f32 %v3289, %v3497
    %3499 = vmatmul.f32.gmra.mxu0 %v2887
    %v3500 = vpop.f32.mrf.mxu0
    %v3501 = vadd.f32 %v3292, %v3500
    %3502 = vmatmul.f32.gmra.mxu0 %v2896
    %v3503 = vpop.f32.mrf.mxu0
    %v3504 = vadd.f32 %v3295, %v3503
    %3505 = vmatmul.f32.gmra.mxu0 %v2905
    %v3506 = vpop.f32.mrf.mxu0
    %v3507 = vadd.f32 %v3298, %v3506
    %3508 = vmatmul.f32.gmra.mxu0 %v2914
    %v3509 = vpop.f32.mrf.mxu0
    %v3510 = vadd.f32 %v3301, %v3509
    %3511 = vmatmul.f32.gmra.mxu0 %v2923
    %v3512 = vpop.f32.mrf.mxu0
    %v3513 = vadd.f32 %v3304, %v3512
    %3514 = vmatmul.f32.gmra.mxu0 %v2932
    %v3515 = vpop.f32.mrf.mxu0
    %v3516 = vadd.f32 %v3307, %v3515
    %3517 = vmatmul.f32.gmra.mxu0 %v2941
    %v3518 = vpop.f32.mrf.mxu0
    %v3519 = vadd.f32 %v3310, %v3518
    %3520 = vmatmul.f32.gmra.mxu0 %v2950
    %v3521 = vpop.f32.mrf.mxu0
    %v3522 = vadd.f32 %v3313, %v3521
    %3523 = vdwg.mxu0
    %3524 = vmatpush.msra.mxu0 %v3005
    %3525 = vmatpush.msra.mxu0 %v3004
    %3526 = vmatpush.msra.mxu0 %v3003
    %3527 = vmatpush.msra.mxu0 %v3002
    %3528 = vmatpush.msra.mxu0 %v3001
    %3529 = vmatpush.msra.mxu0 %v3000
    %3530 = vmatpush.msra.mxu0 %v2999
    %3531 = vmatpush.msra.mxu0 %v2998
    %3532 = vmatpush.msra.mxu0 %v2997
    %3533 = vmatpush.msra.mxu0 %v2996
    %3534 = vmatpush.msra.mxu0 %v2995
    %3535 = vmatpush.msra.mxu0 %v2994
    %3536 = vmatpush.msra.mxu0 %v2993
    %3537 = vmatpush.msra.mxu0 %v2992
    %3538 = vmatpush.msra.mxu0 %v2991
    %3539 = vmatpush.msra.mxu0 %v2990
    %3540 = vmatmul.f32.gmra.mxu0 %v2384
    %v3541 = vpop.f32.mrf.mxu0
    %v3542 = vadd.f32 %v3333, %v3541
    %3543 = vmatmul.f32.gmra.mxu0 %v2393
    %v3544 = vpop.f32.mrf.mxu0
    %v3545 = vadd.f32 %v3336, %v3544
    %3546 = vmatmul.f32.gmra.mxu0 %v2402
    %v3547 = vpop.f32.mrf.mxu0
    %v3548 = vadd.f32 %v3339, %v3547
    %3549 = vmatmul.f32.gmra.mxu0 %v2411
    %v3550 = vpop.f32.mrf.mxu0
    %v3551 = vadd.f32 %v3342, %v3550
    %3552 = vmatmul.f32.gmra.mxu0 %v2420
    %v3553 = vpop.f32.mrf.mxu0
    %v3554 = vadd.f32 %v3345, %v3553
    %3555 = vmatmul.f32.gmra.mxu0 %v2429
    %v3556 = vpop.f32.mrf.mxu0
    %v3557 = vadd.f32 %v3348, %v3556
    %3558 = vmatmul.f32.gmra.mxu0 %v2438
    %v3559 = vpop.f32.mrf.mxu0
    %v3560 = vadd.f32 %v3351, %v3559
    %3561 = vmatmul.f32.gmra.mxu0 %v2447
    %v3562 = vpop.f32.mrf.mxu0
    %v3563 = vadd.f32 %v3354, %v3562
    %3564 = vmatmul.f32.gmra.mxu0 %v2456
    %v3565 = vpop.f32.mrf.mxu0
    %v3566 = vadd.f32 %v3357, %v3565
    %3567 = vmatmul.f32.gmra.mxu0 %v2465
    %v3568 = vpop.f32.mrf.mxu0
    %v3569 = vadd.f32 %v3360, %v3568
    %3570 = vmatmul.f32.gmra.mxu0 %v2474
    %v3571 = vpop.f32.mrf.mxu0
    %v3572 = vadd.f32 %v3363, %v3571
    %3573 = vmatmul.f32.gmra.mxu0 %v2483
    %v3574 = vpop.f32.mrf.mxu0
    %v3575 = vadd.f32 %v3366, %v3574
    %3576 = vmatmul.f32.gmra.mxu0 %v2492
    %v3577 = vpop.f32.mrf.mxu0
    %v3578 = vadd.f32 %v3369, %v3577
    %3579 = vmatmul.f32.gmra.mxu0 %v2501
    %v3580 = vpop.f32.mrf.mxu0
    %v3581 = vadd.f32 %v3372, %v3580
    %3582 = vmatmul.f32.gmra.mxu0 %v2510
    %v3583 = vpop.f32.mrf.mxu0
    %v3584 = vadd.f32 %v3375, %v3583
    %3585 = vmatmul.f32.gmra.mxu0 %v2519
    %v3586 = vpop.f32.mrf.mxu0
    %v3587 = vadd.f32 %v3378, %v3586
    %3588 = vmatmul.f32.gmra.mxu0 %v2528
    %v3589 = vpop.f32.mrf.mxu0
    %v3590 = vadd.f32 %v3381, %v3589
    %3591 = vmatmul.f32.gmra.mxu0 %v2537
    %v3592 = vpop.f32.mrf.mxu0
    %v3593 = vadd.f32 %v3384, %v3592
    %3594 = vmatmul.f32.gmra.mxu0 %v2546
    %v3595 = vpop.f32.mrf.mxu0
    %v3596 = vadd.f32 %v3387, %v3595
    %3597 = vmatmul.f32.gmra.mxu0 %v2555
    %v3598 = vpop.f32.mrf.mxu0
    %v3599 = vadd.f32 %v3390, %v3598
    %3600 = vmatmul.f32.gmra.mxu0 %v2564
    %v3601 = vpop.f32.mrf.mxu0
    %v3602 = vadd.f32 %v3393, %v3601
    %3603 = vmatmul.f32.gmra.mxu0 %v2573
    %v3604 = vpop.f32.mrf.mxu0
    %v3605 = vadd.f32 %v3396, %v3604
    %3606 = vmatmul.f32.gmra.mxu0 %v2582
    %v3607 = vpop.f32.mrf.mxu0
    %v3608 = vadd.f32 %v3399, %v3607
    %3609 = vmatmul.f32.gmra.mxu0 %v2591
    %v3610 = vpop.f32.mrf.mxu0
    %v3611 = vadd.f32 %v3402, %v3610
    %3612 = vmatmul.f32.gmra.mxu0 %v2600
    %v3613 = vpop.f32.mrf.mxu0
    %v3614 = vadd.f32 %v3405, %v3613
    %3615 = vmatmul.f32.gmra.mxu0 %v2609
    %v3616 = vpop.f32.mrf.mxu0
    %v3617 = vadd.f32 %v3408, %v3616
    %3618 = vmatmul.f32.gmra.mxu0 %v2618
    %v3619 = vpop.f32.mrf.mxu0
    %v3620 = vadd.f32 %v3411, %v3619
    %3621 = vmatmul.f32.gmra.mxu0 %v2627
    %v3622 = vpop.f32.mrf.mxu0
    %v3623 = vadd.f32 %v3414, %v3622
    %3624 = vmatmul.f32.gmra.mxu0 %v2636
    %v3625 = vpop.f32.mrf.mxu0
    %v3626 = vadd.f32 %v3417, %v3625
    %3627 = vmatmul.f32.gmra.mxu0 %v2645
    %v3628 = vpop.f32.mrf.mxu0
    %v3629 = vadd.f32 %v3420, %v3628
    %3630 = vmatmul.f32.gmra.mxu0 %v2654
    %v3631 = vpop.f32.mrf.mxu0
    %v3632 = vadd.f32 %v3423, %v3631
    %3633 = vmatmul.f32.gmra.mxu0 %v2663
    %v3634 = vpop.f32.mrf.mxu0
    %v3635 = vadd.f32 %v3426, %v3634
    %3636 = vmatmul.f32.gmra.mxu0 %v2672
    %v3637 = vpop.f32.mrf.mxu0
    %v3638 = vadd.f32 %v3429, %v3637
    %3639 = vmatmul.f32.gmra.mxu0 %v2681
    %v3640 = vpop.f32.mrf.mxu0
    %v3641 = vadd.f32 %v3432, %v3640
    %3642 = vmatmul.f32.gmra.mxu0 %v2690
    %v3643 = vpop.f32.mrf.mxu0
    %v3644 = vadd.f32 %v3435, %v3643
    %3645 = vmatmul.f32.gmra.mxu0 %v2699
    %v3646 = vpop.f32.mrf.mxu0
    %v3647 = vadd.f32 %v3438, %v3646
    %3648 = vmatmul.f32.gmra.mxu0 %v2708
    %v3649 = vpop.f32.mrf.mxu0
    %v3650 = vadd.f32 %v3441, %v3649
    %3651 = vmatmul.f32.gmra.mxu0 %v2717
    %v3652 = vpop.f32.mrf.mxu0
    %v3653 = vadd.f32 %v3444, %v3652
    %3654 = vmatmul.f32.gmra.mxu0 %v2726
    %v3655 = vpop.f32.mrf.mxu0
    %v3656 = vadd.f32 %v3447, %v3655
    %3657 = vmatmul.f32.gmra.mxu0 %v2735
    %v3658 = vpop.f32.mrf.mxu0
    %v3659 = vadd.f32 %v3450, %v3658
    %3660 = vmatmul.f32.gmra.mxu0 %v2744
    %v3661 = vpop.f32.mrf.mxu0
    %v3662 = vadd.f32 %v3453, %v3661
    %3663 = vmatmul.f32.gmra.mxu0 %v2753
    %v3664 = vpop.f32.mrf.mxu0
    %v3665 = vadd.f32 %v3456, %v3664
    %3666 = vmatmul.f32.gmra.mxu0 %v2762
    %v3667 = vpop.f32.mrf.mxu0
    %v3668 = vadd.f32 %v3459, %v3667
    %3669 = vmatmul.f32.gmra.mxu0 %v2771
    %v3670 = vpop.f32.mrf.mxu0
    %v3671 = vadd.f32 %v3462, %v3670
    %3672 = vmatmul.f32.gmra.mxu0 %v2780
    %v3673 = vpop.f32.mrf.mxu0
    %v3674 = vadd.f32 %v3465, %v3673
    %3675 = vmatmul.f32.gmra.mxu0 %v2789
    %v3676 = vpop.f32.mrf.mxu0
    %v3677 = vadd.f32 %v3468, %v3676
    %3678 = vmatmul.f32.gmra.mxu0 %v2798
    %v3679 = vpop.f32.mrf.mxu0
    %v3680 = vadd.f32 %v3471, %v3679
    %3681 = vmatmul.f32.gmra.mxu0 %v2807
    %v3682 = vpop.f32.mrf.mxu0
    %v3683 = vadd.f32 %v3474, %v3682
    %3684 = vmatmul.f32.gmra.mxu0 %v2816
    %v3685 = vpop.f32.mrf.mxu0
    %v3686 = vadd.f32 %v3477, %v3685
    %3687 = vmatmul.f32.gmra.mxu0 %v2825
    %v3688 = vpop.f32.mrf.mxu0
    %v3689 = vadd.f32 %v3480, %v3688
    %3690 = vmatmul.f32.gmra.mxu0 %v2834
    %v3691 = vpop.f32.mrf.mxu0
    %v3692 = vadd.f32 %v3483, %v3691
    %3693 = vmatmul.f32.gmra.mxu0 %v2843
    %v3694 = vpop.f32.mrf.mxu0
    %v3695 = vadd.f32 %v3486, %v3694
    %3696 = vmatmul.f32.gmra.mxu0 %v2852
    %v3697 = vpop.f32.mrf.mxu0
    %v3698 = vadd.f32 %v3489, %v3697
    %3699 = vmatmul.f32.gmra.mxu0 %v2861
    %v3700 = vpop.f32.mrf.mxu0
    %v3701 = vadd.f32 %v3492, %v3700
    %3702 = vmatmul.f32.gmra.mxu0 %v2870
    %v3703 = vpop.f32.mrf.mxu0
    %v3704 = vadd.f32 %v3495, %v3703
    %3705 = vmatmul.f32.gmra.mxu0 %v2879
    %v3706 = vpop.f32.mrf.mxu0
    %v3707 = vadd.f32 %v3498, %v3706
    %3708 = vmatmul.f32.gmra.mxu0 %v2888
    %v3709 = vpop.f32.mrf.mxu0
    %v3710 = vadd.f32 %v3501, %v3709
    %3711 = vmatmul.f32.gmra.mxu0 %v2897
    %v3712 = vpop.f32.mrf.mxu0
    %v3713 = vadd.f32 %v3504, %v3712
    %3714 = vmatmul.f32.gmra.mxu0 %v2906
    %v3715 = vpop.f32.mrf.mxu0
    %v3716 = vadd.f32 %v3507, %v3715
    %3717 = vmatmul.f32.gmra.mxu0 %v2915
    %v3718 = vpop.f32.mrf.mxu0
    %v3719 = vadd.f32 %v3510, %v3718
    %3720 = vmatmul.f32.gmra.mxu0 %v2924
    %v3721 = vpop.f32.mrf.mxu0
    %v3722 = vadd.f32 %v3513, %v3721
    %3723 = vmatmul.f32.gmra.mxu0 %v2933
    %v3724 = vpop.f32.mrf.mxu0
    %v3725 = vadd.f32 %v3516, %v3724
    %3726 = vmatmul.f32.gmra.mxu0 %v2942
    %v3727 = vpop.f32.mrf.mxu0
    %v3728 = vadd.f32 %v3519, %v3727
    %3729 = vmatmul.f32.gmra.mxu0 %v2951
    %v3730 = vpop.f32.mrf.mxu0
    %v3731 = vadd.f32 %v3522, %v3730
    %3732 = vdwg.mxu0
    %3733 = vmatpush.msra.mxu0 %v3021
    %3734 = vmatpush.msra.mxu0 %v3020
    %3735 = vmatpush.msra.mxu0 %v3019
    %3736 = vmatpush.msra.mxu0 %v3018
    %3737 = vmatpush.msra.mxu0 %v3017
    %3738 = vmatpush.msra.mxu0 %v3016
    %3739 = vmatpush.msra.mxu0 %v3015
    %3740 = vmatpush.msra.mxu0 %v3014
    %3741 = vmatpush.msra.mxu0 %v3013
    %3742 = vmatpush.msra.mxu0 %v3012
    %3743 = vmatpush.msra.mxu0 %v3011
    %3744 = vmatpush.msra.mxu0 %v3010
    %3745 = vmatpush.msra.mxu0 %v3009
    %3746 = vmatpush.msra.mxu0 %v3008
    %3747 = vmatpush.msra.mxu0 %v3007
    %3748 = vmatpush.msra.mxu0 %v3006
    %3749 = vmatmul.f32.gmra.mxu0 %v2385
    %v3750 = vpop.f32.mrf.mxu0
    %v3751 = vadd.f32 %v3542, %v3750
    %3752 = vmatmul.f32.gmra.mxu0 %v2394
    %v3753 = vpop.f32.mrf.mxu0
    %v3754 = vadd.f32 %v3545, %v3753
    %3755 = vmatmul.f32.gmra.mxu0 %v2403
    %v3756 = vpop.f32.mrf.mxu0
    %v3757 = vadd.f32 %v3548, %v3756
    %3758 = vmatmul.f32.gmra.mxu0 %v2412
    %v3759 = vpop.f32.mrf.mxu0
    %v3760 = vadd.f32 %v3551, %v3759
    %3761 = vmatmul.f32.gmra.mxu0 %v2421
    %v3762 = vpop.f32.mrf.mxu0
    %v3763 = vadd.f32 %v3554, %v3762
    %3764 = vmatmul.f32.gmra.mxu0 %v2430
    %v3765 = vpop.f32.mrf.mxu0
    %v3766 = vadd.f32 %v3557, %v3765
    %3767 = vmatmul.f32.gmra.mxu0 %v2439
    %v3768 = vpop.f32.mrf.mxu0
    %v3769 = vadd.f32 %v3560, %v3768
    %3770 = vmatmul.f32.gmra.mxu0 %v2448
    %v3771 = vpop.f32.mrf.mxu0
    %v3772 = vadd.f32 %v3563, %v3771
    %3773 = vmatmul.f32.gmra.mxu0 %v2457
    %v3774 = vpop.f32.mrf.mxu0
    %v3775 = vadd.f32 %v3566, %v3774
    %3776 = vmatmul.f32.gmra.mxu0 %v2466
    %v3777 = vpop.f32.mrf.mxu0
    %v3778 = vadd.f32 %v3569, %v3777
    %3779 = vmatmul.f32.gmra.mxu0 %v2475
    %v3780 = vpop.f32.mrf.mxu0
    %v3781 = vadd.f32 %v3572, %v3780
    %3782 = vmatmul.f32.gmra.mxu0 %v2484
    %v3783 = vpop.f32.mrf.mxu0
    %v3784 = vadd.f32 %v3575, %v3783
    %3785 = vmatmul.f32.gmra.mxu0 %v2493
    %v3786 = vpop.f32.mrf.mxu0
    %v3787 = vadd.f32 %v3578, %v3786
    %3788 = vmatmul.f32.gmra.mxu0 %v2502
    %v3789 = vpop.f32.mrf.mxu0
    %v3790 = vadd.f32 %v3581, %v3789
    %3791 = vmatmul.f32.gmra.mxu0 %v2511
    %v3792 = vpop.f32.mrf.mxu0
    %v3793 = vadd.f32 %v3584, %v3792
    %3794 = vmatmul.f32.gmra.mxu0 %v2520
    %v3795 = vpop.f32.mrf.mxu0
    %v3796 = vadd.f32 %v3587, %v3795
    %3797 = vmatmul.f32.gmra.mxu0 %v2529
    %v3798 = vpop.f32.mrf.mxu0
    %v3799 = vadd.f32 %v3590, %v3798
    %3800 = vmatmul.f32.gmra.mxu0 %v2538
    %v3801 = vpop.f32.mrf.mxu0
    %v3802 = vadd.f32 %v3593, %v3801
    %3803 = vmatmul.f32.gmra.mxu0 %v2547
    %v3804 = vpop.f32.mrf.mxu0
    %v3805 = vadd.f32 %v3596, %v3804
    %3806 = vmatmul.f32.gmra.mxu0 %v2556
    %v3807 = vpop.f32.mrf.mxu0
    %v3808 = vadd.f32 %v3599, %v3807
    %3809 = vmatmul.f32.gmra.mxu0 %v2565
    %v3810 = vpop.f32.mrf.mxu0
    %v3811 = vadd.f32 %v3602, %v3810
    %3812 = vmatmul.f32.gmra.mxu0 %v2574
    %v3813 = vpop.f32.mrf.mxu0
    %v3814 = vadd.f32 %v3605, %v3813
    %3815 = vmatmul.f32.gmra.mxu0 %v2583
    %v3816 = vpop.f32.mrf.mxu0
    %v3817 = vadd.f32 %v3608, %v3816
    %3818 = vmatmul.f32.gmra.mxu0 %v2592
    %v3819 = vpop.f32.mrf.mxu0
    %v3820 = vadd.f32 %v3611, %v3819
    %3821 = vmatmul.f32.gmra.mxu0 %v2601
    %v3822 = vpop.f32.mrf.mxu0
    %v3823 = vadd.f32 %v3614, %v3822
    %3824 = vmatmul.f32.gmra.mxu0 %v2610
    %v3825 = vpop.f32.mrf.mxu0
    %v3826 = vadd.f32 %v3617, %v3825
    %3827 = vmatmul.f32.gmra.mxu0 %v2619
    %v3828 = vpop.f32.mrf.mxu0
    %v3829 = vadd.f32 %v3620, %v3828
    %3830 = vmatmul.f32.gmra.mxu0 %v2628
    %v3831 = vpop.f32.mrf.mxu0
    %v3832 = vadd.f32 %v3623, %v3831
    %3833 = vmatmul.f32.gmra.mxu0 %v2637
    %v3834 = vpop.f32.mrf.mxu0
    %v3835 = vadd.f32 %v3626, %v3834
    %3836 = vmatmul.f32.gmra.mxu0 %v2646
    %v3837 = vpop.f32.mrf.mxu0
    %v3838 = vadd.f32 %v3629, %v3837
    %3839 = vmatmul.f32.gmra.mxu0 %v2655
    %v3840 = vpop.f32.mrf.mxu0
    %v3841 = vadd.f32 %v3632, %v3840
    %3842 = vmatmul.f32.gmra.mxu0 %v2664
    %v3843 = vpop.f32.mrf.mxu0
    %v3844 = vadd.f32 %v3635, %v3843
    %3845 = vmatmul.f32.gmra.mxu0 %v2673
    %v3846 = vpop.f32.mrf.mxu0
    %v3847 = vadd.f32 %v3638, %v3846
    %3848 = vmatmul.f32.gmra.mxu0 %v2682
    %v3849 = vpop.f32.mrf.mxu0
    %v3850 = vadd.f32 %v3641, %v3849
    %3851 = vmatmul.f32.gmra.mxu0 %v2691
    %v3852 = vpop.f32.mrf.mxu0
    %v3853 = vadd.f32 %v3644, %v3852
    %3854 = vmatmul.f32.gmra.mxu0 %v2700
    %v3855 = vpop.f32.mrf.mxu0
    %v3856 = vadd.f32 %v3647, %v3855
    %3857 = vmatmul.f32.gmra.mxu0 %v2709
    %v3858 = vpop.f32.mrf.mxu0
    %v3859 = vadd.f32 %v3650, %v3858
    %3860 = vmatmul.f32.gmra.mxu0 %v2718
    %v3861 = vpop.f32.mrf.mxu0
    %v3862 = vadd.f32 %v3653, %v3861
    %3863 = vmatmul.f32.gmra.mxu0 %v2727
    %v3864 = vpop.f32.mrf.mxu0
    %v3865 = vadd.f32 %v3656, %v3864
    %3866 = vmatmul.f32.gmra.mxu0 %v2736
    %v3867 = vpop.f32.mrf.mxu0
    %v3868 = vadd.f32 %v3659, %v3867
    %3869 = vmatmul.f32.gmra.mxu0 %v2745
    %v3870 = vpop.f32.mrf.mxu0
    %v3871 = vadd.f32 %v3662, %v3870
    %3872 = vmatmul.f32.gmra.mxu0 %v2754
    %v3873 = vpop.f32.mrf.mxu0
    %v3874 = vadd.f32 %v3665, %v3873
    %3875 = vmatmul.f32.gmra.mxu0 %v2763
    %v3876 = vpop.f32.mrf.mxu0
    %v3877 = vadd.f32 %v3668, %v3876
    %3878 = vmatmul.f32.gmra.mxu0 %v2772
    %v3879 = vpop.f32.mrf.mxu0
    %v3880 = vadd.f32 %v3671, %v3879
    %3881 = vmatmul.f32.gmra.mxu0 %v2781
    %v3882 = vpop.f32.mrf.mxu0
    %v3883 = vadd.f32 %v3674, %v3882
    %3884 = vmatmul.f32.gmra.mxu0 %v2790
    %v3885 = vpop.f32.mrf.mxu0
    %v3886 = vadd.f32 %v3677, %v3885
    %3887 = vmatmul.f32.gmra.mxu0 %v2799
    %v3888 = vpop.f32.mrf.mxu0
    %v3889 = vadd.f32 %v3680, %v3888
    %3890 = vmatmul.f32.gmra.mxu0 %v2808
    %v3891 = vpop.f32.mrf.mxu0
    %v3892 = vadd.f32 %v3683, %v3891
    %3893 = vmatmul.f32.gmra.mxu0 %v2817
    %v3894 = vpop.f32.mrf.mxu0
    %v3895 = vadd.f32 %v3686, %v3894
    %3896 = vmatmul.f32.gmra.mxu0 %v2826
    %v3897 = vpop.f32.mrf.mxu0
    %v3898 = vadd.f32 %v3689, %v3897
    %3899 = vmatmul.f32.gmra.mxu0 %v2835
    %v3900 = vpop.f32.mrf.mxu0
    %v3901 = vadd.f32 %v3692, %v3900
    %3902 = vmatmul.f32.gmra.mxu0 %v2844
    %v3903 = vpop.f32.mrf.mxu0
    %v3904 = vadd.f32 %v3695, %v3903
    %3905 = vmatmul.f32.gmra.mxu0 %v2853
    %v3906 = vpop.f32.mrf.mxu0
    %v3907 = vadd.f32 %v3698, %v3906
    %3908 = vmatmul.f32.gmra.mxu0 %v2862
    %v3909 = vpop.f32.mrf.mxu0
    %v3910 = vadd.f32 %v3701, %v3909
    %3911 = vmatmul.f32.gmra.mxu0 %v2871
    %v3912 = vpop.f32.mrf.mxu0
    %v3913 = vadd.f32 %v3704, %v3912
    %3914 = vmatmul.f32.gmra.mxu0 %v2880
    %v3915 = vpop.f32.mrf.mxu0
    %v3916 = vadd.f32 %v3707, %v3915
    %3917 = vmatmul.f32.gmra.mxu0 %v2889
    %v3918 = vpop.f32.mrf.mxu0
    %v3919 = vadd.f32 %v3710, %v3918
    %3920 = vmatmul.f32.gmra.mxu0 %v2898
    %v3921 = vpop.f32.mrf.mxu0
    %v3922 = vadd.f32 %v3713, %v3921
    %3923 = vmatmul.f32.gmra.mxu0 %v2907
    %v3924 = vpop.f32.mrf.mxu0
    %v3925 = vadd.f32 %v3716, %v3924
    %3926 = vmatmul.f32.gmra.mxu0 %v2916
    %v3927 = vpop.f32.mrf.mxu0
    %v3928 = vadd.f32 %v3719, %v3927
    %3929 = vmatmul.f32.gmra.mxu0 %v2925
    %v3930 = vpop.f32.mrf.mxu0
    %v3931 = vadd.f32 %v3722, %v3930
    %3932 = vmatmul.f32.gmra.mxu0 %v2934
    %v3933 = vpop.f32.mrf.mxu0
    %v3934 = vadd.f32 %v3725, %v3933
    %3935 = vmatmul.f32.gmra.mxu0 %v2943
    %v3936 = vpop.f32.mrf.mxu0
    %v3937 = vadd.f32 %v3728, %v3936
    %3938 = vmatmul.f32.gmra.mxu0 %v2952
    %v3939 = vpop.f32.mrf.mxu0
    %v3940 = vadd.f32 %v3731, %v3939
    %3941 = vdwg.mxu0
    %3942 = vmatpush.msra.mxu0 %v3037
    %3943 = vmatpush.msra.mxu0 %v3036
    %3944 = vmatpush.msra.mxu0 %v3035
    %3945 = vmatpush.msra.mxu0 %v3034
    %3946 = vmatpush.msra.mxu0 %v3033
    %3947 = vmatpush.msra.mxu0 %v3032
    %3948 = vmatpush.msra.mxu0 %v3031
    %3949 = vmatpush.msra.mxu0 %v3030
    %3950 = vmatpush.msra.mxu0 %v3029
    %3951 = vmatpush.msra.mxu0 %v3028
    %3952 = vmatpush.msra.mxu0 %v3027
    %3953 = vmatpush.msra.mxu0 %v3026
    %3954 = vmatpush.msra.mxu0 %v3025
    %3955 = vmatpush.msra.mxu0 %v3024
    %3956 = vmatpush.msra.mxu0 %v3023
    %3957 = vmatpush.msra.mxu0 %v3022
    %3958 = vmatmul.f32.gmra.mxu0 %v2386
    %v3959 = vpop.f32.mrf.mxu0
    %v3960 = vadd.f32 %v3751, %v3959
    %3961 = vmatmul.f32.gmra.mxu0 %v2395
    %v3962 = vpop.f32.mrf.mxu0
    %v3963 = vadd.f32 %v3754, %v3962
    %3964 = vmatmul.f32.gmra.mxu0 %v2404
    %v3965 = vpop.f32.mrf.mxu0
    %v3966 = vadd.f32 %v3757, %v3965
    %3967 = vmatmul.f32.gmra.mxu0 %v2413
    %v3968 = vpop.f32.mrf.mxu0
    %v3969 = vadd.f32 %v3760, %v3968
    %3970 = vmatmul.f32.gmra.mxu0 %v2422
    %v3971 = vpop.f32.mrf.mxu0
    %v3972 = vadd.f32 %v3763, %v3971
    %3973 = vmatmul.f32.gmra.mxu0 %v2431
    %v3974 = vpop.f32.mrf.mxu0
    %v3975 = vadd.f32 %v3766, %v3974
    %3976 = vmatmul.f32.gmra.mxu0 %v2440
    %v3977 = vpop.f32.mrf.mxu0
    %v3978 = vadd.f32 %v3769, %v3977
    %3979 = vmatmul.f32.gmra.mxu0 %v2449
    %v3980 = vpop.f32.mrf.mxu0
    %v3981 = vadd.f32 %v3772, %v3980
    %3982 = vmatmul.f32.gmra.mxu0 %v2458
    %v3983 = vpop.f32.mrf.mxu0
    %v3984 = vadd.f32 %v3775, %v3983
    %3985 = vmatmul.f32.gmra.mxu0 %v2467
    %v3986 = vpop.f32.mrf.mxu0
    %v3987 = vadd.f32 %v3778, %v3986
    %3988 = vmatmul.f32.gmra.mxu0 %v2476
    %v3989 = vpop.f32.mrf.mxu0
    %v3990 = vadd.f32 %v3781, %v3989
    %3991 = vmatmul.f32.gmra.mxu0 %v2485
    %v3992 = vpop.f32.mrf.mxu0
    %v3993 = vadd.f32 %v3784, %v3992
    %3994 = vmatmul.f32.gmra.mxu0 %v2494
    %v3995 = vpop.f32.mrf.mxu0
    %v3996 = vadd.f32 %v3787, %v3995
    %3997 = vmatmul.f32.gmra.mxu0 %v2503
    %v3998 = vpop.f32.mrf.mxu0
    %v3999 = vadd.f32 %v3790, %v3998
    %4000 = vmatmul.f32.gmra.mxu0 %v2512
    %v4001 = vpop.f32.mrf.mxu0
    %v4002 = vadd.f32 %v3793, %v4001
    %4003 = vmatmul.f32.gmra.mxu0 %v2521
    %v4004 = vpop.f32.mrf.mxu0
    %v4005 = vadd.f32 %v3796, %v4004
    %4006 = vmatmul.f32.gmra.mxu0 %v2530
    %v4007 = vpop.f32.mrf.mxu0
    %v4008 = vadd.f32 %v3799, %v4007
    %4009 = vmatmul.f32.gmra.mxu0 %v2539
    %v4010 = vpop.f32.mrf.mxu0
    %v4011 = vadd.f32 %v3802, %v4010
    %4012 = vmatmul.f32.gmra.mxu0 %v2548
    %v4013 = vpop.f32.mrf.mxu0
    %v4014 = vadd.f32 %v3805, %v4013
    %4015 = vmatmul.f32.gmra.mxu0 %v2557
    %v4016 = vpop.f32.mrf.mxu0
    %v4017 = vadd.f32 %v3808, %v4016
    %4018 = vmatmul.f32.gmra.mxu0 %v2566
    %v4019 = vpop.f32.mrf.mxu0
    %v4020 = vadd.f32 %v3811, %v4019
    %4021 = vmatmul.f32.gmra.mxu0 %v2575
    %v4022 = vpop.f32.mrf.mxu0
    %v4023 = vadd.f32 %v3814, %v4022
    %4024 = vmatmul.f32.gmra.mxu0 %v2584
    %v4025 = vpop.f32.mrf.mxu0
    %v4026 = vadd.f32 %v3817, %v4025
    %4027 = vmatmul.f32.gmra.mxu0 %v2593
    %v4028 = vpop.f32.mrf.mxu0
    %v4029 = vadd.f32 %v3820, %v4028
    %4030 = vmatmul.f32.gmra.mxu0 %v2602
    %v4031 = vpop.f32.mrf.mxu0
    %v4032 = vadd.f32 %v3823, %v4031
    %4033 = vmatmul.f32.gmra.mxu0 %v2611
    %v4034 = vpop.f32.mrf.mxu0
    %v4035 = vadd.f32 %v3826, %v4034
    %4036 = vmatmul.f32.gmra.mxu0 %v2620
    %v4037 = vpop.f32.mrf.mxu0
    %v4038 = vadd.f32 %v3829, %v4037
    %4039 = vmatmul.f32.gmra.mxu0 %v2629
    %v4040 = vpop.f32.mrf.mxu0
    %v4041 = vadd.f32 %v3832, %v4040
    %4042 = vmatmul.f32.gmra.mxu0 %v2638
    %v4043 = vpop.f32.mrf.mxu0
    %v4044 = vadd.f32 %v3835, %v4043
    %4045 = vmatmul.f32.gmra.mxu0 %v2647
    %v4046 = vpop.f32.mrf.mxu0
    %v4047 = vadd.f32 %v3838, %v4046
    %4048 = vmatmul.f32.gmra.mxu0 %v2656
    %v4049 = vpop.f32.mrf.mxu0
    %v4050 = vadd.f32 %v3841, %v4049
    %4051 = vmatmul.f32.gmra.mxu0 %v2665
    %v4052 = vpop.f32.mrf.mxu0
    %v4053 = vadd.f32 %v3844, %v4052
    %4054 = vmatmul.f32.gmra.mxu0 %v2674
    %v4055 = vpop.f32.mrf.mxu0
    %v4056 = vadd.f32 %v3847, %v4055
    %4057 = vmatmul.f32.gmra.mxu0 %v2683
    %v4058 = vpop.f32.mrf.mxu0
    %v4059 = vadd.f32 %v3850, %v4058
    %4060 = vmatmul.f32.gmra.mxu0 %v2692
    %v4061 = vpop.f32.mrf.mxu0
    %v4062 = vadd.f32 %v3853, %v4061
    %4063 = vmatmul.f32.gmra.mxu0 %v2701
    %v4064 = vpop.f32.mrf.mxu0
    %v4065 = vadd.f32 %v3856, %v4064
    %4066 = vmatmul.f32.gmra.mxu0 %v2710
    %v4067 = vpop.f32.mrf.mxu0
    %v4068 = vadd.f32 %v3859, %v4067
    %4069 = vmatmul.f32.gmra.mxu0 %v2719
    %v4070 = vpop.f32.mrf.mxu0
    %v4071 = vadd.f32 %v3862, %v4070
    %4072 = vmatmul.f32.gmra.mxu0 %v2728
    %v4073 = vpop.f32.mrf.mxu0
    %v4074 = vadd.f32 %v3865, %v4073
    %4075 = vmatmul.f32.gmra.mxu0 %v2737
    %v4076 = vpop.f32.mrf.mxu0
    %v4077 = vadd.f32 %v3868, %v4076
    %4078 = vmatmul.f32.gmra.mxu0 %v2746
    %v4079 = vpop.f32.mrf.mxu0
    %v4080 = vadd.f32 %v3871, %v4079
    %4081 = vmatmul.f32.gmra.mxu0 %v2755
    %v4082 = vpop.f32.mrf.mxu0
    %v4083 = vadd.f32 %v3874, %v4082
    %4084 = vmatmul.f32.gmra.mxu0 %v2764
    %v4085 = vpop.f32.mrf.mxu0
    %v4086 = vadd.f32 %v3877, %v4085
    %4087 = vmatmul.f32.gmra.mxu0 %v2773
    %v4088 = vpop.f32.mrf.mxu0
    %v4089 = vadd.f32 %v3880, %v4088
    %4090 = vmatmul.f32.gmra.mxu0 %v2782
    %v4091 = vpop.f32.mrf.mxu0
    %v4092 = vadd.f32 %v3883, %v4091
    %4093 = vmatmul.f32.gmra.mxu0 %v2791
    %v4094 = vpop.f32.mrf.mxu0
    %v4095 = vadd.f32 %v3886, %v4094
    %4096 = vmatmul.f32.gmra.mxu0 %v2800
    %v4097 = vpop.f32.mrf.mxu0
    %v4098 = vadd.f32 %v3889, %v4097
    %4099 = vmatmul.f32.gmra.mxu0 %v2809
    %v4100 = vpop.f32.mrf.mxu0
    %v4101 = vadd.f32 %v3892, %v4100
    %4102 = vmatmul.f32.gmra.mxu0 %v2818
    %v4103 = vpop.f32.mrf.mxu0
    %v4104 = vadd.f32 %v3895, %v4103
    %4105 = vmatmul.f32.gmra.mxu0 %v2827
    %v4106 = vpop.f32.mrf.mxu0
    %v4107 = vadd.f32 %v3898, %v4106
    %4108 = vmatmul.f32.gmra.mxu0 %v2836
    %v4109 = vpop.f32.mrf.mxu0
    %v4110 = vadd.f32 %v3901, %v4109
    %4111 = vmatmul.f32.gmra.mxu0 %v2845
    %v4112 = vpop.f32.mrf.mxu0
    %v4113 = vadd.f32 %v3904, %v4112
    %4114 = vmatmul.f32.gmra.mxu0 %v2854
    %v4115 = vpop.f32.mrf.mxu0
    %v4116 = vadd.f32 %v3907, %v4115
    %4117 = vmatmul.f32.gmra.mxu0 %v2863
    %v4118 = vpop.f32.mrf.mxu0
    %v4119 = vadd.f32 %v3910, %v4118
    %4120 = vmatmul.f32.gmra.mxu0 %v2872
    %v4121 = vpop.f32.mrf.mxu0
    %v4122 = vadd.f32 %v3913, %v4121
    %4123 = vmatmul.f32.gmra.mxu0 %v2881
    %v4124 = vpop.f32.mrf.mxu0
    %v4125 = vadd.f32 %v3916, %v4124
    %4126 = vmatmul.f32.gmra.mxu0 %v2890
    %v4127 = vpop.f32.mrf.mxu0
    %v4128 = vadd.f32 %v3919, %v4127
    %4129 = vmatmul.f32.gmra.mxu0 %v2899
    %v4130 = vpop.f32.mrf.mxu0
    %v4131 = vadd.f32 %v3922, %v4130
    %4132 = vmatmul.f32.gmra.mxu0 %v2908
    %v4133 = vpop.f32.mrf.mxu0
    %v4134 = vadd.f32 %v3925, %v4133
    %4135 = vmatmul.f32.gmra.mxu0 %v2917
    %v4136 = vpop.f32.mrf.mxu0
    %v4137 = vadd.f32 %v3928, %v4136
    %4138 = vmatmul.f32.gmra.mxu0 %v2926
    %v4139 = vpop.f32.mrf.mxu0
    %v4140 = vadd.f32 %v3931, %v4139
    %4141 = vmatmul.f32.gmra.mxu0 %v2935
    %v4142 = vpop.f32.mrf.mxu0
    %v4143 = vadd.f32 %v3934, %v4142
    %4144 = vmatmul.f32.gmra.mxu0 %v2944
    %v4145 = vpop.f32.mrf.mxu0
    %v4146 = vadd.f32 %v3937, %v4145
    %4147 = vmatmul.f32.gmra.mxu0 %v2953
    %v4148 = vpop.f32.mrf.mxu0
    %v4149 = vadd.f32 %v3940, %v4148
    %4150 = vdwg.mxu0
    %4151 = vmatpush.msra.mxu0 %v3053
    %4152 = vmatpush.msra.mxu0 %v3052
    %4153 = vmatpush.msra.mxu0 %v3051
    %4154 = vmatpush.msra.mxu0 %v3050
    %4155 = vmatpush.msra.mxu0 %v3049
    %4156 = vmatpush.msra.mxu0 %v3048
    %4157 = vmatpush.msra.mxu0 %v3047
    %4158 = vmatpush.msra.mxu0 %v3046
    %4159 = vmatpush.msra.mxu0 %v3045
    %4160 = vmatpush.msra.mxu0 %v3044
    %4161 = vmatpush.msra.mxu0 %v3043
    %4162 = vmatpush.msra.mxu0 %v3042
    %4163 = vmatpush.msra.mxu0 %v3041
    %4164 = vmatpush.msra.mxu0 %v3040
    %4165 = vmatpush.msra.mxu0 %v3039
    %4166 = vmatpush.msra.mxu0 %v3038
    %4167 = vmatmul.f32.gmra.mxu0 %v2387
    %v4168 = vpop.f32.mrf.mxu0
    %v4169 = vadd.f32 %v3960, %v4168
    %4170 = vmatmul.f32.gmra.mxu0 %v2396
    %v4171 = vpop.f32.mrf.mxu0
    %v4172 = vadd.f32 %v3963, %v4171
    %4173 = vmatmul.f32.gmra.mxu0 %v2405
    %v4174 = vpop.f32.mrf.mxu0
    %v4175 = vadd.f32 %v3966, %v4174
    %4176 = vmatmul.f32.gmra.mxu0 %v2414
    %v4177 = vpop.f32.mrf.mxu0
    %v4178 = vadd.f32 %v3969, %v4177
    %4179 = vmatmul.f32.gmra.mxu0 %v2423
    %v4180 = vpop.f32.mrf.mxu0
    %v4181 = vadd.f32 %v3972, %v4180
    %4182 = vmatmul.f32.gmra.mxu0 %v2432
    %v4183 = vpop.f32.mrf.mxu0
    %v4184 = vadd.f32 %v3975, %v4183
    %4185 = vmatmul.f32.gmra.mxu0 %v2441
    %v4186 = vpop.f32.mrf.mxu0
    %v4187 = vadd.f32 %v3978, %v4186
    %4188 = vmatmul.f32.gmra.mxu0 %v2450
    %v4189 = vpop.f32.mrf.mxu0
    %v4190 = vadd.f32 %v3981, %v4189
    %4191 = vmatmul.f32.gmra.mxu0 %v2459
    %v4192 = vpop.f32.mrf.mxu0
    %v4193 = vadd.f32 %v3984, %v4192
    %4194 = vmatmul.f32.gmra.mxu0 %v2468
    %v4195 = vpop.f32.mrf.mxu0
    %v4196 = vadd.f32 %v3987, %v4195
    %4197 = vmatmul.f32.gmra.mxu0 %v2477
    %v4198 = vpop.f32.mrf.mxu0
    %v4199 = vadd.f32 %v3990, %v4198
    %4200 = vmatmul.f32.gmra.mxu0 %v2486
    %v4201 = vpop.f32.mrf.mxu0
    %v4202 = vadd.f32 %v3993, %v4201
    %4203 = vmatmul.f32.gmra.mxu0 %v2495
    %v4204 = vpop.f32.mrf.mxu0
    %v4205 = vadd.f32 %v3996, %v4204
    %4206 = vmatmul.f32.gmra.mxu0 %v2504
    %v4207 = vpop.f32.mrf.mxu0
    %v4208 = vadd.f32 %v3999, %v4207
    %4209 = vmatmul.f32.gmra.mxu0 %v2513
    %v4210 = vpop.f32.mrf.mxu0
    %v4211 = vadd.f32 %v4002, %v4210
    %4212 = vmatmul.f32.gmra.mxu0 %v2522
    %v4213 = vpop.f32.mrf.mxu0
    %v4214 = vadd.f32 %v4005, %v4213
    %4215 = vmatmul.f32.gmra.mxu0 %v2531
    %v4216 = vpop.f32.mrf.mxu0
    %v4217 = vadd.f32 %v4008, %v4216
    %4218 = vmatmul.f32.gmra.mxu0 %v2540
    %v4219 = vpop.f32.mrf.mxu0
    %v4220 = vadd.f32 %v4011, %v4219
    %4221 = vmatmul.f32.gmra.mxu0 %v2549
    %v4222 = vpop.f32.mrf.mxu0
    %v4223 = vadd.f32 %v4014, %v4222
    %4224 = vmatmul.f32.gmra.mxu0 %v2558
    %v4225 = vpop.f32.mrf.mxu0
    %v4226 = vadd.f32 %v4017, %v4225
    %4227 = vmatmul.f32.gmra.mxu0 %v2567
    %v4228 = vpop.f32.mrf.mxu0
    %v4229 = vadd.f32 %v4020, %v4228
    %4230 = vmatmul.f32.gmra.mxu0 %v2576
    %v4231 = vpop.f32.mrf.mxu0
    %v4232 = vadd.f32 %v4023, %v4231
    %4233 = vmatmul.f32.gmra.mxu0 %v2585
    %v4234 = vpop.f32.mrf.mxu0
    %v4235 = vadd.f32 %v4026, %v4234
    %4236 = vmatmul.f32.gmra.mxu0 %v2594
    %v4237 = vpop.f32.mrf.mxu0
    %v4238 = vadd.f32 %v4029, %v4237
    %4239 = vmatmul.f32.gmra.mxu0 %v2603
    %v4240 = vpop.f32.mrf.mxu0
    %v4241 = vadd.f32 %v4032, %v4240
    %4242 = vmatmul.f32.gmra.mxu0 %v2612
    %v4243 = vpop.f32.mrf.mxu0
    %v4244 = vadd.f32 %v4035, %v4243
    %4245 = vmatmul.f32.gmra.mxu0 %v2621
    %v4246 = vpop.f32.mrf.mxu0
    %v4247 = vadd.f32 %v4038, %v4246
    %4248 = vmatmul.f32.gmra.mxu0 %v2630
    %v4249 = vpop.f32.mrf.mxu0
    %v4250 = vadd.f32 %v4041, %v4249
    %4251 = vmatmul.f32.gmra.mxu0 %v2639
    %v4252 = vpop.f32.mrf.mxu0
    %v4253 = vadd.f32 %v4044, %v4252
    %4254 = vmatmul.f32.gmra.mxu0 %v2648
    %v4255 = vpop.f32.mrf.mxu0
    %v4256 = vadd.f32 %v4047, %v4255
    %4257 = vmatmul.f32.gmra.mxu0 %v2657
    %v4258 = vpop.f32.mrf.mxu0
    %v4259 = vadd.f32 %v4050, %v4258
    %4260 = vmatmul.f32.gmra.mxu0 %v2666
    %v4261 = vpop.f32.mrf.mxu0
    %v4262 = vadd.f32 %v4053, %v4261
    %4263 = vmatmul.f32.gmra.mxu0 %v2675
    %v4264 = vpop.f32.mrf.mxu0
    %v4265 = vadd.f32 %v4056, %v4264
    %4266 = vmatmul.f32.gmra.mxu0 %v2684
    %v4267 = vpop.f32.mrf.mxu0
    %v4268 = vadd.f32 %v4059, %v4267
    %4269 = vmatmul.f32.gmra.mxu0 %v2693
    %v4270 = vpop.f32.mrf.mxu0
    %v4271 = vadd.f32 %v4062, %v4270
    %4272 = vmatmul.f32.gmra.mxu0 %v2702
    %v4273 = vpop.f32.mrf.mxu0
    %v4274 = vadd.f32 %v4065, %v4273
    %4275 = vmatmul.f32.gmra.mxu0 %v2711
    %v4276 = vpop.f32.mrf.mxu0
    %v4277 = vadd.f32 %v4068, %v4276
    %4278 = vmatmul.f32.gmra.mxu0 %v2720
    %v4279 = vpop.f32.mrf.mxu0
    %v4280 = vadd.f32 %v4071, %v4279
    %4281 = vmatmul.f32.gmra.mxu0 %v2729
    %v4282 = vpop.f32.mrf.mxu0
    %v4283 = vadd.f32 %v4074, %v4282
    %4284 = vmatmul.f32.gmra.mxu0 %v2738
    %v4285 = vpop.f32.mrf.mxu0
    %v4286 = vadd.f32 %v4077, %v4285
    %4287 = vmatmul.f32.gmra.mxu0 %v2747
    %v4288 = vpop.f32.mrf.mxu0
    %v4289 = vadd.f32 %v4080, %v4288
    %4290 = vmatmul.f32.gmra.mxu0 %v2756
    %v4291 = vpop.f32.mrf.mxu0
    %v4292 = vadd.f32 %v4083, %v4291
    %4293 = vmatmul.f32.gmra.mxu0 %v2765
    %v4294 = vpop.f32.mrf.mxu0
    %v4295 = vadd.f32 %v4086, %v4294
    %4296 = vmatmul.f32.gmra.mxu0 %v2774
    %v4297 = vpop.f32.mrf.mxu0
    %v4298 = vadd.f32 %v4089, %v4297
    %4299 = vmatmul.f32.gmra.mxu0 %v2783
    %v4300 = vpop.f32.mrf.mxu0
    %v4301 = vadd.f32 %v4092, %v4300
    %4302 = vmatmul.f32.gmra.mxu0 %v2792
    %v4303 = vpop.f32.mrf.mxu0
    %v4304 = vadd.f32 %v4095, %v4303
    %4305 = vmatmul.f32.gmra.mxu0 %v2801
    %v4306 = vpop.f32.mrf.mxu0
    %v4307 = vadd.f32 %v4098, %v4306
    %4308 = vmatmul.f32.gmra.mxu0 %v2810
    %v4309 = vpop.f32.mrf.mxu0
    %v4310 = vadd.f32 %v4101, %v4309
    %4311 = vmatmul.f32.gmra.mxu0 %v2819
    %v4312 = vpop.f32.mrf.mxu0
    %v4313 = vadd.f32 %v4104, %v4312
    %4314 = vmatmul.f32.gmra.mxu0 %v2828
    %v4315 = vpop.f32.mrf.mxu0
    %v4316 = vadd.f32 %v4107, %v4315
    %4317 = vmatmul.f32.gmra.mxu0 %v2837
    %v4318 = vpop.f32.mrf.mxu0
    %v4319 = vadd.f32 %v4110, %v4318
    %4320 = vmatmul.f32.gmra.mxu0 %v2846
    %v4321 = vpop.f32.mrf.mxu0
    %v4322 = vadd.f32 %v4113, %v4321
    %4323 = vmatmul.f32.gmra.mxu0 %v2855
    %v4324 = vpop.f32.mrf.mxu0
    %v4325 = vadd.f32 %v4116, %v4324
    %4326 = vmatmul.f32.gmra.mxu0 %v2864
    %v4327 = vpop.f32.mrf.mxu0
    %v4328 = vadd.f32 %v4119, %v4327
    %4329 = vmatmul.f32.gmra.mxu0 %v2873
    %v4330 = vpop.f32.mrf.mxu0
    %v4331 = vadd.f32 %v4122, %v4330
    %4332 = vmatmul.f32.gmra.mxu0 %v2882
    %v4333 = vpop.f32.mrf.mxu0
    %v4334 = vadd.f32 %v4125, %v4333
    %4335 = vmatmul.f32.gmra.mxu0 %v2891
    %v4336 = vpop.f32.mrf.mxu0
    %v4337 = vadd.f32 %v4128, %v4336
    %4338 = vmatmul.f32.gmra.mxu0 %v2900
    %v4339 = vpop.f32.mrf.mxu0
    %v4340 = vadd.f32 %v4131, %v4339
    %4341 = vmatmul.f32.gmra.mxu0 %v2909
    %v4342 = vpop.f32.mrf.mxu0
    %v4343 = vadd.f32 %v4134, %v4342
    %4344 = vmatmul.f32.gmra.mxu0 %v2918
    %v4345 = vpop.f32.mrf.mxu0
    %v4346 = vadd.f32 %v4137, %v4345
    %4347 = vmatmul.f32.gmra.mxu0 %v2927
    %v4348 = vpop.f32.mrf.mxu0
    %v4349 = vadd.f32 %v4140, %v4348
    %4350 = vmatmul.f32.gmra.mxu0 %v2936
    %v4351 = vpop.f32.mrf.mxu0
    %v4352 = vadd.f32 %v4143, %v4351
    %4353 = vmatmul.f32.gmra.mxu0 %v2945
    %v4354 = vpop.f32.mrf.mxu0
    %v4355 = vadd.f32 %v4146, %v4354
    %4356 = vmatmul.f32.gmra.mxu0 %v2954
    %v4357 = vpop.f32.mrf.mxu0
    %v4358 = vadd.f32 %v4149, %v4357
    %4359 = vdwg.mxu0
    %4360 = vmatpush.msra.mxu0 %v3069
    %4361 = vmatpush.msra.mxu0 %v3068
    %4362 = vmatpush.msra.mxu0 %v3067
    %4363 = vmatpush.msra.mxu0 %v3066
    %4364 = vmatpush.msra.mxu0 %v3065
    %4365 = vmatpush.msra.mxu0 %v3064
    %4366 = vmatpush.msra.mxu0 %v3063
    %4367 = vmatpush.msra.mxu0 %v3062
    %4368 = vmatpush.msra.mxu0 %v3061
    %4369 = vmatpush.msra.mxu0 %v3060
    %4370 = vmatpush.msra.mxu0 %v3059
    %4371 = vmatpush.msra.mxu0 %v3058
    %4372 = vmatpush.msra.mxu0 %v3057
    %4373 = vmatpush.msra.mxu0 %v3056
    %4374 = vmatpush.msra.mxu0 %v3055
    %4375 = vmatpush.msra.mxu0 %v3054
    %4376 = vmatmul.f32.gmra.mxu0 %v2388
    %v4377 = vpop.f32.mrf.mxu0
    %v4378 = vadd.f32 %v4169, %v4377
    %4379 = vmatmul.f32.gmra.mxu0 %v2397
    %v4380 = vpop.f32.mrf.mxu0
    %v4381 = vadd.f32 %v4172, %v4380
    %4382 = vmatmul.f32.gmra.mxu0 %v2406
    %v4383 = vpop.f32.mrf.mxu0
    %v4384 = vadd.f32 %v4175, %v4383
    %4385 = vmatmul.f32.gmra.mxu0 %v2415
    %v4386 = vpop.f32.mrf.mxu0
    %v4387 = vadd.f32 %v4178, %v4386
    %4388 = vmatmul.f32.gmra.mxu0 %v2424
    %v4389 = vpop.f32.mrf.mxu0
    %v4390 = vadd.f32 %v4181, %v4389
    %4391 = vmatmul.f32.gmra.mxu0 %v2433
    %v4392 = vpop.f32.mrf.mxu0
    %v4393 = vadd.f32 %v4184, %v4392
    %4394 = vmatmul.f32.gmra.mxu0 %v2442
    %v4395 = vpop.f32.mrf.mxu0
    %v4396 = vadd.f32 %v4187, %v4395
    %4397 = vmatmul.f32.gmra.mxu0 %v2451
    %v4398 = vpop.f32.mrf.mxu0
    %v4399 = vadd.f32 %v4190, %v4398
    %4400 = vmatmul.f32.gmra.mxu0 %v2460
    %v4401 = vpop.f32.mrf.mxu0
    %v4402 = vadd.f32 %v4193, %v4401
    %4403 = vmatmul.f32.gmra.mxu0 %v2469
    %v4404 = vpop.f32.mrf.mxu0
    %v4405 = vadd.f32 %v4196, %v4404
    %4406 = vmatmul.f32.gmra.mxu0 %v2478
    %v4407 = vpop.f32.mrf.mxu0
    %v4408 = vadd.f32 %v4199, %v4407
    %4409 = vmatmul.f32.gmra.mxu0 %v2487
    %v4410 = vpop.f32.mrf.mxu0
    %v4411 = vadd.f32 %v4202, %v4410
    %4412 = vmatmul.f32.gmra.mxu0 %v2496
    %v4413 = vpop.f32.mrf.mxu0
    %v4414 = vadd.f32 %v4205, %v4413
    %4415 = vmatmul.f32.gmra.mxu0 %v2505
    %v4416 = vpop.f32.mrf.mxu0
    %v4417 = vadd.f32 %v4208, %v4416
    %4418 = vmatmul.f32.gmra.mxu0 %v2514
    %v4419 = vpop.f32.mrf.mxu0
    %v4420 = vadd.f32 %v4211, %v4419
    %4421 = vmatmul.f32.gmra.mxu0 %v2523
    %v4422 = vpop.f32.mrf.mxu0
    %v4423 = vadd.f32 %v4214, %v4422
    %4424 = vmatmul.f32.gmra.mxu0 %v2532
    %v4425 = vpop.f32.mrf.mxu0
    %v4426 = vadd.f32 %v4217, %v4425
    %4427 = vmatmul.f32.gmra.mxu0 %v2541
    %v4428 = vpop.f32.mrf.mxu0
    %v4429 = vadd.f32 %v4220, %v4428
    %4430 = vmatmul.f32.gmra.mxu0 %v2550
    %v4431 = vpop.f32.mrf.mxu0
    %v4432 = vadd.f32 %v4223, %v4431
    %4433 = vmatmul.f32.gmra.mxu0 %v2559
    %v4434 = vpop.f32.mrf.mxu0
    %v4435 = vadd.f32 %v4226, %v4434
    %4436 = vmatmul.f32.gmra.mxu0 %v2568
    %v4437 = vpop.f32.mrf.mxu0
    %v4438 = vadd.f32 %v4229, %v4437
    %4439 = vmatmul.f32.gmra.mxu0 %v2577
    %v4440 = vpop.f32.mrf.mxu0
    %v4441 = vadd.f32 %v4232, %v4440
    %4442 = vmatmul.f32.gmra.mxu0 %v2586
    %v4443 = vpop.f32.mrf.mxu0
    %v4444 = vadd.f32 %v4235, %v4443
    %4445 = vmatmul.f32.gmra.mxu0 %v2595
    %v4446 = vpop.f32.mrf.mxu0
    %v4447 = vadd.f32 %v4238, %v4446
    %4448 = vmatmul.f32.gmra.mxu0 %v2604
    %v4449 = vpop.f32.mrf.mxu0
    %v4450 = vadd.f32 %v4241, %v4449
    %4451 = vmatmul.f32.gmra.mxu0 %v2613
    %v4452 = vpop.f32.mrf.mxu0
    %v4453 = vadd.f32 %v4244, %v4452
    %4454 = vmatmul.f32.gmra.mxu0 %v2622
    %v4455 = vpop.f32.mrf.mxu0
    %v4456 = vadd.f32 %v4247, %v4455
    %4457 = vmatmul.f32.gmra.mxu0 %v2631
    %v4458 = vpop.f32.mrf.mxu0
    %v4459 = vadd.f32 %v4250, %v4458
    %4460 = vmatmul.f32.gmra.mxu0 %v2640
    %v4461 = vpop.f32.mrf.mxu0
    %v4462 = vadd.f32 %v4253, %v4461
    %4463 = vmatmul.f32.gmra.mxu0 %v2649
    %v4464 = vpop.f32.mrf.mxu0
    %v4465 = vadd.f32 %v4256, %v4464
    %4466 = vmatmul.f32.gmra.mxu0 %v2658
    %v4467 = vpop.f32.mrf.mxu0
    %v4468 = vadd.f32 %v4259, %v4467
    %4469 = vmatmul.f32.gmra.mxu0 %v2667
    %v4470 = vpop.f32.mrf.mxu0
    %v4471 = vadd.f32 %v4262, %v4470
    %4472 = vmatmul.f32.gmra.mxu0 %v2676
    %v4473 = vpop.f32.mrf.mxu0
    %v4474 = vadd.f32 %v4265, %v4473
    %4475 = vmatmul.f32.gmra.mxu0 %v2685
    %v4476 = vpop.f32.mrf.mxu0
    %v4477 = vadd.f32 %v4268, %v4476
    %4478 = vmatmul.f32.gmra.mxu0 %v2694
    %v4479 = vpop.f32.mrf.mxu0
    %v4480 = vadd.f32 %v4271, %v4479
    %4481 = vmatmul.f32.gmra.mxu0 %v2703
    %v4482 = vpop.f32.mrf.mxu0
    %v4483 = vadd.f32 %v4274, %v4482
    %4484 = vmatmul.f32.gmra.mxu0 %v2712
    %v4485 = vpop.f32.mrf.mxu0
    %v4486 = vadd.f32 %v4277, %v4485
    %4487 = vmatmul.f32.gmra.mxu0 %v2721
    %v4488 = vpop.f32.mrf.mxu0
    %v4489 = vadd.f32 %v4280, %v4488
    %4490 = vmatmul.f32.gmra.mxu0 %v2730
    %v4491 = vpop.f32.mrf.mxu0
    %v4492 = vadd.f32 %v4283, %v4491
    %4493 = vmatmul.f32.gmra.mxu0 %v2739
    %v4494 = vpop.f32.mrf.mxu0
    %v4495 = vadd.f32 %v4286, %v4494
    %4496 = vmatmul.f32.gmra.mxu0 %v2748
    %v4497 = vpop.f32.mrf.mxu0
    %v4498 = vadd.f32 %v4289, %v4497
    %4499 = vmatmul.f32.gmra.mxu0 %v2757
    %v4500 = vpop.f32.mrf.mxu0
    %v4501 = vadd.f32 %v4292, %v4500
    %4502 = vmatmul.f32.gmra.mxu0 %v2766
    %v4503 = vpop.f32.mrf.mxu0
    %v4504 = vadd.f32 %v4295, %v4503
    %4505 = vmatmul.f32.gmra.mxu0 %v2775
    %v4506 = vpop.f32.mrf.mxu0
    %v4507 = vadd.f32 %v4298, %v4506
    %4508 = vmatmul.f32.gmra.mxu0 %v2784
    %v4509 = vpop.f32.mrf.mxu0
    %v4510 = vadd.f32 %v4301, %v4509
    %4511 = vmatmul.f32.gmra.mxu0 %v2793
    %v4512 = vpop.f32.mrf.mxu0
    %v4513 = vadd.f32 %v4304, %v4512
    %4514 = vmatmul.f32.gmra.mxu0 %v2802
    %v4515 = vpop.f32.mrf.mxu0
    %v4516 = vadd.f32 %v4307, %v4515
    %4517 = vmatmul.f32.gmra.mxu0 %v2811
    %v4518 = vpop.f32.mrf.mxu0
    %v4519 = vadd.f32 %v4310, %v4518
    %4520 = vmatmul.f32.gmra.mxu0 %v2820
    %v4521 = vpop.f32.mrf.mxu0
    %v4522 = vadd.f32 %v4313, %v4521
    %4523 = vmatmul.f32.gmra.mxu0 %v2829
    %v4524 = vpop.f32.mrf.mxu0
    %v4525 = vadd.f32 %v4316, %v4524
    %4526 = vmatmul.f32.gmra.mxu0 %v2838
    %v4527 = vpop.f32.mrf.mxu0
    %v4528 = vadd.f32 %v4319, %v4527
    %4529 = vmatmul.f32.gmra.mxu0 %v2847
    %v4530 = vpop.f32.mrf.mxu0
    %v4531 = vadd.f32 %v4322, %v4530
    %4532 = vmatmul.f32.gmra.mxu0 %v2856
    %v4533 = vpop.f32.mrf.mxu0
    %v4534 = vadd.f32 %v4325, %v4533
    %4535 = vmatmul.f32.gmra.mxu0 %v2865
    %v4536 = vpop.f32.mrf.mxu0
    %v4537 = vadd.f32 %v4328, %v4536
    %4538 = vmatmul.f32.gmra.mxu0 %v2874
    %v4539 = vpop.f32.mrf.mxu0
    %v4540 = vadd.f32 %v4331, %v4539
    %4541 = vmatmul.f32.gmra.mxu0 %v2883
    %v4542 = vpop.f32.mrf.mxu0
    %v4543 = vadd.f32 %v4334, %v4542
    %4544 = vmatmul.f32.gmra.mxu0 %v2892
    %v4545 = vpop.f32.mrf.mxu0
    %v4546 = vadd.f32 %v4337, %v4545
    %4547 = vmatmul.f32.gmra.mxu0 %v2901
    %v4548 = vpop.f32.mrf.mxu0
    %v4549 = vadd.f32 %v4340, %v4548
    %4550 = vmatmul.f32.gmra.mxu0 %v2910
    %v4551 = vpop.f32.mrf.mxu0
    %v4552 = vadd.f32 %v4343, %v4551
    %4553 = vmatmul.f32.gmra.mxu0 %v2919
    %v4554 = vpop.f32.mrf.mxu0
    %v4555 = vadd.f32 %v4346, %v4554
    %4556 = vmatmul.f32.gmra.mxu0 %v2928
    %v4557 = vpop.f32.mrf.mxu0
    %v4558 = vadd.f32 %v4349, %v4557
    %4559 = vmatmul.f32.gmra.mxu0 %v2937
    %v4560 = vpop.f32.mrf.mxu0
    %v4561 = vadd.f32 %v4352, %v4560
    %4562 = vmatmul.f32.gmra.mxu0 %v2946
    %v4563 = vpop.f32.mrf.mxu0
    %v4564 = vadd.f32 %v4355, %v4563
    %4565 = vmatmul.f32.gmra.mxu0 %v2955
    %v4566 = vpop.f32.mrf.mxu0
    %v4567 = vadd.f32 %v4358, %v4566
    %4568 = vdwg.mxu0
    %4569 = vmatpush.msra.mxu0 %v3085
    %4570 = vmatpush.msra.mxu0 %v3084
    %4571 = vmatpush.msra.mxu0 %v3083
    %4572 = vmatpush.msra.mxu0 %v3082
    %4573 = vmatpush.msra.mxu0 %v3081
    %4574 = vmatpush.msra.mxu0 %v3080
    %4575 = vmatpush.msra.mxu0 %v3079
    %4576 = vmatpush.msra.mxu0 %v3078
    %4577 = vmatpush.msra.mxu0 %v3077
    %4578 = vmatpush.msra.mxu0 %v3076
    %4579 = vmatpush.msra.mxu0 %v3075
    %4580 = vmatpush.msra.mxu0 %v3074
    %4581 = vmatpush.msra.mxu0 %v3073
    %4582 = vmatpush.msra.mxu0 %v3072
    %4583 = vmatpush.msra.mxu0 %v3071
    %4584 = vmatpush.msra.mxu0 %v3070
    %4585 = vmatmul.f32.gmra.mxu0 %v2389
    %v4586 = vpop.f32.mrf.mxu0
    %v4587 = vadd.f32 %v4378, %v4586
    %4588 = vmatmul.f32.gmra.mxu0 %v2398
    %v4589 = vpop.f32.mrf.mxu0
    %v4590 = vadd.f32 %v4381, %v4589
    %4591 = vmatmul.f32.gmra.mxu0 %v2407
    %v4592 = vpop.f32.mrf.mxu0
    %v4593 = vadd.f32 %v4384, %v4592
    %4594 = vmatmul.f32.gmra.mxu0 %v2416
    %v4595 = vpop.f32.mrf.mxu0
    %v4596 = vadd.f32 %v4387, %v4595
    %4597 = vmatmul.f32.gmra.mxu0 %v2425
    %v4598 = vpop.f32.mrf.mxu0
    %v4599 = vadd.f32 %v4390, %v4598
    %4600 = vmatmul.f32.gmra.mxu0 %v2434
    %v4601 = vpop.f32.mrf.mxu0
    %v4602 = vadd.f32 %v4393, %v4601
    %4603 = vmatmul.f32.gmra.mxu0 %v2443
    %v4604 = vpop.f32.mrf.mxu0
    %v4605 = vadd.f32 %v4396, %v4604
    %4606 = vmatmul.f32.gmra.mxu0 %v2452
    %v4607 = vpop.f32.mrf.mxu0
    %v4608 = vadd.f32 %v4399, %v4607
    %4609 = vmatmul.f32.gmra.mxu0 %v2461
    %v4610 = vpop.f32.mrf.mxu0
    %v4611 = vadd.f32 %v4402, %v4610
    %4612 = vmatmul.f32.gmra.mxu0 %v2470
    %v4613 = vpop.f32.mrf.mxu0
    %v4614 = vadd.f32 %v4405, %v4613
    %4615 = vmatmul.f32.gmra.mxu0 %v2479
    %v4616 = vpop.f32.mrf.mxu0
    %v4617 = vadd.f32 %v4408, %v4616
    %4618 = vmatmul.f32.gmra.mxu0 %v2488
    %v4619 = vpop.f32.mrf.mxu0
    %v4620 = vadd.f32 %v4411, %v4619
    %4621 = vmatmul.f32.gmra.mxu0 %v2497
    %v4622 = vpop.f32.mrf.mxu0
    %v4623 = vadd.f32 %v4414, %v4622
    %4624 = vmatmul.f32.gmra.mxu0 %v2506
    %v4625 = vpop.f32.mrf.mxu0
    %v4626 = vadd.f32 %v4417, %v4625
    %4627 = vmatmul.f32.gmra.mxu0 %v2515
    %v4628 = vpop.f32.mrf.mxu0
    %v4629 = vadd.f32 %v4420, %v4628
    %4630 = vmatmul.f32.gmra.mxu0 %v2524
    %v4631 = vpop.f32.mrf.mxu0
    %v4632 = vadd.f32 %v4423, %v4631
    %4633 = vmatmul.f32.gmra.mxu0 %v2533
    %v4634 = vpop.f32.mrf.mxu0
    %v4635 = vadd.f32 %v4426, %v4634
    %4636 = vmatmul.f32.gmra.mxu0 %v2542
    %v4637 = vpop.f32.mrf.mxu0
    %v4638 = vadd.f32 %v4429, %v4637
    %4639 = vmatmul.f32.gmra.mxu0 %v2551
    %v4640 = vpop.f32.mrf.mxu0
    %v4641 = vadd.f32 %v4432, %v4640
    %4642 = vmatmul.f32.gmra.mxu0 %v2560
    %v4643 = vpop.f32.mrf.mxu0
    %v4644 = vadd.f32 %v4435, %v4643
    %4645 = vmatmul.f32.gmra.mxu0 %v2569
    %v4646 = vpop.f32.mrf.mxu0
    %v4647 = vadd.f32 %v4438, %v4646
    %4648 = vmatmul.f32.gmra.mxu0 %v2578
    %v4649 = vpop.f32.mrf.mxu0
    %v4650 = vadd.f32 %v4441, %v4649
    %4651 = vmatmul.f32.gmra.mxu0 %v2587
    %v4652 = vpop.f32.mrf.mxu0
    %v4653 = vadd.f32 %v4444, %v4652
    %4654 = vmatmul.f32.gmra.mxu0 %v2596
    %v4655 = vpop.f32.mrf.mxu0
    %v4656 = vadd.f32 %v4447, %v4655
    %4657 = vmatmul.f32.gmra.mxu0 %v2605
    %v4658 = vpop.f32.mrf.mxu0
    %v4659 = vadd.f32 %v4450, %v4658
    %4660 = vmatmul.f32.gmra.mxu0 %v2614
    %v4661 = vpop.f32.mrf.mxu0
    %v4662 = vadd.f32 %v4453, %v4661
    %4663 = vmatmul.f32.gmra.mxu0 %v2623
    %v4664 = vpop.f32.mrf.mxu0
    %v4665 = vadd.f32 %v4456, %v4664
    %4666 = vmatmul.f32.gmra.mxu0 %v2632
    %v4667 = vpop.f32.mrf.mxu0
    %v4668 = vadd.f32 %v4459, %v4667
    %4669 = vmatmul.f32.gmra.mxu0 %v2641
    %v4670 = vpop.f32.mrf.mxu0
    %v4671 = vadd.f32 %v4462, %v4670
    %4672 = vmatmul.f32.gmra.mxu0 %v2650
    %v4673 = vpop.f32.mrf.mxu0
    %v4674 = vadd.f32 %v4465, %v4673
    %4675 = vmatmul.f32.gmra.mxu0 %v2659
    %v4676 = vpop.f32.mrf.mxu0
    %v4677 = vadd.f32 %v4468, %v4676
    %4678 = vmatmul.f32.gmra.mxu0 %v2668
    %v4679 = vpop.f32.mrf.mxu0
    %v4680 = vadd.f32 %v4471, %v4679
    %4681 = vmatmul.f32.gmra.mxu0 %v2677
    %v4682 = vpop.f32.mrf.mxu0
    %v4683 = vadd.f32 %v4474, %v4682
    %4684 = vmatmul.f32.gmra.mxu0 %v2686
    %v4685 = vpop.f32.mrf.mxu0
    %v4686 = vadd.f32 %v4477, %v4685
    %4687 = vmatmul.f32.gmra.mxu0 %v2695
    %v4688 = vpop.f32.mrf.mxu0
    %v4689 = vadd.f32 %v4480, %v4688
    %4690 = vmatmul.f32.gmra.mxu0 %v2704
    %v4691 = vpop.f32.mrf.mxu0
    %v4692 = vadd.f32 %v4483, %v4691
    %4693 = vmatmul.f32.gmra.mxu0 %v2713
    %v4694 = vpop.f32.mrf.mxu0
    %v4695 = vadd.f32 %v4486, %v4694
    %4696 = vmatmul.f32.gmra.mxu0 %v2722
    %v4697 = vpop.f32.mrf.mxu0
    %v4698 = vadd.f32 %v4489, %v4697
    %4699 = vmatmul.f32.gmra.mxu0 %v2731
    %v4700 = vpop.f32.mrf.mxu0
    %v4701 = vadd.f32 %v4492, %v4700
    %4702 = vmatmul.f32.gmra.mxu0 %v2740
    %v4703 = vpop.f32.mrf.mxu0
    %v4704 = vadd.f32 %v4495, %v4703
    %4705 = vmatmul.f32.gmra.mxu0 %v2749
    %v4706 = vpop.f32.mrf.mxu0
    %v4707 = vadd.f32 %v4498, %v4706
    %4708 = vmatmul.f32.gmra.mxu0 %v2758
    %v4709 = vpop.f32.mrf.mxu0
    %v4710 = vadd.f32 %v4501, %v4709
    %4711 = vmatmul.f32.gmra.mxu0 %v2767
    %v4712 = vpop.f32.mrf.mxu0
    %v4713 = vadd.f32 %v4504, %v4712
    %4714 = vmatmul.f32.gmra.mxu0 %v2776
    %v4715 = vpop.f32.mrf.mxu0
    %v4716 = vadd.f32 %v4507, %v4715
    %4717 = vmatmul.f32.gmra.mxu0 %v2785
    %v4718 = vpop.f32.mrf.mxu0
    %v4719 = vadd.f32 %v4510, %v4718
    %4720 = vmatmul.f32.gmra.mxu0 %v2794
    %v4721 = vpop.f32.mrf.mxu0
    %v4722 = vadd.f32 %v4513, %v4721
    %4723 = vmatmul.f32.gmra.mxu0 %v2803
    %v4724 = vpop.f32.mrf.mxu0
    %v4725 = vadd.f32 %v4516, %v4724
    %4726 = vmatmul.f32.gmra.mxu0 %v2812
    %v4727 = vpop.f32.mrf.mxu0
    %v4728 = vadd.f32 %v4519, %v4727
    %4729 = vmatmul.f32.gmra.mxu0 %v2821
    %v4730 = vpop.f32.mrf.mxu0
    %v4731 = vadd.f32 %v4522, %v4730
    %4732 = vmatmul.f32.gmra.mxu0 %v2830
    %v4733 = vpop.f32.mrf.mxu0
    %v4734 = vadd.f32 %v4525, %v4733
    %4735 = vmatmul.f32.gmra.mxu0 %v2839
    %v4736 = vpop.f32.mrf.mxu0
    %v4737 = vadd.f32 %v4528, %v4736
    %4738 = vmatmul.f32.gmra.mxu0 %v2848
    %v4739 = vpop.f32.mrf.mxu0
    %v4740 = vadd.f32 %v4531, %v4739
    %4741 = vmatmul.f32.gmra.mxu0 %v2857
    %v4742 = vpop.f32.mrf.mxu0
    %v4743 = vadd.f32 %v4534, %v4742
    %4744 = vmatmul.f32.gmra.mxu0 %v2866
    %v4745 = vpop.f32.mrf.mxu0
    %v4746 = vadd.f32 %v4537, %v4745
    %4747 = vmatmul.f32.gmra.mxu0 %v2875
    %v4748 = vpop.f32.mrf.mxu0
    %v4749 = vadd.f32 %v4540, %v4748
    %4750 = vmatmul.f32.gmra.mxu0 %v2884
    %v4751 = vpop.f32.mrf.mxu0
    %v4752 = vadd.f32 %v4543, %v4751
    %4753 = vmatmul.f32.gmra.mxu0 %v2893
    %v4754 = vpop.f32.mrf.mxu0
    %v4755 = vadd.f32 %v4546, %v4754
    %4756 = vmatmul.f32.gmra.mxu0 %v2902
    %v4757 = vpop.f32.mrf.mxu0
    %v4758 = vadd.f32 %v4549, %v4757
    %4759 = vmatmul.f32.gmra.mxu0 %v2911
    %v4760 = vpop.f32.mrf.mxu0
    %v4761 = vadd.f32 %v4552, %v4760
    %4762 = vmatmul.f32.gmra.mxu0 %v2920
    %v4763 = vpop.f32.mrf.mxu0
    %v4764 = vadd.f32 %v4555, %v4763
    %4765 = vmatmul.f32.gmra.mxu0 %v2929
    %v4766 = vpop.f32.mrf.mxu0
    %v4767 = vadd.f32 %v4558, %v4766
    %4768 = vmatmul.f32.gmra.mxu0 %v2938
    %v4769 = vpop.f32.mrf.mxu0
    %v4770 = vadd.f32 %v4561, %v4769
    %4771 = vmatmul.f32.gmra.mxu0 %v2947
    %v4772 = vpop.f32.mrf.mxu0
    %v4773 = vadd.f32 %v4564, %v4772
    %4774 = vmatmul.f32.gmra.mxu0 %v2956
    %v4775 = vpop.f32.mrf.mxu0
    %v4776 = vadd.f32 %v4567, %v4775
    %4777 = vdwg.mxu0
    %4778 = vmatpush.msra.mxu0 %v3101
    %4779 = vmatpush.msra.mxu0 %v3100
    %4780 = vmatpush.msra.mxu0 %v3099
    %4781 = vmatpush.msra.mxu0 %v3098
    %4782 = vmatpush.msra.mxu0 %v3097
    %4783 = vmatpush.msra.mxu0 %v3096
    %4784 = vmatpush.msra.mxu0 %v3095
    %4785 = vmatpush.msra.mxu0 %v3094
    %4786 = vmatpush.msra.mxu0 %v3093
    %4787 = vmatpush.msra.mxu0 %v3092
    %4788 = vmatpush.msra.mxu0 %v3091
    %4789 = vmatpush.msra.mxu0 %v3090
    %4790 = vmatpush.msra.mxu0 %v3089
    %4791 = vmatpush.msra.mxu0 %v3088
    %4792 = vmatpush.msra.mxu0 %v3087
    %4793 = vmatpush.msra.mxu0 %v3086
    %4794 = vmatmul.f32.gmra.mxu0 %v2390
    %v4795 = vpop.f32.mrf.mxu0
    %v4796 = vadd.f32 %v4587, %v4795
    %4797 = vmatmul.f32.gmra.mxu0 %v2399
    %v4798 = vpop.f32.mrf.mxu0
    %v4799 = vadd.f32 %v4590, %v4798
    %4800 = vmatmul.f32.gmra.mxu0 %v2408
    %v4801 = vpop.f32.mrf.mxu0
    %v4802 = vadd.f32 %v4593, %v4801
    %4803 = vmatmul.f32.gmra.mxu0 %v2417
    %v4804 = vpop.f32.mrf.mxu0
    %v4805 = vadd.f32 %v4596, %v4804
    %4806 = vmatmul.f32.gmra.mxu0 %v2426
    %v4807 = vpop.f32.mrf.mxu0
    %v4808 = vadd.f32 %v4599, %v4807
    %4809 = vmatmul.f32.gmra.mxu0 %v2435
    %v4810 = vpop.f32.mrf.mxu0
    %v4811 = vadd.f32 %v4602, %v4810
    %4812 = vmatmul.f32.gmra.mxu0 %v2444
    %v4813 = vpop.f32.mrf.mxu0
    %v4814 = vadd.f32 %v4605, %v4813
    %4815 = vmatmul.f32.gmra.mxu0 %v2453
    %v4816 = vpop.f32.mrf.mxu0
    %v4817 = vadd.f32 %v4608, %v4816
    %4818 = vmatmul.f32.gmra.mxu0 %v2462
    %v4819 = vpop.f32.mrf.mxu0
    %v4820 = vadd.f32 %v4611, %v4819
    %4821 = vmatmul.f32.gmra.mxu0 %v2471
    %v4822 = vpop.f32.mrf.mxu0
    %v4823 = vadd.f32 %v4614, %v4822
    %4824 = vmatmul.f32.gmra.mxu0 %v2480
    %v4825 = vpop.f32.mrf.mxu0
    %v4826 = vadd.f32 %v4617, %v4825
    %4827 = vmatmul.f32.gmra.mxu0 %v2489
    %v4828 = vpop.f32.mrf.mxu0
    %v4829 = vadd.f32 %v4620, %v4828
    %4830 = vmatmul.f32.gmra.mxu0 %v2498
    %v4831 = vpop.f32.mrf.mxu0
    %v4832 = vadd.f32 %v4623, %v4831
    %4833 = vmatmul.f32.gmra.mxu0 %v2507
    %v4834 = vpop.f32.mrf.mxu0
    %v4835 = vadd.f32 %v4626, %v4834
    %4836 = vmatmul.f32.gmra.mxu0 %v2516
    %v4837 = vpop.f32.mrf.mxu0
    %v4838 = vadd.f32 %v4629, %v4837
    %4839 = vmatmul.f32.gmra.mxu0 %v2525
    %v4840 = vpop.f32.mrf.mxu0
    %v4841 = vadd.f32 %v4632, %v4840
    %4842 = vmatmul.f32.gmra.mxu0 %v2534
    %v4843 = vpop.f32.mrf.mxu0
    %v4844 = vadd.f32 %v4635, %v4843
    %4845 = vmatmul.f32.gmra.mxu0 %v2543
    %v4846 = vpop.f32.mrf.mxu0
    %v4847 = vadd.f32 %v4638, %v4846
    %4848 = vmatmul.f32.gmra.mxu0 %v2552
    %v4849 = vpop.f32.mrf.mxu0
    %v4850 = vadd.f32 %v4641, %v4849
    %4851 = vmatmul.f32.gmra.mxu0 %v2561
    %v4852 = vpop.f32.mrf.mxu0
    %v4853 = vadd.f32 %v4644, %v4852
    %4854 = vmatmul.f32.gmra.mxu0 %v2570
    %v4855 = vpop.f32.mrf.mxu0
    %v4856 = vadd.f32 %v4647, %v4855
    %4857 = vmatmul.f32.gmra.mxu0 %v2579
    %v4858 = vpop.f32.mrf.mxu0
    %v4859 = vadd.f32 %v4650, %v4858
    %4860 = vmatmul.f32.gmra.mxu0 %v2588
    %v4861 = vpop.f32.mrf.mxu0
    %v4862 = vadd.f32 %v4653, %v4861
    %4863 = vmatmul.f32.gmra.mxu0 %v2597
    %v4864 = vpop.f32.mrf.mxu0
    %v4865 = vadd.f32 %v4656, %v4864
    %4866 = vmatmul.f32.gmra.mxu0 %v2606
    %v4867 = vpop.f32.mrf.mxu0
    %v4868 = vadd.f32 %v4659, %v4867
    %4869 = vmatmul.f32.gmra.mxu0 %v2615
    %v4870 = vpop.f32.mrf.mxu0
    %v4871 = vadd.f32 %v4662, %v4870
    %4872 = vmatmul.f32.gmra.mxu0 %v2624
    %v4873 = vpop.f32.mrf.mxu0
    %v4874 = vadd.f32 %v4665, %v4873
    %4875 = vmatmul.f32.gmra.mxu0 %v2633
    %v4876 = vpop.f32.mrf.mxu0
    %v4877 = vadd.f32 %v4668, %v4876
    %4878 = vmatmul.f32.gmra.mxu0 %v2642
    %v4879 = vpop.f32.mrf.mxu0
    %v4880 = vadd.f32 %v4671, %v4879
    %4881 = vmatmul.f32.gmra.mxu0 %v2651
    %v4882 = vpop.f32.mrf.mxu0
    %v4883 = vadd.f32 %v4674, %v4882
    %4884 = vmatmul.f32.gmra.mxu0 %v2660
    %v4885 = vpop.f32.mrf.mxu0
    %v4886 = vadd.f32 %v4677, %v4885
    %4887 = vmatmul.f32.gmra.mxu0 %v2669
    %v4888 = vpop.f32.mrf.mxu0
    %v4889 = vadd.f32 %v4680, %v4888
    %4890 = vmatmul.f32.gmra.mxu0 %v2678
    %v4891 = vpop.f32.mrf.mxu0
    %v4892 = vadd.f32 %v4683, %v4891
    %4893 = vmatmul.f32.gmra.mxu0 %v2687
    %v4894 = vpop.f32.mrf.mxu0
    %v4895 = vadd.f32 %v4686, %v4894
    %4896 = vmatmul.f32.gmra.mxu0 %v2696
    %v4897 = vpop.f32.mrf.mxu0
    %v4898 = vadd.f32 %v4689, %v4897
    %4899 = vmatmul.f32.gmra.mxu0 %v2705
    %v4900 = vpop.f32.mrf.mxu0
    %v4901 = vadd.f32 %v4692, %v4900
    %4902 = vmatmul.f32.gmra.mxu0 %v2714
    %v4903 = vpop.f32.mrf.mxu0
    %v4904 = vadd.f32 %v4695, %v4903
    %4905 = vmatmul.f32.gmra.mxu0 %v2723
    %v4906 = vpop.f32.mrf.mxu0
    %v4907 = vadd.f32 %v4698, %v4906
    %4908 = vmatmul.f32.gmra.mxu0 %v2732
    %v4909 = vpop.f32.mrf.mxu0
    %v4910 = vadd.f32 %v4701, %v4909
    %4911 = vmatmul.f32.gmra.mxu0 %v2741
    %v4912 = vpop.f32.mrf.mxu0
    %v4913 = vadd.f32 %v4704, %v4912
    %4914 = vmatmul.f32.gmra.mxu0 %v2750
    %v4915 = vpop.f32.mrf.mxu0
    %v4916 = vadd.f32 %v4707, %v4915
    %4917 = vmatmul.f32.gmra.mxu0 %v2759
    %v4918 = vpop.f32.mrf.mxu0
    %v4919 = vadd.f32 %v4710, %v4918
    %4920 = vmatmul.f32.gmra.mxu0 %v2768
    %v4921 = vpop.f32.mrf.mxu0
    %v4922 = vadd.f32 %v4713, %v4921
    %4923 = vmatmul.f32.gmra.mxu0 %v2777
    %v4924 = vpop.f32.mrf.mxu0
    %v4925 = vadd.f32 %v4716, %v4924
    %4926 = vmatmul.f32.gmra.mxu0 %v2786
    %v4927 = vpop.f32.mrf.mxu0
    %v4928 = vadd.f32 %v4719, %v4927
    %4929 = vmatmul.f32.gmra.mxu0 %v2795
    %v4930 = vpop.f32.mrf.mxu0
    %v4931 = vadd.f32 %v4722, %v4930
    %4932 = vmatmul.f32.gmra.mxu0 %v2804
    %v4933 = vpop.f32.mrf.mxu0
    %v4934 = vadd.f32 %v4725, %v4933
    %4935 = vmatmul.f32.gmra.mxu0 %v2813
    %v4936 = vpop.f32.mrf.mxu0
    %v4937 = vadd.f32 %v4728, %v4936
    %4938 = vmatmul.f32.gmra.mxu0 %v2822
    %v4939 = vpop.f32.mrf.mxu0
    %v4940 = vadd.f32 %v4731, %v4939
    %4941 = vmatmul.f32.gmra.mxu0 %v2831
    %v4942 = vpop.f32.mrf.mxu0
    %v4943 = vadd.f32 %v4734, %v4942
    %4944 = vmatmul.f32.gmra.mxu0 %v2840
    %v4945 = vpop.f32.mrf.mxu0
    %v4946 = vadd.f32 %v4737, %v4945
    %4947 = vmatmul.f32.gmra.mxu0 %v2849
    %v4948 = vpop.f32.mrf.mxu0
    %v4949 = vadd.f32 %v4740, %v4948
    %4950 = vmatmul.f32.gmra.mxu0 %v2858
    %v4951 = vpop.f32.mrf.mxu0
    %v4952 = vadd.f32 %v4743, %v4951
    %4953 = vmatmul.f32.gmra.mxu0 %v2867
    %v4954 = vpop.f32.mrf.mxu0
    %v4955 = vadd.f32 %v4746, %v4954
    %4956 = vmatmul.f32.gmra.mxu0 %v2876
    %v4957 = vpop.f32.mrf.mxu0
    %v4958 = vadd.f32 %v4749, %v4957
    %4959 = vmatmul.f32.gmra.mxu0 %v2885
    %v4960 = vpop.f32.mrf.mxu0
    %v4961 = vadd.f32 %v4752, %v4960
    %4962 = vmatmul.f32.gmra.mxu0 %v2894
    %v4963 = vpop.f32.mrf.mxu0
    %v4964 = vadd.f32 %v4755, %v4963
    %4965 = vmatmul.f32.gmra.mxu0 %v2903
    %v4966 = vpop.f32.mrf.mxu0
    %v4967 = vadd.f32 %v4758, %v4966
    %4968 = vmatmul.f32.gmra.mxu0 %v2912
    %v4969 = vpop.f32.mrf.mxu0
    %v4970 = vadd.f32 %v4761, %v4969
    %4971 = vmatmul.f32.gmra.mxu0 %v2921
    %v4972 = vpop.f32.mrf.mxu0
    %v4973 = vadd.f32 %v4764, %v4972
    %4974 = vmatmul.f32.gmra.mxu0 %v2930
    %v4975 = vpop.f32.mrf.mxu0
    %v4976 = vadd.f32 %v4767, %v4975
    %4977 = vmatmul.f32.gmra.mxu0 %v2939
    %v4978 = vpop.f32.mrf.mxu0
    %v4979 = vadd.f32 %v4770, %v4978
    %4980 = vmatmul.f32.gmra.mxu0 %v2948
    %v4981 = vpop.f32.mrf.mxu0
    %v4982 = vadd.f32 %v4773, %v4981
    %4983 = vmatmul.f32.gmra.mxu0 %v2957
    %v4984 = vpop.f32.mrf.mxu0
    %v4985 = vadd.f32 %v4776, %v4984
    %4986 = vdwg.mxu0
    %v4987 = vld [vmem:[%s19] sm:$0x1]
    %v4988 = vperm.slane %v4987, 0
    %v4989 = vmul.f32 %v4796, %v4988
    %v4990 = vmul.f32 %v4799, %v4988
    %v4991 = vmul.f32 %v4802, %v4988
    %v4992 = vmul.f32 %v4805, %v4988
    %v4993 = vmul.f32 %v4808, %v4988
    %v4994 = vmul.f32 %v4811, %v4988
    %v4995 = vmul.f32 %v4814, %v4988
    %v4996 = vmul.f32 %v4817, %v4988
    %v4997 = vmul.f32 %v4820, %v4988
    %v4998 = vmul.f32 %v4823, %v4988
    %v4999 = vmul.f32 %v4826, %v4988
    %v5000 = vmul.f32 %v4829, %v4988
    %v5001 = vmul.f32 %v4832, %v4988
    %v5002 = vmul.f32 %v4835, %v4988
    %v5003 = vmul.f32 %v4838, %v4988
    %v5004 = vmul.f32 %v4841, %v4988
    %v5005 = vmul.f32 %v4844, %v4988
    %v5006 = vmul.f32 %v4847, %v4988
    %v5007 = vmul.f32 %v4850, %v4988
    %v5008 = vmul.f32 %v4853, %v4988
    %v5009 = vmul.f32 %v4856, %v4988
    %v5010 = vmul.f32 %v4859, %v4988
    %v5011 = vmul.f32 %v4862, %v4988
    %v5012 = vmul.f32 %v4865, %v4988
    %v5013 = vmul.f32 %v4868, %v4988
    %v5014 = vmul.f32 %v4871, %v4988
    %v5015 = vmul.f32 %v4874, %v4988
    %v5016 = vmul.f32 %v4877, %v4988
    %v5017 = vmul.f32 %v4880, %v4988
    %v5018 = vmul.f32 %v4883, %v4988
    %v5019 = vmul.f32 %v4886, %v4988
    %v5020 = vmul.f32 %v4889, %v4988
    %v5021 = vld [vmem:[%s20] sm:$0x1]
    %v5022 = vperm.slane %v5021, 0
    %v5023 = vadd.f32 %v4989, %v5022
    %v5024 = vadd.f32 %v4990, %v5022
    %v5025 = vadd.f32 %v4991, %v5022
    %v5026 = vadd.f32 %v4992, %v5022
    %v5027 = vadd.f32 %v4993, %v5022
    %v5028 = vadd.f32 %v4994, %v5022
    %v5029 = vadd.f32 %v4995, %v5022
    %v5030 = vadd.f32 %v4996, %v5022
    %v5031 = vadd.f32 %v4997, %v5022
    %v5032 = vadd.f32 %v4998, %v5022
    %v5033 = vadd.f32 %v4999, %v5022
    %v5034 = vadd.f32 %v5000, %v5022
    %v5035 = vadd.f32 %v5001, %v5022
    %v5036 = vadd.f32 %v5002, %v5022
    %v5037 = vadd.f32 %v5003, %v5022
    %v5038 = vadd.f32 %v5004, %v5022
    %v5039 = vadd.f32 %v5005, %v5022
    %v5040 = vadd.f32 %v5006, %v5022
    %v5041 = vadd.f32 %v5007, %v5022
    %v5042 = vadd.f32 %v5008, %v5022
    %v5043 = vadd.f32 %v5009, %v5022
    %v5044 = vadd.f32 %v5010, %v5022
    %v5045 = vadd.f32 %v5011, %v5022
    %v5046 = vadd.f32 %v5012, %v5022
    %v5047 = vadd.f32 %v5013, %v5022
    %v5048 = vadd.f32 %v5014, %v5022
    %v5049 = vadd.f32 %v5015, %v5022
    %v5050 = vadd.f32 %v5016, %v5022
    %v5051 = vadd.f32 %v5017, %v5022
    %v5052 = vadd.f32 %v5018, %v5022
    %v5053 = vadd.f32 %v5019, %v5022
    %v5054 = vadd.f32 %v5020, %v5022
    %v5055 = vmax.f32 %v5023, 0.0
    %v5056 = vmax.f32 %v5024, 0.0
    %v5057 = vmax.f32 %v5025, 0.0
    %v5058 = vmax.f32 %v5026, 0.0
    %v5059 = vmax.f32 %v5027, 0.0
    %v5060 = vmax.f32 %v5028, 0.0
    %v5061 = vmax.f32 %v5029, 0.0
    %v5062 = vmax.f32 %v5030, 0.0
    %v5063 = vmax.f32 %v5031, 0.0
    %v5064 = vmax.f32 %v5032, 0.0
    %v5065 = vmax.f32 %v5033, 0.0
    %v5066 = vmax.f32 %v5034, 0.0
    %v5067 = vmax.f32 %v5035, 0.0
    %v5068 = vmax.f32 %v5036, 0.0
    %v5069 = vmax.f32 %v5037, 0.0
    %v5070 = vmax.f32 %v5038, 0.0
    %v5071 = vmax.f32 %v5039, 0.0
    %v5072 = vmax.f32 %v5040, 0.0
    %v5073 = vmax.f32 %v5041, 0.0
    %v5074 = vmax.f32 %v5042, 0.0
    %v5075 = vmax.f32 %v5043, 0.0
    %v5076 = vmax.f32 %v5044, 0.0
    %v5077 = vmax.f32 %v5045, 0.0
    %v5078 = vmax.f32 %v5046, 0.0
    %v5079 = vmax.f32 %v5047, 0.0
    %v5080 = vmax.f32 %v5048, 0.0
    %v5081 = vmax.f32 %v5049, 0.0
    %v5082 = vmax.f32 %v5050, 0.0
    %v5083 = vmax.f32 %v5051, 0.0
    %v5084 = vmax.f32 %v5052, 0.0
    %v5085 = vmax.f32 %v5053, 0.0
    %v5086 = vmax.f32 %v5054, 0.0
    %5087 = vst [vmem:[%s1063 + $0x1] sm:$0xff] %v5055
    %5088 = vst [vmem:[%s1063 + $0x9] sm:$0xff] %v5056
    %5089 = vst [vmem:[%s1063 + $0x19] sm:$0xff] %v5057
    %5090 = vst [vmem:[%s1063 + $0x21] sm:$0xff] %v5058
    %5091 = vst [vmem:[%s1063 + $0x31] sm:$0xff] %v5059
    %5092 = vst [vmem:[%s1063 + $0x39] sm:$0xff] %v5060
    %5093 = vst [vmem:[%s1063 + $0x49] sm:$0xff] %v5061
    %5094 = vst [vmem:[%s1063 + $0x51] sm:$0xff] %v5062
    %5095 = vst [vmem:[%s1063 + $0x61] sm:$0xff] %v5063
    %5096 = vst [vmem:[%s1063 + $0x69] sm:$0xff] %v5064
    %5097 = vst [vmem:[%s1063 + $0x79] sm:$0xff] %v5065
    %5098 = vst [vmem:[%s1063 + $0x81] sm:$0xff] %v5066
    %5099 = vst [vmem:[%s1063 + $0x91] sm:$0xff] %v5067
    %5100 = vst [vmem:[%s1063 + $0x99] sm:$0xff] %v5068
    %5101 = vst [vmem:[%s1063 + $0xa9] sm:$0xff] %v5069
    %5102 = vst [vmem:[%s1063 + $0xb1] sm:$0xff] %v5070
    %5103 = vst [vmem:[%s1063 + $0xc1] sm:$0xff] %v5071
    %5104 = vst [vmem:[%s1063 + $0xc9] sm:$0xff] %v5072
    %5105 = vst [vmem:[%s1063 + $0xd9] sm:$0xff] %v5073
    %5106 = vst [vmem:[%s1063 + $0xe1] sm:$0xff] %v5074
    %5107 = vst [vmem:[%s1063 + $0xf1] sm:$0xff] %v5075
    %5108 = vst [vmem:[%s1063 + $0xf9] sm:$0xff] %v5076
    %5109 = vst [vmem:[%s1063 + $0x109] sm:$0xff] %v5077
    %5110 = vst [vmem:[%s1063 + $0x111] sm:$0xff] %v5078
    %5111 = vst [vmem:[%s1063 + $0x121] sm:$0xff] %v5079
    %5112 = vst [vmem:[%s1063 + $0x129] sm:$0xff] %v5080
    %5113 = vst [vmem:[%s1063 + $0x139] sm:$0xff] %v5081
    %5114 = vst [vmem:[%s1063 + $0x141] sm:$0xff] %v5082
    %5115 = vst [vmem:[%s1063 + $0x151] sm:$0xff] %v5083
    %5116 = vst [vmem:[%s1063 + $0x159] sm:$0xff] %v5084
    %5117 = vst [vmem:[%s1063 + $0x169] sm:$0xff] %v5085
    %5118 = vst [vmem:[%s1063 + $0x171] sm:$0xff] %v5086
    %v5119 = vld [vmem:[%s19 + $0x1] sm:$0x1]
    %v5120 = vperm.slane %v5119, 0
    %v5121 = vmul.f32 %v4892, %v5120
    %v5122 = vmul.f32 %v4895, %v5120
    %v5123 = vmul.f32 %v4898, %v5120
    %v5124 = vmul.f32 %v4901, %v5120
    %v5125 = vmul.f32 %v4904, %v5120
    %v5126 = vmul.f32 %v4907, %v5120
    %v5127 = vmul.f32 %v4910, %v5120
    %v5128 = vmul.f32 %v4913, %v5120
    %v5129 = vmul.f32 %v4916, %v5120
    %v5130 = vmul.f32 %v4919, %v5120
    %v5131 = vmul.f32 %v4922, %v5120
    %v5132 = vmul.f32 %v4925, %v5120
    %v5133 = vmul.f32 %v4928, %v5120
    %v5134 = vmul.f32 %v4931, %v5120
    %v5135 = vmul.f32 %v4934, %v5120
    %v5136 = vmul.f32 %v4937, %v5120
    %v5137 = vmul.f32 %v4940, %v5120
    %v5138 = vmul.f32 %v4943, %v5120
    %v5139 = vmul.f32 %v4946, %v5120
    %v5140 = vmul.f32 %v4949, %v5120
    %v5141 = vmul.f32 %v4952, %v5120
    %v5142 = vmul.f32 %v4955, %v5120
    %v5143 = vmul.f32 %v4958, %v5120
    %v5144 = vmul.f32 %v4961, %v5120
    %v5145 = vmul.f32 %v4964, %v5120
    %v5146 = vmul.f32 %v4967, %v5120
    %v5147 = vmul.f32 %v4970, %v5120
    %v5148 = vmul.f32 %v4973, %v5120
    %v5149 = vmul.f32 %v4976, %v5120
    %v5150 = vmul.f32 %v4979, %v5120
    %v5151 = vmul.f32 %v4982, %v5120
    %v5152 = vmul.f32 %v4985, %v5120
    %v5153 = vld [vmem:[%s20 + $0x1] sm:$0x1]
    %v5154 = vperm.slane %v5153, 0
    %v5155 = vadd.f32 %v5121, %v5154
    %v5156 = vadd.f32 %v5122, %v5154
    %v5157 = vadd.f32 %v5123, %v5154
    %v5158 = vadd.f32 %v5124, %v5154
    %v5159 = vadd.f32 %v5125, %v5154
    %v5160 = vadd.f32 %v5126, %v5154
    %v5161 = vadd.f32 %v5127, %v5154
    %v5162 = vadd.f32 %v5128, %v5154
    %v5163 = vadd.f32 %v5129, %v5154
    %v5164 = vadd.f32 %v5130, %v5154
    %v5165 = vadd.f32 %v5131, %v5154
    %v5166 = vadd.f32 %v5132, %v5154
    %v5167 = vadd.f32 %v5133, %v5154
    %v5168 = vadd.f32 %v5134, %v5154
    %v5169 = vadd.f32 %v5135, %v5154
    %v5170 = vadd.f32 %v5136, %v5154
    %v5171 = vadd.f32 %v5137, %v5154
    %v5172 = vadd.f32 %v5138, %v5154
    %v5173 = vadd.f32 %v5139, %v5154
    %v5174 = vadd.f32 %v5140, %v5154
    %v5175 = vadd.f32 %v5141, %v5154
    %v5176 = vadd.f32 %v5142, %v5154
    %v5177 = vadd.f32 %v5143, %v5154
    %v5178 = vadd.f32 %v5144, %v5154
    %v5179 = vadd.f32 %v5145, %v5154
    %v5180 = vadd.f32 %v5146, %v5154
    %v5181 = vadd.f32 %v5147, %v5154
    %v5182 = vadd.f32 %v5148, %v5154
    %v5183 = vadd.f32 %v5149, %v5154
    %v5184 = vadd.f32 %v5150, %v5154
    %v5185 = vadd.f32 %v5151, %v5154
    %v5186 = vadd.f32 %v5152, %v5154
    %v5187 = vmax.f32 %v5155, 0.0
    %v5188 = vmax.f32 %v5156, 0.0
    %v5189 = vmax.f32 %v5157, 0.0
    %v5190 = vmax.f32 %v5158, 0.0
    %v5191 = vmax.f32 %v5159, 0.0
    %v5192 = vmax.f32 %v5160, 0.0
    %v5193 = vmax.f32 %v5161, 0.0
    %v5194 = vmax.f32 %v5162, 0.0
    %v5195 = vmax.f32 %v5163, 0.0
    %v5196 = vmax.f32 %v5164, 0.0
    %v5197 = vmax.f32 %v5165, 0.0
    %v5198 = vmax.f32 %v5166, 0.0
    %v5199 = vmax.f32 %v5167, 0.0
    %v5200 = vmax.f32 %v5168, 0.0
    %v5201 = vmax.f32 %v5169, 0.0
    %v5202 = vmax.f32 %v5170, 0.0
    %v5203 = vmax.f32 %v5171, 0.0
    %v5204 = vmax.f32 %v5172, 0.0
    %v5205 = vmax.f32 %v5173, 0.0
    %v5206 = vmax.f32 %v5174, 0.0
    %v5207 = vmax.f32 %v5175, 0.0
    %v5208 = vmax.f32 %v5176, 0.0
    %v5209 = vmax.f32 %v5177, 0.0
    %v5210 = vmax.f32 %v5178, 0.0
    %v5211 = vmax.f32 %v5179, 0.0
    %v5212 = vmax.f32 %v5180, 0.0
    %v5213 = vmax.f32 %v5181, 0.0
    %v5214 = vmax.f32 %v5182, 0.0
    %v5215 = vmax.f32 %v5183, 0.0
    %v5216 = vmax.f32 %v5184, 0.0
    %v5217 = vmax.f32 %v5185, 0.0
    %v5218 = vmax.f32 %v5186, 0.0
    %5219 = vst [vmem:[%s1196 + $0x1] sm:$0xff] %v5187
    %5220 = vst [vmem:[%s1196 + $0x9] sm:$0xff] %v5188
    %5221 = vst [vmem:[%s1196 + $0x19] sm:$0xff] %v5189
    %5222 = vst [vmem:[%s1196 + $0x21] sm:$0xff] %v5190
    %5223 = vst [vmem:[%s1196 + $0x31] sm:$0xff] %v5191
    %5224 = vst [vmem:[%s1196 + $0x39] sm:$0xff] %v5192
    %5225 = vst [vmem:[%s1196 + $0x49] sm:$0xff] %v5193
    %5226 = vst [vmem:[%s1196 + $0x51] sm:$0xff] %v5194
    %5227 = vst [vmem:[%s1196 + $0x61] sm:$0xff] %v5195
    %5228 = vst [vmem:[%s1196 + $0x69] sm:$0xff] %v5196
    %5229 = vst [vmem:[%s1196 + $0x79] sm:$0xff] %v5197
    %5230 = vst [vmem:[%s1196 + $0x81] sm:$0xff] %v5198
    %5231 = vst [vmem:[%s1196 + $0x91] sm:$0xff] %v5199
    %5232 = vst [vmem:[%s1196 + $0x99] sm:$0xff] %v5200
    %5233 = vst [vmem:[%s1196 + $0xa9] sm:$0xff] %v5201
    %5234 = vst [vmem:[%s1196 + $0xb1] sm:$0xff] %v5202
    %5235 = vst [vmem:[%s1196 + $0xc1] sm:$0xff] %v5203
    %5236 = vst [vmem:[%s1196 + $0xc9] sm:$0xff] %v5204
    %5237 = vst [vmem:[%s1196 + $0xd9] sm:$0xff] %v5205
    %5238 = vst [vmem:[%s1196 + $0xe1] sm:$0xff] %v5206
    %5239 = vst [vmem:[%s1196 + $0xf1] sm:$0xff] %v5207
    %5240 = vst [vmem:[%s1196 + $0xf9] sm:$0xff] %v5208
    %5241 = vst [vmem:[%s1196 + $0x109] sm:$0xff] %v5209
    %5242 = vst [vmem:[%s1196 + $0x111] sm:$0xff] %v5210
    %5243 = vst [vmem:[%s1196 + $0x121] sm:$0xff] %v5211
    %5244 = vst [vmem:[%s1196 + $0x129] sm:$0xff] %v5212
    %5245 = vst [vmem:[%s1196 + $0x139] sm:$0xff] %v5213
    %5246 = vst [vmem:[%s1196 + $0x141] sm:$0xff] %v5214
    %5247 = vst [vmem:[%s1196 + $0x151] sm:$0xff] %v5215
    %5248 = vst [vmem:[%s1196 + $0x159] sm:$0xff] %v5216
    %5249 = vst [vmem:[%s1196 + $0x169] sm:$0xff] %v5217
    %5250 = vst [vmem:[%s1196 + $0x171] sm:$0xff] %v5218
    %v5251 = vld [vmem:[#allocation2] sm:$0xff]
    %v5252 = vld [vmem:[#allocation2 + $0x8] sm:$0xff]
    %v5253 = vld [vmem:[#allocation2 + $0x18] sm:$0xff]
    %v5254 = vld [vmem:[#allocation2 + $0x20] sm:$0xff]
    %v5255 = vld [vmem:[#allocation2 + $0x30] sm:$0xff]
    %v5256 = vld [vmem:[#allocation2 + $0x38] sm:$0xff]
    %v5257 = vld [vmem:[#allocation2 + $0x48] sm:$0xff]
    %v5258 = vld [vmem:[#allocation2 + $0x50] sm:$0xff]
    %v5259 = vld [vmem:[#allocation2 + $0x60] sm:$0xff]
    %v5260 = vld [vmem:[#allocation2 + $0x68] sm:$0xff]
    %v5261 = vld [vmem:[#allocation2 + $0x78] sm:$0xff]
    %v5262 = vld [vmem:[#allocation2 + $0x80] sm:$0xff]
    %v5263 = vld [vmem:[#allocation2 + $0x90] sm:$0xff]
    %v5264 = vld [vmem:[#allocation2 + $0x98] sm:$0xff]
    %v5265 = vld [vmem:[#allocation2 + $0xa8] sm:$0xff]
    %v5266 = vld [vmem:[#allocation2 + $0xb0] sm:$0xff]
    %v5267 = vld [vmem:[#allocation2 + $0xc0] sm:$0xff]
    %v5268 = vld [vmem:[#allocation2 + $0xc8] sm:$0xff]
    %v5269 = vld [vmem:[#allocation2 + $0xd8] sm:$0xff]
    %v5270 = vld [vmem:[#allocation2 + $0xe0] sm:$0xff]
    %v5271 = vld [vmem:[#allocation2 + $0xf0] sm:$0xff]
    %v5272 = vld [vmem:[#allocation2 + $0xf8] sm:$0xff]
    %v5273 = vld [vmem:[#allocation2 + $0x108] sm:$0xff]
    %v5274 = vld [vmem:[#allocation2 + $0x110] sm:$0xff]
    %v5275 = vld [vmem:[#allocation2 + $0x120] sm:$0xff]
    %v5276 = vld [vmem:[#allocation2 + $0x128] sm:$0xff]
    %v5277 = vld [vmem:[#allocation2 + $0x138] sm:$0xff]
    %v5278 = vld [vmem:[#allocation2 + $0x140] sm:$0xff]
    %v5279 = vld [vmem:[#allocation2 + $0x150] sm:$0xff]
    %v5280 = vld [vmem:[#allocation2 + $0x158] sm:$0xff]
    %v5281 = vld [vmem:[#allocation2 + $0x168] sm:$0xff]
    %v5282 = vld [vmem:[#allocation2 + $0x170] sm:$0xff]
    %v5283 = vld [vmem:[#allocation2 + $0x1b0] sm:$0xff]
    %v5284 = vld [vmem:[#allocation2 + $0x1b8] sm:$0xff]
    %v5285 = vld [vmem:[#allocation2 + $0x1c8] sm:$0xff]
    %v5286 = vld [vmem:[#allocation2 + $0x1d0] sm:$0xff]
    %v5287 = vld [vmem:[#allocation2 + $0x1e0] sm:$0xff]
    %v5288 = vld [vmem:[#allocation2 + $0x1e8] sm:$0xff]
    %v5289 = vld [vmem:[#allocation2 + $0x1f8] sm:$0xff]
    %v5290 = vld [vmem:[#allocation2 + $0x200] sm:$0xff]
    %v5291 = vld [vmem:[#allocation2 + $0x210] sm:$0xff]
    %v5292 = vld [vmem:[#allocation2 + $0x218] sm:$0xff]
    %v5293 = vld [vmem:[#allocation2 + $0x228] sm:$0xff]
    %v5294 = vld [vmem:[#allocation2 + $0x230] sm:$0xff]
    %v5295 = vld [vmem:[#allocation2 + $0x240] sm:$0xff]
    %v5296 = vld [vmem:[#allocation2 + $0x248] sm:$0xff]
    %v5297 = vld [vmem:[#allocation2 + $0x258] sm:$0xff]
    %v5298 = vld [vmem:[#allocation2 + $0x260] sm:$0xff]
    %v5299 = vld [vmem:[#allocation2 + $0x270] sm:$0xff]
    %v5300 = vld [vmem:[#allocation2 + $0x278] sm:$0xff]
    %v5301 = vld [vmem:[#allocation2 + $0x288] sm:$0xff]
    %v5302 = vld [vmem:[#allocation2 + $0x290] sm:$0xff]
    %v5303 = vld [vmem:[#allocation2 + $0x2a0] sm:$0xff]
    %v5304 = vld [vmem:[#allocation2 + $0x2a8] sm:$0xff]
    %v5305 = vld [vmem:[#allocation2 + $0x2b8] sm:$0xff]
    %v5306 = vld [vmem:[#allocation2 + $0x2c0] sm:$0xff]
    %v5307 = vld [vmem:[#allocation2 + $0x2d0] sm:$0xff]
    %v5308 = vld [vmem:[#allocation2 + $0x2d8] sm:$0xff]
    %v5309 = vld [vmem:[#allocation2 + $0x2e8] sm:$0xff]
    %v5310 = vld [vmem:[#allocation2 + $0x2f0] sm:$0xff]
    %v5311 = vld [vmem:[#allocation2 + $0x300] sm:$0xff]
    %v5312 = vld [vmem:[#allocation2 + $0x308] sm:$0xff]
    %v5313 = vld [vmem:[#allocation2 + $0x318] sm:$0xff]
    %v5314 = vld [vmem:[#allocation2 + $0x320] sm:$0xff]
    %5315 = vst [vmem:[#allocation3] sm:$0xff] %v5251
    %5316 = vst [vmem:[#allocation3 + $0x48] sm:$0xff] %v5252
    %5317 = vst [vmem:[#allocation3 + $0x90] sm:$0xff] %v5253
    %5318 = vst [vmem:[#allocation3 + $0xd8] sm:$0xff] %v5254
    %5319 = vst [vmem:[#allocation3 + $0x120] sm:$0xff] %v5255
    %5320 = vst [vmem:[#allocation3 + $0x168] sm:$0xff] %v5256
    %5321 = vst [vmem:[#allocation3 + $0x1b0] sm:$0xff] %v5257
    %5322 = vst [vmem:[#allocation3 + $0x1f8] sm:$0xff] %v5258
    %5323 = vst [vmem:[#allocation3 + $0x240] sm:$0xff] %v5259
    %5324 = vst [vmem:[#allocation3 + $0x288] sm:$0xff] %v5260
    %5325 = vst [vmem:[#allocation3 + $0x2d0] sm:$0xff] %v5261
    %5326 = vst [vmem:[#allocation3 + $0x318] sm:$0xff] %v5262
    %5327 = vst [vmem:[#allocation3 + $0x360] sm:$0xff] %v5263
    %5328 = vst [vmem:[#allocation3 + $0x3a8] sm:$0xff] %v5264
    %5329 = vst [vmem:[#allocation3 + $0x3f0] sm:$0xff] %v5265
    %5330 = vst [vmem:[#allocation3 + $0x438] sm:$0xff] %v5266
    %5331 = vst [vmem:[#allocation3 + $0x480] sm:$0xff] %v5267
    %5332 = vst [vmem:[#allocation3 + $0x4c8] sm:$0xff] %v5268
    %5333 = vst [vmem:[#allocation3 + $0x510] sm:$0xff] %v5269
    %5334 = vst [vmem:[#allocation3 + $0x558] sm:$0xff] %v5270
    %5335 = vst [vmem:[#allocation3 + $0x5a0] sm:$0xff] %v5271
    %5336 = vst [vmem:[#allocation3 + $0x5e8] sm:$0xff] %v5272
    %5337 = vst [vmem:[#allocation3 + $0x630] sm:$0xff] %v5273
    %5338 = vst [vmem:[#allocation3 + $0x678] sm:$0xff] %v5274
    %5339 = vst [vmem:[#allocation3 + $0x6c0] sm:$0xff] %v5275
    %5340 = vst [vmem:[#allocation3 + $0x708] sm:$0xff] %v5276
    %5341 = vst [vmem:[#allocation3 + $0x750] sm:$0xff] %v5277
    %5342 = vst [vmem:[#allocation3 + $0x798] sm:$0xff] %v5278
    %5343 = vst [vmem:[#allocation3 + $0x7e0] sm:$0xff] %v5279
    %5344 = vst [vmem:[#allocation3 + $0x828] sm:$0xff] %v5280
    %5345 = vst [vmem:[#allocation3 + $0x870] sm:$0xff] %v5281
    %5346 = vst [vmem:[#allocation3 + $0x8b8] sm:$0xff] %v5282
    %5347 = vst [vmem:[#allocation3 + $0x900] sm:$0xff] %v5283
    %5348 = vst [vmem:[#allocation3 + $0x948] sm:$0xff] %v5284
    %5349 = vst [vmem:[#allocation3 + $0x990] sm:$0xff] %v5285
    %5350 = vst [vmem:[#allocation3 + $0x9d8] sm:$0xff] %v5286
    %5351 = vst [vmem:[#allocation3 + $0xa20] sm:$0xff] %v5287
    %5352 = vst [vmem:[#allocation3 + $0xa68] sm:$0xff] %v5288
    %5353 = vst [vmem:[#allocation3 + $0xab0] sm:$0xff] %v5289
    %5354 = vst [vmem:[#allocation3 + $0xaf8] sm:$0xff] %v5290
    %5355 = vst [vmem:[#allocation3 + $0xb40] sm:$0xff] %v5291
    %5356 = vst [vmem:[#allocation3 + $0xb88] sm:$0xff] %v5292
    %5357 = vst [vmem:[#allocation3 + $0xbd0] sm:$0xff] %v5293
    %5358 = vst [vmem:[#allocation3 + $0xc18] sm:$0xff] %v5294
    %5359 = vst [vmem:[#allocation3 + $0xc60] sm:$0xff] %v5295
    %5360 = vst [vmem:[#allocation3 + $0xca8] sm:$0xff] %v5296
    %5361 = vst [vmem:[#allocation3 + $0xcf0] sm:$0xff] %v5297
    %5362 = vst [vmem:[#allocation3 + $0xd38] sm:$0xff] %v5298
    %5363 = vst [vmem:[#allocation3 + $0xd80] sm:$0xff] %v5299
    %5364 = vst [vmem:[#allocation3 + $0xdc8] sm:$0xff] %v5300
    %5365 = vst [vmem:[#allocation3 + $0xe10] sm:$0xff] %v5301
    %5366 = vst [vmem:[#allocation3 + $0xe58] sm:$0xff] %v5302
    %5367 = vst [vmem:[#allocation3 + $0xea0] sm:$0xff] %v5303
    %5368 = vst [vmem:[#allocation3 + $0xee8] sm:$0xff] %v5304
    %5369 = vst [vmem:[#allocation3 + $0xf30] sm:$0xff] %v5305
    %5370 = vst [vmem:[#allocation3 + $0xf78] sm:$0xff] %v5306
    %5371 = vst [vmem:[#allocation3 + $0xfc0] sm:$0xff] %v5307
    %5372 = vst [vmem:[#allocation3 + $0x1008] sm:$0xff] %v5308
    %5373 = vst [vmem:[#allocation3 + $0x1050] sm:$0xff] %v5309
    %5374 = vst [vmem:[#allocation3 + $0x1098] sm:$0xff] %v5310
    %5375 = vst [vmem:[#allocation3 + $0x10e0] sm:$0xff] %v5311
    %5376 = vst [vmem:[#allocation3 + $0x1128] sm:$0xff] %v5312
    %5377 = vst [vmem:[#allocation3 + $0x1170] sm:$0xff] %v5313
    %5378 = vst [vmem:[#allocation3 + $0x11b8] sm:$0xff] %v5314
    %v5379 = vld [vmem:[#allocation2 + $0x1] sm:$0xff]
    %v5380 = vld [vmem:[#allocation2 + $0x9] sm:$0xff]
    %v5381 = vld [vmem:[#allocation2 + $0x19] sm:$0xff]
    %v5382 = vld [vmem:[#allocation2 + $0x21] sm:$0xff]
    %v5383 = vld [vmem:[#allocation2 + $0x31] sm:$0xff]
    %v5384 = vld [vmem:[#allocation2 + $0x39] sm:$0xff]
    %v5385 = vld [vmem:[#allocation2 + $0x49] sm:$0xff]
    %v5386 = vld [vmem:[#allocation2 + $0x51] sm:$0xff]
    %v5387 = vld [vmem:[#allocation2 + $0x61] sm:$0xff]
    %v5388 = vld [vmem:[#allocation2 + $0x69] sm:$0xff]
    %v5389 = vld [vmem:[#allocation2 + $0x79] sm:$0xff]
    %v5390 = vld [vmem:[#allocation2 + $0x81] sm:$0xff]
    %v5391 = vld [vmem:[#allocation2 + $0x91] sm:$0xff]
    %v5392 = vld [vmem:[#allocation2 + $0x99] sm:$0xff]
    %v5393 = vld [vmem:[#allocation2 + $0xa9] sm:$0xff]
    %v5394 = vld [vmem:[#allocation2 + $0xb1] sm:$0xff]
    %v5395 = vld [vmem:[#allocation2 + $0xc1] sm:$0xff]
    %v5396 = vld [vmem:[#allocation2 + $0xc9] sm:$0xff]
    %v5397 = vld [vmem:[#allocation2 + $0xd9] sm:$0xff]
    %v5398 = vld [vmem:[#allocation2 + $0xe1] sm:$0xff]
    %v5399 = vld [vmem:[#allocation2 + $0xf1] sm:$0xff]
    %v5400 = vld [vmem:[#allocation2 + $0xf9] sm:$0xff]
    %v5401 = vld [vmem:[#allocation2 + $0x109] sm:$0xff]
    %v5402 = vld [vmem:[#allocation2 + $0x111] sm:$0xff]
    %v5403 = vld [vmem:[#allocation2 + $0x121] sm:$0xff]
    %v5404 = vld [vmem:[#allocation2 + $0x129] sm:$0xff]
    %v5405 = vld [vmem:[#allocation2 + $0x139] sm:$0xff]
    %v5406 = vld [vmem:[#allocation2 + $0x141] sm:$0xff]
    %v5407 = vld [vmem:[#allocation2 + $0x151] sm:$0xff]
    %v5408 = vld [vmem:[#allocation2 + $0x159] sm:$0xff]
    %v5409 = vld [vmem:[#allocation2 + $0x169] sm:$0xff]
    %v5410 = vld [vmem:[#allocation2 + $0x171] sm:$0xff]
    %v5411 = vld [vmem:[#allocation2 + $0x1b1] sm:$0xff]
    %v5412 = vld [vmem:[#allocation2 + $0x1b9] sm:$0xff]
    %v5413 = vld [vmem:[#allocation2 + $0x1c9] sm:$0xff]
    %v5414 = vld [vmem:[#allocation2 + $0x1d1] sm:$0xff]
    %v5415 = vld [vmem:[#allocation2 + $0x1e1] sm:$0xff]
    %v5416 = vld [vmem:[#allocation2 + $0x1e9] sm:$0xff]
    %v5417 = vld [vmem:[#allocation2 + $0x1f9] sm:$0xff]
    %v5418 = vld [vmem:[#allocation2 + $0x201] sm:$0xff]
    %v5419 = vld [vmem:[#allocation2 + $0x211] sm:$0xff]
    %v5420 = vld [vmem:[#allocation2 + $0x219] sm:$0xff]
    %v5421 = vld [vmem:[#allocation2 + $0x229] sm:$0xff]
    %v5422 = vld [vmem:[#allocation2 + $0x231] sm:$0xff]
    %v5423 = vld [vmem:[#allocation2 + $0x241] sm:$0xff]
    %v5424 = vld [vmem:[#allocation2 + $0x249] sm:$0xff]
    %v5425 = vld [vmem:[#allocation2 + $0x259] sm:$0xff]
    %v5426 = vld [vmem:[#allocation2 + $0x261] sm:$0xff]
    %v5427 = vld [vmem:[#allocation2 + $0x271] sm:$0xff]
    %v5428 = vld [vmem:[#allocation2 + $0x279] sm:$0xff]
    %v5429 = vld [vmem:[#allocation2 + $0x289] sm:$0xff]
    %v5430 = vld [vmem:[#allocation2 + $0x291] sm:$0xff]
    %v5431 = vld [vmem:[#allocation2 + $0x2a1] sm:$0xff]
    %v5432 = vld [vmem:[#allocation2 + $0x2a9] sm:$0xff]
    %v5433 = vld [vmem:[#allocation2 + $0x2b9] sm:$0xff]
    %v5434 = vld [vmem:[#allocation2 + $0x2c1] sm:$0xff]
    %v5435 = vld [vmem:[#allocation2 + $0x2d1] sm:$0xff]
    %v5436 = vld [vmem:[#allocation2 + $0x2d9] sm:$0xff]
    %v5437 = vld [vmem:[#allocation2 + $0x2e9] sm:$0xff]
    %v5438 = vld [vmem:[#allocation2 + $0x2f1] sm:$0xff]
    %v5439 = vld [vmem:[#allocation2 + $0x301] sm:$0xff]
    %v5440 = vld [vmem:[#allocation2 + $0x309] sm:$0xff]
    %v5441 = vld [vmem:[#allocation2 + $0x319] sm:$0xff]
    %v5442 = vld [vmem:[#allocation2 + $0x321] sm:$0xff]
    %5443 = vst [vmem:[#allocation3 + $0x8] sm:$0xff] %v5379
    %5444 = vst [vmem:[#allocation3 + $0x50] sm:$0xff] %v5380
    %5445 = vst [vmem:[#allocation3 + $0x98] sm:$0xff] %v5381
    %5446 = vst [vmem:[#allocation3 + $0xe0] sm:$0xff] %v5382
    %5447 = vst [vmem:[#allocation3 + $0x128] sm:$0xff] %v5383
    %5448 = vst [vmem:[#allocation3 + $0x170] sm:$0xff] %v5384
    %5449 = vst [vmem:[#allocation3 + $0x1b8] sm:$0xff] %v5385
    %5450 = vst [vmem:[#allocation3 + $0x200] sm:$0xff] %v5386
    %5451 = vst [vmem:[#allocation3 + $0x248] sm:$0xff] %v5387
    %5452 = vst [vmem:[#allocation3 + $0x290] sm:$0xff] %v5388
    %5453 = vst [vmem:[#allocation3 + $0x2d8] sm:$0xff] %v5389
    %5454 = vst [vmem:[#allocation3 + $0x320] sm:$0xff] %v5390
    %5455 = vst [vmem:[#allocation3 + $0x368] sm:$0xff] %v5391
    %5456 = vst [vmem:[#allocation3 + $0x3b0] sm:$0xff] %v5392
    %5457 = vst [vmem:[#allocation3 + $0x3f8] sm:$0xff] %v5393
    %5458 = vst [vmem:[#allocation3 + $0x440] sm:$0xff] %v5394
    %5459 = vst [vmem:[#allocation3 + $0x488] sm:$0xff] %v5395
    %5460 = vst [vmem:[#allocation3 + $0x4d0] sm:$0xff] %v5396
    %5461 = vst [vmem:[#allocation3 + $0x518] sm:$0xff] %v5397
    %5462 = vst [vmem:[#allocation3 + $0x560] sm:$0xff] %v5398
    %5463 = vst [vmem:[#allocation3 + $0x5a8] sm:$0xff] %v5399
    %5464 = vst [vmem:[#allocation3 + $0x5f0] sm:$0xff] %v5400
    %5465 = vst [vmem:[#allocation3 + $0x638] sm:$0xff] %v5401
    %5466 = vst [vmem:[#allocation3 + $0x680] sm:$0xff] %v5402
    %5467 = vst [vmem:[#allocation3 + $0x6c8] sm:$0xff] %v5403
    %5468 = vst [vmem:[#allocation3 + $0x710] sm:$0xff] %v5404
    %5469 = vst [vmem:[#allocation3 + $0x758] sm:$0xff] %v5405
    %5470 = vst [vmem:[#allocation3 + $0x7a0] sm:$0xff] %v5406
    %5471 = vst [vmem:[#allocation3 + $0x7e8] sm:$0xff] %v5407
    %5472 = vst [vmem:[#allocation3 + $0x830] sm:$0xff] %v5408
    %5473 = vst [vmem:[#allocation3 + $0x878] sm:$0xff] %v5409
    %5474 = vst [vmem:[#allocation3 + $0x8c0] sm:$0xff] %v5410
    %5475 = vst [vmem:[#allocation3 + $0x908] sm:$0xff] %v5411
    %5476 = vst [vmem:[#allocation3 + $0x950] sm:$0xff] %v5412
    %5477 = vst [vmem:[#allocation3 + $0x998] sm:$0xff] %v5413
    %5478 = vst [vmem:[#allocation3 + $0x9e0] sm:$0xff] %v5414
    %5479 = vst [vmem:[#allocation3 + $0xa28] sm:$0xff] %v5415
    %5480 = vst [vmem:[#allocation3 + $0xa70] sm:$0xff] %v5416
    %5481 = vst [vmem:[#allocation3 + $0xab8] sm:$0xff] %v5417
    %5482 = vst [vmem:[#allocation3 + $0xb00] sm:$0xff] %v5418
    %5483 = vst [vmem:[#allocation3 + $0xb48] sm:$0xff] %v5419
    %5484 = vst [vmem:[#allocation3 + $0xb90] sm:$0xff] %v5420
    %5485 = vst [vmem:[#allocation3 + $0xbd8] sm:$0xff] %v5421
    %5486 = vst [vmem:[#allocation3 + $0xc20] sm:$0xff] %v5422
    %5487 = vst [vmem:[#allocation3 + $0xc68] sm:$0xff] %v5423
    %5488 = vst [vmem:[#allocation3 + $0xcb0] sm:$0xff] %v5424
    %5489 = vst [vmem:[#allocation3 + $0xcf8] sm:$0xff] %v5425
    %5490 = vst [vmem:[#allocation3 + $0xd40] sm:$0xff] %v5426
    %5491 = vst [vmem:[#allocation3 + $0xd88] sm:$0xff] %v5427
    %5492 = vst [vmem:[#allocation3 + $0xdd0] sm:$0xff] %v5428
    %5493 = vst [vmem:[#allocation3 + $0xe18] sm:$0xff] %v5429
    %5494 = vst [vmem:[#allocation3 + $0xe60] sm:$0xff] %v5430
    %5495 = vst [vmem:[#allocation3 + $0xea8] sm:$0xff] %v5431
    %5496 = vst [vmem:[#allocation3 + $0xef0] sm:$0xff] %v5432
    %5497 = vst [vmem:[#allocation3 + $0xf38] sm:$0xff] %v5433
    %5498 = vst [vmem:[#allocation3 + $0xf80] sm:$0xff] %v5434
    %5499 = vst [vmem:[#allocation3 + $0xfc8] sm:$0xff] %v5435
    %5500 = vst [vmem:[#allocation3 + $0x1010] sm:$0xff] %v5436
    %5501 = vst [vmem:[#allocation3 + $0x1058] sm:$0xff] %v5437
    %5502 = vst [vmem:[#allocation3 + $0x10a0] sm:$0xff] %v5438
    %5503 = vst [vmem:[#allocation3 + $0x10e8] sm:$0xff] %v5439
    %5504 = vst [vmem:[#allocation3 + $0x1130] sm:$0xff] %v5440
    %5505 = vst [vmem:[#allocation3 + $0x1178] sm:$0xff] %v5441
    %5506 = vst [vmem:[#allocation3 + $0x11c0] sm:$0xff] %v5442
    %v5507 = vld [vmem:[#allocation2 + $0x2] sm:$0xff]
    %v5508 = vld [vmem:[#allocation2 + $0xa] sm:$0xff]
    %v5509 = vld [vmem:[#allocation2 + $0x1a] sm:$0xff]
    %v5510 = vld [vmem:[#allocation2 + $0x22] sm:$0xff]
    %v5511 = vld [vmem:[#allocation2 + $0x32] sm:$0xff]
    %v5512 = vld [vmem:[#allocation2 + $0x3a] sm:$0xff]
    %v5513 = vld [vmem:[#allocation2 + $0x4a] sm:$0xff]
    %v5514 = vld [vmem:[#allocation2 + $0x52] sm:$0xff]
    %v5515 = vld [vmem:[#allocation2 + $0x62] sm:$0xff]
    %v5516 = vld [vmem:[#allocation2 + $0x6a] sm:$0xff]
    %v5517 = vld [vmem:[#allocation2 + $0x7a] sm:$0xff]
    %v5518 = vld [vmem:[#allocation2 + $0x82] sm:$0xff]
    %v5519 = vld [vmem:[#allocation2 + $0x92] sm:$0xff]
    %v5520 = vld [vmem:[#allocation2 + $0x9a] sm:$0xff]
    %v5521 = vld [vmem:[#allocation2 + $0xaa] sm:$0xff]
    %v5522 = vld [vmem:[#allocation2 + $0xb2] sm:$0xff]
    %v5523 = vld [vmem:[#allocation2 + $0xc2] sm:$0xff]
    %v5524 = vld [vmem:[#allocation2 + $0xca] sm:$0xff]
    %v5525 = vld [vmem:[#allocation2 + $0xda] sm:$0xff]
    %v5526 = vld [vmem:[#allocation2 + $0xe2] sm:$0xff]
    %v5527 = vld [vmem:[#allocation2 + $0xf2] sm:$0xff]
    %v5528 = vld [vmem:[#allocation2 + $0xfa] sm:$0xff]
    %v5529 = vld [vmem:[#allocation2 + $0x10a] sm:$0xff]
    %v5530 = vld [vmem:[#allocation2 + $0x112] sm:$0xff]
    %v5531 = vld [vmem:[#allocation2 + $0x122] sm:$0xff]
    %v5532 = vld [vmem:[#allocation2 + $0x12a] sm:$0xff]
    %v5533 = vld [vmem:[#allocation2 + $0x13a] sm:$0xff]
    %v5534 = vld [vmem:[#allocation2 + $0x142] sm:$0xff]
    %v5535 = vld [vmem:[#allocation2 + $0x152] sm:$0xff]
    %v5536 = vld [vmem:[#allocation2 + $0x15a] sm:$0xff]
    %v5537 = vld [vmem:[#allocation2 + $0x16a] sm:$0xff]
    %v5538 = vld [vmem:[#allocation2 + $0x172] sm:$0xff]
    %v5539 = vld [vmem:[#allocation2 + $0x1b2] sm:$0xff]
    %v5540 = vld [vmem:[#allocation2 + $0x1ba] sm:$0xff]
    %v5541 = vld [vmem:[#allocation2 + $0x1ca] sm:$0xff]
    %v5542 = vld [vmem:[#allocation2 + $0x1d2] sm:$0xff]
    %v5543 = vld [vmem:[#allocation2 + $0x1e2] sm:$0xff]
    %v5544 = vld [vmem:[#allocation2 + $0x1ea] sm:$0xff]
    %v5545 = vld [vmem:[#allocation2 + $0x1fa] sm:$0xff]
    %v5546 = vld [vmem:[#allocation2 + $0x202] sm:$0xff]
    %v5547 = vld [vmem:[#allocation2 + $0x212] sm:$0xff]
    %v5548 = vld [vmem:[#allocation2 + $0x21a] sm:$0xff]
    %v5549 = vld [vmem:[#allocation2 + $0x22a] sm:$0xff]
    %v5550 = vld [vmem:[#allocation2 + $0x232] sm:$0xff]
    %v5551 = vld [vmem:[#allocation2 + $0x242] sm:$0xff]
    %v5552 = vld [vmem:[#allocation2 + $0x24a] sm:$0xff]
    %v5553 = vld [vmem:[#allocation2 + $0x25a] sm:$0xff]
    %v5554 = vld [vmem:[#allocation2 + $0x262] sm:$0xff]
    %v5555 = vld [vmem:[#allocation2 + $0x272] sm:$0xff]
    %v5556 = vld [vmem:[#allocation2 + $0x27a] sm:$0xff]
    %v5557 = vld [vmem:[#allocation2 + $0x28a] sm:$0xff]
    %v5558 = vld [vmem:[#allocation2 + $0x292] sm:$0xff]
    %v5559 = vld [vmem:[#allocation2 + $0x2a2] sm:$0xff]
    %v5560 = vld [vmem:[#allocation2 + $0x2aa] sm:$0xff]
    %v5561 = vld [vmem:[#allocation2 + $0x2ba] sm:$0xff]
    %v5562 = vld [vmem:[#allocation2 + $0x2c2] sm:$0xff]
    %v5563 = vld [vmem:[#allocation2 + $0x2d2] sm:$0xff]
    %v5564 = vld [vmem:[#allocation2 + $0x2da] sm:$0xff]
    %v5565 = vld [vmem:[#allocation2 + $0x2ea] sm:$0xff]
    %v5566 = vld [vmem:[#allocation2 + $0x2f2] sm:$0xff]
    %v5567 = vld [vmem:[#allocation2 + $0x302] sm:$0xff]
    %v5568 = vld [vmem:[#allocation2 + $0x30a] sm:$0xff]
    %v5569 = vld [vmem:[#allocation2 + $0x31a] sm:$0xff]
    %v5570 = vld [vmem:[#allocation2 + $0x322] sm:$0xff]
    %5571 = vst [vmem:[#allocation3 + $0x10] sm:$0xff] %v5507
    %5572 = vst [vmem:[#allocation3 + $0x58] sm:$0xff] %v5508
    %5573 = vst [vmem:[#allocation3 + $0xa0] sm:$0xff] %v5509
    %5574 = vst [vmem:[#allocation3 + $0xe8] sm:$0xff] %v5510
    %5575 = vst [vmem:[#allocation3 + $0x130] sm:$0xff] %v5511
    %5576 = vst [vmem:[#allocation3 + $0x178] sm:$0xff] %v5512
    %5577 = vst [vmem:[#allocation3 + $0x1c0] sm:$0xff] %v5513
    %5578 = vst [vmem:[#allocation3 + $0x208] sm:$0xff] %v5514
    %5579 = vst [vmem:[#allocation3 + $0x250] sm:$0xff] %v5515
    %5580 = vst [vmem:[#allocation3 + $0x298] sm:$0xff] %v5516
    %5581 = vst [vmem:[#allocation3 + $0x2e0] sm:$0xff] %v5517
    %5582 = vst [vmem:[#allocation3 + $0x328] sm:$0xff] %v5518
    %5583 = vst [vmem:[#allocation3 + $0x370] sm:$0xff] %v5519
    %5584 = vst [vmem:[#allocation3 + $0x3b8] sm:$0xff] %v5520
    %5585 = vst [vmem:[#allocation3 + $0x400] sm:$0xff] %v5521
    %5586 = vst [vmem:[#allocation3 + $0x448] sm:$0xff] %v5522
    %5587 = vst [vmem:[#allocation3 + $0x490] sm:$0xff] %v5523
    %5588 = vst [vmem:[#allocation3 + $0x4d8] sm:$0xff] %v5524
    %5589 = vst [vmem:[#allocation3 + $0x520] sm:$0xff] %v5525
    %5590 = vst [vmem:[#allocation3 + $0x568] sm:$0xff] %v5526
    %5591 = vst [vmem:[#allocation3 + $0x5b0] sm:$0xff] %v5527
    %5592 = vst [vmem:[#allocation3 + $0x5f8] sm:$0xff] %v5528
    %5593 = vst [vmem:[#allocation3 + $0x640] sm:$0xff] %v5529
    %5594 = vst [vmem:[#allocation3 + $0x688] sm:$0xff] %v5530
    %5595 = vst [vmem:[#allocation3 + $0x6d0] sm:$0xff] %v5531
    %5596 = vst [vmem:[#allocation3 + $0x718] sm:$0xff] %v5532
    %5597 = vst [vmem:[#allocation3 + $0x760] sm:$0xff] %v5533
    %5598 = vst [vmem:[#allocation3 + $0x7a8] sm:$0xff] %v5534
    %5599 = vst [vmem:[#allocation3 + $0x7f0] sm:$0xff] %v5535
    %5600 = vst [vmem:[#allocation3 + $0x838] sm:$0xff] %v5536
    %5601 = vst [vmem:[#allocation3 + $0x880] sm:$0xff] %v5537
    %5602 = vst [vmem:[#allocation3 + $0x8c8] sm:$0xff] %v5538
    %5603 = vst [vmem:[#allocation3 + $0x910] sm:$0xff] %v5539
    %5604 = vst [vmem:[#allocation3 + $0x958] sm:$0xff] %v5540
    %5605 = vst [vmem:[#allocation3 + $0x9a0] sm:$0xff] %v5541
    %5606 = vst [vmem:[#allocation3 + $0x9e8] sm:$0xff] %v5542
    %5607 = vst [vmem:[#allocation3 + $0xa30] sm:$0xff] %v5543
    %5608 = vst [vmem:[#allocation3 + $0xa78] sm:$0xff] %v5544
    %5609 = vst [vmem:[#allocation3 + $0xac0] sm:$0xff] %v5545
    %5610 = vst [vmem:[#allocation3 + $0xb08] sm:$0xff] %v5546
    %5611 = vst [vmem:[#allocation3 + $0xb50] sm:$0xff] %v5547
    %5612 = vst [vmem:[#allocation3 + $0xb98] sm:$0xff] %v5548
    %5613 = vst [vmem:[#allocation3 + $0xbe0] sm:$0xff] %v5549
    %5614 = vst [vmem:[#allocation3 + $0xc28] sm:$0xff] %v5550
    %5615 = vst [vmem:[#allocation3 + $0xc70] sm:$0xff] %v5551
    %5616 = vst [vmem:[#allocation3 + $0xcb8] sm:$0xff] %v5552
    %5617 = vst [vmem:[#allocation3 + $0xd00] sm:$0xff] %v5553
    %5618 = vst [vmem:[#allocation3 + $0xd48] sm:$0xff] %v5554
    %5619 = vst [vmem:[#allocation3 + $0xd90] sm:$0xff] %v5555
    %5620 = vst [vmem:[#allocation3 + $0xdd8] sm:$0xff] %v5556
    %5621 = vst [vmem:[#allocation3 + $0xe20] sm:$0xff] %v5557
    %5622 = vst [vmem:[#allocation3 + $0xe68] sm:$0xff] %v5558
    %5623 = vst [vmem:[#allocation3 + $0xeb0] sm:$0xff] %v5559
    %5624 = vst [vmem:[#allocation3 + $0xef8] sm:$0xff] %v5560
    %5625 = vst [vmem:[#allocation3 + $0xf40] sm:$0xff] %v5561
    %5626 = vst [vmem:[#allocation3 + $0xf88] sm:$0xff] %v5562
    %5627 = vst [vmem:[#allocation3 + $0xfd0] sm:$0xff] %v5563
    %5628 = vst [vmem:[#allocation3 + $0x1018] sm:$0xff] %v5564
    %5629 = vst [vmem:[#allocation3 + $0x1060] sm:$0xff] %v5565
    %5630 = vst [vmem:[#allocation3 + $0x10a8] sm:$0xff] %v5566
    %5631 = vst [vmem:[#allocation3 + $0x10f0] sm:$0xff] %v5567
    %5632 = vst [vmem:[#allocation3 + $0x1138] sm:$0xff] %v5568
    %5633 = vst [vmem:[#allocation3 + $0x1180] sm:$0xff] %v5569
    %5634 = vst [vmem:[#allocation3 + $0x11c8] sm:$0xff] %v5570
    %v5635 = vld [vmem:[%s1063] sm:$0xff]
    %v5636 = vld [vmem:[%s1063 + $0x8] sm:$0xff]
    %v5637 = vld [vmem:[%s1063 + $0x18] sm:$0xff]
    %v5638 = vld [vmem:[%s1063 + $0x20] sm:$0xff]
    %v5639 = vld [vmem:[%s1063 + $0x30] sm:$0xff]
    %v5640 = vld [vmem:[%s1063 + $0x38] sm:$0xff]
    %v5641 = vld [vmem:[%s1063 + $0x48] sm:$0xff]
    %v5642 = vld [vmem:[%s1063 + $0x50] sm:$0xff]
    %v5643 = vld [vmem:[%s1063 + $0x60] sm:$0xff]
    %v5644 = vld [vmem:[%s1063 + $0x68] sm:$0xff]
    %v5645 = vld [vmem:[%s1063 + $0x78] sm:$0xff]
    %v5646 = vld [vmem:[%s1063 + $0x80] sm:$0xff]
    %v5647 = vld [vmem:[%s1063 + $0x90] sm:$0xff]
    %v5648 = vld [vmem:[%s1063 + $0x98] sm:$0xff]
    %v5649 = vld [vmem:[%s1063 + $0xa8] sm:$0xff]
    %v5650 = vld [vmem:[%s1063 + $0xb0] sm:$0xff]
    %v5651 = vld [vmem:[%s1063 + $0xc0] sm:$0xff]
    %v5652 = vld [vmem:[%s1063 + $0xc8] sm:$0xff]
    %v5653 = vld [vmem:[%s1063 + $0xd8] sm:$0xff]
    %v5654 = vld [vmem:[%s1063 + $0xe0] sm:$0xff]
    %v5655 = vld [vmem:[%s1063 + $0xf0] sm:$0xff]
    %v5656 = vld [vmem:[%s1063 + $0xf8] sm:$0xff]
    %v5657 = vld [vmem:[%s1063 + $0x108] sm:$0xff]
    %v5658 = vld [vmem:[%s1063 + $0x110] sm:$0xff]
    %v5659 = vld [vmem:[%s1063 + $0x120] sm:$0xff]
    %v5660 = vld [vmem:[%s1063 + $0x128] sm:$0xff]
    %v5661 = vld [vmem:[%s1063 + $0x138] sm:$0xff]
    %v5662 = vld [vmem:[%s1063 + $0x140] sm:$0xff]
    %v5663 = vld [vmem:[%s1063 + $0x150] sm:$0xff]
    %v5664 = vld [vmem:[%s1063 + $0x158] sm:$0xff]
    %v5665 = vld [vmem:[%s1063 + $0x168] sm:$0xff]
    %v5666 = vld [vmem:[%s1063 + $0x170] sm:$0xff]
    %v5667 = vld [vmem:[%s1063 + $0x1b0] sm:$0xff]
    %v5668 = vld [vmem:[%s1063 + $0x1b8] sm:$0xff]
    %v5669 = vld [vmem:[%s1063 + $0x1c8] sm:$0xff]
    %v5670 = vld [vmem:[%s1063 + $0x1d0] sm:$0xff]
    %v5671 = vld [vmem:[%s1063 + $0x1e0] sm:$0xff]
    %v5672 = vld [vmem:[%s1063 + $0x1e8] sm:$0xff]
    %v5673 = vld [vmem:[%s1063 + $0x1f8] sm:$0xff]
    %v5674 = vld [vmem:[%s1063 + $0x200] sm:$0xff]
    %v5675 = vld [vmem:[%s1063 + $0x210] sm:$0xff]
    %v5676 = vld [vmem:[%s1063 + $0x218] sm:$0xff]
    %v5677 = vld [vmem:[%s1063 + $0x228] sm:$0xff]
    %v5678 = vld [vmem:[%s1063 + $0x230] sm:$0xff]
    %v5679 = vld [vmem:[%s1063 + $0x240] sm:$0xff]
    %v5680 = vld [vmem:[%s1063 + $0x248] sm:$0xff]
    %v5681 = vld [vmem:[%s1063 + $0x258] sm:$0xff]
    %v5682 = vld [vmem:[%s1063 + $0x260] sm:$0xff]
    %v5683 = vld [vmem:[%s1063 + $0x270] sm:$0xff]
    %v5684 = vld [vmem:[%s1063 + $0x278] sm:$0xff]
    %v5685 = vld [vmem:[%s1063 + $0x288] sm:$0xff]
    %v5686 = vld [vmem:[%s1063 + $0x290] sm:$0xff]
    %v5687 = vld [vmem:[%s1063 + $0x2a0] sm:$0xff]
    %v5688 = vld [vmem:[%s1063 + $0x2a8] sm:$0xff]
    %v5689 = vld [vmem:[%s1063 + $0x2b8] sm:$0xff]
    %v5690 = vld [vmem:[%s1063 + $0x2c0] sm:$0xff]
    %v5691 = vld [vmem:[%s1063 + $0x2d0] sm:$0xff]
    %v5692 = vld [vmem:[%s1063 + $0x2d8] sm:$0xff]
    %v5693 = vld [vmem:[%s1063 + $0x2e8] sm:$0xff]
    %v5694 = vld [vmem:[%s1063 + $0x2f0] sm:$0xff]
    %v5695 = vld [vmem:[%s1063 + $0x300] sm:$0xff]
    %v5696 = vld [vmem:[%s1063 + $0x308] sm:$0xff]
    %v5697 = vld [vmem:[%s1063 + $0x318] sm:$0xff]
    %v5698 = vld [vmem:[%s1063 + $0x320] sm:$0xff]
    %5699 = vst [vmem:[#allocation3 + $0x18] sm:$0xff] %v5635
    %5700 = vst [vmem:[#allocation3 + $0x60] sm:$0xff] %v5636
    %5701 = vst [vmem:[#allocation3 + $0xa8] sm:$0xff] %v5637
    %5702 = vst [vmem:[#allocation3 + $0xf0] sm:$0xff] %v5638
    %5703 = vst [vmem:[#allocation3 + $0x138] sm:$0xff] %v5639
    %5704 = vst [vmem:[#allocation3 + $0x180] sm:$0xff] %v5640
    %5705 = vst [vmem:[#allocation3 + $0x1c8] sm:$0xff] %v5641
    %5706 = vst [vmem:[#allocation3 + $0x210] sm:$0xff] %v5642
    %5707 = vst [vmem:[#allocation3 + $0x258] sm:$0xff] %v5643
    %5708 = vst [vmem:[#allocation3 + $0x2a0] sm:$0xff] %v5644
    %5709 = vst [vmem:[#allocation3 + $0x2e8] sm:$0xff] %v5645
    %5710 = vst [vmem:[#allocation3 + $0x330] sm:$0xff] %v5646
    %5711 = vst [vmem:[#allocation3 + $0x378] sm:$0xff] %v5647
    %5712 = vst [vmem:[#allocation3 + $0x3c0] sm:$0xff] %v5648
    %5713 = vst [vmem:[#allocation3 + $0x408] sm:$0xff] %v5649
    %5714 = vst [vmem:[#allocation3 + $0x450] sm:$0xff] %v5650
    %5715 = vst [vmem:[#allocation3 + $0x498] sm:$0xff] %v5651
    %5716 = vst [vmem:[#allocation3 + $0x4e0] sm:$0xff] %v5652
    %5717 = vst [vmem:[#allocation3 + $0x528] sm:$0xff] %v5653
    %5718 = vst [vmem:[#allocation3 + $0x570] sm:$0xff] %v5654
    %5719 = vst [vmem:[#allocation3 + $0x5b8] sm:$0xff] %v5655
    %5720 = vst [vmem:[#allocation3 + $0x600] sm:$0xff] %v5656
    %5721 = vst [vmem:[#allocation3 + $0x648] sm:$0xff] %v5657
    %5722 = vst [vmem:[#allocation3 + $0x690] sm:$0xff] %v5658
    %5723 = vst [vmem:[#allocation3 + $0x6d8] sm:$0xff] %v5659
    %5724 = vst [vmem:[#allocation3 + $0x720] sm:$0xff] %v5660
    %5725 = vst [vmem:[#allocation3 + $0x768] sm:$0xff] %v5661
    %5726 = vst [vmem:[#allocation3 + $0x7b0] sm:$0xff] %v5662
    %5727 = vst [vmem:[#allocation3 + $0x7f8] sm:$0xff] %v5663
    %5728 = vst [vmem:[#allocation3 + $0x840] sm:$0xff] %v5664
    %5729 = vst [vmem:[#allocation3 + $0x888] sm:$0xff] %v5665
    %5730 = vst [vmem:[#allocation3 + $0x8d0] sm:$0xff] %v5666
    %5731 = vst [vmem:[#allocation3 + $0x918] sm:$0xff] %v5667
    %5732 = vst [vmem:[#allocation3 + $0x960] sm:$0xff] %v5668
    %5733 = vst [vmem:[#allocation3 + $0x9a8] sm:$0xff] %v5669
    %5734 = vst [vmem:[#allocation3 + $0x9f0] sm:$0xff] %v5670
    %5735 = vst [vmem:[#allocation3 + $0xa38] sm:$0xff] %v5671
    %5736 = vst [vmem:[#allocation3 + $0xa80] sm:$0xff] %v5672
    %5737 = vst [vmem:[#allocation3 + $0xac8] sm:$0xff] %v5673
    %5738 = vst [vmem:[#allocation3 + $0xb10] sm:$0xff] %v5674
    %5739 = vst [vmem:[#allocation3 + $0xb58] sm:$0xff] %v5675
    %5740 = vst [vmem:[#allocation3 + $0xba0] sm:$0xff] %v5676
    %5741 = vst [vmem:[#allocation3 + $0xbe8] sm:$0xff] %v5677
    %5742 = vst [vmem:[#allocation3 + $0xc30] sm:$0xff] %v5678
    %5743 = vst [vmem:[#allocation3 + $0xc78] sm:$0xff] %v5679
    %5744 = vst [vmem:[#allocation3 + $0xcc0] sm:$0xff] %v5680
    %5745 = vst [vmem:[#allocation3 + $0xd08] sm:$0xff] %v5681
    %5746 = vst [vmem:[#allocation3 + $0xd50] sm:$0xff] %v5682
    %5747 = vst [vmem:[#allocation3 + $0xd98] sm:$0xff] %v5683
    %5748 = vst [vmem:[#allocation3 + $0xde0] sm:$0xff] %v5684
    %5749 = vst [vmem:[#allocation3 + $0xe28] sm:$0xff] %v5685
    %5750 = vst [vmem:[#allocation3 + $0xe70] sm:$0xff] %v5686
    %5751 = vst [vmem:[#allocation3 + $0xeb8] sm:$0xff] %v5687
    %5752 = vst [vmem:[#allocation3 + $0xf00] sm:$0xff] %v5688
    %5753 = vst [vmem:[#allocation3 + $0xf48] sm:$0xff] %v5689
    %5754 = vst [vmem:[#allocation3 + $0xf90] sm:$0xff] %v5690
    %5755 = vst [vmem:[#allocation3 + $0xfd8] sm:$0xff] %v5691
    %5756 = vst [vmem:[#allocation3 + $0x1020] sm:$0xff] %v5692
    %5757 = vst [vmem:[#allocation3 + $0x1068] sm:$0xff] %v5693
    %5758 = vst [vmem:[#allocation3 + $0x10b0] sm:$0xff] %v5694
    %5759 = vst [vmem:[#allocation3 + $0x10f8] sm:$0xff] %v5695
    %5760 = vst [vmem:[#allocation3 + $0x1140] sm:$0xff] %v5696
    %5761 = vst [vmem:[#allocation3 + $0x1188] sm:$0xff] %v5697
    %5762 = vst [vmem:[#allocation3 + $0x11d0] sm:$0xff] %v5698
    %v5763 = vld [vmem:[%s1063 + $0x1] sm:$0xff]
    %v5764 = vld [vmem:[%s1063 + $0x9] sm:$0xff]
    %v5765 = vld [vmem:[%s1063 + $0x19] sm:$0xff]
    %v5766 = vld [vmem:[%s1063 + $0x21] sm:$0xff]
    %v5767 = vld [vmem:[%s1063 + $0x31] sm:$0xff]
    %v5768 = vld [vmem:[%s1063 + $0x39] sm:$0xff]
    %v5769 = vld [vmem:[%s1063 + $0x49] sm:$0xff]
    %v5770 = vld [vmem:[%s1063 + $0x51] sm:$0xff]
    %v5771 = vld [vmem:[%s1063 + $0x61] sm:$0xff]
    %v5772 = vld [vmem:[%s1063 + $0x69] sm:$0xff]
    %v5773 = vld [vmem:[%s1063 + $0x79] sm:$0xff]
    %v5774 = vld [vmem:[%s1063 + $0x81] sm:$0xff]
    %v5775 = vld [vmem:[%s1063 + $0x91] sm:$0xff]
    %v5776 = vld [vmem:[%s1063 + $0x99] sm:$0xff]
    %v5777 = vld [vmem:[%s1063 + $0xa9] sm:$0xff]
    %v5778 = vld [vmem:[%s1063 + $0xb1] sm:$0xff]
    %v5779 = vld [vmem:[%s1063 + $0xc1] sm:$0xff]
    %v5780 = vld [vmem:[%s1063 + $0xc9] sm:$0xff]
    %v5781 = vld [vmem:[%s1063 + $0xd9] sm:$0xff]
    %v5782 = vld [vmem:[%s1063 + $0xe1] sm:$0xff]
    %v5783 = vld [vmem:[%s1063 + $0xf1] sm:$0xff]
    %v5784 = vld [vmem:[%s1063 + $0xf9] sm:$0xff]
    %v5785 = vld [vmem:[%s1063 + $0x109] sm:$0xff]
    %v5786 = vld [vmem:[%s1063 + $0x111] sm:$0xff]
    %v5787 = vld [vmem:[%s1063 + $0x121] sm:$0xff]
    %v5788 = vld [vmem:[%s1063 + $0x129] sm:$0xff]
    %v5789 = vld [vmem:[%s1063 + $0x139] sm:$0xff]
    %v5790 = vld [vmem:[%s1063 + $0x141] sm:$0xff]
    %v5791 = vld [vmem:[%s1063 + $0x151] sm:$0xff]
    %v5792 = vld [vmem:[%s1063 + $0x159] sm:$0xff]
    %v5793 = vld [vmem:[%s1063 + $0x169] sm:$0xff]
    %v5794 = vld [vmem:[%s1063 + $0x171] sm:$0xff]
    %v5795 = vld [vmem:[%s1063 + $0x1b1] sm:$0xff]
    %v5796 = vld [vmem:[%s1063 + $0x1b9] sm:$0xff]
    %v5797 = vld [vmem:[%s1063 + $0x1c9] sm:$0xff]
    %v5798 = vld [vmem:[%s1063 + $0x1d1] sm:$0xff]
    %v5799 = vld [vmem:[%s1063 + $0x1e1] sm:$0xff]
    %v5800 = vld [vmem:[%s1063 + $0x1e9] sm:$0xff]
    %v5801 = vld [vmem:[%s1063 + $0x1f9] sm:$0xff]
    %v5802 = vld [vmem:[%s1063 + $0x201] sm:$0xff]
    %v5803 = vld [vmem:[%s1063 + $0x211] sm:$0xff]
    %v5804 = vld [vmem:[%s1063 + $0x219] sm:$0xff]
    %v5805 = vld [vmem:[%s1063 + $0x229] sm:$0xff]
    %v5806 = vld [vmem:[%s1063 + $0x231] sm:$0xff]
    %v5807 = vld [vmem:[%s1063 + $0x241] sm:$0xff]
    %v5808 = vld [vmem:[%s1063 + $0x249] sm:$0xff]
    %v5809 = vld [vmem:[%s1063 + $0x259] sm:$0xff]
    %v5810 = vld [vmem:[%s1063 + $0x261] sm:$0xff]
    %v5811 = vld [vmem:[%s1063 + $0x271] sm:$0xff]
    %v5812 = vld [vmem:[%s1063 + $0x279] sm:$0xff]
    %v5813 = vld [vmem:[%s1063 + $0x289] sm:$0xff]
    %v5814 = vld [vmem:[%s1063 + $0x291] sm:$0xff]
    %v5815 = vld [vmem:[%s1063 + $0x2a1] sm:$0xff]
    %v5816 = vld [vmem:[%s1063 + $0x2a9] sm:$0xff]
    %v5817 = vld [vmem:[%s1063 + $0x2b9] sm:$0xff]
    %v5818 = vld [vmem:[%s1063 + $0x2c1] sm:$0xff]
    %v5819 = vld [vmem:[%s1063 + $0x2d1] sm:$0xff]
    %v5820 = vld [vmem:[%s1063 + $0x2d9] sm:$0xff]
    %v5821 = vld [vmem:[%s1063 + $0x2e9] sm:$0xff]
    %v5822 = vld [vmem:[%s1063 + $0x2f1] sm:$0xff]
    %v5823 = vld [vmem:[%s1063 + $0x301] sm:$0xff]
    %v5824 = vld [vmem:[%s1063 + $0x309] sm:$0xff]
    %v5825 = vld [vmem:[%s1063 + $0x319] sm:$0xff]
    %v5826 = vld [vmem:[%s1063 + $0x321] sm:$0xff]
    %5827 = vst [vmem:[#allocation3 + $0x20] sm:$0xff] %v5763
    %5828 = vst [vmem:[#allocation3 + $0x68] sm:$0xff] %v5764
    %5829 = vst [vmem:[#allocation3 + $0xb0] sm:$0xff] %v5765
    %5830 = vst [vmem:[#allocation3 + $0xf8] sm:$0xff] %v5766
    %5831 = vst [vmem:[#allocation3 + $0x140] sm:$0xff] %v5767
    %5832 = vst [vmem:[#allocation3 + $0x188] sm:$0xff] %v5768
    %5833 = vst [vmem:[#allocation3 + $0x1d0] sm:$0xff] %v5769
    %5834 = vst [vmem:[#allocation3 + $0x218] sm:$0xff] %v5770
    %5835 = vst [vmem:[#allocation3 + $0x260] sm:$0xff] %v5771
    %5836 = vst [vmem:[#allocation3 + $0x2a8] sm:$0xff] %v5772
    %5837 = vst [vmem:[#allocation3 + $0x2f0] sm:$0xff] %v5773
    %5838 = vst [vmem:[#allocation3 + $0x338] sm:$0xff] %v5774
    %5839 = vst [vmem:[#allocation3 + $0x380] sm:$0xff] %v5775
    %5840 = vst [vmem:[#allocation3 + $0x3c8] sm:$0xff] %v5776
    %5841 = vst [vmem:[#allocation3 + $0x410] sm:$0xff] %v5777
    %5842 = vst [vmem:[#allocation3 + $0x458] sm:$0xff] %v5778
    %5843 = vst [vmem:[#allocation3 + $0x4a0] sm:$0xff] %v5779
    %5844 = vst [vmem:[#allocation3 + $0x4e8] sm:$0xff] %v5780
    %5845 = vst [vmem:[#allocation3 + $0x530] sm:$0xff] %v5781
    %5846 = vst [vmem:[#allocation3 + $0x578] sm:$0xff] %v5782
    %5847 = vst [vmem:[#allocation3 + $0x5c0] sm:$0xff] %v5783
    %5848 = vst [vmem:[#allocation3 + $0x608] sm:$0xff] %v5784
    %5849 = vst [vmem:[#allocation3 + $0x650] sm:$0xff] %v5785
    %5850 = vst [vmem:[#allocation3 + $0x698] sm:$0xff] %v5786
    %5851 = vst [vmem:[#allocation3 + $0x6e0] sm:$0xff] %v5787
    %5852 = vst [vmem:[#allocation3 + $0x728] sm:$0xff] %v5788
    %5853 = vst [vmem:[#allocation3 + $0x770] sm:$0xff] %v5789
    %5854 = vst [vmem:[#allocation3 + $0x7b8] sm:$0xff] %v5790
    %5855 = vst [vmem:[#allocation3 + $0x800] sm:$0xff] %v5791
    %5856 = vst [vmem:[#allocation3 + $0x848] sm:$0xff] %v5792
    %5857 = vst [vmem:[#allocation3 + $0x890] sm:$0xff] %v5793
    %5858 = vst [vmem:[#allocation3 + $0x8d8] sm:$0xff] %v5794
    %5859 = vst [vmem:[#allocation3 + $0x920] sm:$0xff] %v5795
    %5860 = vst [vmem:[#allocation3 + $0x968] sm:$0xff] %v5796
    %5861 = vst [vmem:[#allocation3 + $0x9b0] sm:$0xff] %v5797
    %5862 = vst [vmem:[#allocation3 + $0x9f8] sm:$0xff] %v5798
    %5863 = vst [vmem:[#allocation3 + $0xa40] sm:$0xff] %v5799
    %5864 = vst [vmem:[#allocation3 + $0xa88] sm:$0xff] %v5800
    %5865 = vst [vmem:[#allocation3 + $0xad0] sm:$0xff] %v5801
    %5866 = vst [vmem:[#allocation3 + $0xb18] sm:$0xff] %v5802
    %5867 = vst [vmem:[#allocation3 + $0xb60] sm:$0xff] %v5803
    %5868 = vst [vmem:[#allocation3 + $0xba8] sm:$0xff] %v5804
    %5869 = vst [vmem:[#allocation3 + $0xbf0] sm:$0xff] %v5805
    %5870 = vst [vmem:[#allocation3 + $0xc38] sm:$0xff] %v5806
    %5871 = vst [vmem:[#allocation3 + $0xc80] sm:$0xff] %v5807
    %5872 = vst [vmem:[#allocation3 + $0xcc8] sm:$0xff] %v5808
    %5873 = vst [vmem:[#allocation3 + $0xd10] sm:$0xff] %v5809
    %5874 = vst [vmem:[#allocation3 + $0xd58] sm:$0xff] %v5810
    %5875 = vst [vmem:[#allocation3 + $0xda0] sm:$0xff] %v5811
    %5876 = vst [vmem:[#allocation3 + $0xde8] sm:$0xff] %v5812
    %5877 = vst [vmem:[#allocation3 + $0xe30] sm:$0xff] %v5813
    %5878 = vst [vmem:[#allocation3 + $0xe78] sm:$0xff] %v5814
    %5879 = vst [vmem:[#allocation3 + $0xec0] sm:$0xff] %v5815
    %5880 = vst [vmem:[#allocation3 + $0xf08] sm:$0xff] %v5816
    %5881 = vst [vmem:[#allocation3 + $0xf50] sm:$0xff] %v5817
    %5882 = vst [vmem:[#allocation3 + $0xf98] sm:$0xff] %v5818
    %5883 = vst [vmem:[#allocation3 + $0xfe0] sm:$0xff] %v5819
    %5884 = vst [vmem:[#allocation3 + $0x1028] sm:$0xff] %v5820
    %5885 = vst [vmem:[#allocation3 + $0x1070] sm:$0xff] %v5821
    %5886 = vst [vmem:[#allocation3 + $0x10b8] sm:$0xff] %v5822
    %5887 = vst [vmem:[#allocation3 + $0x1100] sm:$0xff] %v5823
    %5888 = vst [vmem:[#allocation3 + $0x1148] sm:$0xff] %v5824
    %5889 = vst [vmem:[#allocation3 + $0x1190] sm:$0xff] %v5825
    %5890 = vst [vmem:[#allocation3 + $0x11d8] sm:$0xff] %v5826
    %v5891 = vld [vmem:[%s1063 + $0x2] sm:$0xff]
    %v5892 = vld [vmem:[%s1063 + $0xa] sm:$0xff]
    %v5893 = vld [vmem:[%s1063 + $0x1a] sm:$0xff]
    %v5894 = vld [vmem:[%s1063 + $0x22] sm:$0xff]
    %v5895 = vld [vmem:[%s1063 + $0x32] sm:$0xff]
    %v5896 = vld [vmem:[%s1063 + $0x3a] sm:$0xff]
    %v5897 = vld [vmem:[%s1063 + $0x4a] sm:$0xff]
    %v5898 = vld [vmem:[%s1063 + $0x52] sm:$0xff]
    %v5899 = vld [vmem:[%s1063 + $0x62] sm:$0xff]
    %v5900 = vld [vmem:[%s1063 + $0x6a] sm:$0xff]
    %v5901 = vld [vmem:[%s1063 + $0x7a] sm:$0xff]
    %v5902 = vld [vmem:[%s1063 + $0x82] sm:$0xff]
    %v5903 = vld [vmem:[%s1063 + $0x92] sm:$0xff]
    %v5904 = vld [vmem:[%s1063 + $0x9a] sm:$0xff]
    %v5905 = vld [vmem:[%s1063 + $0xaa] sm:$0xff]
    %v5906 = vld [vmem:[%s1063 + $0xb2] sm:$0xff]
    %v5907 = vld [vmem:[%s1063 + $0xc2] sm:$0xff]
    %v5908 = vld [vmem:[%s1063 + $0xca] sm:$0xff]
    %v5909 = vld [vmem:[%s1063 + $0xda] sm:$0xff]
    %v5910 = vld [vmem:[%s1063 + $0xe2] sm:$0xff]
    %v5911 = vld [vmem:[%s1063 + $0xf2] sm:$0xff]
    %v5912 = vld [vmem:[%s1063 + $0xfa] sm:$0xff]
    %v5913 = vld [vmem:[%s1063 + $0x10a] sm:$0xff]
    %v5914 = vld [vmem:[%s1063 + $0x112] sm:$0xff]
    %v5915 = vld [vmem:[%s1063 + $0x122] sm:$0xff]
    %v5916 = vld [vmem:[%s1063 + $0x12a] sm:$0xff]
    %v5917 = vld [vmem:[%s1063 + $0x13a] sm:$0xff]
    %v5918 = vld [vmem:[%s1063 + $0x142] sm:$0xff]
    %v5919 = vld [vmem:[%s1063 + $0x152] sm:$0xff]
    %v5920 = vld [vmem:[%s1063 + $0x15a] sm:$0xff]
    %v5921 = vld [vmem:[%s1063 + $0x16a] sm:$0xff]
    %v5922 = vld [vmem:[%s1063 + $0x172] sm:$0xff]
    %v5923 = vld [vmem:[%s1063 + $0x1b2] sm:$0xff]
    %v5924 = vld [vmem:[%s1063 + $0x1ba] sm:$0xff]
    %v5925 = vld [vmem:[%s1063 + $0x1ca] sm:$0xff]
    %v5926 = vld [vmem:[%s1063 + $0x1d2] sm:$0xff]
    %v5927 = vld [vmem:[%s1063 + $0x1e2] sm:$0xff]
    %v5928 = vld [vmem:[%s1063 + $0x1ea] sm:$0xff]
    %v5929 = vld [vmem:[%s1063 + $0x1fa] sm:$0xff]
    %v5930 = vld [vmem:[%s1063 + $0x202] sm:$0xff]
    %v5931 = vld [vmem:[%s1063 + $0x212] sm:$0xff]
    %v5932 = vld [vmem:[%s1063 + $0x21a] sm:$0xff]
    %v5933 = vld [vmem:[%s1063 + $0x22a] sm:$0xff]
    %v5934 = vld [vmem:[%s1063 + $0x232] sm:$0xff]
    %v5935 = vld [vmem:[%s1063 + $0x242] sm:$0xff]
    %v5936 = vld [vmem:[%s1063 + $0x24a] sm:$0xff]
    %v5937 = vld [vmem:[%s1063 + $0x25a] sm:$0xff]
    %v5938 = vld [vmem:[%s1063 + $0x262] sm:$0xff]
    %v5939 = vld [vmem:[%s1063 + $0x272] sm:$0xff]
    %v5940 = vld [vmem:[%s1063 + $0x27a] sm:$0xff]
    %v5941 = vld [vmem:[%s1063 + $0x28a] sm:$0xff]
    %v5942 = vld [vmem:[%s1063 + $0x292] sm:$0xff]
    %v5943 = vld [vmem:[%s1063 + $0x2a2] sm:$0xff]
    %v5944 = vld [vmem:[%s1063 + $0x2aa] sm:$0xff]
    %v5945 = vld [vmem:[%s1063 + $0x2ba] sm:$0xff]
    %v5946 = vld [vmem:[%s1063 + $0x2c2] sm:$0xff]
    %v5947 = vld [vmem:[%s1063 + $0x2d2] sm:$0xff]
    %v5948 = vld [vmem:[%s1063 + $0x2da] sm:$0xff]
    %v5949 = vld [vmem:[%s1063 + $0x2ea] sm:$0xff]
    %v5950 = vld [vmem:[%s1063 + $0x2f2] sm:$0xff]
    %v5951 = vld [vmem:[%s1063 + $0x302] sm:$0xff]
    %v5952 = vld [vmem:[%s1063 + $0x30a] sm:$0xff]
    %v5953 = vld [vmem:[%s1063 + $0x31a] sm:$0xff]
    %v5954 = vld [vmem:[%s1063 + $0x322] sm:$0xff]
    %5955 = vst [vmem:[#allocation3 + $0x28] sm:$0xff] %v5891
    %5956 = vst [vmem:[#allocation3 + $0x70] sm:$0xff] %v5892
    %5957 = vst [vmem:[#allocation3 + $0xb8] sm:$0xff] %v5893
    %5958 = vst [vmem:[#allocation3 + $0x100] sm:$0xff] %v5894
    %5959 = vst [vmem:[#allocation3 + $0x148] sm:$0xff] %v5895
    %5960 = vst [vmem:[#allocation3 + $0x190] sm:$0xff] %v5896
    %5961 = vst [vmem:[#allocation3 + $0x1d8] sm:$0xff] %v5897
    %5962 = vst [vmem:[#allocation3 + $0x220] sm:$0xff] %v5898
    %5963 = vst [vmem:[#allocation3 + $0x268] sm:$0xff] %v5899
    %5964 = vst [vmem:[#allocation3 + $0x2b0] sm:$0xff] %v5900
    %5965 = vst [vmem:[#allocation3 + $0x2f8] sm:$0xff] %v5901
    %5966 = vst [vmem:[#allocation3 + $0x340] sm:$0xff] %v5902
    %5967 = vst [vmem:[#allocation3 + $0x388] sm:$0xff] %v5903
    %5968 = vst [vmem:[#allocation3 + $0x3d0] sm:$0xff] %v5904
    %5969 = vst [vmem:[#allocation3 + $0x418] sm:$0xff] %v5905
    %5970 = vst [vmem:[#allocation3 + $0x460] sm:$0xff] %v5906
    %5971 = vst [vmem:[#allocation3 + $0x4a8] sm:$0xff] %v5907
    %5972 = vst [vmem:[#allocation3 + $0x4f0] sm:$0xff] %v5908
    %5973 = vst [vmem:[#allocation3 + $0x538] sm:$0xff] %v5909
    %5974 = vst [vmem:[#allocation3 + $0x580] sm:$0xff] %v5910
    %5975 = vst [vmem:[#allocation3 + $0x5c8] sm:$0xff] %v5911
    %5976 = vst [vmem:[#allocation3 + $0x610] sm:$0xff] %v5912
    %5977 = vst [vmem:[#allocation3 + $0x658] sm:$0xff] %v5913
    %5978 = vst [vmem:[#allocation3 + $0x6a0] sm:$0xff] %v5914
    %5979 = vst [vmem:[#allocation3 + $0x6e8] sm:$0xff] %v5915
    %5980 = vst [vmem:[#allocation3 + $0x730] sm:$0xff] %v5916
    %5981 = vst [vmem:[#allocation3 + $0x778] sm:$0xff] %v5917
    %5982 = vst [vmem:[#allocation3 + $0x7c0] sm:$0xff] %v5918
    %5983 = vst [vmem:[#allocation3 + $0x808] sm:$0xff] %v5919
    %5984 = vst [vmem:[#allocation3 + $0x850] sm:$0xff] %v5920
    %5985 = vst [vmem:[#allocation3 + $0x898] sm:$0xff] %v5921
    %5986 = vst [vmem:[#allocation3 + $0x8e0] sm:$0xff] %v5922
    %5987 = vst [vmem:[#allocation3 + $0x928] sm:$0xff] %v5923
    %5988 = vst [vmem:[#allocation3 + $0x970] sm:$0xff] %v5924
    %5989 = vst [vmem:[#allocation3 + $0x9b8] sm:$0xff] %v5925
    %5990 = vst [vmem:[#allocation3 + $0xa00] sm:$0xff] %v5926
    %5991 = vst [vmem:[#allocation3 + $0xa48] sm:$0xff] %v5927
    %5992 = vst [vmem:[#allocation3 + $0xa90] sm:$0xff] %v5928
    %5993 = vst [vmem:[#allocation3 + $0xad8] sm:$0xff] %v5929
    %5994 = vst [vmem:[#allocation3 + $0xb20] sm:$0xff] %v5930
    %5995 = vst [vmem:[#allocation3 + $0xb68] sm:$0xff] %v5931
    %5996 = vst [vmem:[#allocation3 + $0xbb0] sm:$0xff] %v5932
    %5997 = vst [vmem:[#allocation3 + $0xbf8] sm:$0xff] %v5933
    %5998 = vst [vmem:[#allocation3 + $0xc40] sm:$0xff] %v5934
    %5999 = vst [vmem:[#allocation3 + $0xc88] sm:$0xff] %v5935
    %6000 = vst [vmem:[#allocation3 + $0xcd0] sm:$0xff] %v5936
    %6001 = vst [vmem:[#allocation3 + $0xd18] sm:$0xff] %v5937
    %6002 = vst [vmem:[#allocation3 + $0xd60] sm:$0xff] %v5938
    %6003 = vst [vmem:[#allocation3 + $0xda8] sm:$0xff] %v5939
    %6004 = vst [vmem:[#allocation3 + $0xdf0] sm:$0xff] %v5940
    %6005 = vst [vmem:[#allocation3 + $0xe38] sm:$0xff] %v5941
    %6006 = vst [vmem:[#allocation3 + $0xe80] sm:$0xff] %v5942
    %6007 = vst [vmem:[#allocation3 + $0xec8] sm:$0xff] %v5943
    %6008 = vst [vmem:[#allocation3 + $0xf10] sm:$0xff] %v5944
    %6009 = vst [vmem:[#allocation3 + $0xf58] sm:$0xff] %v5945
    %6010 = vst [vmem:[#allocation3 + $0xfa0] sm:$0xff] %v5946
    %6011 = vst [vmem:[#allocation3 + $0xfe8] sm:$0xff] %v5947
    %6012 = vst [vmem:[#allocation3 + $0x1030] sm:$0xff] %v5948
    %6013 = vst [vmem:[#allocation3 + $0x1078] sm:$0xff] %v5949
    %6014 = vst [vmem:[#allocation3 + $0x10c0] sm:$0xff] %v5950
    %6015 = vst [vmem:[#allocation3 + $0x1108] sm:$0xff] %v5951
    %6016 = vst [vmem:[#allocation3 + $0x1150] sm:$0xff] %v5952
    %6017 = vst [vmem:[#allocation3 + $0x1198] sm:$0xff] %v5953
    %6018 = vst [vmem:[#allocation3 + $0x11e0] sm:$0xff] %v5954
    %v6019 = vld [vmem:[%s1997] sm:$0xff]
    %v6020 = vld [vmem:[%s1997 + $0x8] sm:$0xff]
    %v6021 = vld [vmem:[%s1997 + $0x18] sm:$0xff]
    %v6022 = vld [vmem:[%s1997 + $0x20] sm:$0xff]
    %v6023 = vld [vmem:[%s1997 + $0x30] sm:$0xff]
    %v6024 = vld [vmem:[%s1997 + $0x38] sm:$0xff]
    %v6025 = vld [vmem:[%s1997 + $0x48] sm:$0xff]
    %v6026 = vld [vmem:[%s1997 + $0x50] sm:$0xff]
    %v6027 = vld [vmem:[%s1997 + $0x60] sm:$0xff]
    %v6028 = vld [vmem:[%s1997 + $0x68] sm:$0xff]
    %v6029 = vld [vmem:[%s1997 + $0x78] sm:$0xff]
    %v6030 = vld [vmem:[%s1997 + $0x80] sm:$0xff]
    %v6031 = vld [vmem:[%s1997 + $0x90] sm:$0xff]
    %v6032 = vld [vmem:[%s1997 + $0x98] sm:$0xff]
    %v6033 = vld [vmem:[%s1997 + $0xa8] sm:$0xff]
    %v6034 = vld [vmem:[%s1997 + $0xb0] sm:$0xff]
    %v6035 = vld [vmem:[%s1997 + $0xc0] sm:$0xff]
    %v6036 = vld [vmem:[%s1997 + $0xc8] sm:$0xff]
    %v6037 = vld [vmem:[%s1997 + $0xd8] sm:$0xff]
    %v6038 = vld [vmem:[%s1997 + $0xe0] sm:$0xff]
    %v6039 = vld [vmem:[%s1997 + $0xf0] sm:$0xff]
    %v6040 = vld [vmem:[%s1997 + $0xf8] sm:$0xff]
    %v6041 = vld [vmem:[%s1997 + $0x108] sm:$0xff]
    %v6042 = vld [vmem:[%s1997 + $0x110] sm:$0xff]
    %v6043 = vld [vmem:[%s1997 + $0x120] sm:$0xff]
    %v6044 = vld [vmem:[%s1997 + $0x128] sm:$0xff]
    %v6045 = vld [vmem:[%s1997 + $0x138] sm:$0xff]
    %v6046 = vld [vmem:[%s1997 + $0x140] sm:$0xff]
    %v6047 = vld [vmem:[%s1997 + $0x150] sm:$0xff]
    %v6048 = vld [vmem:[%s1997 + $0x158] sm:$0xff]
    %v6049 = vld [vmem:[%s1997 + $0x168] sm:$0xff]
    %v6050 = vld [vmem:[%s1997 + $0x170] sm:$0xff]
    %v6051 = vld [vmem:[%s1997 + $0x1b0] sm:$0xff]
    %v6052 = vld [vmem:[%s1997 + $0x1b8] sm:$0xff]
    %v6053 = vld [vmem:[%s1997 + $0x1c8] sm:$0xff]
    %v6054 = vld [vmem:[%s1997 + $0x1d0] sm:$0xff]
    %v6055 = vld [vmem:[%s1997 + $0x1e0] sm:$0xff]
    %v6056 = vld [vmem:[%s1997 + $0x1e8] sm:$0xff]
    %v6057 = vld [vmem:[%s1997 + $0x1f8] sm:$0xff]
    %v6058 = vld [vmem:[%s1997 + $0x200] sm:$0xff]
    %v6059 = vld [vmem:[%s1997 + $0x210] sm:$0xff]
    %v6060 = vld [vmem:[%s1997 + $0x218] sm:$0xff]
    %v6061 = vld [vmem:[%s1997 + $0x228] sm:$0xff]
    %v6062 = vld [vmem:[%s1997 + $0x230] sm:$0xff]
    %v6063 = vld [vmem:[%s1997 + $0x240] sm:$0xff]
    %v6064 = vld [vmem:[%s1997 + $0x248] sm:$0xff]
    %v6065 = vld [vmem:[%s1997 + $0x258] sm:$0xff]
    %v6066 = vld [vmem:[%s1997 + $0x260] sm:$0xff]
    %v6067 = vld [vmem:[%s1997 + $0x270] sm:$0xff]
    %v6068 = vld [vmem:[%s1997 + $0x278] sm:$0xff]
    %v6069 = vld [vmem:[%s1997 + $0x288] sm:$0xff]
    %v6070 = vld [vmem:[%s1997 + $0x290] sm:$0xff]
    %v6071 = vld [vmem:[%s1997 + $0x2a0] sm:$0xff]
    %v6072 = vld [vmem:[%s1997 + $0x2a8] sm:$0xff]
    %v6073 = vld [vmem:[%s1997 + $0x2b8] sm:$0xff]
    %v6074 = vld [vmem:[%s1997 + $0x2c0] sm:$0xff]
    %v6075 = vld [vmem:[%s1997 + $0x2d0] sm:$0xff]
    %v6076 = vld [vmem:[%s1997 + $0x2d8] sm:$0xff]
    %v6077 = vld [vmem:[%s1997 + $0x2e8] sm:$0xff]
    %v6078 = vld [vmem:[%s1997 + $0x2f0] sm:$0xff]
    %v6079 = vld [vmem:[%s1997 + $0x300] sm:$0xff]
    %v6080 = vld [vmem:[%s1997 + $0x308] sm:$0xff]
    %v6081 = vld [vmem:[%s1997 + $0x318] sm:$0xff]
    %v6082 = vld [vmem:[%s1997 + $0x320] sm:$0xff]
    %6083 = vst [vmem:[#allocation3 + $0x30] sm:$0xff] %v6019
    %6084 = vst [vmem:[#allocation3 + $0x78] sm:$0xff] %v6020
    %6085 = vst [vmem:[#allocation3 + $0xc0] sm:$0xff] %v6021
    %6086 = vst [vmem:[#allocation3 + $0x108] sm:$0xff] %v6022
    %6087 = vst [vmem:[#allocation3 + $0x150] sm:$0xff] %v6023
    %6088 = vst [vmem:[#allocation3 + $0x198] sm:$0xff] %v6024
    %6089 = vst [vmem:[#allocation3 + $0x1e0] sm:$0xff] %v6025
    %6090 = vst [vmem:[#allocation3 + $0x228] sm:$0xff] %v6026
    %6091 = vst [vmem:[#allocation3 + $0x270] sm:$0xff] %v6027
    %6092 = vst [vmem:[#allocation3 + $0x2b8] sm:$0xff] %v6028
    %6093 = vst [vmem:[#allocation3 + $0x300] sm:$0xff] %v6029
    %6094 = vst [vmem:[#allocation3 + $0x348] sm:$0xff] %v6030
    %6095 = vst [vmem:[#allocation3 + $0x390] sm:$0xff] %v6031
    %6096 = vst [vmem:[#allocation3 + $0x3d8] sm:$0xff] %v6032
    %6097 = vst [vmem:[#allocation3 + $0x420] sm:$0xff] %v6033
    %6098 = vst [vmem:[#allocation3 + $0x468] sm:$0xff] %v6034
    %6099 = vst [vmem:[#allocation3 + $0x4b0] sm:$0xff] %v6035
    %6100 = vst [vmem:[#allocation3 + $0x4f8] sm:$0xff] %v6036
    %6101 = vst [vmem:[#allocation3 + $0x540] sm:$0xff] %v6037
    %6102 = vst [vmem:[#allocation3 + $0x588] sm:$0xff] %v6038
    %6103 = vst [vmem:[#allocation3 + $0x5d0] sm:$0xff] %v6039
    %6104 = vst [vmem:[#allocation3 + $0x618] sm:$0xff] %v6040
    %6105 = vst [vmem:[#allocation3 + $0x660] sm:$0xff] %v6041
    %6106 = vst [vmem:[#allocation3 + $0x6a8] sm:$0xff] %v6042
    %6107 = vst [vmem:[#allocation3 + $0x6f0] sm:$0xff] %v6043
    %6108 = vst [vmem:[#allocation3 + $0x738] sm:$0xff] %v6044
    %6109 = vst [vmem:[#allocation3 + $0x780] sm:$0xff] %v6045
    %6110 = vst [vmem:[#allocation3 + $0x7c8] sm:$0xff] %v6046
    %6111 = vst [vmem:[#allocation3 + $0x810] sm:$0xff] %v6047
    %6112 = vst [vmem:[#allocation3 + $0x858] sm:$0xff] %v6048
    %6113 = vst [vmem:[#allocation3 + $0x8a0] sm:$0xff] %v6049
    %6114 = vst [vmem:[#allocation3 + $0x8e8] sm:$0xff] %v6050
    %6115 = vst [vmem:[#allocation3 + $0x930] sm:$0xff] %v6051
    %6116 = vst [vmem:[#allocation3 + $0x978] sm:$0xff] %v6052
    %6117 = vst [vmem:[#allocation3 + $0x9c0] sm:$0xff] %v6053
    %6118 = vst [vmem:[#allocation3 + $0xa08] sm:$0xff] %v6054
    %6119 = vst [vmem:[#allocation3 + $0xa50] sm:$0xff] %v6055
    %6120 = vst [vmem:[#allocation3 + $0xa98] sm:$0xff] %v6056
    %6121 = vst [vmem:[#allocation3 + $0xae0] sm:$0xff] %v6057
    %6122 = vst [vmem:[#allocation3 + $0xb28] sm:$0xff] %v6058
    %6123 = vst [vmem:[#allocation3 + $0xb70] sm:$0xff] %v6059
    %6124 = vst [vmem:[#allocation3 + $0xbb8] sm:$0xff] %v6060
    %6125 = vst [vmem:[#allocation3 + $0xc00] sm:$0xff] %v6061
    %6126 = vst [vmem:[#allocation3 + $0xc48] sm:$0xff] %v6062
    %6127 = vst [vmem:[#allocation3 + $0xc90] sm:$0xff] %v6063
    %6128 = vst [vmem:[#allocation3 + $0xcd8] sm:$0xff] %v6064
    %6129 = vst [vmem:[#allocation3 + $0xd20] sm:$0xff] %v6065
    %6130 = vst [vmem:[#allocation3 + $0xd68] sm:$0xff] %v6066
    %6131 = vst [vmem:[#allocation3 + $0xdb0] sm:$0xff] %v6067
    %6132 = vst [vmem:[#allocation3 + $0xdf8] sm:$0xff] %v6068
    %6133 = vst [vmem:[#allocation3 + $0xe40] sm:$0xff] %v6069
    %6134 = vst [vmem:[#allocation3 + $0xe88] sm:$0xff] %v6070
    %6135 = vst [vmem:[#allocation3 + $0xed0] sm:$0xff] %v6071
    %6136 = vst [vmem:[#allocation3 + $0xf18] sm:$0xff] %v6072
    %6137 = vst [vmem:[#allocation3 + $0xf60] sm:$0xff] %v6073
    %6138 = vst [vmem:[#allocation3 + $0xfa8] sm:$0xff] %v6074
    %6139 = vst [vmem:[#allocation3 + $0xff0] sm:$0xff] %v6075
    %6140 = vst [vmem:[#allocation3 + $0x1038] sm:$0xff] %v6076
    %6141 = vst [vmem:[#allocation3 + $0x1080] sm:$0xff] %v6077
    %6142 = vst [vmem:[#allocation3 + $0x10c8] sm:$0xff] %v6078
    %6143 = vst [vmem:[#allocation3 + $0x1110] sm:$0xff] %v6079
    %6144 = vst [vmem:[#allocation3 + $0x1158] sm:$0xff] %v6080
    %6145 = vst [vmem:[#allocation3 + $0x11a0] sm:$0xff] %v6081
    %6146 = vst [vmem:[#allocation3 + $0x11e8] sm:$0xff] %v6082
    %v6147 = vld [vmem:[%s1997 + $0x1] sm:$0xff]
    %v6148 = vld [vmem:[%s1997 + $0x9] sm:$0xff]
    %v6149 = vld [vmem:[%s1997 + $0x19] sm:$0xff]
    %v6150 = vld [vmem:[%s1997 + $0x21] sm:$0xff]
    %v6151 = vld [vmem:[%s1997 + $0x31] sm:$0xff]
    %v6152 = vld [vmem:[%s1997 + $0x39] sm:$0xff]
    %v6153 = vld [vmem:[%s1997 + $0x49] sm:$0xff]
    %v6154 = vld [vmem:[%s1997 + $0x51] sm:$0xff]
    %v6155 = vld [vmem:[%s1997 + $0x61] sm:$0xff]
    %v6156 = vld [vmem:[%s1997 + $0x69] sm:$0xff]
    %v6157 = vld [vmem:[%s1997 + $0x79] sm:$0xff]
    %v6158 = vld [vmem:[%s1997 + $0x81] sm:$0xff]
    %v6159 = vld [vmem:[%s1997 + $0x91] sm:$0xff]
    %v6160 = vld [vmem:[%s1997 + $0x99] sm:$0xff]
    %v6161 = vld [vmem:[%s1997 + $0xa9] sm:$0xff]
    %v6162 = vld [vmem:[%s1997 + $0xb1] sm:$0xff]
    %v6163 = vld [vmem:[%s1997 + $0xc1] sm:$0xff]
    %v6164 = vld [vmem:[%s1997 + $0xc9] sm:$0xff]
    %v6165 = vld [vmem:[%s1997 + $0xd9] sm:$0xff]
    %v6166 = vld [vmem:[%s1997 + $0xe1] sm:$0xff]
    %v6167 = vld [vmem:[%s1997 + $0xf1] sm:$0xff]
    %v6168 = vld [vmem:[%s1997 + $0xf9] sm:$0xff]
    %v6169 = vld [vmem:[%s1997 + $0x109] sm:$0xff]
    %v6170 = vld [vmem:[%s1997 + $0x111] sm:$0xff]
    %v6171 = vld [vmem:[%s1997 + $0x121] sm:$0xff]
    %v6172 = vld [vmem:[%s1997 + $0x129] sm:$0xff]
    %v6173 = vld [vmem:[%s1997 + $0x139] sm:$0xff]
    %v6174 = vld [vmem:[%s1997 + $0x141] sm:$0xff]
    %v6175 = vld [vmem:[%s1997 + $0x151] sm:$0xff]
    %v6176 = vld [vmem:[%s1997 + $0x159] sm:$0xff]
    %v6177 = vld [vmem:[%s1997 + $0x169] sm:$0xff]
    %v6178 = vld [vmem:[%s1997 + $0x171] sm:$0xff]
    %v6179 = vld [vmem:[%s1997 + $0x1b1] sm:$0xff]
    %v6180 = vld [vmem:[%s1997 + $0x1b9] sm:$0xff]
    %v6181 = vld [vmem:[%s1997 + $0x1c9] sm:$0xff]
    %v6182 = vld [vmem:[%s1997 + $0x1d1] sm:$0xff]
    %v6183 = vld [vmem:[%s1997 + $0x1e1] sm:$0xff]
    %v6184 = vld [vmem:[%s1997 + $0x1e9] sm:$0xff]
    %v6185 = vld [vmem:[%s1997 + $0x1f9] sm:$0xff]
    %v6186 = vld [vmem:[%s1997 + $0x201] sm:$0xff]
    %v6187 = vld [vmem:[%s1997 + $0x211] sm:$0xff]
    %v6188 = vld [vmem:[%s1997 + $0x219] sm:$0xff]
    %v6189 = vld [vmem:[%s1997 + $0x229] sm:$0xff]
    %v6190 = vld [vmem:[%s1997 + $0x231] sm:$0xff]
    %v6191 = vld [vmem:[%s1997 + $0x241] sm:$0xff]
    %v6192 = vld [vmem:[%s1997 + $0x249] sm:$0xff]
    %v6193 = vld [vmem:[%s1997 + $0x259] sm:$0xff]
    %v6194 = vld [vmem:[%s1997 + $0x261] sm:$0xff]
    %v6195 = vld [vmem:[%s1997 + $0x271] sm:$0xff]
    %v6196 = vld [vmem:[%s1997 + $0x279] sm:$0xff]
    %v6197 = vld [vmem:[%s1997 + $0x289] sm:$0xff]
    %v6198 = vld [vmem:[%s1997 + $0x291] sm:$0xff]
    %v6199 = vld [vmem:[%s1997 + $0x2a1] sm:$0xff]
    %v6200 = vld [vmem:[%s1997 + $0x2a9] sm:$0xff]
    %v6201 = vld [vmem:[%s1997 + $0x2b9] sm:$0xff]
    %v6202 = vld [vmem:[%s1997 + $0x2c1] sm:$0xff]
    %v6203 = vld [vmem:[%s1997 + $0x2d1] sm:$0xff]
    %v6204 = vld [vmem:[%s1997 + $0x2d9] sm:$0xff]
    %v6205 = vld [vmem:[%s1997 + $0x2e9] sm:$0xff]
    %v6206 = vld [vmem:[%s1997 + $0x2f1] sm:$0xff]
    %v6207 = vld [vmem:[%s1997 + $0x301] sm:$0xff]
    %v6208 = vld [vmem:[%s1997 + $0x309] sm:$0xff]
    %v6209 = vld [vmem:[%s1997 + $0x319] sm:$0xff]
    %v6210 = vld [vmem:[%s1997 + $0x321] sm:$0xff]
    %6211 = vst [vmem:[#allocation3 + $0x38] sm:$0xff] %v6147
    %6212 = vst [vmem:[#allocation3 + $0x80] sm:$0xff] %v6148
    %6213 = vst [vmem:[#allocation3 + $0xc8] sm:$0xff] %v6149
    %6214 = vst [vmem:[#allocation3 + $0x110] sm:$0xff] %v6150
    %6215 = vst [vmem:[#allocation3 + $0x158] sm:$0xff] %v6151
    %6216 = vst [vmem:[#allocation3 + $0x1a0] sm:$0xff] %v6152
    %6217 = vst [vmem:[#allocation3 + $0x1e8] sm:$0xff] %v6153
    %6218 = vst [vmem:[#allocation3 + $0x230] sm:$0xff] %v6154
    %6219 = vst [vmem:[#allocation3 + $0x278] sm:$0xff] %v6155
    %6220 = vst [vmem:[#allocation3 + $0x2c0] sm:$0xff] %v6156
    %6221 = vst [vmem:[#allocation3 + $0x308] sm:$0xff] %v6157
    %6222 = vst [vmem:[#allocation3 + $0x350] sm:$0xff] %v6158
    %6223 = vst [vmem:[#allocation3 + $0x398] sm:$0xff] %v6159
    %6224 = vst [vmem:[#allocation3 + $0x3e0] sm:$0xff] %v6160
    %6225 = vst [vmem:[#allocation3 + $0x428] sm:$0xff] %v6161
    %6226 = vst [vmem:[#allocation3 + $0x470] sm:$0xff] %v6162
    %6227 = vst [vmem:[#allocation3 + $0x4b8] sm:$0xff] %v6163
    %6228 = vst [vmem:[#allocation3 + $0x500] sm:$0xff] %v6164
    %6229 = vst [vmem:[#allocation3 + $0x548] sm:$0xff] %v6165
    %6230 = vst [vmem:[#allocation3 + $0x590] sm:$0xff] %v6166
    %6231 = vst [vmem:[#allocation3 + $0x5d8] sm:$0xff] %v6167
    %6232 = vst [vmem:[#allocation3 + $0x620] sm:$0xff] %v6168
    %6233 = vst [vmem:[#allocation3 + $0x668] sm:$0xff] %v6169
    %6234 = vst [vmem:[#allocation3 + $0x6b0] sm:$0xff] %v6170
    %6235 = vst [vmem:[#allocation3 + $0x6f8] sm:$0xff] %v6171
    %6236 = vst [vmem:[#allocation3 + $0x740] sm:$0xff] %v6172
    %6237 = vst [vmem:[#allocation3 + $0x788] sm:$0xff] %v6173
    %6238 = vst [vmem:[#allocation3 + $0x7d0] sm:$0xff] %v6174
    %6239 = vst [vmem:[#allocation3 + $0x818] sm:$0xff] %v6175
    %6240 = vst [vmem:[#allocation3 + $0x860] sm:$0xff] %v6176
    %6241 = vst [vmem:[#allocation3 + $0x8a8] sm:$0xff] %v6177
    %6242 = vst [vmem:[#allocation3 + $0x8f0] sm:$0xff] %v6178
    %6243 = vst [vmem:[#allocation3 + $0x938] sm:$0xff] %v6179
    %6244 = vst [vmem:[#allocation3 + $0x980] sm:$0xff] %v6180
    %6245 = vst [vmem:[#allocation3 + $0x9c8] sm:$0xff] %v6181
    %6246 = vst [vmem:[#allocation3 + $0xa10] sm:$0xff] %v6182
    %6247 = vst [vmem:[#allocation3 + $0xa58] sm:$0xff] %v6183
    %6248 = vst [vmem:[#allocation3 + $0xaa0] sm:$0xff] %v6184
    %6249 = vst [vmem:[#allocation3 + $0xae8] sm:$0xff] %v6185
    %6250 = vst [vmem:[#allocation3 + $0xb30] sm:$0xff] %v6186
    %6251 = vst [vmem:[#allocation3 + $0xb78] sm:$0xff] %v6187
    %6252 = vst [vmem:[#allocation3 + $0xbc0] sm:$0xff] %v6188
    %6253 = vst [vmem:[#allocation3 + $0xc08] sm:$0xff] %v6189
    %6254 = vst [vmem:[#allocation3 + $0xc50] sm:$0xff] %v6190
    %6255 = vst [vmem:[#allocation3 + $0xc98] sm:$0xff] %v6191
    %6256 = vst [vmem:[#allocation3 + $0xce0] sm:$0xff] %v6192
    %6257 = vst [vmem:[#allocation3 + $0xd28] sm:$0xff] %v6193
    %6258 = vst [vmem:[#allocation3 + $0xd70] sm:$0xff] %v6194
    %6259 = vst [vmem:[#allocation3 + $0xdb8] sm:$0xff] %v6195
    %6260 = vst [vmem:[#allocation3 + $0xe00] sm:$0xff] %v6196
    %6261 = vst [vmem:[#allocation3 + $0xe48] sm:$0xff] %v6197
    %6262 = vst [vmem:[#allocation3 + $0xe90] sm:$0xff] %v6198
    %6263 = vst [vmem:[#allocation3 + $0xed8] sm:$0xff] %v6199
    %6264 = vst [vmem:[#allocation3 + $0xf20] sm:$0xff] %v6200
    %6265 = vst [vmem:[#allocation3 + $0xf68] sm:$0xff] %v6201
    %6266 = vst [vmem:[#allocation3 + $0xfb0] sm:$0xff] %v6202
    %6267 = vst [vmem:[#allocation3 + $0xff8] sm:$0xff] %v6203
    %6268 = vst [vmem:[#allocation3 + $0x1040] sm:$0xff] %v6204
    %6269 = vst [vmem:[#allocation3 + $0x1088] sm:$0xff] %v6205
    %6270 = vst [vmem:[#allocation3 + $0x10d0] sm:$0xff] %v6206
    %6271 = vst [vmem:[#allocation3 + $0x1118] sm:$0xff] %v6207
    %6272 = vst [vmem:[#allocation3 + $0x1160] sm:$0xff] %v6208
    %6273 = vst [vmem:[#allocation3 + $0x11a8] sm:$0xff] %v6209
    %6274 = vst [vmem:[#allocation3 + $0x11f0] sm:$0xff] %v6210
    %v6275 = vld [vmem:[%s1997 + $0x2] sm:$0xff]
    %v6276 = vld [vmem:[%s1997 + $0xa] sm:$0xff]
    %v6277 = vld [vmem:[%s1997 + $0x1a] sm:$0xff]
    %v6278 = vld [vmem:[%s1997 + $0x22] sm:$0xff]
    %v6279 = vld [vmem:[%s1997 + $0x32] sm:$0xff]
    %v6280 = vld [vmem:[%s1997 + $0x3a] sm:$0xff]
    %v6281 = vld [vmem:[%s1997 + $0x4a] sm:$0xff]
    %v6282 = vld [vmem:[%s1997 + $0x52] sm:$0xff]
    %v6283 = vld [vmem:[%s1997 + $0x62] sm:$0xff]
    %v6284 = vld [vmem:[%s1997 + $0x6a] sm:$0xff]
    %v6285 = vld [vmem:[%s1997 + $0x7a] sm:$0xff]
    %v6286 = vld [vmem:[%s1997 + $0x82] sm:$0xff]
    %v6287 = vld [vmem:[%s1997 + $0x92] sm:$0xff]
    %v6288 = vld [vmem:[%s1997 + $0x9a] sm:$0xff]
    %v6289 = vld [vmem:[%s1997 + $0xaa] sm:$0xff]
    %v6290 = vld [vmem:[%s1997 + $0xb2] sm:$0xff]
    %v6291 = vld [vmem:[%s1997 + $0xc2] sm:$0xff]
    %v6292 = vld [vmem:[%s1997 + $0xca] sm:$0xff]
    %v6293 = vld [vmem:[%s1997 + $0xda] sm:$0xff]
    %v6294 = vld [vmem:[%s1997 + $0xe2] sm:$0xff]
    %v6295 = vld [vmem:[%s1997 + $0xf2] sm:$0xff]
    %v6296 = vld [vmem:[%s1997 + $0xfa] sm:$0xff]
    %v6297 = vld [vmem:[%s1997 + $0x10a] sm:$0xff]
    %v6298 = vld [vmem:[%s1997 + $0x112] sm:$0xff]
    %v6299 = vld [vmem:[%s1997 + $0x122] sm:$0xff]
    %v6300 = vld [vmem:[%s1997 + $0x12a] sm:$0xff]
    %v6301 = vld [vmem:[%s1997 + $0x13a] sm:$0xff]
    %v6302 = vld [vmem:[%s1997 + $0x142] sm:$0xff]
    %v6303 = vld [vmem:[%s1997 + $0x152] sm:$0xff]
    %v6304 = vld [vmem:[%s1997 + $0x15a] sm:$0xff]
    %v6305 = vld [vmem:[%s1997 + $0x16a] sm:$0xff]
    %v6306 = vld [vmem:[%s1997 + $0x172] sm:$0xff]
    %v6307 = vld [vmem:[%s1997 + $0x1b2] sm:$0xff]
    %v6308 = vld [vmem:[%s1997 + $0x1ba] sm:$0xff]
    %v6309 = vld [vmem:[%s1997 + $0x1ca] sm:$0xff]
    %v6310 = vld [vmem:[%s1997 + $0x1d2] sm:$0xff]
    %v6311 = vld [vmem:[%s1997 + $0x1e2] sm:$0xff]
    %v6312 = vld [vmem:[%s1997 + $0x1ea] sm:$0xff]
    %v6313 = vld [vmem:[%s1997 + $0x1fa] sm:$0xff]
    %v6314 = vld [vmem:[%s1997 + $0x202] sm:$0xff]
    %v6315 = vld [vmem:[%s1997 + $0x212] sm:$0xff]
    %v6316 = vld [vmem:[%s1997 + $0x21a] sm:$0xff]
    %v6317 = vld [vmem:[%s1997 + $0x22a] sm:$0xff]
    %v6318 = vld [vmem:[%s1997 + $0x232] sm:$0xff]
    %v6319 = vld [vmem:[%s1997 + $0x242] sm:$0xff]
    %v6320 = vld [vmem:[%s1997 + $0x24a] sm:$0xff]
    %v6321 = vld [vmem:[%s1997 + $0x25a] sm:$0xff]
    %v6322 = vld [vmem:[%s1997 + $0x262] sm:$0xff]
    %v6323 = vld [vmem:[%s1997 + $0x272] sm:$0xff]
    %v6324 = vld [vmem:[%s1997 + $0x27a] sm:$0xff]
    %v6325 = vld [vmem:[%s1997 + $0x28a] sm:$0xff]
    %v6326 = vld [vmem:[%s1997 + $0x292] sm:$0xff]
    %v6327 = vld [vmem:[%s1997 + $0x2a2] sm:$0xff]
    %v6328 = vld [vmem:[%s1997 + $0x2aa] sm:$0xff]
    %v6329 = vld [vmem:[%s1997 + $0x2ba] sm:$0xff]
    %v6330 = vld [vmem:[%s1997 + $0x2c2] sm:$0xff]
    %v6331 = vld [vmem:[%s1997 + $0x2d2] sm:$0xff]
    %v6332 = vld [vmem:[%s1997 + $0x2da] sm:$0xff]
    %v6333 = vld [vmem:[%s1997 + $0x2ea] sm:$0xff]
    %v6334 = vld [vmem:[%s1997 + $0x2f2] sm:$0xff]
    %v6335 = vld [vmem:[%s1997 + $0x302] sm:$0xff]
    %v6336 = vld [vmem:[%s1997 + $0x30a] sm:$0xff]
    %v6337 = vld [vmem:[%s1997 + $0x31a] sm:$0xff]
    %v6338 = vld [vmem:[%s1997 + $0x322] sm:$0xff]
    %6339 = vst [vmem:[#allocation3 + $0x40] sm:$0xff] %v6275
    %6340 = vst [vmem:[#allocation3 + $0x88] sm:$0xff] %v6276
    %6341 = vst [vmem:[#allocation3 + $0xd0] sm:$0xff] %v6277
    %6342 = vst [vmem:[#allocation3 + $0x118] sm:$0xff] %v6278
    %6343 = vst [vmem:[#allocation3 + $0x160] sm:$0xff] %v6279
    %6344 = vst [vmem:[#allocation3 + $0x1a8] sm:$0xff] %v6280
    %6345 = vst [vmem:[#allocation3 + $0x1f0] sm:$0xff] %v6281
    %6346 = vst [vmem:[#allocation3 + $0x238] sm:$0xff] %v6282
    %6347 = vst [vmem:[#allocation3 + $0x280] sm:$0xff] %v6283
    %6348 = vst [vmem:[#allocation3 + $0x2c8] sm:$0xff] %v6284
    %6349 = vst [vmem:[#allocation3 + $0x310] sm:$0xff] %v6285
    %6350 = vst [vmem:[#allocation3 + $0x358] sm:$0xff] %v6286
    %6351 = vst [vmem:[#allocation3 + $0x3a0] sm:$0xff] %v6287
    %6352 = vst [vmem:[#allocation3 + $0x3e8] sm:$0xff] %v6288
    %6353 = vst [vmem:[#allocation3 + $0x430] sm:$0xff] %v6289
    %6354 = vst [vmem:[#allocation3 + $0x478] sm:$0xff] %v6290
    %6355 = vst [vmem:[#allocation3 + $0x4c0] sm:$0xff] %v6291
    %6356 = vst [vmem:[#allocation3 + $0x508] sm:$0xff] %v6292
    %6357 = vst [vmem:[#allocation3 + $0x550] sm:$0xff] %v6293
    %6358 = vst [vmem:[#allocation3 + $0x598] sm:$0xff] %v6294
    %6359 = vst [vmem:[#allocation3 + $0x5e0] sm:$0xff] %v6295
    %6360 = vst [vmem:[#allocation3 + $0x628] sm:$0xff] %v6296
    %6361 = vst [vmem:[#allocation3 + $0x670] sm:$0xff] %v6297
    %6362 = vst [vmem:[#allocation3 + $0x6b8] sm:$0xff] %v6298
    %6363 = vst [vmem:[#allocation3 + $0x700] sm:$0xff] %v6299
    %6364 = vst [vmem:[#allocation3 + $0x748] sm:$0xff] %v6300
    %6365 = vst [vmem:[#allocation3 + $0x790] sm:$0xff] %v6301
    %6366 = vst [vmem:[#allocation3 + $0x7d8] sm:$0xff] %v6302
    %6367 = vst [vmem:[#allocation3 + $0x820] sm:$0xff] %v6303
    %6368 = vst [vmem:[#allocation3 + $0x868] sm:$0xff] %v6304
    %6369 = vst [vmem:[#allocation3 + $0x8b0] sm:$0xff] %v6305
    %6370 = vst [vmem:[#allocation3 + $0x8f8] sm:$0xff] %v6306
    %6371 = vst [vmem:[#allocation3 + $0x940] sm:$0xff] %v6307
    %6372 = vst [vmem:[#allocation3 + $0x988] sm:$0xff] %v6308
    %6373 = vst [vmem:[#allocation3 + $0x9d0] sm:$0xff] %v6309
    %6374 = vst [vmem:[#allocation3 + $0xa18] sm:$0xff] %v6310
    %6375 = vst [vmem:[#allocation3 + $0xa60] sm:$0xff] %v6311
    %6376 = vst [vmem:[#allocation3 + $0xaa8] sm:$0xff] %v6312
    %6377 = vst [vmem:[#allocation3 + $0xaf0] sm:$0xff] %v6313
    %6378 = vst [vmem:[#allocation3 + $0xb38] sm:$0xff] %v6314
    %6379 = vst [vmem:[#allocation3 + $0xb80] sm:$0xff] %v6315
    %6380 = vst [vmem:[#allocation3 + $0xbc8] sm:$0xff] %v6316
    %6381 = vst [vmem:[#allocation3 + $0xc10] sm:$0xff] %v6317
    %6382 = vst [vmem:[#allocation3 + $0xc58] sm:$0xff] %v6318
    %6383 = vst [vmem:[#allocation3 + $0xca0] sm:$0xff] %v6319
    %6384 = vst [vmem:[#allocation3 + $0xce8] sm:$0xff] %v6320
    %6385 = vst [vmem:[#allocation3 + $0xd30] sm:$0xff] %v6321
    %6386 = vst [vmem:[#allocation3 + $0xd78] sm:$0xff] %v6322
    %6387 = vst [vmem:[#allocation3 + $0xdc0] sm:$0xff] %v6323
    %6388 = vst [vmem:[#allocation3 + $0xe08] sm:$0xff] %v6324
    %6389 = vst [vmem:[#allocation3 + $0xe50] sm:$0xff] %v6325
    %6390 = vst [vmem:[#allocation3 + $0xe98] sm:$0xff] %v6326
    %6391 = vst [vmem:[#allocation3 + $0xee0] sm:$0xff] %v6327
    %6392 = vst [vmem:[#allocation3 + $0xf28] sm:$0xff] %v6328
    %6393 = vst [vmem:[#allocation3 + $0xf70] sm:$0xff] %v6329
    %6394 = vst [vmem:[#allocation3 + $0xfb8] sm:$0xff] %v6330
    %6395 = vst [vmem:[#allocation3 + $0x1000] sm:$0xff] %v6331
    %6396 = vst [vmem:[#allocation3 + $0x1048] sm:$0xff] %v6332
    %6397 = vst [vmem:[#allocation3 + $0x1090] sm:$0xff] %v6333
    %6398 = vst [vmem:[#allocation3 + $0x10d8] sm:$0xff] %v6334
    %6399 = vst [vmem:[#allocation3 + $0x1120] sm:$0xff] %v6335
    %6400 = vst [vmem:[#allocation3 + $0x1168] sm:$0xff] %v6336
    %6401 = vst [vmem:[#allocation3 + $0x11b0] sm:$0xff] %v6337
    %6402 = vst [vmem:[#allocation3 + $0x11f8] sm:$0xff] %v6338
    %v6403 = vld [vmem:[%s15] sm:$0xff]
    %v6404 = vld [vmem:[%s15 + $0x8] sm:$0x1]
    %v6405 = vld [vmem:[#allocation3] sm:$0xff]
    %v6406 = vld [vmem:[#allocation3 + $0x8] sm:$0xff]
    %v6407 = vld [vmem:[#allocation3 + $0x10] sm:$0xff]
    %v6408 = vld [vmem:[#allocation3 + $0x18] sm:$0xff]
    %v6409 = vld [vmem:[#allocation3 + $0x20] sm:$0xff]
    %v6410 = vld [vmem:[#allocation3 + $0x28] sm:$0xff]
    %v6411 = vld [vmem:[#allocation3 + $0x30] sm:$0xff]
    %v6412 = vld [vmem:[#allocation3 + $0x38] sm:$0xff]
    %v6413 = vld [vmem:[#allocation3 + $0x40] sm:$0xff]
    %v6414 = vld [vmem:[#allocation3 + $0x48] sm:$0xff]
    %v6415 = vld [vmem:[#allocation3 + $0x50] sm:$0xff]
    %v6416 = vld [vmem:[#allocation3 + $0x58] sm:$0xff]
    %v6417 = vld [vmem:[#allocation3 + $0x60] sm:$0xff]
    %v6418 = vld [vmem:[#allocation3 + $0x68] sm:$0xff]
    %v6419 = vld [vmem:[#allocation3 + $0x70] sm:$0xff]
    %v6420 = vld [vmem:[#allocation3 + $0x78] sm:$0xff]
    %v6421 = vld [vmem:[#allocation3 + $0x80] sm:$0xff]
    %v6422 = vld [vmem:[#allocation3 + $0x88] sm:$0xff]
    %v6423 = vld [vmem:[#allocation3 + $0x90] sm:$0xff]
    %v6424 = vld [vmem:[#allocation3 + $0x98] sm:$0xff]
    %v6425 = vld [vmem:[#allocation3 + $0xa0] sm:$0xff]
    %v6426 = vld [vmem:[#allocation3 + $0xa8] sm:$0xff]
    %v6427 = vld [vmem:[#allocation3 + $0xb0] sm:$0xff]
    %v6428 = vld [vmem:[#allocation3 + $0xb8] sm:$0xff]
    %v6429 = vld [vmem:[#allocation3 + $0xc0] sm:$0xff]
    %v6430 = vld [vmem:[#allocation3 + $0xc8] sm:$0xff]
    %v6431 = vld [vmem:[#allocation3 + $0xd0] sm:$0xff]
    %v6432 = vld [vmem:[#allocation3 + $0xd8] sm:$0xff]
    %v6433 = vld [vmem:[#allocation3 + $0xe0] sm:$0xff]
    %v6434 = vld [vmem:[#allocation3 + $0xe8] sm:$0xff]
    %v6435 = vld [vmem:[#allocation3 + $0xf0] sm:$0xff]
    %v6436 = vld [vmem:[#allocation3 + $0xf8] sm:$0xff]
    %v6437 = vld [vmem:[#allocation3 + $0x100] sm:$0xff]
    %v6438 = vld [vmem:[#allocation3 + $0x108] sm:$0xff]
    %v6439 = vld [vmem:[#allocation3 + $0x110] sm:$0xff]
    %v6440 = vld [vmem:[#allocation3 + $0x118] sm:$0xff]
    %v6441 = vld [vmem:[#allocation3 + $0x120] sm:$0xff]
    %v6442 = vld [vmem:[#allocation3 + $0x128] sm:$0xff]
    %v6443 = vld [vmem:[#allocation3 + $0x130] sm:$0xff]
    %v6444 = vld [vmem:[#allocation3 + $0x138] sm:$0xff]
    %v6445 = vld [vmem:[#allocation3 + $0x140] sm:$0xff]
    %v6446 = vld [vmem:[#allocation3 + $0x148] sm:$0xff]
    %v6447 = vld [vmem:[#allocation3 + $0x150] sm:$0xff]
    %v6448 = vld [vmem:[#allocation3 + $0x158] sm:$0xff]
    %v6449 = vld [vmem:[#allocation3 + $0x160] sm:$0xff]
    %v6450 = vld [vmem:[#allocation3 + $0x168] sm:$0xff]
    %v6451 = vld [vmem:[#allocation3 + $0x170] sm:$0xff]
    %v6452 = vld [vmem:[#allocation3 + $0x178] sm:$0xff]
    %v6453 = vld [vmem:[#allocation3 + $0x180] sm:$0xff]
    %v6454 = vld [vmem:[#allocation3 + $0x188] sm:$0xff]
    %v6455 = vld [vmem:[#allocation3 + $0x190] sm:$0xff]
    %v6456 = vld [vmem:[#allocation3 + $0x198] sm:$0xff]
    %v6457 = vld [vmem:[#allocation3 + $0x1a0] sm:$0xff]
    %v6458 = vld [vmem:[#allocation3 + $0x1a8] sm:$0xff]
    %v6459 = vld [vmem:[#allocation3 + $0x1b0] sm:$0xff]
    %v6460 = vld [vmem:[#allocation3 + $0x1b8] sm:$0xff]
    %v6461 = vld [vmem:[#allocation3 + $0x1c0] sm:$0xff]
    %v6462 = vld [vmem:[#allocation3 + $0x1c8] sm:$0xff]
    %v6463 = vld [vmem:[#allocation3 + $0x1d0] sm:$0xff]
    %v6464 = vld [vmem:[#allocation3 + $0x1d8] sm:$0xff]
    %v6465 = vld [vmem:[#allocation3 + $0x1e0] sm:$0xff]
    %v6466 = vld [vmem:[#allocation3 + $0x1e8] sm:$0xff]
    %v6467 = vld [vmem:[#allocation3 + $0x1f0] sm:$0xff]
    %v6468 = vld [vmem:[#allocation3 + $0x1f8] sm:$0xff]
    %v6469 = vld [vmem:[#allocation3 + $0x200] sm:$0xff]
    %v6470 = vld [vmem:[#allocation3 + $0x208] sm:$0xff]
    %v6471 = vld [vmem:[#allocation3 + $0x210] sm:$0xff]
    %v6472 = vld [vmem:[#allocation3 + $0x218] sm:$0xff]
    %v6473 = vld [vmem:[#allocation3 + $0x220] sm:$0xff]
    %v6474 = vld [vmem:[#allocation3 + $0x228] sm:$0xff]
    %v6475 = vld [vmem:[#allocation3 + $0x230] sm:$0xff]
    %v6476 = vld [vmem:[#allocation3 + $0x238] sm:$0xff]
    %v6477 = vld [vmem:[#allocation3 + $0x240] sm:$0xff]
    %v6478 = vld [vmem:[#allocation3 + $0x248] sm:$0xff]
    %v6479 = vld [vmem:[#allocation3 + $0x250] sm:$0xff]
    %v6480 = vld [vmem:[#allocation3 + $0x258] sm:$0xff]
    %v6481 = vld [vmem:[#allocation3 + $0x260] sm:$0xff]
    %v6482 = vld [vmem:[#allocation3 + $0x268] sm:$0xff]
    %v6483 = vld [vmem:[#allocation3 + $0x270] sm:$0xff]
    %v6484 = vld [vmem:[#allocation3 + $0x278] sm:$0xff]
    %v6485 = vld [vmem:[#allocation3 + $0x280] sm:$0xff]
    %v6486 = vld [vmem:[#allocation3 + $0x288] sm:$0xff]
    %v6487 = vld [vmem:[#allocation3 + $0x290] sm:$0xff]
    %v6488 = vld [vmem:[#allocation3 + $0x298] sm:$0xff]
    %v6489 = vld [vmem:[#allocation3 + $0x2a0] sm:$0xff]
    %v6490 = vld [vmem:[#allocation3 + $0x2a8] sm:$0xff]
    %v6491 = vld [vmem:[#allocation3 + $0x2b0] sm:$0xff]
    %v6492 = vld [vmem:[#allocation3 + $0x2b8] sm:$0xff]
    %v6493 = vld [vmem:[#allocation3 + $0x2c0] sm:$0xff]
    %v6494 = vld [vmem:[#allocation3 + $0x2c8] sm:$0xff]
    %v6495 = vld [vmem:[#allocation3 + $0x2d0] sm:$0xff]
    %v6496 = vld [vmem:[#allocation3 + $0x2d8] sm:$0xff]
    %v6497 = vld [vmem:[#allocation3 + $0x2e0] sm:$0xff]
    %v6498 = vld [vmem:[#allocation3 + $0x2e8] sm:$0xff]
    %v6499 = vld [vmem:[#allocation3 + $0x2f0] sm:$0xff]
    %v6500 = vld [vmem:[#allocation3 + $0x2f8] sm:$0xff]
    %v6501 = vld [vmem:[#allocation3 + $0x300] sm:$0xff]
    %v6502 = vld [vmem:[#allocation3 + $0x308] sm:$0xff]
    %v6503 = vld [vmem:[#allocation3 + $0x310] sm:$0xff]
    %v6504 = vld [vmem:[#allocation3 + $0x318] sm:$0xff]
    %v6505 = vld [vmem:[#allocation3 + $0x320] sm:$0xff]
    %v6506 = vld [vmem:[#allocation3 + $0x328] sm:$0xff]
    %v6507 = vld [vmem:[#allocation3 + $0x330] sm:$0xff]
    %v6508 = vld [vmem:[#allocation3 + $0x338] sm:$0xff]
    %v6509 = vld [vmem:[#allocation3 + $0x340] sm:$0xff]
    %v6510 = vld [vmem:[#allocation3 + $0x348] sm:$0xff]
    %v6511 = vld [vmem:[#allocation3 + $0x350] sm:$0xff]
    %v6512 = vld [vmem:[#allocation3 + $0x358] sm:$0xff]
    %v6513 = vld [vmem:[#allocation3 + $0x360] sm:$0xff]
    %v6514 = vld [vmem:[#allocation3 + $0x368] sm:$0xff]
    %v6515 = vld [vmem:[#allocation3 + $0x370] sm:$0xff]
    %v6516 = vld [vmem:[#allocation3 + $0x378] sm:$0xff]
    %v6517 = vld [vmem:[#allocation3 + $0x380] sm:$0xff]
    %v6518 = vld [vmem:[#allocation3 + $0x388] sm:$0xff]
    %v6519 = vld [vmem:[#allocation3 + $0x390] sm:$0xff]
    %v6520 = vld [vmem:[#allocation3 + $0x398] sm:$0xff]
    %v6521 = vld [vmem:[#allocation3 + $0x3a0] sm:$0xff]
    %v6522 = vld [vmem:[#allocation3 + $0x3a8] sm:$0xff]
    %v6523 = vld [vmem:[#allocation3 + $0x3b0] sm:$0xff]
    %v6524 = vld [vmem:[#allocation3 + $0x3b8] sm:$0xff]
    %v6525 = vld [vmem:[#allocation3 + $0x3c0] sm:$0xff]
    %v6526 = vld [vmem:[#allocation3 + $0x3c8] sm:$0xff]
    %v6527 = vld [vmem:[#allocation3 + $0x3d0] sm:$0xff]
    %v6528 = vld [vmem:[#allocation3 + $0x3d8] sm:$0xff]
    %v6529 = vld [vmem:[#allocation3 + $0x3e0] sm:$0xff]
    %v6530 = vld [vmem:[#allocation3 + $0x3e8] sm:$0xff]
    %v6531 = vld [vmem:[#allocation3 + $0x3f0] sm:$0xff]
    %v6532 = vld [vmem:[#allocation3 + $0x3f8] sm:$0xff]
    %v6533 = vld [vmem:[#allocation3 + $0x400] sm:$0xff]
    %v6534 = vld [vmem:[#allocation3 + $0x408] sm:$0xff]
    %v6535 = vld [vmem:[#allocation3 + $0x410] sm:$0xff]
    %v6536 = vld [vmem:[#allocation3 + $0x418] sm:$0xff]
    %v6537 = vld [vmem:[#allocation3 + $0x420] sm:$0xff]
    %v6538 = vld [vmem:[#allocation3 + $0x428] sm:$0xff]
    %v6539 = vld [vmem:[#allocation3 + $0x430] sm:$0xff]
    %v6540 = vld [vmem:[#allocation3 + $0x438] sm:$0xff]
    %v6541 = vld [vmem:[#allocation3 + $0x440] sm:$0xff]
    %v6542 = vld [vmem:[#allocation3 + $0x448] sm:$0xff]
    %v6543 = vld [vmem:[#allocation3 + $0x450] sm:$0xff]
    %v6544 = vld [vmem:[#allocation3 + $0x458] sm:$0xff]
    %v6545 = vld [vmem:[#allocation3 + $0x460] sm:$0xff]
    %v6546 = vld [vmem:[#allocation3 + $0x468] sm:$0xff]
    %v6547 = vld [vmem:[#allocation3 + $0x470] sm:$0xff]
    %v6548 = vld [vmem:[#allocation3 + $0x478] sm:$0xff]
    %v6549 = vld [vmem:[#allocation3 + $0x480] sm:$0xff]
    %v6550 = vld [vmem:[#allocation3 + $0x488] sm:$0xff]
    %v6551 = vld [vmem:[#allocation3 + $0x490] sm:$0xff]
    %v6552 = vld [vmem:[#allocation3 + $0x498] sm:$0xff]
    %v6553 = vld [vmem:[#allocation3 + $0x4a0] sm:$0xff]
    %v6554 = vld [vmem:[#allocation3 + $0x4a8] sm:$0xff]
    %v6555 = vld [vmem:[#allocation3 + $0x4b0] sm:$0xff]
    %v6556 = vld [vmem:[#allocation3 + $0x4b8] sm:$0xff]
    %v6557 = vld [vmem:[#allocation3 + $0x4c0] sm:$0xff]
    %v6558 = vld [vmem:[#allocation3 + $0x4c8] sm:$0xff]
    %v6559 = vld [vmem:[#allocation3 + $0x4d0] sm:$0xff]
    %v6560 = vld [vmem:[#allocation3 + $0x4d8] sm:$0xff]
    %v6561 = vld [vmem:[#allocation3 + $0x4e0] sm:$0xff]
    %v6562 = vld [vmem:[#allocation3 + $0x4e8] sm:$0xff]
    %v6563 = vld [vmem:[#allocation3 + $0x4f0] sm:$0xff]
    %v6564 = vld [vmem:[#allocation3 + $0x4f8] sm:$0xff]
    %v6565 = vld [vmem:[#allocation3 + $0x500] sm:$0xff]
    %v6566 = vld [vmem:[#allocation3 + $0x508] sm:$0xff]
    %v6567 = vld [vmem:[#allocation3 + $0x510] sm:$0xff]
    %v6568 = vld [vmem:[#allocation3 + $0x518] sm:$0xff]
    %v6569 = vld [vmem:[#allocation3 + $0x520] sm:$0xff]
    %v6570 = vld [vmem:[#allocation3 + $0x528] sm:$0xff]
    %v6571 = vld [vmem:[#allocation3 + $0x530] sm:$0xff]
    %v6572 = vld [vmem:[#allocation3 + $0x538] sm:$0xff]
    %v6573 = vld [vmem:[#allocation3 + $0x540] sm:$0xff]
    %v6574 = vld [vmem:[#allocation3 + $0x548] sm:$0xff]
    %v6575 = vld [vmem:[#allocation3 + $0x550] sm:$0xff]
    %v6576 = vld [vmem:[#allocation3 + $0x558] sm:$0xff]
    %v6577 = vld [vmem:[#allocation3 + $0x560] sm:$0xff]
    %v6578 = vld [vmem:[#allocation3 + $0x568] sm:$0xff]
    %v6579 = vld [vmem:[#allocation3 + $0x570] sm:$0xff]
    %v6580 = vld [vmem:[#allocation3 + $0x578] sm:$0xff]
    %v6581 = vld [vmem:[#allocation3 + $0x580] sm:$0xff]
    %v6582 = vld [vmem:[#allocation3 + $0x588] sm:$0xff]
    %v6583 = vld [vmem:[#allocation3 + $0x590] sm:$0xff]
    %v6584 = vld [vmem:[#allocation3 + $0x598] sm:$0xff]
    %v6585 = vld [vmem:[#allocation3 + $0x5a0] sm:$0xff]
    %v6586 = vld [vmem:[#allocation3 + $0x5a8] sm:$0xff]
    %v6587 = vld [vmem:[#allocation3 + $0x5b0] sm:$0xff]
    %v6588 = vld [vmem:[#allocation3 + $0x5b8] sm:$0xff]
    %v6589 = vld [vmem:[#allocation3 + $0x5c0] sm:$0xff]
    %v6590 = vld [vmem:[#allocation3 + $0x5c8] sm:$0xff]
    %v6591 = vld [vmem:[#allocation3 + $0x5d0] sm:$0xff]
    %v6592 = vld [vmem:[#allocation3 + $0x5d8] sm:$0xff]
    %v6593 = vld [vmem:[#allocation3 + $0x5e0] sm:$0xff]
    %v6594 = vld [vmem:[#allocation3 + $0x5e8] sm:$0xff]
    %v6595 = vld [vmem:[#allocation3 + $0x5f0] sm:$0xff]
    %v6596 = vld [vmem:[#allocation3 + $0x5f8] sm:$0xff]
    %v6597 = vld [vmem:[#allocation3 + $0x600] sm:$0xff]
    %v6598 = vld [vmem:[#allocation3 + $0x608] sm:$0xff]
    %v6599 = vld [vmem:[#allocation3 + $0x610] sm:$0xff]
    %v6600 = vld [vmem:[#allocation3 + $0x618] sm:$0xff]
    %v6601 = vld [vmem:[#allocation3 + $0x620] sm:$0xff]
    %v6602 = vld [vmem:[#allocation3 + $0x628] sm:$0xff]
    %v6603 = vld [vmem:[#allocation3 + $0x630] sm:$0xff]
    %v6604 = vld [vmem:[#allocation3 + $0x638] sm:$0xff]
    %v6605 = vld [vmem:[#allocation3 + $0x640] sm:$0xff]
    %v6606 = vld [vmem:[#allocation3 + $0x648] sm:$0xff]
    %v6607 = vld [vmem:[#allocation3 + $0x650] sm:$0xff]
    %v6608 = vld [vmem:[#allocation3 + $0x658] sm:$0xff]
    %v6609 = vld [vmem:[#allocation3 + $0x660] sm:$0xff]
    %v6610 = vld [vmem:[#allocation3 + $0x668] sm:$0xff]
    %v6611 = vld [vmem:[#allocation3 + $0x670] sm:$0xff]
    %v6612 = vld [vmem:[#allocation3 + $0x678] sm:$0xff]
    %v6613 = vld [vmem:[#allocation3 + $0x680] sm:$0xff]
    %v6614 = vld [vmem:[#allocation3 + $0x688] sm:$0xff]
    %v6615 = vld [vmem:[#allocation3 + $0x690] sm:$0xff]
    %v6616 = vld [vmem:[#allocation3 + $0x698] sm:$0xff]
    %v6617 = vld [vmem:[#allocation3 + $0x6a0] sm:$0xff]
    %v6618 = vld [vmem:[#allocation3 + $0x6a8] sm:$0xff]
    %v6619 = vld [vmem:[#allocation3 + $0x6b0] sm:$0xff]
    %v6620 = vld [vmem:[#allocation3 + $0x6b8] sm:$0xff]
    %v6621 = vld [vmem:[#allocation3 + $0x6c0] sm:$0xff]
    %v6622 = vld [vmem:[#allocation3 + $0x6c8] sm:$0xff]
    %v6623 = vld [vmem:[#allocation3 + $0x6d0] sm:$0xff]
    %v6624 = vld [vmem:[#allocation3 + $0x6d8] sm:$0xff]
    %v6625 = vld [vmem:[#allocation3 + $0x6e0] sm:$0xff]
    %v6626 = vld [vmem:[#allocation3 + $0x6e8] sm:$0xff]
    %v6627 = vld [vmem:[#allocation3 + $0x6f0] sm:$0xff]
    %v6628 = vld [vmem:[#allocation3 + $0x6f8] sm:$0xff]
    %v6629 = vld [vmem:[#allocation3 + $0x700] sm:$0xff]
    %v6630 = vld [vmem:[#allocation3 + $0x708] sm:$0xff]
    %v6631 = vld [vmem:[#allocation3 + $0x710] sm:$0xff]
    %v6632 = vld [vmem:[#allocation3 + $0x718] sm:$0xff]
    %v6633 = vld [vmem:[#allocation3 + $0x720] sm:$0xff]
    %v6634 = vld [vmem:[#allocation3 + $0x728] sm:$0xff]
    %v6635 = vld [vmem:[#allocation3 + $0x730] sm:$0xff]
    %v6636 = vld [vmem:[#allocation3 + $0x738] sm:$0xff]
    %v6637 = vld [vmem:[#allocation3 + $0x740] sm:$0xff]
    %v6638 = vld [vmem:[#allocation3 + $0x748] sm:$0xff]
    %v6639 = vld [vmem:[#allocation3 + $0x750] sm:$0xff]
    %v6640 = vld [vmem:[#allocation3 + $0x758] sm:$0xff]
    %v6641 = vld [vmem:[#allocation3 + $0x760] sm:$0xff]
    %v6642 = vld [vmem:[#allocation3 + $0x768] sm:$0xff]
    %v6643 = vld [vmem:[#allocation3 + $0x770] sm:$0xff]
    %v6644 = vld [vmem:[#allocation3 + $0x778] sm:$0xff]
    %v6645 = vld [vmem:[#allocation3 + $0x780] sm:$0xff]
    %v6646 = vld [vmem:[#allocation3 + $0x788] sm:$0xff]
    %v6647 = vld [vmem:[#allocation3 + $0x790] sm:$0xff]
    %v6648 = vld [vmem:[#allocation3 + $0x798] sm:$0xff]
    %v6649 = vld [vmem:[#allocation3 + $0x7a0] sm:$0xff]
    %v6650 = vld [vmem:[#allocation3 + $0x7a8] sm:$0xff]
    %v6651 = vld [vmem:[#allocation3 + $0x7b0] sm:$0xff]
    %v6652 = vld [vmem:[#allocation3 + $0x7b8] sm:$0xff]
    %v6653 = vld [vmem:[#allocation3 + $0x7c0] sm:$0xff]
    %v6654 = vld [vmem:[#allocation3 + $0x7c8] sm:$0xff]
    %v6655 = vld [vmem:[#allocation3 + $0x7d0] sm:$0xff]
    %v6656 = vld [vmem:[#allocation3 + $0x7d8] sm:$0xff]
    %v6657 = vld [vmem:[#allocation3 + $0x7e0] sm:$0xff]
    %v6658 = vld [vmem:[#allocation3 + $0x7e8] sm:$0xff]
    %v6659 = vld [vmem:[#allocation3 + $0x7f0] sm:$0xff]
    %v6660 = vld [vmem:[#allocation3 + $0x7f8] sm:$0xff]
    %v6661 = vld [vmem:[#allocation3 + $0x800] sm:$0xff]
    %v6662 = vld [vmem:[#allocation3 + $0x808] sm:$0xff]
    %v6663 = vld [vmem:[#allocation3 + $0x810] sm:$0xff]
    %v6664 = vld [vmem:[#allocation3 + $0x818] sm:$0xff]
    %v6665 = vld [vmem:[#allocation3 + $0x820] sm:$0xff]
    %v6666 = vld [vmem:[#allocation3 + $0x828] sm:$0xff]
    %v6667 = vld [vmem:[#allocation3 + $0x830] sm:$0xff]
    %v6668 = vld [vmem:[#allocation3 + $0x838] sm:$0xff]
    %v6669 = vld [vmem:[#allocation3 + $0x840] sm:$0xff]
    %v6670 = vld [vmem:[#allocation3 + $0x848] sm:$0xff]
    %v6671 = vld [vmem:[#allocation3 + $0x850] sm:$0xff]
    %v6672 = vld [vmem:[#allocation3 + $0x858] sm:$0xff]
    %v6673 = vld [vmem:[#allocation3 + $0x860] sm:$0xff]
    %v6674 = vld [vmem:[#allocation3 + $0x868] sm:$0xff]
    %v6675 = vld [vmem:[#allocation3 + $0x870] sm:$0xff]
    %v6676 = vld [vmem:[#allocation3 + $0x878] sm:$0xff]
    %v6677 = vld [vmem:[#allocation3 + $0x880] sm:$0xff]
    %v6678 = vld [vmem:[#allocation3 + $0x888] sm:$0xff]
    %v6679 = vld [vmem:[#allocation3 + $0x890] sm:$0xff]
    %v6680 = vld [vmem:[#allocation3 + $0x898] sm:$0xff]
    %v6681 = vld [vmem:[#allocation3 + $0x8a0] sm:$0xff]
    %v6682 = vld [vmem:[#allocation3 + $0x8a8] sm:$0xff]
    %v6683 = vld [vmem:[#allocation3 + $0x8b0] sm:$0xff]
    %v6684 = vld [vmem:[#allocation3 + $0x8b8] sm:$0xff]
    %v6685 = vld [vmem:[#allocation3 + $0x8c0] sm:$0xff]
    %v6686 = vld [vmem:[#allocation3 + $0x8c8] sm:$0xff]
    %v6687 = vld [vmem:[#allocation3 + $0x8d0] sm:$0xff]
    %v6688 = vld [vmem:[#allocation3 + $0x8d8] sm:$0xff]
    %v6689 = vld [vmem:[#allocation3 + $0x8e0] sm:$0xff]
    %v6690 = vld [vmem:[#allocation3 + $0x8e8] sm:$0xff]
    %v6691 = vld [vmem:[#allocation3 + $0x8f0] sm:$0xff]
    %v6692 = vld [vmem:[#allocation3 + $0x8f8] sm:$0xff]
    %v6693 = vld [vmem:[#allocation3 + $0x900] sm:$0xff]
    %v6694 = vld [vmem:[#allocation3 + $0x908] sm:$0xff]
    %v6695 = vld [vmem:[#allocation3 + $0x910] sm:$0xff]
    %v6696 = vld [vmem:[#allocation3 + $0x918] sm:$0xff]
    %v6697 = vld [vmem:[#allocation3 + $0x920] sm:$0xff]
    %v6698 = vld [vmem:[#allocation3 + $0x928] sm:$0xff]
    %v6699 = vld [vmem:[#allocation3 + $0x930] sm:$0xff]
    %v6700 = vld [vmem:[#allocation3 + $0x938] sm:$0xff]
    %v6701 = vld [vmem:[#allocation3 + $0x940] sm:$0xff]
    %v6702 = vld [vmem:[#allocation3 + $0x948] sm:$0xff]
    %v6703 = vld [vmem:[#allocation3 + $0x950] sm:$0xff]
    %v6704 = vld [vmem:[#allocation3 + $0x958] sm:$0xff]
    %v6705 = vld [vmem:[#allocation3 + $0x960] sm:$0xff]
    %v6706 = vld [vmem:[#allocation3 + $0x968] sm:$0xff]
    %v6707 = vld [vmem:[#allocation3 + $0x970] sm:$0xff]
    %v6708 = vld [vmem:[#allocation3 + $0x978] sm:$0xff]
    %v6709 = vld [vmem:[#allocation3 + $0x980] sm:$0xff]
    %v6710 = vld [vmem:[#allocation3 + $0x988] sm:$0xff]
    %v6711 = vld [vmem:[#allocation3 + $0x990] sm:$0xff]
    %v6712 = vld [vmem:[#allocation3 + $0x998] sm:$0xff]
    %v6713 = vld [vmem:[#allocation3 + $0x9a0] sm:$0xff]
    %v6714 = vld [vmem:[#allocation3 + $0x9a8] sm:$0xff]
    %v6715 = vld [vmem:[#allocation3 + $0x9b0] sm:$0xff]
    %v6716 = vld [vmem:[#allocation3 + $0x9b8] sm:$0xff]
    %v6717 = vld [vmem:[#allocation3 + $0x9c0] sm:$0xff]
    %v6718 = vld [vmem:[#allocation3 + $0x9c8] sm:$0xff]
    %v6719 = vld [vmem:[#allocation3 + $0x9d0] sm:$0xff]
    %v6720 = vld [vmem:[#allocation3 + $0x9d8] sm:$0xff]
    %v6721 = vld [vmem:[#allocation3 + $0x9e0] sm:$0xff]
    %v6722 = vld [vmem:[#allocation3 + $0x9e8] sm:$0xff]
    %v6723 = vld [vmem:[#allocation3 + $0x9f0] sm:$0xff]
    %v6724 = vld [vmem:[#allocation3 + $0x9f8] sm:$0xff]
    %v6725 = vld [vmem:[#allocation3 + $0xa00] sm:$0xff]
    %v6726 = vld [vmem:[#allocation3 + $0xa08] sm:$0xff]
    %v6727 = vld [vmem:[#allocation3 + $0xa10] sm:$0xff]
    %v6728 = vld [vmem:[#allocation3 + $0xa18] sm:$0xff]
    %v6729 = vld [vmem:[#allocation3 + $0xa20] sm:$0xff]
    %v6730 = vld [vmem:[#allocation3 + $0xa28] sm:$0xff]
    %v6731 = vld [vmem:[#allocation3 + $0xa30] sm:$0xff]
    %v6732 = vld [vmem:[#allocation3 + $0xa38] sm:$0xff]
    %v6733 = vld [vmem:[#allocation3 + $0xa40] sm:$0xff]
    %v6734 = vld [vmem:[#allocation3 + $0xa48] sm:$0xff]
    %v6735 = vld [vmem:[#allocation3 + $0xa50] sm:$0xff]
    %v6736 = vld [vmem:[#allocation3 + $0xa58] sm:$0xff]
    %v6737 = vld [vmem:[#allocation3 + $0xa60] sm:$0xff]
    %v6738 = vld [vmem:[#allocation3 + $0xa68] sm:$0xff]
    %v6739 = vld [vmem:[#allocation3 + $0xa70] sm:$0xff]
    %v6740 = vld [vmem:[#allocation3 + $0xa78] sm:$0xff]
    %v6741 = vld [vmem:[#allocation3 + $0xa80] sm:$0xff]
    %v6742 = vld [vmem:[#allocation3 + $0xa88] sm:$0xff]
    %v6743 = vld [vmem:[#allocation3 + $0xa90] sm:$0xff]
    %v6744 = vld [vmem:[#allocation3 + $0xa98] sm:$0xff]
    %v6745 = vld [vmem:[#allocation3 + $0xaa0] sm:$0xff]
    %v6746 = vld [vmem:[#allocation3 + $0xaa8] sm:$0xff]
    %v6747 = vld [vmem:[#allocation3 + $0xab0] sm:$0xff]
    %v6748 = vld [vmem:[#allocation3 + $0xab8] sm:$0xff]
    %v6749 = vld [vmem:[#allocation3 + $0xac0] sm:$0xff]
    %v6750 = vld [vmem:[#allocation3 + $0xac8] sm:$0xff]
    %v6751 = vld [vmem:[#allocation3 + $0xad0] sm:$0xff]
    %v6752 = vld [vmem:[#allocation3 + $0xad8] sm:$0xff]
    %v6753 = vld [vmem:[#allocation3 + $0xae0] sm:$0xff]
    %v6754 = vld [vmem:[#allocation3 + $0xae8] sm:$0xff]
    %v6755 = vld [vmem:[#allocation3 + $0xaf0] sm:$0xff]
    %v6756 = vld [vmem:[#allocation3 + $0xaf8] sm:$0xff]
    %v6757 = vld [vmem:[#allocation3 + $0xb00] sm:$0xff]
    %v6758 = vld [vmem:[#allocation3 + $0xb08] sm:$0xff]
    %v6759 = vld [vmem:[#allocation3 + $0xb10] sm:$0xff]
    %v6760 = vld [vmem:[#allocation3 + $0xb18] sm:$0xff]
    %v6761 = vld [vmem:[#allocation3 + $0xb20] sm:$0xff]
    %v6762 = vld [vmem:[#allocation3 + $0xb28] sm:$0xff]
    %v6763 = vld [vmem:[#allocation3 + $0xb30] sm:$0xff]
    %v6764 = vld [vmem:[#allocation3 + $0xb38] sm:$0xff]
    %v6765 = vld [vmem:[#allocation3 + $0xb40] sm:$0xff]
    %v6766 = vld [vmem:[#allocation3 + $0xb48] sm:$0xff]
    %v6767 = vld [vmem:[#allocation3 + $0xb50] sm:$0xff]
    %v6768 = vld [vmem:[#allocation3 + $0xb58] sm:$0xff]
    %v6769 = vld [vmem:[#allocation3 + $0xb60] sm:$0xff]
    %v6770 = vld [vmem:[#allocation3 + $0xb68] sm:$0xff]
    %v6771 = vld [vmem:[#allocation3 + $0xb70] sm:$0xff]
    %v6772 = vld [vmem:[#allocation3 + $0xb78] sm:$0xff]
    %v6773 = vld [vmem:[#allocation3 + $0xb80] sm:$0xff]
    %v6774 = vld [vmem:[#allocation3 + $0xb88] sm:$0xff]
    %v6775 = vld [vmem:[#allocation3 + $0xb90] sm:$0xff]
    %v6776 = vld [vmem:[#allocation3 + $0xb98] sm:$0xff]
    %v6777 = vld [vmem:[#allocation3 + $0xba0] sm:$0xff]
    %v6778 = vld [vmem:[#allocation3 + $0xba8] sm:$0xff]
    %v6779 = vld [vmem:[#allocation3 + $0xbb0] sm:$0xff]
    %v6780 = vld [vmem:[#allocation3 + $0xbb8] sm:$0xff]
    %v6781 = vld [vmem:[#allocation3 + $0xbc0] sm:$0xff]
    %v6782 = vld [vmem:[#allocation3 + $0xbc8] sm:$0xff]
    %v6783 = vld [vmem:[#allocation3 + $0xbd0] sm:$0xff]
    %v6784 = vld [vmem:[#allocation3 + $0xbd8] sm:$0xff]
    %v6785 = vld [vmem:[#allocation3 + $0xbe0] sm:$0xff]
    %v6786 = vld [vmem:[#allocation3 + $0xbe8] sm:$0xff]
    %v6787 = vld [vmem:[#allocation3 + $0xbf0] sm:$0xff]
    %v6788 = vld [vmem:[#allocation3 + $0xbf8] sm:$0xff]
    %v6789 = vld [vmem:[#allocation3 + $0xc00] sm:$0xff]
    %v6790 = vld [vmem:[#allocation3 + $0xc08] sm:$0xff]
    %v6791 = vld [vmem:[#allocation3 + $0xc10] sm:$0xff]
    %v6792 = vld [vmem:[#allocation3 + $0xc18] sm:$0xff]
    %v6793 = vld [vmem:[#allocation3 + $0xc20] sm:$0xff]
    %v6794 = vld [vmem:[#allocation3 + $0xc28] sm:$0xff]
    %v6795 = vld [vmem:[#allocation3 + $0xc30] sm:$0xff]
    %v6796 = vld [vmem:[#allocation3 + $0xc38] sm:$0xff]
    %v6797 = vld [vmem:[#allocation3 + $0xc40] sm:$0xff]
    %v6798 = vld [vmem:[#allocation3 + $0xc48] sm:$0xff]
    %v6799 = vld [vmem:[#allocation3 + $0xc50] sm:$0xff]
    %v6800 = vld [vmem:[#allocation3 + $0xc58] sm:$0xff]
    %v6801 = vld [vmem:[#allocation3 + $0xc60] sm:$0xff]
    %v6802 = vld [vmem:[#allocation3 + $0xc68] sm:$0xff]
    %v6803 = vld [vmem:[#allocation3 + $0xc70] sm:$0xff]
    %v6804 = vld [vmem:[#allocation3 + $0xc78] sm:$0xff]
    %v6805 = vld [vmem:[#allocation3 + $0xc80] sm:$0xff]
    %v6806 = vld [vmem:[#allocation3 + $0xc88] sm:$0xff]
    %v6807 = vld [vmem:[#allocation3 + $0xc90] sm:$0xff]
    %v6808 = vld [vmem:[#allocation3 + $0xc98] sm:$0xff]
    %v6809 = vld [vmem:[#allocation3 + $0xca0] sm:$0xff]
    %v6810 = vld [vmem:[#allocation3 + $0xca8] sm:$0xff]
    %v6811 = vld [vmem:[#allocation3 + $0xcb0] sm:$0xff]
    %v6812 = vld [vmem:[#allocation3 + $0xcb8] sm:$0xff]
    %v6813 = vld [vmem:[#allocation3 + $0xcc0] sm:$0xff]
    %v6814 = vld [vmem:[#allocation3 + $0xcc8] sm:$0xff]
    %v6815 = vld [vmem:[#allocation3 + $0xcd0] sm:$0xff]
    %v6816 = vld [vmem:[#allocation3 + $0xcd8] sm:$0xff]
    %v6817 = vld [vmem:[#allocation3 + $0xce0] sm:$0xff]
    %v6818 = vld [vmem:[#allocation3 + $0xce8] sm:$0xff]
    %v6819 = vld [vmem:[#allocation3 + $0xcf0] sm:$0xff]
    %v6820 = vld [vmem:[#allocation3 + $0xcf8] sm:$0xff]
    %v6821 = vld [vmem:[#allocation3 + $0xd00] sm:$0xff]
    %v6822 = vld [vmem:[#allocation3 + $0xd08] sm:$0xff]
    %v6823 = vld [vmem:[#allocation3 + $0xd10] sm:$0xff]
    %v6824 = vld [vmem:[#allocation3 + $0xd18] sm:$0xff]
    %v6825 = vld [vmem:[#allocation3 + $0xd20] sm:$0xff]
    %v6826 = vld [vmem:[#allocation3 + $0xd28] sm:$0xff]
    %v6827 = vld [vmem:[#allocation3 + $0xd30] sm:$0xff]
    %v6828 = vld [vmem:[#allocation3 + $0xd38] sm:$0xff]
    %v6829 = vld [vmem:[#allocation3 + $0xd40] sm:$0xff]
    %v6830 = vld [vmem:[#allocation3 + $0xd48] sm:$0xff]
    %v6831 = vld [vmem:[#allocation3 + $0xd50] sm:$0xff]
    %v6832 = vld [vmem:[#allocation3 + $0xd58] sm:$0xff]
    %v6833 = vld [vmem:[#allocation3 + $0xd60] sm:$0xff]
    %v6834 = vld [vmem:[#allocation3 + $0xd68] sm:$0xff]
    %v6835 = vld [vmem:[#allocation3 + $0xd70] sm:$0xff]
    %v6836 = vld [vmem:[#allocation3 + $0xd78] sm:$0xff]
    %v6837 = vld [vmem:[#allocation3 + $0xd80] sm:$0xff]
    %v6838 = vld [vmem:[#allocation3 + $0xd88] sm:$0xff]
    %v6839 = vld [vmem:[#allocation3 + $0xd90] sm:$0xff]
    %v6840 = vld [vmem:[#allocation3 + $0xd98] sm:$0xff]
    %v6841 = vld [vmem:[#allocation3 + $0xda0] sm:$0xff]
    %v6842 = vld [vmem:[#allocation3 + $0xda8] sm:$0xff]
    %v6843 = vld [vmem:[#allocation3 + $0xdb0] sm:$0xff]
    %v6844 = vld [vmem:[#allocation3 + $0xdb8] sm:$0xff]
    %v6845 = vld [vmem:[#allocation3 + $0xdc0] sm:$0xff]
    %v6846 = vld [vmem:[#allocation3 + $0xdc8] sm:$0xff]
    %v6847 = vld [vmem:[#allocation3 + $0xdd0] sm:$0xff]
    %v6848 = vld [vmem:[#allocation3 + $0xdd8] sm:$0xff]
    %v6849 = vld [vmem:[#allocation3 + $0xde0] sm:$0xff]
    %v6850 = vld [vmem:[#allocation3 + $0xde8] sm:$0xff]
    %v6851 = vld [vmem:[#allocation3 + $0xdf0] sm:$0xff]
    %v6852 = vld [vmem:[#allocation3 + $0xdf8] sm:$0xff]
    %v6853 = vld [vmem:[#allocation3 + $0xe00] sm:$0xff]
    %v6854 = vld [vmem:[#allocation3 + $0xe08] sm:$0xff]
    %v6855 = vld [vmem:[#allocation3 + $0xe10] sm:$0xff]
    %v6856 = vld [vmem:[#allocation3 + $0xe18] sm:$0xff]
    %v6857 = vld [vmem:[#allocation3 + $0xe20] sm:$0xff]
    %v6858 = vld [vmem:[#allocation3 + $0xe28] sm:$0xff]
    %v6859 = vld [vmem:[#allocation3 + $0xe30] sm:$0xff]
    %v6860 = vld [vmem:[#allocation3 + $0xe38] sm:$0xff]
    %v6861 = vld [vmem:[#allocation3 + $0xe40] sm:$0xff]
    %v6862 = vld [vmem:[#allocation3 + $0xe48] sm:$0xff]
    %v6863 = vld [vmem:[#allocation3 + $0xe50] sm:$0xff]
    %v6864 = vld [vmem:[#allocation3 + $0xe58] sm:$0xff]
    %v6865 = vld [vmem:[#allocation3 + $0xe60] sm:$0xff]
    %v6866 = vld [vmem:[#allocation3 + $0xe68] sm:$0xff]
    %v6867 = vld [vmem:[#allocation3 + $0xe70] sm:$0xff]
    %v6868 = vld [vmem:[#allocation3 + $0xe78] sm:$0xff]
    %v6869 = vld [vmem:[#allocation3 + $0xe80] sm:$0xff]
    %v6870 = vld [vmem:[#allocation3 + $0xe88] sm:$0xff]
    %v6871 = vld [vmem:[#allocation3 + $0xe90] sm:$0xff]
    %v6872 = vld [vmem:[#allocation3 + $0xe98] sm:$0xff]
    %v6873 = vld [vmem:[#allocation3 + $0xea0] sm:$0xff]
    %v6874 = vld [vmem:[#allocation3 + $0xea8] sm:$0xff]
    %v6875 = vld [vmem:[#allocation3 + $0xeb0] sm:$0xff]
    %v6876 = vld [vmem:[#allocation3 + $0xeb8] sm:$0xff]
    %v6877 = vld [vmem:[#allocation3 + $0xec0] sm:$0xff]
    %v6878 = vld [vmem:[#allocation3 + $0xec8] sm:$0xff]
    %v6879 = vld [vmem:[#allocation3 + $0xed0] sm:$0xff]
    %v6880 = vld [vmem:[#allocation3 + $0xed8] sm:$0xff]
    %v6881 = vld [vmem:[#allocation3 + $0xee0] sm:$0xff]
    %v6882 = vld [vmem:[#allocation3 + $0xee8] sm:$0xff]
    %v6883 = vld [vmem:[#allocation3 + $0xef0] sm:$0xff]
    %v6884 = vld [vmem:[#allocation3 + $0xef8] sm:$0xff]
    %v6885 = vld [vmem:[#allocation3 + $0xf00] sm:$0xff]
    %v6886 = vld [vmem:[#allocation3 + $0xf08] sm:$0xff]
    %v6887 = vld [vmem:[#allocation3 + $0xf10] sm:$0xff]
    %v6888 = vld [vmem:[#allocation3 + $0xf18] sm:$0xff]
    %v6889 = vld [vmem:[#allocation3 + $0xf20] sm:$0xff]
    %v6890 = vld [vmem:[#allocation3 + $0xf28] sm:$0xff]
    %v6891 = vld [vmem:[#allocation3 + $0xf30] sm:$0xff]
    %v6892 = vld [vmem:[#allocation3 + $0xf38] sm:$0xff]
    %v6893 = vld [vmem:[#allocation3 + $0xf40] sm:$0xff]
    %v6894 = vld [vmem:[#allocation3 + $0xf48] sm:$0xff]
    %v6895 = vld [vmem:[#allocation3 + $0xf50] sm:$0xff]
    %v6896 = vld [vmem:[#allocation3 + $0xf58] sm:$0xff]
    %v6897 = vld [vmem:[#allocation3 + $0xf60] sm:$0xff]
    %v6898 = vld [vmem:[#allocation3 + $0xf68] sm:$0xff]
    %v6899 = vld [vmem:[#allocation3 + $0xf70] sm:$0xff]
    %v6900 = vld [vmem:[#allocation3 + $0xf78] sm:$0xff]
    %v6901 = vld [vmem:[#allocation3 + $0xf80] sm:$0xff]
    %v6902 = vld [vmem:[#allocation3 + $0xf88] sm:$0xff]
    %v6903 = vld [vmem:[#allocation3 + $0xf90] sm:$0xff]
    %v6904 = vld [vmem:[#allocation3 + $0xf98] sm:$0xff]
    %v6905 = vld [vmem:[#allocation3 + $0xfa0] sm:$0xff]
    %v6906 = vld [vmem:[#allocation3 + $0xfa8] sm:$0xff]
    %v6907 = vld [vmem:[#allocation3 + $0xfb0] sm:$0xff]
    %v6908 = vld [vmem:[#allocation3 + $0xfb8] sm:$0xff]
    %v6909 = vld [vmem:[#allocation3 + $0xfc0] sm:$0xff]
    %v6910 = vld [vmem:[#allocation3 + $0xfc8] sm:$0xff]
    %v6911 = vld [vmem:[#allocation3 + $0xfd0] sm:$0xff]
    %v6912 = vld [vmem:[#allocation3 + $0xfd8] sm:$0xff]
    %v6913 = vld [vmem:[#allocation3 + $0xfe0] sm:$0xff]
    %v6914 = vld [vmem:[#allocation3 + $0xfe8] sm:$0xff]
    %v6915 = vld [vmem:[#allocation3 + $0xff0] sm:$0xff]
    %v6916 = vld [vmem:[#allocation3 + $0xff8] sm:$0xff]
    %v6917 = vld [vmem:[#allocation3 + $0x1000] sm:$0xff]
    %v6918 = vld [vmem:[#allocation3 + $0x1008] sm:$0xff]
    %v6919 = vld [vmem:[#allocation3 + $0x1010] sm:$0xff]
    %v6920 = vld [vmem:[#allocation3 + $0x1018] sm:$0xff]
    %v6921 = vld [vmem:[#allocation3 + $0x1020] sm:$0xff]
    %v6922 = vld [vmem:[#allocation3 + $0x1028] sm:$0xff]
    %v6923 = vld [vmem:[#allocation3 + $0x1030] sm:$0xff]
    %v6924 = vld [vmem:[#allocation3 + $0x1038] sm:$0xff]
    %v6925 = vld [vmem:[#allocation3 + $0x1040] sm:$0xff]
    %v6926 = vld [vmem:[#allocation3 + $0x1048] sm:$0xff]
    %v6927 = vld [vmem:[#allocation3 + $0x1050] sm:$0xff]
    %v6928 = vld [vmem:[#allocation3 + $0x1058] sm:$0xff]
    %v6929 = vld [vmem:[#allocation3 + $0x1060] sm:$0xff]
    %v6930 = vld [vmem:[#allocation3 + $0x1068] sm:$0xff]
    %v6931 = vld [vmem:[#allocation3 + $0x1070] sm:$0xff]
    %v6932 = vld [vmem:[#allocation3 + $0x1078] sm:$0xff]
    %v6933 = vld [vmem:[#allocation3 + $0x1080] sm:$0xff]
    %v6934 = vld [vmem:[#allocation3 + $0x1088] sm:$0xff]
    %v6935 = vld [vmem:[#allocation3 + $0x1090] sm:$0xff]
    %v6936 = vld [vmem:[#allocation3 + $0x1098] sm:$0xff]
    %v6937 = vld [vmem:[#allocation3 + $0x10a0] sm:$0xff]
    %v6938 = vld [vmem:[#allocation3 + $0x10a8] sm:$0xff]
    %v6939 = vld [vmem:[#allocation3 + $0x10b0] sm:$0xff]
    %v6940 = vld [vmem:[#allocation3 + $0x10b8] sm:$0xff]
    %v6941 = vld [vmem:[#allocation3 + $0x10c0] sm:$0xff]
    %v6942 = vld [vmem:[#allocation3 + $0x10c8] sm:$0xff]
    %v6943 = vld [vmem:[#allocation3 + $0x10d0] sm:$0xff]
    %v6944 = vld [vmem:[#allocation3 + $0x10d8] sm:$0xff]
    %v6945 = vld [vmem:[#allocation3 + $0x10e0] sm:$0xff]
    %v6946 = vld [vmem:[#allocation3 + $0x10e8] sm:$0xff]
    %v6947 = vld [vmem:[#allocation3 + $0x10f0] sm:$0xff]
    %v6948 = vld [vmem:[#allocation3 + $0x10f8] sm:$0xff]
    %v6949 = vld [vmem:[#allocation3 + $0x1100] sm:$0xff]
    %v6950 = vld [vmem:[#allocation3 + $0x1108] sm:$0xff]
    %v6951 = vld [vmem:[#allocation3 + $0x1110] sm:$0xff]
    %v6952 = vld [vmem:[#allocation3 + $0x1118] sm:$0xff]
    %v6953 = vld [vmem:[#allocation3 + $0x1120] sm:$0xff]
    %v6954 = vld [vmem:[#allocation3 + $0x1128] sm:$0xff]
    %v6955 = vld [vmem:[#allocation3 + $0x1130] sm:$0xff]
    %v6956 = vld [vmem:[#allocation3 + $0x1138] sm:$0xff]
    %v6957 = vld [vmem:[#allocation3 + $0x1140] sm:$0xff]
    %v6958 = vld [vmem:[#allocation3 + $0x1148] sm:$0xff]
    %v6959 = vld [vmem:[#allocation3 + $0x1150] sm:$0xff]
    %v6960 = vld [vmem:[#allocation3 + $0x1158] sm:$0xff]
    %v6961 = vld [vmem:[#allocation3 + $0x1160] sm:$0xff]
    %v6962 = vld [vmem:[#allocation3 + $0x1168] sm:$0xff]
    %v6963 = vld [vmem:[#allocation3 + $0x1170] sm:$0xff]
    %v6964 = vld [vmem:[#allocation3 + $0x1178] sm:$0xff]
    %v6965 = vld [vmem:[#allocation3 + $0x1180] sm:$0xff]
    %v6966 = vld [vmem:[#allocation3 + $0x1188] sm:$0xff]
    %v6967 = vld [vmem:[#allocation3 + $0x1190] sm:$0xff]
    %v6968 = vld [vmem:[#allocation3 + $0x1198] sm:$0xff]
    %v6969 = vld [vmem:[#allocation3 + $0x11a0] sm:$0xff]
    %v6970 = vld [vmem:[#allocation3 + $0x11a8] sm:$0xff]
    %v6971 = vld [vmem:[#allocation3 + $0x11b0] sm:$0xff]
    %v6972 = vld [vmem:[#allocation3 + $0x11b8] sm:$0xff]
    %v6973 = vld [vmem:[#allocation3 + $0x11c0] sm:$0xff]
    %v6974 = vld [vmem:[#allocation3 + $0x11c8] sm:$0xff]
    %v6975 = vld [vmem:[#allocation3 + $0x11d0] sm:$0xff]
    %v6976 = vld [vmem:[#allocation3 + $0x11d8] sm:$0xff]
    %v6977 = vld [vmem:[#allocation3 + $0x11e0] sm:$0xff]
    %v6978 = vld [vmem:[#allocation3 + $0x11e8] sm:$0xff]
    %v6979 = vld [vmem:[#allocation3 + $0x11f0] sm:$0xff]
    %v6980 = vld [vmem:[#allocation3 + $0x11f8] sm:$0xff]
    %v6981 = vld [vmem:[#allocation6] sm:$0x1]
    %6983 = vset.pattern.permute.xlu0 0
    %6984 = vperm.xlu0 %6983, %v6981
    %v6985 = vpop.permute.xlu0 %6984
    %v6987 = vperm.slane %v6985, 0
    %v6990 = vperm.slane %v6403, 0
    %v6991 = vperm.slane %v6403, 1
    %v6992 = vperm.slane %v6403, 2
    %v6993 = vperm.slane %v6403, 3
    %v6994 = vperm.slane %v6403, 4
    %v6995 = vperm.slane %v6403, 5
    %v6996 = vperm.slane %v6403, 6
    %v6997 = vperm.slane %v6403, 7
    %v6998 = vperm.slane %v6404, 0
    %7008 = vmatpush.xpose.msra.mxu0 %v6540
    %7009 = vmatpush.xpose.msra.mxu0 %v6531
    %7010 = vmatpush.xpose.msra.mxu0 %v6522
    %7011 = vmatpush.xpose.msra.mxu0 %v6513
    %7012 = vmatpush.xpose.msra.mxu0 %v6504
    %7013 = vmatpush.xpose.msra.mxu0 %v6495
    %7014 = vmatpush.xpose.msra.mxu0 %v6486
    %7015 = vmatpush.xpose.msra.mxu0 %v6477
    %7016 = vmatpush.xpose.msra.mxu0 %v6468
    %7017 = vmatpush.xpose.msra.mxu0 %v6459
    %7018 = vmatpush.xpose.msra.mxu0 %v6450
    %7019 = vmatpush.xpose.msra.mxu0 %v6441
    %7020 = vmatpush.xpose.msra.mxu0 %v6432
    %7021 = vmatpush.xpose.msra.mxu0 %v6423
    %7022 = vmatpush.xpose.msra.mxu0 %v6414
    %7023 = vmatpush.xpose.msra.mxu0 %v6405
    %7024 = vmatmul.f32.gmra.mxu0 %v6990
    %v7025 = vpop.f32.mrf.mxu0
    %v7026 = vadd.f32 %v6987, %v7025
    %7027 = vdwg.mxu0
    %7028 = vmatpush.xpose.msra.mxu0 %v6541
    %7029 = vmatpush.xpose.msra.mxu0 %v6532
    %7030 = vmatpush.xpose.msra.mxu0 %v6523
    %7031 = vmatpush.xpose.msra.mxu0 %v6514
    %7032 = vmatpush.xpose.msra.mxu0 %v6505
    %7033 = vmatpush.xpose.msra.mxu0 %v6496
    %7034 = vmatpush.xpose.msra.mxu0 %v6487
    %7035 = vmatpush.xpose.msra.mxu0 %v6478
    %7036 = vmatpush.xpose.msra.mxu0 %v6469
    %7037 = vmatpush.xpose.msra.mxu0 %v6460
    %7038 = vmatpush.xpose.msra.mxu0 %v6451
    %7039 = vmatpush.xpose.msra.mxu0 %v6442
    %7040 = vmatpush.xpose.msra.mxu0 %v6433
    %7041 = vmatpush.xpose.msra.mxu0 %v6424
    %7042 = vmatpush.xpose.msra.mxu0 %v6415
    %7043 = vmatpush.xpose.msra.mxu0 %v6406
    %7044 = vmatmul.f32.gmra.mxu0 %v6991
    %v7045 = vpop.f32.mrf.mxu0
    %v7046 = vadd.f32 %v7026, %v7045
    %7047 = vdwg.mxu0
    %7048 = vmatpush.xpose.msra.mxu0 %v6542
    %7049 = vmatpush.xpose.msra.mxu0 %v6533
    %7050 = vmatpush.xpose.msra.mxu0 %v6524
    %7051 = vmatpush.xpose.msra.mxu0 %v6515
    %7052 = vmatpush.xpose.msra.mxu0 %v6506
    %7053 = vmatpush.xpose.msra.mxu0 %v6497
    %7054 = vmatpush.xpose.msra.mxu0 %v6488
    %7055 = vmatpush.xpose.msra.mxu0 %v6479
    %7056 = vmatpush.xpose.msra.mxu0 %v6470
    %7057 = vmatpush.xpose.msra.mxu0 %v6461
    %7058 = vmatpush.xpose.msra.mxu0 %v6452
    %7059 = vmatpush.xpose.msra.mxu0 %v6443
    %7060 = vmatpush.xpose.msra.mxu0 %v6434
    %7061 = vmatpush.xpose.msra.mxu0 %v6425
    %7062 = vmatpush.xpose.msra.mxu0 %v6416
    %7063 = vmatpush.xpose.msra.mxu0 %v6407
    %7064 = vmatmul.f32.gmra.mxu0 %v6992
    %v7065 = vpop.f32.mrf.mxu0
    %v7066 = vadd.f32 %v7046, %v7065
    %7067 = vdwg.mxu0
    %7068 = vmatpush.xpose.msra.mxu0 %v6543
    %7069 = vmatpush.xpose.msra.mxu0 %v6534
    %7070 = vmatpush.xpose.msra.mxu0 %v6525
    %7071 = vmatpush.xpose.msra.mxu0 %v6516
    %7072 = vmatpush.xpose.msra.mxu0 %v6507
    %7073 = vmatpush.xpose.msra.mxu0 %v6498
    %7074 = vmatpush.xpose.msra.mxu0 %v6489
    %7075 = vmatpush.xpose.msra.mxu0 %v6480
    %7076 = vmatpush.xpose.msra.mxu0 %v6471
    %7077 = vmatpush.xpose.msra.mxu0 %v6462
    %7078 = vmatpush.xpose.msra.mxu0 %v6453
    %7079 = vmatpush.xpose.msra.mxu0 %v6444
    %7080 = vmatpush.xpose.msra.mxu0 %v6435
    %7081 = vmatpush.xpose.msra.mxu0 %v6426
    %7082 = vmatpush.xpose.msra.mxu0 %v6417
    %7083 = vmatpush.xpose.msra.mxu0 %v6408
    %7084 = vmatmul.f32.gmra.mxu0 %v6993
    %v7085 = vpop.f32.mrf.mxu0
    %v7086 = vadd.f32 %v7066, %v7085
    %7087 = vdwg.mxu0
    %7088 = vmatpush.xpose.msra.mxu0 %v6544
    %7089 = vmatpush.xpose.msra.mxu0 %v6535
    %7090 = vmatpush.xpose.msra.mxu0 %v6526
    %7091 = vmatpush.xpose.msra.mxu0 %v6517
    %7092 = vmatpush.xpose.msra.mxu0 %v6508
    %7093 = vmatpush.xpose.msra.mxu0 %v6499
    %7094 = vmatpush.xpose.msra.mxu0 %v6490
    %7095 = vmatpush.xpose.msra.mxu0 %v6481
    %7096 = vmatpush.xpose.msra.mxu0 %v6472
    %7097 = vmatpush.xpose.msra.mxu0 %v6463
    %7098 = vmatpush.xpose.msra.mxu0 %v6454
    %7099 = vmatpush.xpose.msra.mxu0 %v6445
    %7100 = vmatpush.xpose.msra.mxu0 %v6436
    %7101 = vmatpush.xpose.msra.mxu0 %v6427
    %7102 = vmatpush.xpose.msra.mxu0 %v6418
    %7103 = vmatpush.xpose.msra.mxu0 %v6409
    %7104 = vmatmul.f32.gmra.mxu0 %v6994
    %v7105 = vpop.f32.mrf.mxu0
    %v7106 = vadd.f32 %v7086, %v7105
    %7107 = vdwg.mxu0
    %7108 = vmatpush.xpose.msra.mxu0 %v6545
    %7109 = vmatpush.xpose.msra.mxu0 %v6536
    %7110 = vmatpush.xpose.msra.mxu0 %v6527
    %7111 = vmatpush.xpose.msra.mxu0 %v6518
    %7112 = vmatpush.xpose.msra.mxu0 %v6509
    %7113 = vmatpush.xpose.msra.mxu0 %v6500
    %7114 = vmatpush.xpose.msra.mxu0 %v6491
    %7115 = vmatpush.xpose.msra.mxu0 %v6482
    %7116 = vmatpush.xpose.msra.mxu0 %v6473
    %7117 = vmatpush.xpose.msra.mxu0 %v6464
    %7118 = vmatpush.xpose.msra.mxu0 %v6455
    %7119 = vmatpush.xpose.msra.mxu0 %v6446
    %7120 = vmatpush.xpose.msra.mxu0 %v6437
    %7121 = vmatpush.xpose.msra.mxu0 %v6428
    %7122 = vmatpush.xpose.msra.mxu0 %v6419
    %7123 = vmatpush.xpose.msra.mxu0 %v6410
    %7124 = vmatmul.f32.gmra.mxu0 %v6995
    %v7125 = vpop.f32.mrf.mxu0
    %v7126 = vadd.f32 %v7106, %v7125
    %7127 = vdwg.mxu0
    %7128 = vmatpush.xpose.msra.mxu0 %v6546
    %7129 = vmatpush.xpose.msra.mxu0 %v6537
    %7130 = vmatpush.xpose.msra.mxu0 %v6528
    %7131 = vmatpush.xpose.msra.mxu0 %v6519
    %7132 = vmatpush.xpose.msra.mxu0 %v6510
    %7133 = vmatpush.xpose.msra.mxu0 %v6501
    %7134 = vmatpush.xpose.msra.mxu0 %v6492
    %7135 = vmatpush.xpose.msra.mxu0 %v6483
    %7136 = vmatpush.xpose.msra.mxu0 %v6474
    %7137 = vmatpush.xpose.msra.mxu0 %v6465
    %7138 = vmatpush.xpose.msra.mxu0 %v6456
    %7139 = vmatpush.xpose.msra.mxu0 %v6447
    %7140 = vmatpush.xpose.msra.mxu0 %v6438
    %7141 = vmatpush.xpose.msra.mxu0 %v6429
    %7142 = vmatpush.xpose.msra.mxu0 %v6420
    %7143 = vmatpush.xpose.msra.mxu0 %v6411
    %7144 = vmatmul.f32.gmra.mxu0 %v6996
    %v7145 = vpop.f32.mrf.mxu0
    %v7146 = vadd.f32 %v7126, %v7145
    %7147 = vdwg.mxu0
    %7148 = vmatpush.xpose.msra.mxu0 %v6547
    %7149 = vmatpush.xpose.msra.mxu0 %v6538
    %7150 = vmatpush.xpose.msra.mxu0 %v6529
    %7151 = vmatpush.xpose.msra.mxu0 %v6520
    %7152 = vmatpush.xpose.msra.mxu0 %v6511
    %7153 = vmatpush.xpose.msra.mxu0 %v6502
    %7154 = vmatpush.xpose.msra.mxu0 %v6493
    %7155 = vmatpush.xpose.msra.mxu0 %v6484
    %7156 = vmatpush.xpose.msra.mxu0 %v6475
    %7157 = vmatpush.xpose.msra.mxu0 %v6466
    %7158 = vmatpush.xpose.msra.mxu0 %v6457
    %7159 = vmatpush.xpose.msra.mxu0 %v6448
    %7160 = vmatpush.xpose.msra.mxu0 %v6439
    %7161 = vmatpush.xpose.msra.mxu0 %v6430
    %7162 = vmatpush.xpose.msra.mxu0 %v6421
    %7163 = vmatpush.xpose.msra.mxu0 %v6412
    %7164 = vmatmul.f32.gmra.mxu0 %v6997
    %v7165 = vpop.f32.mrf.mxu0
    %v7166 = vadd.f32 %v7146, %v7165
    %7167 = vdwg.mxu0
    %7168 = vmatpush.xpose.msra.mxu0 %v6548
    %7169 = vmatpush.xpose.msra.mxu0 %v6539
    %7170 = vmatpush.xpose.msra.mxu0 %v6530
    %7171 = vmatpush.xpose.msra.mxu0 %v6521
    %7172 = vmatpush.xpose.msra.mxu0 %v6512
    %7173 = vmatpush.xpose.msra.mxu0 %v6503
    %7174 = vmatpush.xpose.msra.mxu0 %v6494
    %7175 = vmatpush.xpose.msra.mxu0 %v6485
    %7176 = vmatpush.xpose.msra.mxu0 %v6476
    %7177 = vmatpush.xpose.msra.mxu0 %v6467
    %7178 = vmatpush.xpose.msra.mxu0 %v6458
    %7179 = vmatpush.xpose.msra.mxu0 %v6449
    %7180 = vmatpush.xpose.msra.mxu0 %v6440
    %7181 = vmatpush.xpose.msra.mxu0 %v6431
    %7182 = vmatpush.xpose.msra.mxu0 %v6422
    %7183 = vmatpush.xpose.msra.mxu0 %v6413
    %7184 = vmatmul.f32.gmra.mxu0 %v6998
    %v7185 = vpop.f32.mrf.mxu0
    %v7186 = vadd.f32 %v7166, %v7185
    %7187 = vdwg.mxu0
    %7188 = vmatpush.xpose.msra.mxu0 %v6684
    %7189 = vmatpush.xpose.msra.mxu0 %v6675
    %7190 = vmatpush.xpose.msra.mxu0 %v6666
    %7191 = vmatpush.xpose.msra.mxu0 %v6657
    %7192 = vmatpush.xpose.msra.mxu0 %v6648
    %7193 = vmatpush.xpose.msra.mxu0 %v6639
    %7194 = vmatpush.xpose.msra.mxu0 %v6630
    %7195 = vmatpush.xpose.msra.mxu0 %v6621
    %7196 = vmatpush.xpose.msra.mxu0 %v6612
    %7197 = vmatpush.xpose.msra.mxu0 %v6603
    %7198 = vmatpush.xpose.msra.mxu0 %v6594
    %7199 = vmatpush.xpose.msra.mxu0 %v6585
    %7200 = vmatpush.xpose.msra.mxu0 %v6576
    %7201 = vmatpush.xpose.msra.mxu0 %v6567
    %7202 = vmatpush.xpose.msra.mxu0 %v6558
    %7203 = vmatpush.xpose.msra.mxu0 %v6549
    %7204 = vmatmul.f32.gmra.mxu0 %v6990
    %v7205 = vpop.f32.mrf.mxu0
    %v7206 = vadd.f32 %v6987, %v7205
    %7207 = vdwg.mxu0
    %7208 = vmatpush.xpose.msra.mxu0 %v6685
    %7209 = vmatpush.xpose.msra.mxu0 %v6676
    %7210 = vmatpush.xpose.msra.mxu0 %v6667
    %7211 = vmatpush.xpose.msra.mxu0 %v6658
    %7212 = vmatpush.xpose.msra.mxu0 %v6649
    %7213 = vmatpush.xpose.msra.mxu0 %v6640
    %7214 = vmatpush.xpose.msra.mxu0 %v6631
    %7215 = vmatpush.xpose.msra.mxu0 %v6622
    %7216 = vmatpush.xpose.msra.mxu0 %v6613
    %7217 = vmatpush.xpose.msra.mxu0 %v6604
    %7218 = vmatpush.xpose.msra.mxu0 %v6595
    %7219 = vmatpush.xpose.msra.mxu0 %v6586
    %7220 = vmatpush.xpose.msra.mxu0 %v6577
    %7221 = vmatpush.xpose.msra.mxu0 %v6568
    %7222 = vmatpush.xpose.msra.mxu0 %v6559
    %7223 = vmatpush.xpose.msra.mxu0 %v6550
    %7224 = vmatmul.f32.gmra.mxu0 %v6991
    %v7225 = vpop.f32.mrf.mxu0
    %v7226 = vadd.f32 %v7206, %v7225
    %7227 = vdwg.mxu0
    %7228 = vmatpush.xpose.msra.mxu0 %v6686
    %7229 = vmatpush.xpose.msra.mxu0 %v6677
    %7230 = vmatpush.xpose.msra.mxu0 %v6668
    %7231 = vmatpush.xpose.msra.mxu0 %v6659
    %7232 = vmatpush.xpose.msra.mxu0 %v6650
    %7233 = vmatpush.xpose.msra.mxu0 %v6641
    %7234 = vmatpush.xpose.msra.mxu0 %v6632
    %7235 = vmatpush.xpose.msra.mxu0 %v6623
    %7236 = vmatpush.xpose.msra.mxu0 %v6614
    %7237 = vmatpush.xpose.msra.mxu0 %v6605
    %7238 = vmatpush.xpose.msra.mxu0 %v6596
    %7239 = vmatpush.xpose.msra.mxu0 %v6587
    %7240 = vmatpush.xpose.msra.mxu0 %v6578
    %7241 = vmatpush.xpose.msra.mxu0 %v6569
    %7242 = vmatpush.xpose.msra.mxu0 %v6560
    %7243 = vmatpush.xpose.msra.mxu0 %v6551
    %7244 = vmatmul.f32.gmra.mxu0 %v6992
    %v7245 = vpop.f32.mrf.mxu0
    %v7246 = vadd.f32 %v7226, %v7245
    %7247 = vdwg.mxu0
    %7248 = vmatpush.xpose.msra.mxu0 %v6687
    %7249 = vmatpush.xpose.msra.mxu0 %v6678
    %7250 = vmatpush.xpose.msra.mxu0 %v6669
    %7251 = vmatpush.xpose.msra.mxu0 %v6660
    %7252 = vmatpush.xpose.msra.mxu0 %v6651
    %7253 = vmatpush.xpose.msra.mxu0 %v6642
    %7254 = vmatpush.xpose.msra.mxu0 %v6633
    %7255 = vmatpush.xpose.msra.mxu0 %v6624
    %7256 = vmatpush.xpose.msra.mxu0 %v6615
    %7257 = vmatpush.xpose.msra.mxu0 %v6606
    %7258 = vmatpush.xpose.msra.mxu0 %v6597
    %7259 = vmatpush.xpose.msra.mxu0 %v6588
    %7260 = vmatpush.xpose.msra.mxu0 %v6579
    %7261 = vmatpush.xpose.msra.mxu0 %v6570
    %7262 = vmatpush.xpose.msra.mxu0 %v6561
    %7263 = vmatpush.xpose.msra.mxu0 %v6552
    %7264 = vmatmul.f32.gmra.mxu0 %v6993
    %v7265 = vpop.f32.mrf.mxu0
    %v7266 = vadd.f32 %v7246, %v7265
    %7267 = vdwg.mxu0
    %7268 = vmatpush.xpose.msra.mxu0 %v6688
    %7269 = vmatpush.xpose.msra.mxu0 %v6679
    %7270 = vmatpush.xpose.msra.mxu0 %v6670
    %7271 = vmatpush.xpose.msra.mxu0 %v6661
    %7272 = vmatpush.xpose.msra.mxu0 %v6652
    %7273 = vmatpush.xpose.msra.mxu0 %v6643
    %7274 = vmatpush.xpose.msra.mxu0 %v6634
    %7275 = vmatpush.xpose.msra.mxu0 %v6625
    %7276 = vmatpush.xpose.msra.mxu0 %v6616
    %7277 = vmatpush.xpose.msra.mxu0 %v6607
    %7278 = vmatpush.xpose.msra.mxu0 %v6598
    %7279 = vmatpush.xpose.msra.mxu0 %v6589
    %7280 = vmatpush.xpose.msra.mxu0 %v6580
    %7281 = vmatpush.xpose.msra.mxu0 %v6571
    %7282 = vmatpush.xpose.msra.mxu0 %v6562
    %7283 = vmatpush.xpose.msra.mxu0 %v6553
    %7284 = vmatmul.f32.gmra.mxu0 %v6994
    %v7285 = vpop.f32.mrf.mxu0
    %v7286 = vadd.f32 %v7266, %v7285
    %7287 = vdwg.mxu0
    %7288 = vmatpush.xpose.msra.mxu0 %v6689
    %7289 = vmatpush.xpose.msra.mxu0 %v6680
    %7290 = vmatpush.xpose.msra.mxu0 %v6671
    %7291 = vmatpush.xpose.msra.mxu0 %v6662
    %7292 = vmatpush.xpose.msra.mxu0 %v6653
    %7293 = vmatpush.xpose.msra.mxu0 %v6644
    %7294 = vmatpush.xpose.msra.mxu0 %v6635
    %7295 = vmatpush.xpose.msra.mxu0 %v6626
    %7296 = vmatpush.xpose.msra.mxu0 %v6617
    %7297 = vmatpush.xpose.msra.mxu0 %v6608
    %7298 = vmatpush.xpose.msra.mxu0 %v6599
    %7299 = vmatpush.xpose.msra.mxu0 %v6590
    %7300 = vmatpush.xpose.msra.mxu0 %v6581
    %7301 = vmatpush.xpose.msra.mxu0 %v6572
    %7302 = vmatpush.xpose.msra.mxu0 %v6563
    %7303 = vmatpush.xpose.msra.mxu0 %v6554
    %7304 = vmatmul.f32.gmra.mxu0 %v6995
    %v7305 = vpop.f32.mrf.mxu0
    %v7306 = vadd.f32 %v7286, %v7305
    %7307 = vdwg.mxu0
    %7308 = vmatpush.xpose.msra.mxu0 %v6690
    %7309 = vmatpush.xpose.msra.mxu0 %v6681
    %7310 = vmatpush.xpose.msra.mxu0 %v6672
    %7311 = vmatpush.xpose.msra.mxu0 %v6663
    %7312 = vmatpush.xpose.msra.mxu0 %v6654
    %7313 = vmatpush.xpose.msra.mxu0 %v6645
    %7314 = vmatpush.xpose.msra.mxu0 %v6636
    %7315 = vmatpush.xpose.msra.mxu0 %v6627
    %7316 = vmatpush.xpose.msra.mxu0 %v6618
    %7317 = vmatpush.xpose.msra.mxu0 %v6609
    %7318 = vmatpush.xpose.msra.mxu0 %v6600
    %7319 = vmatpush.xpose.msra.mxu0 %v6591
    %7320 = vmatpush.xpose.msra.mxu0 %v6582
    %7321 = vmatpush.xpose.msra.mxu0 %v6573
    %7322 = vmatpush.xpose.msra.mxu0 %v6564
    %7323 = vmatpush.xpose.msra.mxu0 %v6555
    %7324 = vmatmul.f32.gmra.mxu0 %v6996
    %v7325 = vpop.f32.mrf.mxu0
    %v7326 = vadd.f32 %v7306, %v7325
    %7327 = vdwg.mxu0
    %7328 = vmatpush.xpose.msra.mxu0 %v6691
    %7329 = vmatpush.xpose.msra.mxu0 %v6682
    %7330 = vmatpush.xpose.msra.mxu0 %v6673
    %7331 = vmatpush.xpose.msra.mxu0 %v6664
    %7332 = vmatpush.xpose.msra.mxu0 %v6655
    %7333 = vmatpush.xpose.msra.mxu0 %v6646
    %7334 = vmatpush.xpose.msra.mxu0 %v6637
    %7335 = vmatpush.xpose.msra.mxu0 %v6628
    %7336 = vmatpush.xpose.msra.mxu0 %v6619
    %7337 = vmatpush.xpose.msra.mxu0 %v6610
    %7338 = vmatpush.xpose.msra.mxu0 %v6601
    %7339 = vmatpush.xpose.msra.mxu0 %v6592
    %7340 = vmatpush.xpose.msra.mxu0 %v6583
    %7341 = vmatpush.xpose.msra.mxu0 %v6574
    %7342 = vmatpush.xpose.msra.mxu0 %v6565
    %7343 = vmatpush.xpose.msra.mxu0 %v6556
    %7344 = vmatmul.f32.gmra.mxu0 %v6997
    %v7345 = vpop.f32.mrf.mxu0
    %v7346 = vadd.f32 %v7326, %v7345
    %7347 = vdwg.mxu0
    %7348 = vmatpush.xpose.msra.mxu0 %v6692
    %7349 = vmatpush.xpose.msra.mxu0 %v6683
    %7350 = vmatpush.xpose.msra.mxu0 %v6674
    %7351 = vmatpush.xpose.msra.mxu0 %v6665
    %7352 = vmatpush.xpose.msra.mxu0 %v6656
    %7353 = vmatpush.xpose.msra.mxu0 %v6647
    %7354 = vmatpush.xpose.msra.mxu0 %v6638
    %7355 = vmatpush.xpose.msra.mxu0 %v6629
    %7356 = vmatpush.xpose.msra.mxu0 %v6620
    %7357 = vmatpush.xpose.msra.mxu0 %v6611
    %7358 = vmatpush.xpose.msra.mxu0 %v6602
    %7359 = vmatpush.xpose.msra.mxu0 %v6593
    %7360 = vmatpush.xpose.msra.mxu0 %v6584
    %7361 = vmatpush.xpose.msra.mxu0 %v6575
    %7362 = vmatpush.xpose.msra.mxu0 %v6566
    %7363 = vmatpush.xpose.msra.mxu0 %v6557
    %7364 = vmatmul.f32.gmra.mxu0 %v6998
    %v7365 = vpop.f32.mrf.mxu0
    %v7366 = vadd.f32 %v7346, %v7365
    %7367 = vdwg.mxu0
    %7368 = vmatpush.xpose.msra.mxu0 %v6828
    %7369 = vmatpush.xpose.msra.mxu0 %v6819
    %7370 = vmatpush.xpose.msra.mxu0 %v6810
    %7371 = vmatpush.xpose.msra.mxu0 %v6801
    %7372 = vmatpush.xpose.msra.mxu0 %v6792
    %7373 = vmatpush.xpose.msra.mxu0 %v6783
    %7374 = vmatpush.xpose.msra.mxu0 %v6774
    %7375 = vmatpush.xpose.msra.mxu0 %v6765
    %7376 = vmatpush.xpose.msra.mxu0 %v6756
    %7377 = vmatpush.xpose.msra.mxu0 %v6747
    %7378 = vmatpush.xpose.msra.mxu0 %v6738
    %7379 = vmatpush.xpose.msra.mxu0 %v6729
    %7380 = vmatpush.xpose.msra.mxu0 %v6720
    %7381 = vmatpush.xpose.msra.mxu0 %v6711
    %7382 = vmatpush.xpose.msra.mxu0 %v6702
    %7383 = vmatpush.xpose.msra.mxu0 %v6693
    %7384 = vmatmul.f32.gmra.mxu0 %v6990
    %v7385 = vpop.f32.mrf.mxu0
    %v7386 = vadd.f32 %v6987, %v7385
    %7387 = vdwg.mxu0
    %7388 = vmatpush.xpose.msra.mxu0 %v6829
    %7389 = vmatpush.xpose.msra.mxu0 %v6820
    %7390 = vmatpush.xpose.msra.mxu0 %v6811
    %7391 = vmatpush.xpose.msra.mxu0 %v6802
    %7392 = vmatpush.xpose.msra.mxu0 %v6793
    %7393 = vmatpush.xpose.msra.mxu0 %v6784
    %7394 = vmatpush.xpose.msra.mxu0 %v6775
    %7395 = vmatpush.xpose.msra.mxu0 %v6766
    %7396 = vmatpush.xpose.msra.mxu0 %v6757
    %7397 = vmatpush.xpose.msra.mxu0 %v6748
    %7398 = vmatpush.xpose.msra.mxu0 %v6739
    %7399 = vmatpush.xpose.msra.mxu0 %v6730
    %7400 = vmatpush.xpose.msra.mxu0 %v6721
    %7401 = vmatpush.xpose.msra.mxu0 %v6712
    %7402 = vmatpush.xpose.msra.mxu0 %v6703
    %7403 = vmatpush.xpose.msra.mxu0 %v6694
    %7404 = vmatmul.f32.gmra.mxu0 %v6991
    %v7405 = vpop.f32.mrf.mxu0
    %v7406 = vadd.f32 %v7386, %v7405
    %7407 = vdwg.mxu0
    %7408 = vmatpush.xpose.msra.mxu0 %v6830
    %7409 = vmatpush.xpose.msra.mxu0 %v6821
    %7410 = vmatpush.xpose.msra.mxu0 %v6812
    %7411 = vmatpush.xpose.msra.mxu0 %v6803
    %7412 = vmatpush.xpose.msra.mxu0 %v6794
    %7413 = vmatpush.xpose.msra.mxu0 %v6785
    %7414 = vmatpush.xpose.msra.mxu0 %v6776
    %7415 = vmatpush.xpose.msra.mxu0 %v6767
    %7416 = vmatpush.xpose.msra.mxu0 %v6758
    %7417 = vmatpush.xpose.msra.mxu0 %v6749
    %7418 = vmatpush.xpose.msra.mxu0 %v6740
    %7419 = vmatpush.xpose.msra.mxu0 %v6731
    %7420 = vmatpush.xpose.msra.mxu0 %v6722
    %7421 = vmatpush.xpose.msra.mxu0 %v6713
    %7422 = vmatpush.xpose.msra.mxu0 %v6704
    %7423 = vmatpush.xpose.msra.mxu0 %v6695
    %7424 = vmatmul.f32.gmra.mxu0 %v6992
    %v7425 = vpop.f32.mrf.mxu0
    %v7426 = vadd.f32 %v7406, %v7425
    %7427 = vdwg.mxu0
    %7428 = vmatpush.xpose.msra.mxu0 %v6831
    %7429 = vmatpush.xpose.msra.mxu0 %v6822
    %7430 = vmatpush.xpose.msra.mxu0 %v6813
    %7431 = vmatpush.xpose.msra.mxu0 %v6804
    %7432 = vmatpush.xpose.msra.mxu0 %v6795
    %7433 = vmatpush.xpose.msra.mxu0 %v6786
    %7434 = vmatpush.xpose.msra.mxu0 %v6777
    %7435 = vmatpush.xpose.msra.mxu0 %v6768
    %7436 = vmatpush.xpose.msra.mxu0 %v6759
    %7437 = vmatpush.xpose.msra.mxu0 %v6750
    %7438 = vmatpush.xpose.msra.mxu0 %v6741
    %7439 = vmatpush.xpose.msra.mxu0 %v6732
    %7440 = vmatpush.xpose.msra.mxu0 %v6723
    %7441 = vmatpush.xpose.msra.mxu0 %v6714
    %7442 = vmatpush.xpose.msra.mxu0 %v6705
    %7443 = vmatpush.xpose.msra.mxu0 %v6696
    %7444 = vmatmul.f32.gmra.mxu0 %v6993
    %v7445 = vpop.f32.mrf.mxu0
    %v7446 = vadd.f32 %v7426, %v7445
    %7447 = vdwg.mxu0
    %7448 = vmatpush.xpose.msra.mxu0 %v6832
    %7449 = vmatpush.xpose.msra.mxu0 %v6823
    %7450 = vmatpush.xpose.msra.mxu0 %v6814
    %7451 = vmatpush.xpose.msra.mxu0 %v6805
    %7452 = vmatpush.xpose.msra.mxu0 %v6796
    %7453 = vmatpush.xpose.msra.mxu0 %v6787
    %7454 = vmatpush.xpose.msra.mxu0 %v6778
    %7455 = vmatpush.xpose.msra.mxu0 %v6769
    %7456 = vmatpush.xpose.msra.mxu0 %v6760
    %7457 = vmatpush.xpose.msra.mxu0 %v6751
    %7458 = vmatpush.xpose.msra.mxu0 %v6742
    %7459 = vmatpush.xpose.msra.mxu0 %v6733
    %7460 = vmatpush.xpose.msra.mxu0 %v6724
    %7461 = vmatpush.xpose.msra.mxu0 %v6715
    %7462 = vmatpush.xpose.msra.mxu0 %v6706
    %7463 = vmatpush.xpose.msra.mxu0 %v6697
    %7464 = vmatmul.f32.gmra.mxu0 %v6994
    %v7465 = vpop.f32.mrf.mxu0
    %v7466 = vadd.f32 %v7446, %v7465
    %7467 = vdwg.mxu0
    %7468 = vmatpush.xpose.msra.mxu0 %v6833
    %7469 = vmatpush.xpose.msra.mxu0 %v6824
    %7470 = vmatpush.xpose.msra.mxu0 %v6815
    %7471 = vmatpush.xpose.msra.mxu0 %v6806
    %7472 = vmatpush.xpose.msra.mxu0 %v6797
    %7473 = vmatpush.xpose.msra.mxu0 %v6788
    %7474 = vmatpush.xpose.msra.mxu0 %v6779
    %7475 = vmatpush.xpose.msra.mxu0 %v6770
    %7476 = vmatpush.xpose.msra.mxu0 %v6761
    %7477 = vmatpush.xpose.msra.mxu0 %v6752
    %7478 = vmatpush.xpose.msra.mxu0 %v6743
    %7479 = vmatpush.xpose.msra.mxu0 %v6734
    %7480 = vmatpush.xpose.msra.mxu0 %v6725
    %7481 = vmatpush.xpose.msra.mxu0 %v6716
    %7482 = vmatpush.xpose.msra.mxu0 %v6707
    %7483 = vmatpush.xpose.msra.mxu0 %v6698
    %7484 = vmatmul.f32.gmra.mxu0 %v6995
    %v7485 = vpop.f32.mrf.mxu0
    %v7486 = vadd.f32 %v7466, %v7485
    %7487 = vdwg.mxu0
    %7488 = vmatpush.xpose.msra.mxu0 %v6834
    %7489 = vmatpush.xpose.msra.mxu0 %v6825
    %7490 = vmatpush.xpose.msra.mxu0 %v6816
    %7491 = vmatpush.xpose.msra.mxu0 %v6807
    %7492 = vmatpush.xpose.msra.mxu0 %v6798
    %7493 = vmatpush.xpose.msra.mxu0 %v6789
    %7494 = vmatpush.xpose.msra.mxu0 %v6780
    %7495 = vmatpush.xpose.msra.mxu0 %v6771
    %7496 = vmatpush.xpose.msra.mxu0 %v6762
    %7497 = vmatpush.xpose.msra.mxu0 %v6753
    %7498 = vmatpush.xpose.msra.mxu0 %v6744
    %7499 = vmatpush.xpose.msra.mxu0 %v6735
    %7500 = vmatpush.xpose.msra.mxu0 %v6726
    %7501 = vmatpush.xpose.msra.mxu0 %v6717
    %7502 = vmatpush.xpose.msra.mxu0 %v6708
    %7503 = vmatpush.xpose.msra.mxu0 %v6699
    %7504 = vmatmul.f32.gmra.mxu0 %v6996
    %v7505 = vpop.f32.mrf.mxu0
    %v7506 = vadd.f32 %v7486, %v7505
    %7507 = vdwg.mxu0
    %7508 = vmatpush.xpose.msra.mxu0 %v6835
    %7509 = vmatpush.xpose.msra.mxu0 %v6826
    %7510 = vmatpush.xpose.msra.mxu0 %v6817
    %7511 = vmatpush.xpose.msra.mxu0 %v6808
    %7512 = vmatpush.xpose.msra.mxu0 %v6799
    %7513 = vmatpush.xpose.msra.mxu0 %v6790
    %7514 = vmatpush.xpose.msra.mxu0 %v6781
    %7515 = vmatpush.xpose.msra.mxu0 %v6772
    %7516 = vmatpush.xpose.msra.mxu0 %v6763
    %7517 = vmatpush.xpose.msra.mxu0 %v6754
    %7518 = vmatpush.xpose.msra.mxu0 %v6745
    %7519 = vmatpush.xpose.msra.mxu0 %v6736
    %7520 = vmatpush.xpose.msra.mxu0 %v6727
    %7521 = vmatpush.xpose.msra.mxu0 %v6718
    %7522 = vmatpush.xpose.msra.mxu0 %v6709
    %7523 = vmatpush.xpose.msra.mxu0 %v6700
    %7524 = vmatmul.f32.gmra.mxu0 %v6997
    %v7525 = vpop.f32.mrf.mxu0
    %v7526 = vadd.f32 %v7506, %v7525
    %7527 = vdwg.mxu0
    %7528 = vmatpush.xpose.msra.mxu0 %v6836
    %7529 = vmatpush.xpose.msra.mxu0 %v6827
    %7530 = vmatpush.xpose.msra.mxu0 %v6818
    %7531 = vmatpush.xpose.msra.mxu0 %v6809
    %7532 = vmatpush.xpose.msra.mxu0 %v6800
    %7533 = vmatpush.xpose.msra.mxu0 %v6791
    %7534 = vmatpush.xpose.msra.mxu0 %v6782
    %7535 = vmatpush.xpose.msra.mxu0 %v6773
    %7536 = vmatpush.xpose.msra.mxu0 %v6764
    %7537 = vmatpush.xpose.msra.mxu0 %v6755
    %7538 = vmatpush.xpose.msra.mxu0 %v6746
    %7539 = vmatpush.xpose.msra.mxu0 %v6737
    %7540 = vmatpush.xpose.msra.mxu0 %v6728
    %7541 = vmatpush.xpose.msra.mxu0 %v6719
    %7542 = vmatpush.xpose.msra.mxu0 %v6710
    %7543 = vmatpush.xpose.msra.mxu0 %v6701
    %7544 = vmatmul.f32.gmra.mxu0 %v6998
    %v7545 = vpop.f32.mrf.mxu0
    %v7546 = vadd.f32 %v7526, %v7545
    %7547 = vdwg.mxu0
    %7548 = vmatpush.xpose.msra.mxu0 %v6972
    %7549 = vmatpush.xpose.msra.mxu0 %v6963
    %7550 = vmatpush.xpose.msra.mxu0 %v6954
    %7551 = vmatpush.xpose.msra.mxu0 %v6945
    %7552 = vmatpush.xpose.msra.mxu0 %v6936
    %7553 = vmatpush.xpose.msra.mxu0 %v6927
    %7554 = vmatpush.xpose.msra.mxu0 %v6918
    %7555 = vmatpush.xpose.msra.mxu0 %v6909
    %7556 = vmatpush.xpose.msra.mxu0 %v6900
    %7557 = vmatpush.xpose.msra.mxu0 %v6891
    %7558 = vmatpush.xpose.msra.mxu0 %v6882
    %7559 = vmatpush.xpose.msra.mxu0 %v6873
    %7560 = vmatpush.xpose.msra.mxu0 %v6864
    %7561 = vmatpush.xpose.msra.mxu0 %v6855
    %7562 = vmatpush.xpose.msra.mxu0 %v6846
    %7563 = vmatpush.xpose.msra.mxu0 %v6837
    %7564 = vmatmul.f32.gmra.mxu0 %v6990
    %v7565 = vpop.f32.mrf.mxu0
    %v7566 = vadd.f32 %v6987, %v7565
    %7567 = vdwg.mxu0
    %7568 = vmatpush.xpose.msra.mxu0 %v6973
    %7569 = vmatpush.xpose.msra.mxu0 %v6964
    %7570 = vmatpush.xpose.msra.mxu0 %v6955
    %7571 = vmatpush.xpose.msra.mxu0 %v6946
    %7572 = vmatpush.xpose.msra.mxu0 %v6937
    %7573 = vmatpush.xpose.msra.mxu0 %v6928
    %7574 = vmatpush.xpose.msra.mxu0 %v6919
    %7575 = vmatpush.xpose.msra.mxu0 %v6910
    %7576 = vmatpush.xpose.msra.mxu0 %v6901
    %7577 = vmatpush.xpose.msra.mxu0 %v6892
    %7578 = vmatpush.xpose.msra.mxu0 %v6883
    %7579 = vmatpush.xpose.msra.mxu0 %v6874
    %7580 = vmatpush.xpose.msra.mxu0 %v6865
    %7581 = vmatpush.xpose.msra.mxu0 %v6856
    %7582 = vmatpush.xpose.msra.mxu0 %v6847
    %7583 = vmatpush.xpose.msra.mxu0 %v6838
    %7584 = vmatmul.f32.gmra.mxu0 %v6991
    %v7585 = vpop.f32.mrf.mxu0
    %v7586 = vadd.f32 %v7566, %v7585
    %7587 = vdwg.mxu0
    %7588 = vmatpush.xpose.msra.mxu0 %v6974
    %7589 = vmatpush.xpose.msra.mxu0 %v6965
    %7590 = vmatpush.xpose.msra.mxu0 %v6956
    %7591 = vmatpush.xpose.msra.mxu0 %v6947
    %7592 = vmatpush.xpose.msra.mxu0 %v6938
    %7593 = vmatpush.xpose.msra.mxu0 %v6929
    %7594 = vmatpush.xpose.msra.mxu0 %v6920
    %7595 = vmatpush.xpose.msra.mxu0 %v6911
    %7596 = vmatpush.xpose.msra.mxu0 %v6902
    %7597 = vmatpush.xpose.msra.mxu0 %v6893
    %7598 = vmatpush.xpose.msra.mxu0 %v6884
    %7599 = vmatpush.xpose.msra.mxu0 %v6875
    %7600 = vmatpush.xpose.msra.mxu0 %v6866
    %7601 = vmatpush.xpose.msra.mxu0 %v6857
    %7602 = vmatpush.xpose.msra.mxu0 %v6848
    %7603 = vmatpush.xpose.msra.mxu0 %v6839
    %7604 = vmatmul.f32.gmra.mxu0 %v6992
    %v7605 = vpop.f32.mrf.mxu0
    %v7606 = vadd.f32 %v7586, %v7605
    %7607 = vdwg.mxu0
    %7608 = vmatpush.xpose.msra.mxu0 %v6975
    %7609 = vmatpush.xpose.msra.mxu0 %v6966
    %7610 = vmatpush.xpose.msra.mxu0 %v6957
    %7611 = vmatpush.xpose.msra.mxu0 %v6948
    %7612 = vmatpush.xpose.msra.mxu0 %v6939
    %7613 = vmatpush.xpose.msra.mxu0 %v6930
    %7614 = vmatpush.xpose.msra.mxu0 %v6921
    %7615 = vmatpush.xpose.msra.mxu0 %v6912
    %7616 = vmatpush.xpose.msra.mxu0 %v6903
    %7617 = vmatpush.xpose.msra.mxu0 %v6894
    %7618 = vmatpush.xpose.msra.mxu0 %v6885
    %7619 = vmatpush.xpose.msra.mxu0 %v6876
    %7620 = vmatpush.xpose.msra.mxu0 %v6867
    %7621 = vmatpush.xpose.msra.mxu0 %v6858
    %7622 = vmatpush.xpose.msra.mxu0 %v6849
    %7623 = vmatpush.xpose.msra.mxu0 %v6840
    %7624 = vmatmul.f32.gmra.mxu0 %v6993
    %v7625 = vpop.f32.mrf.mxu0
    %v7626 = vadd.f32 %v7606, %v7625
    %7627 = vdwg.mxu0
    %7628 = vmatpush.xpose.msra.mxu0 %v6976
    %7629 = vmatpush.xpose.msra.mxu0 %v6967
    %7630 = vmatpush.xpose.msra.mxu0 %v6958
    %7631 = vmatpush.xpose.msra.mxu0 %v6949
    %7632 = vmatpush.xpose.msra.mxu0 %v6940
    %7633 = vmatpush.xpose.msra.mxu0 %v6931
    %7634 = vmatpush.xpose.msra.mxu0 %v6922
    %7635 = vmatpush.xpose.msra.mxu0 %v6913
    %7636 = vmatpush.xpose.msra.mxu0 %v6904
    %7637 = vmatpush.xpose.msra.mxu0 %v6895
    %7638 = vmatpush.xpose.msra.mxu0 %v6886
    %7639 = vmatpush.xpose.msra.mxu0 %v6877
    %7640 = vmatpush.xpose.msra.mxu0 %v6868
    %7641 = vmatpush.xpose.msra.mxu0 %v6859
    %7642 = vmatpush.xpose.msra.mxu0 %v6850
    %7643 = vmatpush.xpose.msra.mxu0 %v6841
    %7644 = vmatmul.f32.gmra.mxu0 %v6994
    %v7645 = vpop.f32.mrf.mxu0
    %v7646 = vadd.f32 %v7626, %v7645
    %7647 = vdwg.mxu0
    %7648 = vmatpush.xpose.msra.mxu0 %v6977
    %7649 = vmatpush.xpose.msra.mxu0 %v6968
    %7650 = vmatpush.xpose.msra.mxu0 %v6959
    %7651 = vmatpush.xpose.msra.mxu0 %v6950
    %7652 = vmatpush.xpose.msra.mxu0 %v6941
    %7653 = vmatpush.xpose.msra.mxu0 %v6932
    %7654 = vmatpush.xpose.msra.mxu0 %v6923
    %7655 = vmatpush.xpose.msra.mxu0 %v6914
    %7656 = vmatpush.xpose.msra.mxu0 %v6905
    %7657 = vmatpush.xpose.msra.mxu0 %v6896
    %7658 = vmatpush.xpose.msra.mxu0 %v6887
    %7659 = vmatpush.xpose.msra.mxu0 %v6878
    %7660 = vmatpush.xpose.msra.mxu0 %v6869
    %7661 = vmatpush.xpose.msra.mxu0 %v6860
    %7662 = vmatpush.xpose.msra.mxu0 %v6851
    %7663 = vmatpush.xpose.msra.mxu0 %v6842
    %7664 = vmatmul.f32.gmra.mxu0 %v6995
    %v7665 = vpop.f32.mrf.mxu0
    %v7666 = vadd.f32 %v7646, %v7665
    %7667 = vdwg.mxu0
    %7668 = vmatpush.xpose.msra.mxu0 %v6978
    %7669 = vmatpush.xpose.msra.mxu0 %v6969
    %7670 = vmatpush.xpose.msra.mxu0 %v6960
    %7671 = vmatpush.xpose.msra.mxu0 %v6951
    %7672 = vmatpush.xpose.msra.mxu0 %v6942
    %7673 = vmatpush.xpose.msra.mxu0 %v6933
    %7674 = vmatpush.xpose.msra.mxu0 %v6924
    %7675 = vmatpush.xpose.msra.mxu0 %v6915
    %7676 = vmatpush.xpose.msra.mxu0 %v6906
    %7677 = vmatpush.xpose.msra.mxu0 %v6897
    %7678 = vmatpush.xpose.msra.mxu0 %v6888
    %7679 = vmatpush.xpose.msra.mxu0 %v6879
    %7680 = vmatpush.xpose.msra.mxu0 %v6870
    %7681 = vmatpush.xpose.msra.mxu0 %v6861
    %7682 = vmatpush.xpose.msra.mxu0 %v6852
    %7683 = vmatpush.xpose.msra.mxu0 %v6843
    %7684 = vmatmul.f32.gmra.mxu0 %v6996
    %v7685 = vpop.f32.mrf.mxu0
    %v7686 = vadd.f32 %v7666, %v7685
    %7687 = vdwg.mxu0
    %7688 = vmatpush.xpose.msra.mxu0 %v6979
    %7689 = vmatpush.xpose.msra.mxu0 %v6970
    %7690 = vmatpush.xpose.msra.mxu0 %v6961
    %7691 = vmatpush.xpose.msra.mxu0 %v6952
    %7692 = vmatpush.xpose.msra.mxu0 %v6943
    %7693 = vmatpush.xpose.msra.mxu0 %v6934
    %7694 = vmatpush.xpose.msra.mxu0 %v6925
    %7695 = vmatpush.xpose.msra.mxu0 %v6916
    %7696 = vmatpush.xpose.msra.mxu0 %v6907
    %7697 = vmatpush.xpose.msra.mxu0 %v6898
    %7698 = vmatpush.xpose.msra.mxu0 %v6889
    %7699 = vmatpush.xpose.msra.mxu0 %v6880
    %7700 = vmatpush.xpose.msra.mxu0 %v6871
    %7701 = vmatpush.xpose.msra.mxu0 %v6862
    %7702 = vmatpush.xpose.msra.mxu0 %v6853
    %7703 = vmatpush.xpose.msra.mxu0 %v6844
    %7704 = vmatmul.f32.gmra.mxu0 %v6997
    %v7705 = vpop.f32.mrf.mxu0
    %v7706 = vadd.f32 %v7686, %v7705
    %7707 = vdwg.mxu0
    %7708 = vmatpush.xpose.msra.mxu0 %v6980
    %7709 = vmatpush.xpose.msra.mxu0 %v6971
    %7710 = vmatpush.xpose.msra.mxu0 %v6962
    %7711 = vmatpush.xpose.msra.mxu0 %v6953
    %7712 = vmatpush.xpose.msra.mxu0 %v6944
    %7713 = vmatpush.xpose.msra.mxu0 %v6935
    %7714 = vmatpush.xpose.msra.mxu0 %v6926
    %7715 = vmatpush.xpose.msra.mxu0 %v6917
    %7716 = vmatpush.xpose.msra.mxu0 %v6908
    %7717 = vmatpush.xpose.msra.mxu0 %v6899
    %7718 = vmatpush.xpose.msra.mxu0 %v6890
    %7719 = vmatpush.xpose.msra.mxu0 %v6881
    %7720 = vmatpush.xpose.msra.mxu0 %v6872
    %7721 = vmatpush.xpose.msra.mxu0 %v6863
    %7722 = vmatpush.xpose.msra.mxu0 %v6854
    %7723 = vmatpush.xpose.msra.mxu0 %v6845
    %7724 = vmatmul.f32.gmra.mxu0 %v6998
    %v7725 = vpop.f32.mrf.mxu0
    %v7726 = vadd.f32 %v7706, %v7725
    %7727 = vdwg.mxu0
    %v7728 = vld [vmem:[%s21] sm:$0x1]
    %7730 = vset.pattern.permute.xlu0 0
    %7731 = vperm.xlu0 %7730, %v7728
    %v7732 = vpop.permute.xlu0 %7731
    %v7734 = vmul.f32 %v7186, %v7732
    %v7735 = vmul.f32 %v7366, %v7732
    %v7736 = vld [vmem:[%s22] sm:$0x1]
    %7738 = vset.pattern.permute.xlu0 0
    %7739 = vperm.xlu0 %7738, %v7736
    %v7740 = vpop.permute.xlu0 %7739
    %v7742 = vadd.f32 %v7734, %v7740
    %v7743 = vadd.f32 %v7735, %v7740
    %v7745 = vperm.slane %v378, 0
    %v7746 = vperm.slane %v378, 2
    %v7749 = vadd.f32 %v7742, %v7745
    %v7750 = vadd.f32 %v7743, %v7746
    %v7751 = vmax.f32 %v7749, 0.0
    %v7752 = vmax.f32 %v7750, 0.0
    %v7755 = vrot.slane %v7752, 7
    %v7756 = vsel %vm642, %v7751, %v7755
    %v7758 = vlaneseq
    %vm7759 = vcmp.ge.s32.totalorder %v7758, 0
    %vm7760 = vcmp.lt.s32.totalorder %v7758, 256
    %vm7761 = vmand %vm7759, %vm7760
    %7762 = vst.msk [vmem:[#allocation12] ss:$2 sm:$0x3] %vm7761, %v7756
    %v7763 = vld [vmem:[%s21 + $0x1] sm:$0x1]
    %7765 = vset.pattern.permute.xlu0 0
    %7766 = vperm.xlu0 %7765, %v7763
    %v7767 = vpop.permute.xlu0 %7766
    %v7769 = vmul.f32 %v7546, %v7767
    %v7770 = vmul.f32 %v7726, %v7767
    %v7771 = vld [vmem:[%s22 + $0x1] sm:$0x1]
    %7773 = vset.pattern.permute.xlu0 0
    %7774 = vperm.xlu0 %7773, %v7771
    %v7775 = vpop.permute.xlu0 %7774
    %v7777 = vadd.f32 %v7769, %v7775
    %v7778 = vadd.f32 %v7770, %v7775
    %v7779 = vperm.slane %v378, 1
    %v7780 = vperm.slane %v378, 3
    %v7783 = vadd.f32 %v7777, %v7779
    %v7784 = vadd.f32 %v7778, %v7780
    %v7785 = vmax.f32 %v7783, 0.0
    %v7786 = vmax.f32 %v7784, 0.0
    %v7789 = vrot.slane %v7786, 7
    %v7790 = vsel %vm642, %v7785, %v7789
    %s7792 = scalar_lea.vmem [#allocation12], 1
    %7793 = vst.msk [vmem:[%s7792] ss:$2 sm:$0x3] %vm7761, %v7790
    // Predicated region
    $region102: #{tpu_custom_call.1} parent=1 // pred_check
      _
    $region103: #{tpu_custom_call.1} parent=1 // pred_check_branch
      %7795 = sbr.rel (0) target = $region105
    $region104: #{tpu_custom_call.1} parent=1 // pred_region
      %7797 = vsyncadd [#allocation9], 0
      %s7799 = sshll.u32 [#allocation12], 4
      %s7800 = int_to_ptr.vmem [resolvable:$true] %s7799
      %s7801 = sshll.u32 %s23, 4
      %s7802 = int_to_ptr.hbm [resolvable:$true] %s7801
      %7804 = dma.vmem_to_hbm [thread:$0]  %s7800, 64, %s7802, [#allocation9]
    $region105: #{tpu_custom_call.1} parent=1 // pred_fallthru
      _
    // Predicated region
    $region106: #{tpu_custom_call.1} parent=1 // pred_check
      _
    $region107: #{tpu_custom_call.1} parent=1 // pred_check_branch
      %7806 = sbr.rel (0) target = $region109
    $region108: #{tpu_custom_call.1} parent=1 // pred_region
      %7808 = dma.done [#allocation9], 64
    $region109: #{tpu_custom_call.1} parent=1 // pred_fallthru
      _
    %7809 = vsyncpa [#allocation8], 1
    %7810 = vsyncpa [#allocation11], 1
    %7811 = vsyncpa [#allocation9], 1

</llo_original>
